<compile_context>
chip_gen: v6e
topology: v6e:2x2x1
jax: 0.10.0
libtpu: 0.0.40
codegen_flags: <defaults>
</compile_context>

<pallas_src>
import jax
import jax.numpy as jnp
import numpy as np
from jax.experimental import pallas as pl
from jax.experimental.pallas import tpu as pltpu

N = 2                 # batch
H = W = 14
HW = H * W            # 196
C = 768               # cin, hardwired by the module's .view(-1, 768, 14, 14)
FEAT = C              # dset.feat_dim (fg_feats fed to fc has dim C)
E = 24                # args.emb_dim (divisible by reduction_ratio=12)
RED = E // 12         # SEBlock bottleneck
BN_EPS = 1e-5


# ------------------------------------------------------------------------------------
# Fused kernel (single step, everything resident in VMEM):
#   per batch element (static unroll, N=2):
#     1x1 conv (activation_head) + BN2d(eval) + sigmoid -> cam
#     attention pooling   fg[c] = sum_s (sum_e cam[s,e]) * x[s,c] / (HW*E)   [MXU]
#   batched over N:
#     AGV.fc head, SEBlock (fc + excitation) on X_c, fuse, L2-normalize.
# ------------------------------------------------------------------------------------
def agv_kernel(x_ref, xc_ref,
               wconv_ref, bns_ref, bnt_ref,
               w1_ref, b1_ref, s1_ref, t1_ref, w2_ref, b2_ref,
               w3_ref, b3_ref, s3_ref, t3_ref, w4_ref, b4_ref,
               we1_ref, be1_ref, we2_ref, be2_ref,
               out_ref):
    wconv = wconv_ref[...]                         # (C, E) bf16
    bns = bns_ref[...]                             # (1, E) f32
    bnt = bnt_ref[...]                             # (1, E) f32

    # --- activation_head + bn_head + sigmoid + attention pooling, per batch ---------
    # Static unroll keeps every contraction a plain 2-D MXU matmul (no 3-D dot_general
    # and no mid-kernel reshape across the padded sublane boundary).
    fg_rows = []
    for n in range(N):
        xb = x_ref[n]                                                      # (HW, C) bf16
        a = jnp.dot(xb, wconv, preferred_element_type=jnp.float32)         # (HW, E) f32
        cam = jax.nn.sigmoid(a * bns + bnt)                                # (HW, E) f32
        # sum over E commutes past the sigmoid output, so
        #   fg[c] = sum_s (sum_e cam[s,e]) * x[s,c] / (HW*E)
        wsum = jnp.sum(cam, axis=1, keepdims=True)                         # (HW, 1) f32
        # MXU contraction (1,HW)x(HW,C) — replaces the VPU multiply + sublane reduce.
        fg_n = jax.lax.dot_general(
            wsum.astype(jnp.bfloat16), xb,
            dimension_numbers=(((0,), (0,)), ((), ())),
            preferred_element_type=jnp.float32)                            # (1, C) f32
        fg_rows.append(fg_n * (1.0 / (HW * E)))
    fg = jnp.concatenate(fg_rows, axis=0)                                  # (N, C) f32

    # --- AGV.fc : Linear -> BN1d(eval, folded) -> ReLU -> Dropout(id) -> Linear -----
    # NOTE: activations cast to bf16 for the bf16-weight MXU path; f32 accumulation.
    h = jnp.dot(fg.astype(jnp.bfloat16), w1_ref[...],
                preferred_element_type=jnp.float32) + b1_ref[...]          # (N, 2C)
    h = jnp.maximum(h * s1_ref[...] + t1_ref[...], 0.0)
    fg_feats = jnp.dot(h.astype(jnp.bfloat16), w2_ref[...],
                       preferred_element_type=jnp.float32) + b2_ref[...]   # (N, E)

    # --- SEBlock.fc on X_c -----------------------------------------------------------
    xc = xc_ref[...]                                                       # (N, FEAT)
    g = jnp.dot(xc.astype(jnp.bfloat16), w3_ref[...],
                preferred_element_type=jnp.float32) + b3_ref[...]
    g = jnp.maximum(g * s3_ref[...] + t3_ref[...], 0.0)
    g = jnp.dot(g.astype(jnp.bfloat16), w4_ref[...],
                preferred_element_type=jnp.float32) + b4_ref[...]          # (N, E)

    # --- SEBlock.excitation : Linear -> ReLU -> Linear -> Sigmoid (tiny) --------------
    e = jnp.maximum(
        jnp.dot(g, we1_ref[...], preferred_element_type=jnp.float32) + be1_ref[...],
        0.0)                                                               # (N, RED)
    ch = jax.nn.sigmoid(
        jnp.dot(e, we2_ref[...], preferred_element_type=jnp.float32) + be2_ref[...])

    # --- F.normalize(ch * fg_feats + fg_feats, dim=-1)  (rsqrt -> EUP slot) ----------
    y = ch * fg_feats + fg_feats
    ss = jnp.sum(y * y, axis=-1, keepdims=True)
    out_ref[...] = y * jax.lax.rsqrt(jnp.maximum(ss, 1e-24))


def agv_forward(x, xc, p):
    # x only feeds MXU contractions -> stream it in bf16 (halves its HBM traffic).
    args = (x.astype(jnp.bfloat16), xc,
            p["w_conv"], p["bn_scale"], p["bn_shift"],
            p["w1"], p["b1"], p["s1"], p["t1"], p["w2"], p["b2"],
            p["w3"], p["b3"], p["s3"], p["t3"], p["w4"], p["b4"],
            p["we1"], p["be1"], p["we2"], p["be2"])

    # Single-step kernel: every operand is one whole-array, single-buffered VMEM block.
    vmem = lambda: pl.BlockSpec(memory_space=pltpu.MemorySpace.VMEM)

    flops = int(2 * N * (HW * C * E                        # 1x1 conv
                         + HW * C                          # attention pooling matvec
                         + FEAT * 2 * FEAT + 2 * FEAT * E  # AGV.fc
                         + FEAT * 2 * FEAT + 2 * FEAT * E  # SEBlock.fc
                         + E * RED + RED * E))             # excitation
    transcendentals = int(N * (HW * E + E + 1))            # sigmoids + rsqrt
    bytes_accessed = int(sum(int(np.prod(a.shape)) * a.dtype.itemsize for a in args)
                         + N * E * 4)

    return pl.pallas_call(
        agv_kernel,
        out_shape=jax.ShapeDtypeStruct((N, E), jnp.float32),
        in_specs=[vmem() for _ in args],
        out_specs=vmem(),
        cost_estimate=pl.CostEstimate(flops=flops,
                                      transcendentals=transcendentals,
                                      bytes_accessed=bytes_accessed),
    )(*args)


# ------------------------------------------------------------------------------------
# Deterministic parameter init (synthetic; shapes from the module __init__).
# Linear weights stored as (in, out) (transposed vs. torch); conv weight pre-transposed
# to (C, E) and stored bf16; BN folded to scale/shift; the big (768x1536)/(1536x24)
# weights are stored bf16 (streamed bf16, accumulated f32 on the MXU).
# ------------------------------------------------------------------------------------
def _fold_bn(kg, kb, km, kv, dim):
    gamma = 1.0 + 0.1 * jax.random.normal(kg, (dim,), jnp.float32)
    beta = 0.1 * jax.random.normal(kb, (dim,), jnp.float32)
    mean = 0.1 * jax.random.normal(km, (dim,), jnp.float32)
    var = jax.random.uniform(kv, (dim,), jnp.float32, minval=0.5, maxval=1.5)
    scale = gamma / jnp.sqrt(var + BN_EPS)
    shift = beta - mean * scale
    return scale[None, :], shift[None, :]


def init_params(key):
    ks = jax.random.split(key, 32)
    nrm = lambda k, shape, s=0.05: s * jax.random.normal(k, shape, jnp.float32)
    bf = lambda a: a.astype(jnp.bfloat16)
    p = {}
    # activation_head: Conv2d(C, E, 1, bias=False) -> torch weight (E, C); stored (C, E) bf16.
    p["w_conv"] = bf(nrm(ks[0], (C, E)))
    # bn_head: BatchNorm2d(E), eval-mode running stats, folded
    p["bn_scale"], p["bn_shift"] = _fold_bn(ks[1], ks[2], ks[3], ks[4], E)
    # AGV.fc
    p["w1"], p["b1"] = bf(nrm(ks[5], (FEAT, 2 * FEAT))), nrm(ks[6], (1, 2 * FEAT))
    p["s1"], p["t1"] = _fold_bn(ks[7], ks[8], ks[9], ks[10], 2 * FEAT)
    p["w2"], p["b2"] = bf(nrm(ks[11], (2 * FEAT, E))), nrm(ks[12], (1, E))
    # SEBlock.fc
    p["w3"], p["b3"] = bf(nrm(ks[13], (FEAT, 2 * FEAT))), nrm(ks[14], (1, 2 * FEAT))
    p["s3"], p["t3"] = _fold_bn(ks[15], ks[16], ks[17], ks[18], 2 * FEAT)
    p["w4"], p["b4"] = bf(nrm(ks[19], (2 * FEAT, E))), nrm(ks[20], (1, E))
    # SEBlock.excitation
    p["we1"], p["be1"] = nrm(ks[21], (E, RED)), nrm(ks[22], (1, RED))
    p["we2"], p["be2"] = nrm(ks[23], (RED, E)), nrm(ks[24], (1, E))
    return p


# Pure-JAX reference: same eval-mode semantics, same bf16 storage precision for x and
# the bf16-stored weights (upcast to f32); intermediate activations kept in f32.
def reference(x, xc, p):
    f32 = lambda a: a.astype(jnp.float32)
    xr = f32(x.astype(jnp.bfloat16))                                   # mirror bf16 streaming
    a = jnp.einsum("nsc,ce->nse", xr, f32(p["w_conv"]))
    cam = jax.nn.sigmoid(a * p["bn_scale"] + p["bn_shift"])            # (N, HW, E)
    fg = jnp.einsum("nse,nsc->nc", cam, xr) / float(HW * E)            # (N, C)
    h = jnp.maximum((fg @ f32(p["w1"]) + p["b1"]) * p["s1"] + p["t1"], 0.0)
    fg_feats = h @ f32(p["w2"]) + p["b2"]
    g = jnp.maximum((xc @ f32(p["w3"]) + p["b3"]) * p["s3"] + p["t3"], 0.0)
    g = g @ f32(p["w4"]) + p["b4"]
    e = jnp.maximum(g @ p["we1"] + p["be1"], 0.0)
    ch = jax.nn.sigmoid(e @ p["we2"] + p["be2"])
    y = ch * fg_feats + fg_feats
    return y / jnp.maximum(jnp.linalg.norm(y, axis=-1, keepdims=True), 1e-12)


if __name__ == "__main__":
    key = jax.random.PRNGKey(0)
    kx, kc, kp = jax.random.split(key, 3)
    x = jax.random.normal(kx, (N, HW, C), jnp.float32)        # (2, 196, 768)
    x_c = jax.random.normal(kc, (N, FEAT), jnp.float32)       # (2, 768)
    params = init_params(kp)

    out = jax.block_until_ready(agv_forward(x, x_c, params))
    ref = jax.block_until_ready(reference(x, x_c, params))
    np.testing.assert_allclose(np.asarray(out), np.asarray(ref), rtol=2e-2, atol=2e-2)
    assert out.shape == (N, E)
    print("KERNEL_OK")
</pallas_src>

<mosaic_0001>
module attributes {stable_mosaic.version = 11 : i64} {
  func.func @agv_kernel(%arg0: memref<2x196x768xbf16, #tpu.memory_space<vmem>>, %arg1: memref<2x768xf32, #tpu.memory_space<vmem>>, %arg2: memref<768x24xbf16, #tpu.memory_space<vmem>>, %arg3: memref<1x24xf32, #tpu.memory_space<vmem>>, %arg4: memref<1x24xf32, #tpu.memory_space<vmem>>, %arg5: memref<768x1536xbf16, #tpu.memory_space<vmem>>, %arg6: memref<1x1536xf32, #tpu.memory_space<vmem>>, %arg7: memref<1x1536xf32, #tpu.memory_space<vmem>>, %arg8: memref<1x1536xf32, #tpu.memory_space<vmem>>, %arg9: memref<1536x24xbf16, #tpu.memory_space<vmem>>, %arg10: memref<1x24xf32, #tpu.memory_space<vmem>>, %arg11: memref<768x1536xbf16, #tpu.memory_space<vmem>>, %arg12: memref<1x1536xf32, #tpu.memory_space<vmem>>, %arg13: memref<1x1536xf32, #tpu.memory_space<vmem>>, %arg14: memref<1x1536xf32, #tpu.memory_space<vmem>>, %arg15: memref<1536x24xbf16, #tpu.memory_space<vmem>>, %arg16: memref<1x24xf32, #tpu.memory_space<vmem>>, %arg17: memref<24x2xf32, #tpu.memory_space<vmem>>, %arg18: memref<1x2xf32, #tpu.memory_space<vmem>>, %arg19: memref<2x24xf32, #tpu.memory_space<vmem>>, %arg20: memref<1x24xf32, #tpu.memory_space<vmem>>, %arg21: memref<2x24xf32, #tpu.memory_space<vmem>>) attributes {dimension_semantics = [], scalar_prefetch = 0 : i64, scratch_operands = 0 : i64, tpu.core_type = #tpu.core_type<tc>} {
    %c0 = arith.constant 0 : index
    %c0_0 = arith.constant 0 : index
    %0 = vector.load %arg2[%c0, %c0_0] : memref<768x24xbf16, #tpu.memory_space<vmem>>, vector<768x24xbf16>
    %c0_1 = arith.constant 0 : index
    %c0_2 = arith.constant 0 : index
    %1 = vector.load %arg3[%c0_1, %c0_2] : memref<1x24xf32, #tpu.memory_space<vmem>>, vector<1x24xf32>
    %c0_3 = arith.constant 0 : index
    %c0_4 = arith.constant 0 : index
    %2 = vector.load %arg4[%c0_3, %c0_4] : memref<1x24xf32, #tpu.memory_space<vmem>>, vector<1x24xf32>
    %c0_5 = arith.constant 0 : index
    %c0_6 = arith.constant 0 : index
    %c0_7 = arith.constant 0 : index
    %3 = vector.load %arg0[%c0_5, %c0_6, %c0_7] : memref<2x196x768xbf16, #tpu.memory_space<vmem>>, vector<1x196x768xbf16>
    %4 = vector.shape_cast %3 : vector<1x196x768xbf16> to vector<196x768xbf16>
    %cst = arith.constant dense<0.000000e+00> : vector<196x24xf32>
    %5 = tpu.matmul %4, %0, %cst {dimension_numbers = #tpu.dot_dimension_numbers<[1], [0], [0], [1], [0, 0, 1, 1], [], []>} : vector<196x768xbf16>, vector<768x24xbf16>, vector<196x24xf32> -> vector<196x24xf32>
    %6 = vector.broadcast %1 : vector<1x24xf32> to vector<196x24xf32>
    %7 = arith.mulf %5, %6 : vector<196x24xf32>
    %8 = vector.broadcast %2 : vector<1x24xf32> to vector<196x24xf32>
    %9 = arith.addf %7, %8 : vector<196x24xf32>
    %10 = arith.negf %9 : vector<196x24xf32>
    %11 = math.exp %10 : vector<196x24xf32>
    %cst_8 = arith.constant 1.000000e+00 : f32
    %12 = vector.broadcast %cst_8 : f32 to vector<196x24xf32>
    %13 = arith.addf %12, %11 : vector<196x24xf32>
    %14 = arith.divf %12, %13 : vector<196x24xf32>
    %cst_9 = arith.constant dense<0.000000e+00> : vector<196xf32>
    %15 = vector.multi_reduction <add>, %14, %cst_9 [1] : vector<196x24xf32> to vector<196xf32>
    %16 = vector.shape_cast %15 : vector<196xf32> to vector<196x1xf32>
    %17 = arith.truncf %16 : vector<196x1xf32> to vector<196x1xbf16>
    %cst_10 = arith.constant dense<0.000000e+00> : vector<1x768xf32>
    %18 = tpu.matmul %17, %4, %cst_10 {dimension_numbers = #tpu.dot_dimension_numbers<[0], [0], [1], [1], [0, 1, 1, 1], [], []>} : vector<196x1xbf16>, vector<196x768xbf16>, vector<1x768xf32> -> vector<1x768xf32>
    %cst_11 = arith.constant 2.1258503E-4 : f32
    %19 = vector.broadcast %cst_11 : f32 to vector<1x768xf32>
    %20 = arith.mulf %18, %19 : vector<1x768xf32>
    %c1 = arith.constant 1 : index
    %c0_12 = arith.constant 0 : index
    %c0_13 = arith.constant 0 : index
    %21 = vector.load %arg0[%c1, %c0_12, %c0_13] : memref<2x196x768xbf16, #tpu.memory_space<vmem>>, vector<1x196x768xbf16>
    %22 = vector.shape_cast %21 : vector<1x196x768xbf16> to vector<196x768xbf16>
    %cst_14 = arith.constant dense<0.000000e+00> : vector<196x24xf32>
    %23 = tpu.matmul %22, %0, %cst_14 {dimension_numbers = #tpu.dot_dimension_numbers<[1], [0], [0], [1], [0, 0, 1, 1], [], []>} : vector<196x768xbf16>, vector<768x24xbf16>, vector<196x24xf32> -> vector<196x24xf32>
    %24 = vector.broadcast %1 : vector<1x24xf32> to vector<196x24xf32>
    %25 = arith.mulf %23, %24 : vector<196x24xf32>
    %26 = vector.broadcast %2 : vector<1x24xf32> to vector<196x24xf32>
    %27 = arith.addf %25, %26 : vector<196x24xf32>
    %28 = arith.negf %27 : vector<196x24xf32>
    %29 = math.exp %28 : vector<196x24xf32>
    %cst_15 = arith.constant 1.000000e+00 : f32
    %30 = vector.broadcast %cst_15 : f32 to vector<196x24xf32>
    %31 = arith.addf %30, %29 : vector<196x24xf32>
    %32 = arith.divf %30, %31 : vector<196x24xf32>
    %cst_16 = arith.constant dense<0.000000e+00> : vector<196xf32>
    %33 = vector.multi_reduction <add>, %32, %cst_16 [1] : vector<196x24xf32> to vector<196xf32>
    %34 = vector.shape_cast %33 : vector<196xf32> to vector<196x1xf32>
    %35 = arith.truncf %34 : vector<196x1xf32> to vector<196x1xbf16>
    %cst_17 = arith.constant dense<0.000000e+00> : vector<1x768xf32>
    %36 = tpu.matmul %35, %22, %cst_17 {dimension_numbers = #tpu.dot_dimension_numbers<[0], [0], [1], [1], [0, 1, 1, 1], [], []>} : vector<196x1xbf16>, vector<196x768xbf16>, vector<1x768xf32> -> vector<1x768xf32>
    %cst_18 = arith.constant 2.1258503E-4 : f32
    %37 = vector.broadcast %cst_18 : f32 to vector<1x768xf32>
    %38 = arith.mulf %36, %37 : vector<1x768xf32>
    %39 = tpu.concatenate %20, %38 in 0 : vector<1x768xf32>, vector<1x768xf32> -> vector<2x768xf32>
    %40 = arith.truncf %39 : vector<2x768xf32> to vector<2x768xbf16>
    %c0_19 = arith.constant 0 : index
    %c0_20 = arith.constant 0 : index
    %41 = vector.load %arg5[%c0_19, %c0_20] : memref<768x1536xbf16, #tpu.memory_space<vmem>>, vector<768x1536xbf16>
    %cst_21 = arith.constant dense<0.000000e+00> : vector<2x1536xf32>
    %42 = tpu.matmul %40, %41, %cst_21 {dimension_numbers = #tpu.dot_dimension_numbers<[1], [0], [0], [1], [0, 0, 1, 1], [], []>} : vector<2x768xbf16>, vector<768x1536xbf16>, vector<2x1536xf32> -> vector<2x1536xf32>
    %c0_22 = arith.constant 0 : index
    %c0_23 = arith.constant 0 : index
    %43 = vector.load %arg6[%c0_22, %c0_23] : memref<1x1536xf32, #tpu.memory_space<vmem>>, vector<1x1536xf32>
    %44 = vector.broadcast %43 : vector<1x1536xf32> to vector<2x1536xf32>
    %45 = arith.addf %42, %44 : vector<2x1536xf32>
    %c0_24 = arith.constant 0 : index
    %c0_25 = arith.constant 0 : index
    %46 = vector.load %arg7[%c0_24, %c0_25] : memref<1x1536xf32, #tpu.memory_space<vmem>>, vector<1x1536xf32>
    %47 = vector.broadcast %46 : vector<1x1536xf32> to vector<2x1536xf32>
    %48 = arith.mulf %45, %47 : vector<2x1536xf32>
    %c0_26 = arith.constant 0 : index
    %c0_27 = arith.constant 0 : index
    %49 = vector.load %arg8[%c0_26, %c0_27] : memref<1x1536xf32, #tpu.memory_space<vmem>>, vector<1x1536xf32>
    %50 = vector.broadcast %49 : vector<1x1536xf32> to vector<2x1536xf32>
    %51 = arith.addf %48, %50 : vector<2x1536xf32>
    %cst_28 = arith.constant 0.000000e+00 : f32
    %52 = vector.broadcast %cst_28 : f32 to vector<2x1536xf32>
    %53 = arith.maximumf %51, %52 : vector<2x1536xf32>
    %54 = arith.truncf %53 : vector<2x1536xf32> to vector<2x1536xbf16>
    %c0_29 = arith.constant 0 : index
    %c0_30 = arith.constant 0 : index
    %55 = vector.load %arg9[%c0_29, %c0_30] : memref<1536x24xbf16, #tpu.memory_space<vmem>>, vector<1536x24xbf16>
    %cst_31 = arith.constant dense<0.000000e+00> : vector<2x24xf32>
    %56 = tpu.matmul %54, %55, %cst_31 {dimension_numbers = #tpu.dot_dimension_numbers<[1], [0], [0], [1], [0, 0, 1, 1], [], []>} : vector<2x1536xbf16>, vector<1536x24xbf16>, vector<2x24xf32> -> vector<2x24xf32>
    %c0_32 = arith.constant 0 : index
    %c0_33 = arith.constant 0 : index
    %57 = vector.load %arg10[%c0_32, %c0_33] : memref<1x24xf32, #tpu.memory_space<vmem>>, vector<1x24xf32>
    %58 = vector.broadcast %57 : vector<1x24xf32> to vector<2x24xf32>
    %59 = arith.addf %56, %58 : vector<2x24xf32>
    %c0_34 = arith.constant 0 : index
    %c0_35 = arith.constant 0 : index
    %60 = vector.load %arg1[%c0_34, %c0_35] : memref<2x768xf32, #tpu.memory_space<vmem>>, vector<2x768xf32>
    %61 = arith.truncf %60 : vector<2x768xf32> to vector<2x768xbf16>
    %c0_36 = arith.constant 0 : index
    %c0_37 = arith.constant 0 : index
    %62 = vector.load %arg11[%c0_36, %c0_37] : memref<768x1536xbf16, #tpu.memory_space<vmem>>, vector<768x1536xbf16>
    %cst_38 = arith.constant dense<0.000000e+00> : vector<2x1536xf32>
    %63 = tpu.matmul %61, %62, %cst_38 {dimension_numbers = #tpu.dot_dimension_numbers<[1], [0], [0], [1], [0, 0, 1, 1], [], []>} : vector<2x768xbf16>, vector<768x1536xbf16>, vector<2x1536xf32> -> vector<2x1536xf32>
    %c0_39 = arith.constant 0 : index
    %c0_40 = arith.constant 0 : index
    %64 = vector.load %arg12[%c0_39, %c0_40] : memref<1x1536xf32, #tpu.memory_space<vmem>>, vector<1x1536xf32>
    %65 = vector.broadcast %64 : vector<1x1536xf32> to vector<2x1536xf32>
    %66 = arith.addf %63, %65 : vector<2x1536xf32>
    %c0_41 = arith.constant 0 : index
    %c0_42 = arith.constant 0 : index
    %67 = vector.load %arg13[%c0_41, %c0_42] : memref<1x1536xf32, #tpu.memory_space<vmem>>, vector<1x1536xf32>
    %68 = vector.broadcast %67 : vector<1x1536xf32> to vector<2x1536xf32>
    %69 = arith.mulf %66, %68 : vector<2x1536xf32>
    %c0_43 = arith.constant 0 : index
    %c0_44 = arith.constant 0 : index
    %70 = vector.load %arg14[%c0_43, %c0_44] : memref<1x1536xf32, #tpu.memory_space<vmem>>, vector<1x1536xf32>
    %71 = vector.broadcast %70 : vector<1x1536xf32> to vector<2x1536xf32>
    %72 = arith.addf %69, %71 : vector<2x1536xf32>
    %cst_45 = arith.constant 0.000000e+00 : f32
    %73 = vector.broadcast %cst_45 : f32 to vector<2x1536xf32>
    %74 = arith.maximumf %72, %73 : vector<2x1536xf32>
    %75 = arith.truncf %74 : vector<2x1536xf32> to vector<2x1536xbf16>
    %c0_46 = arith.constant 0 : index
    %c0_47 = arith.constant 0 : index
    %76 = vector.load %arg15[%c0_46, %c0_47] : memref<1536x24xbf16, #tpu.memory_space<vmem>>, vector<1536x24xbf16>
    %cst_48 = arith.constant dense<0.000000e+00> : vector<2x24xf32>
    %77 = tpu.matmul %75, %76, %cst_48 {dimension_numbers = #tpu.dot_dimension_numbers<[1], [0], [0], [1], [0, 0, 1, 1], [], []>} : vector<2x1536xbf16>, vector<1536x24xbf16>, vector<2x24xf32> -> vector<2x24xf32>
    %c0_49 = arith.constant 0 : index
    %c0_50 = arith.constant 0 : index
    %78 = vector.load %arg16[%c0_49, %c0_50] : memref<1x24xf32, #tpu.memory_space<vmem>>, vector<1x24xf32>
    %79 = vector.broadcast %78 : vector<1x24xf32> to vector<2x24xf32>
    %80 = arith.addf %77, %79 : vector<2x24xf32>
    %c0_51 = arith.constant 0 : index
    %c0_52 = arith.constant 0 : index
    %81 = vector.load %arg17[%c0_51, %c0_52] : memref<24x2xf32, #tpu.memory_space<vmem>>, vector<24x2xf32>
    %cst_53 = arith.constant dense<0.000000e+00> : vector<2x2xf32>
    %82 = tpu.matmul %80, %81, %cst_53 {dimension_numbers = #tpu.dot_dimension_numbers<[1], [0], [0], [1], [0, 0, 1, 1], [], []>} : vector<2x24xf32>, vector<24x2xf32>, vector<2x2xf32> -> vector<2x2xf32>
    %c0_54 = arith.constant 0 : index
    %c0_55 = arith.constant 0 : index
    %83 = vector.load %arg18[%c0_54, %c0_55] : memref<1x2xf32, #tpu.memory_space<vmem>>, vector<1x2xf32>
    %84 = vector.broadcast %83 : vector<1x2xf32> to vector<2x2xf32>
    %85 = arith.addf %82, %84 : vector<2x2xf32>
    %cst_56 = arith.constant 0.000000e+00 : f32
    %86 = vector.broadcast %cst_56 : f32 to vector<2x2xf32>
    %87 = arith.maximumf %85, %86 : vector<2x2xf32>
    %c0_57 = arith.constant 0 : index
    %c0_58 = arith.constant 0 : index
    %88 = vector.load %arg19[%c0_57, %c0_58] : memref<2x24xf32, #tpu.memory_space<vmem>>, vector<2x24xf32>
    %cst_59 = arith.constant dense<0.000000e+00> : vector<2x24xf32>
    %89 = tpu.matmul %87, %88, %cst_59 {dimension_numbers = #tpu.dot_dimension_numbers<[1], [0], [0], [1], [0, 0, 1, 1], [], []>} : vector<2x2xf32>, vector<2x24xf32>, vector<2x24xf32> -> vector<2x24xf32>
    %c0_60 = arith.constant 0 : index
    %c0_61 = arith.constant 0 : index
    %90 = vector.load %arg20[%c0_60, %c0_61] : memref<1x24xf32, #tpu.memory_space<vmem>>, vector<1x24xf32>
    %91 = vector.broadcast %90 : vector<1x24xf32> to vector<2x24xf32>
    %92 = arith.addf %89, %91 : vector<2x24xf32>
    %93 = arith.negf %92 : vector<2x24xf32>
    %94 = math.exp %93 : vector<2x24xf32>
    %cst_62 = arith.constant 1.000000e+00 : f32
    %95 = vector.broadcast %cst_62 : f32 to vector<2x24xf32>
    %96 = arith.addf %95, %94 : vector<2x24xf32>
    %97 = arith.divf %95, %96 : vector<2x24xf32>
    %98 = arith.mulf %97, %59 : vector<2x24xf32>
    %99 = arith.addf %98, %59 : vector<2x24xf32>
    %100 = arith.mulf %99, %99 : vector<2x24xf32>
    %cst_63 = arith.constant dense<0.000000e+00> : vector<2xf32>
    %101 = vector.multi_reduction <add>, %100, %cst_63 [1] : vector<2x24xf32> to vector<2xf32>
    %102 = vector.shape_cast %101 : vector<2xf32> to vector<2x1xf32>
    %cst_64 = arith.constant 1.000000e-24 : f32
    %103 = vector.broadcast %cst_64 : f32 to vector<2x1xf32>
    %104 = arith.maximumf %102, %103 : vector<2x1xf32>
    %105 = math.rsqrt %104 : vector<2x1xf32>
    %106 = vector.broadcast %105 : vector<2x1xf32> to vector<2x24xf32>
    %107 = arith.mulf %99, %106 : vector<2x24xf32>
    %c0_65 = arith.constant 0 : index
    %c0_66 = arith.constant 0 : index
    %108 = vector.load %arg21[%c0_65, %c0_66] : memref<2x24xf32, #tpu.memory_space<vmem>>, vector<2x24xf32>
    tpu.vector_store %arg21[%c0_65, %c0_66], %107 {strides = array<i32>} : memref<2x24xf32, #tpu.memory_space<vmem>>, vector<2x24xf32>,
    return
  }
}

</mosaic_0001>

<llo_original>
// kernel: tpu_custom_call.1
$region0: #{tpu_custom_call.1}
  #allocation0 [shape = 'u32[]', space=smem, size = 0x4, offset = 0x4, fixed_abs, tag = 'smem constant byte address 0x4 - core index']
  #allocation1 [shape = 'u32[144,128]{1,0:T(1,128)}', space=vmem, size = 0x12000, scoped, tag = 'internal scratch']
  %s0 = inlined_call_operand.vmem [shape: bf16[2,196,768], index: 0, kind: input, shape index: {}]
  %s1 = inlined_call_operand.vmem [shape: f32[2,768], index: 1, kind: input, shape index: {}]
  %s2 = inlined_call_operand.vmem [shape: bf16[768,24], index: 2, kind: input, shape index: {}]
  %s3 = inlined_call_operand.vmem [shape: f32[1,24], index: 3, kind: input, shape index: {}]
  %s4 = inlined_call_operand.vmem [shape: f32[1,24], index: 4, kind: input, shape index: {}]
  %s5 = inlined_call_operand.vmem [shape: bf16[768,1536], index: 5, kind: input, shape index: {}]
  %s6 = inlined_call_operand.vmem [shape: f32[1,1536], index: 6, kind: input, shape index: {}]
  %s7 = inlined_call_operand.vmem [shape: f32[1,1536], index: 7, kind: input, shape index: {}]
  %s8 = inlined_call_operand.vmem [shape: f32[1,1536], index: 8, kind: input, shape index: {}]
  %s9 = inlined_call_operand.vmem [shape: bf16[1536,24], index: 9, kind: input, shape index: {}]
  %s10 = inlined_call_operand.vmem [shape: f32[1,24], index: 10, kind: input, shape index: {}]
  %s11 = inlined_call_operand.hbm [shape: bf16[768,1536], index: 11, kind: input, shape index: {}]
  %s12 = inlined_call_operand.vmem [shape: f32[1,1536], index: 12, kind: input, shape index: {}]
  %s13 = inlined_call_operand.vmem [shape: f32[1,1536], index: 13, kind: input, shape index: {}]
  %s14 = inlined_call_operand.vmem [shape: f32[1,1536], index: 14, kind: input, shape index: {}]
  %s15 = inlined_call_operand.vmem [shape: bf16[1536,24], index: 15, kind: input, shape index: {}]
  %s16 = inlined_call_operand.vmem [shape: f32[1,24], index: 16, kind: input, shape index: {}]
  %s17 = inlined_call_operand.vmem [shape: f32[24,2], index: 17, kind: input, shape index: {}]
  %s18 = inlined_call_operand.vmem [shape: f32[1,2], index: 18, kind: input, shape index: {}]
  %s19 = inlined_call_operand.vmem [shape: f32[2,24], index: 19, kind: input, shape index: {}]
  %s20 = inlined_call_operand.vmem [shape: f32[1,24], index: 20, kind: input, shape index: {}]
  %s21 = inlined_call_operand.hbm [shape: f32[2,24], index: 21, kind: output, shape index: {}]
  %s22 = sld [smem:[#allocation0]]
  $region98: #{tpu_custom_call.1} parent=0
    _
  %s24 = ssub.s32 1, %s22
  %s25 = scalar_select 0, %s24, %s22
  $region1: #{tpu_custom_call.1} parent=0
    #allocation2 [shape = 'u8[2359296]{0}', space=vmem, size = 0x240000, scoped, tag = 'input window, operand 11, single buffered']
    #allocation3 [shape = 's32[1]{0}', space=sflag, size = 0x4, scoped, tag = 'scoped memory for tpu_custom_call.1']
    #allocation4 [shape = 's32[1]{0}', space=sflag, size = 0x4, scoped, tag = 'scoped memory for tpu_custom_call.1']
    #allocation5 [shape = 'u8[1024]{0}', space=vmem, size = 0x400, scoped, tag = 'output window, operand 0, single buffered']
    %26 = vsyncpa [#allocation3], 0
    %27 = vsyncpa [#allocation4], 0
    // Predicated region
    $region2: #{tpu_custom_call.1} parent=1 // pred_check
      _
    $region3: #{tpu_custom_call.1} parent=1 // pred_check_branch
      %29 = sbr.rel (0) target = $region5
    $region4: #{tpu_custom_call.1} parent=1 // pred_region
      _
    $region5: #{tpu_custom_call.1} parent=1 // pred_fallthru
      _
    // Predicated region
    $region6: #{tpu_custom_call.1} parent=1 // pred_check
      _
    $region7: #{tpu_custom_call.1} parent=1 // pred_check_branch
      %31 = sbr.rel (0) target = $region9
    $region8: #{tpu_custom_call.1} parent=1 // pred_region
      _
    $region9: #{tpu_custom_call.1} parent=1 // pred_fallthru
      _
    // Predicated region
    $region10: #{tpu_custom_call.1} parent=1 // pred_check
      _
    $region11: #{tpu_custom_call.1} parent=1 // pred_check_branch
      %33 = sbr.rel (0) target = $region13
    $region12: #{tpu_custom_call.1} parent=1 // pred_region
      _
    $region13: #{tpu_custom_call.1} parent=1 // pred_fallthru
      _
    // Predicated region
    $region14: #{tpu_custom_call.1} parent=1 // pred_check
      _
    $region15: #{tpu_custom_call.1} parent=1 // pred_check_branch
      %35 = sbr.rel (0) target = $region17
    $region16: #{tpu_custom_call.1} parent=1 // pred_region
      _
    $region17: #{tpu_custom_call.1} parent=1 // pred_fallthru
      _
    // Predicated region
    $region18: #{tpu_custom_call.1} parent=1 // pred_check
      _
    $region19: #{tpu_custom_call.1} parent=1 // pred_check_branch
      %37 = sbr.rel (0) target = $region21
    $region20: #{tpu_custom_call.1} parent=1 // pred_region
      _
    $region21: #{tpu_custom_call.1} parent=1 // pred_fallthru
      _
    // Predicated region
    $region22: #{tpu_custom_call.1} parent=1 // pred_check
      _
    $region23: #{tpu_custom_call.1} parent=1 // pred_check_branch
      %39 = sbr.rel (0) target = $region25
    $region24: #{tpu_custom_call.1} parent=1 // pred_region
      _
    $region25: #{tpu_custom_call.1} parent=1 // pred_fallthru
      _
    // Predicated region
    $region26: #{tpu_custom_call.1} parent=1 // pred_check
      _
    $region27: #{tpu_custom_call.1} parent=1 // pred_check_branch
      %41 = sbr.rel (0) target = $region29
    $region28: #{tpu_custom_call.1} parent=1 // pred_region
      _
    $region29: #{tpu_custom_call.1} parent=1 // pred_fallthru
      _
    // Predicated region
    $region30: #{tpu_custom_call.1} parent=1 // pred_check
      _
    $region31: #{tpu_custom_call.1} parent=1 // pred_check_branch
      %43 = sbr.rel (0) target = $region33
    $region32: #{tpu_custom_call.1} parent=1 // pred_region
      _
    $region33: #{tpu_custom_call.1} parent=1 // pred_fallthru
      _
    // Predicated region
    $region34: #{tpu_custom_call.1} parent=1 // pred_check
      _
    $region35: #{tpu_custom_call.1} parent=1 // pred_check_branch
      %45 = sbr.rel (0) target = $region37
    $region36: #{tpu_custom_call.1} parent=1 // pred_region
      _
    $region37: #{tpu_custom_call.1} parent=1 // pred_fallthru
      _
    // Predicated region
    $region38: #{tpu_custom_call.1} parent=1 // pred_check
      _
    $region39: #{tpu_custom_call.1} parent=1 // pred_check_branch
      %47 = sbr.rel (0) target = $region41
    $region40: #{tpu_custom_call.1} parent=1 // pred_region
      _
    $region41: #{tpu_custom_call.1} parent=1 // pred_fallthru
      _
    // Predicated region
    $region42: #{tpu_custom_call.1} parent=1 // pred_check
      _
    $region43: #{tpu_custom_call.1} parent=1 // pred_check_branch
      %49 = sbr.rel (0) target = $region45
    $region44: #{tpu_custom_call.1} parent=1 // pred_region
      _
    $region45: #{tpu_custom_call.1} parent=1 // pred_fallthru
      _
    // Predicated region
    $region46: #{tpu_custom_call.1} parent=1 // pred_check
      _
    $region47: #{tpu_custom_call.1} parent=1 // pred_check_branch
      %51 = sbr.rel (0) target = $region49
    $region48: #{tpu_custom_call.1} parent=1 // pred_region
      %s53 = ssub.s32 73728, 73728
      %54 = vsyncadd [#allocation3], %s53
      %s55 = sshll.u32 [#allocation2], 4
      %s56 = int_to_ptr.vmem [resolvable:$true] %s55
      %61 = dma.hbm_to_vmem [thread:$0]  %s11, 73728, %s56, [#allocation3], 768, 768, 48
    $region49: #{tpu_custom_call.1} parent=1 // pred_fallthru
      _
    // Predicated region
    $region50: #{tpu_custom_call.1} parent=1 // pred_check
      _
    $region51: #{tpu_custom_call.1} parent=1 // pred_check_branch
      %63 = sbr.rel (0) target = $region53
    $region52: #{tpu_custom_call.1} parent=1 // pred_region
      _
    $region53: #{tpu_custom_call.1} parent=1 // pred_fallthru
      _
    // Predicated region
    $region54: #{tpu_custom_call.1} parent=1 // pred_check
      _
    $region55: #{tpu_custom_call.1} parent=1 // pred_check_branch
      %65 = sbr.rel (0) target = $region57
    $region56: #{tpu_custom_call.1} parent=1 // pred_region
      _
    $region57: #{tpu_custom_call.1} parent=1 // pred_fallthru
      _
    // Predicated region
    $region58: #{tpu_custom_call.1} parent=1 // pred_check
      _
    $region59: #{tpu_custom_call.1} parent=1 // pred_check_branch
      %67 = sbr.rel (0) target = $region61
    $region60: #{tpu_custom_call.1} parent=1 // pred_region
      _
    $region61: #{tpu_custom_call.1} parent=1 // pred_fallthru
      _
    // Predicated region
    $region62: #{tpu_custom_call.1} parent=1 // pred_check
      _
    $region63: #{tpu_custom_call.1} parent=1 // pred_check_branch
      %69 = sbr.rel (0) target = $region65
    $region64: #{tpu_custom_call.1} parent=1 // pred_region
      _
    $region65: #{tpu_custom_call.1} parent=1 // pred_fallthru
      _
    // Predicated region
    $region66: #{tpu_custom_call.1} parent=1 // pred_check
      _
    $region67: #{tpu_custom_call.1} parent=1 // pred_check_branch
      %71 = sbr.rel (0) target = $region69
    $region68: #{tpu_custom_call.1} parent=1 // pred_region
      _
    $region69: #{tpu_custom_call.1} parent=1 // pred_fallthru
      _
    // Predicated region
    $region70: #{tpu_custom_call.1} parent=1 // pred_check
      _
    $region71: #{tpu_custom_call.1} parent=1 // pred_check_branch
      %73 = sbr.rel (0) target = $region73
    $region72: #{tpu_custom_call.1} parent=1 // pred_region
      _
    $region73: #{tpu_custom_call.1} parent=1 // pred_fallthru
      _
    // Predicated region
    $region74: #{tpu_custom_call.1} parent=1 // pred_check
      _
    $region75: #{tpu_custom_call.1} parent=1 // pred_check_branch
      %75 = sbr.rel (0) target = $region77
    $region76: #{tpu_custom_call.1} parent=1 // pred_region
      _
    $region77: #{tpu_custom_call.1} parent=1 // pred_fallthru
      _
    // Predicated region
    $region78: #{tpu_custom_call.1} parent=1 // pred_check
      _
    $region79: #{tpu_custom_call.1} parent=1 // pred_check_branch
      %77 = sbr.rel (0) target = $region81
    $region80: #{tpu_custom_call.1} parent=1 // pred_region
      _
    $region81: #{tpu_custom_call.1} parent=1 // pred_fallthru
      _
    // Predicated region
    $region82: #{tpu_custom_call.1} parent=1 // pred_check
      _
    $region83: #{tpu_custom_call.1} parent=1 // pred_check_branch
      %79 = sbr.rel (0) target = $region85
    $region84: #{tpu_custom_call.1} parent=1 // pred_region
      _
    $region85: #{tpu_custom_call.1} parent=1 // pred_fallthru
      _
    // Predicated region
    $region86: #{tpu_custom_call.1} parent=1 // pred_check
      _
    $region87: #{tpu_custom_call.1} parent=1 // pred_check_branch
      %81 = sbr.rel (0) target = $region89
    $region88: #{tpu_custom_call.1} parent=1 // pred_region
      %82 = dma.done [#allocation3], 73728
    $region89: #{tpu_custom_call.1} parent=1 // pred_fallthru
      _
    %v84 = vld [vmem:[%s2] sm:$0xf]
    %v85 = vld [vmem:[%s2 + $0x4] sm:$0xf]
    %v86 = vld [vmem:[%s2 + $0x8] sm:$0xf]
    %v87 = vld [vmem:[%s2 + $0xc] sm:$0xf]
    %v88 = vld [vmem:[%s2 + $0x10] sm:$0xf]
    %v89 = vld [vmem:[%s2 + $0x14] sm:$0xf]
    %v90 = vld [vmem:[%s2 + $0x18] sm:$0xf]
    %v91 = vld [vmem:[%s2 + $0x1c] sm:$0xf]
    %v92 = vld [vmem:[%s2 + $0x20] sm:$0xf]
    %v93 = vld [vmem:[%s2 + $0x24] sm:$0xf]
    %v94 = vld [vmem:[%s2 + $0x28] sm:$0xf]
    %v95 = vld [vmem:[%s2 + $0x2c] sm:$0xf]
    %v96 = vld [vmem:[%s2 + $0x30] sm:$0xf]
    %v97 = vld [vmem:[%s2 + $0x34] sm:$0xf]
    %v98 = vld [vmem:[%s2 + $0x38] sm:$0xf]
    %v99 = vld [vmem:[%s2 + $0x3c] sm:$0xf]
    %v100 = vld [vmem:[%s2 + $0x40] sm:$0xf]
    %v101 = vld [vmem:[%s2 + $0x44] sm:$0xf]
    %v102 = vld [vmem:[%s2 + $0x48] sm:$0xf]
    %v103 = vld [vmem:[%s2 + $0x4c] sm:$0xf]
    %v104 = vld [vmem:[%s2 + $0x50] sm:$0xf]
    %v105 = vld [vmem:[%s2 + $0x54] sm:$0xf]
    %v106 = vld [vmem:[%s2 + $0x58] sm:$0xf]
    %v107 = vld [vmem:[%s2 + $0x5c] sm:$0xf]
    %v108 = vld [vmem:[%s2 + $0x60] sm:$0xf]
    %v109 = vld [vmem:[%s2 + $0x64] sm:$0xf]
    %v110 = vld [vmem:[%s2 + $0x68] sm:$0xf]
    %v111 = vld [vmem:[%s2 + $0x6c] sm:$0xf]
    %v112 = vld [vmem:[%s2 + $0x70] sm:$0xf]
    %v113 = vld [vmem:[%s2 + $0x74] sm:$0xf]
    %v114 = vld [vmem:[%s2 + $0x78] sm:$0xf]
    %v115 = vld [vmem:[%s2 + $0x7c] sm:$0xf]
    %v116 = vld [vmem:[%s2 + $0x80] sm:$0xf]
    %v117 = vld [vmem:[%s2 + $0x84] sm:$0xf]
    %v118 = vld [vmem:[%s2 + $0x88] sm:$0xf]
    %v119 = vld [vmem:[%s2 + $0x8c] sm:$0xf]
    %v120 = vld [vmem:[%s2 + $0x90] sm:$0xf]
    %v121 = vld [vmem:[%s2 + $0x94] sm:$0xf]
    %v122 = vld [vmem:[%s2 + $0x98] sm:$0xf]
    %v123 = vld [vmem:[%s2 + $0x9c] sm:$0xf]
    %v124 = vld [vmem:[%s2 + $0xa0] sm:$0xf]
    %v125 = vld [vmem:[%s2 + $0xa4] sm:$0xf]
    %v126 = vld [vmem:[%s2 + $0xa8] sm:$0xf]
    %v127 = vld [vmem:[%s2 + $0xac] sm:$0xf]
    %v128 = vld [vmem:[%s2 + $0xb0] sm:$0xf]
    %v129 = vld [vmem:[%s2 + $0xb4] sm:$0xf]
    %v130 = vld [vmem:[%s2 + $0xb8] sm:$0xf]
    %v131 = vld [vmem:[%s2 + $0xbc] sm:$0xf]
    %v132 = vld [vmem:[%s2 + $0xc0] sm:$0xf]
    %v133 = vld [vmem:[%s2 + $0xc4] sm:$0xf]
    %v134 = vld [vmem:[%s2 + $0xc8] sm:$0xf]
    %v135 = vld [vmem:[%s2 + $0xcc] sm:$0xf]
    %v136 = vld [vmem:[%s2 + $0xd0] sm:$0xf]
    %v137 = vld [vmem:[%s2 + $0xd4] sm:$0xf]
    %v138 = vld [vmem:[%s2 + $0xd8] sm:$0xf]
    %v139 = vld [vmem:[%s2 + $0xdc] sm:$0xf]
    %v140 = vld [vmem:[%s2 + $0xe0] sm:$0xf]
    %v141 = vld [vmem:[%s2 + $0xe4] sm:$0xf]
    %v142 = vld [vmem:[%s2 + $0xe8] sm:$0xf]
    %v143 = vld [vmem:[%s2 + $0xec] sm:$0xf]
    %v144 = vld [vmem:[%s2 + $0xf0] sm:$0xf]
    %v145 = vld [vmem:[%s2 + $0xf4] sm:$0xf]
    %v146 = vld [vmem:[%s2 + $0xf8] sm:$0xf]
    %v147 = vld [vmem:[%s2 + $0xfc] sm:$0xf]
    %v148 = vld [vmem:[%s2 + $0x100] sm:$0xf]
    %v149 = vld [vmem:[%s2 + $0x104] sm:$0xf]
    %v150 = vld [vmem:[%s2 + $0x108] sm:$0xf]
    %v151 = vld [vmem:[%s2 + $0x10c] sm:$0xf]
    %v152 = vld [vmem:[%s2 + $0x110] sm:$0xf]
    %v153 = vld [vmem:[%s2 + $0x114] sm:$0xf]
    %v154 = vld [vmem:[%s2 + $0x118] sm:$0xf]
    %v155 = vld [vmem:[%s2 + $0x11c] sm:$0xf]
    %v156 = vld [vmem:[%s2 + $0x120] sm:$0xf]
    %v157 = vld [vmem:[%s2 + $0x124] sm:$0xf]
    %v158 = vld [vmem:[%s2 + $0x128] sm:$0xf]
    %v159 = vld [vmem:[%s2 + $0x12c] sm:$0xf]
    %v160 = vld [vmem:[%s2 + $0x130] sm:$0xf]
    %v161 = vld [vmem:[%s2 + $0x134] sm:$0xf]
    %v162 = vld [vmem:[%s2 + $0x138] sm:$0xf]
    %v163 = vld [vmem:[%s2 + $0x13c] sm:$0xf]
    %v164 = vld [vmem:[%s2 + $0x140] sm:$0xf]
    %v165 = vld [vmem:[%s2 + $0x144] sm:$0xf]
    %v166 = vld [vmem:[%s2 + $0x148] sm:$0xf]
    %v167 = vld [vmem:[%s2 + $0x14c] sm:$0xf]
    %v168 = vld [vmem:[%s2 + $0x150] sm:$0xf]
    %v169 = vld [vmem:[%s2 + $0x154] sm:$0xf]
    %v170 = vld [vmem:[%s2 + $0x158] sm:$0xf]
    %v171 = vld [vmem:[%s2 + $0x15c] sm:$0xf]
    %v172 = vld [vmem:[%s2 + $0x160] sm:$0xf]
    %v173 = vld [vmem:[%s2 + $0x164] sm:$0xf]
    %v174 = vld [vmem:[%s2 + $0x168] sm:$0xf]
    %v175 = vld [vmem:[%s2 + $0x16c] sm:$0xf]
    %v176 = vld [vmem:[%s2 + $0x170] sm:$0xf]
    %v177 = vld [vmem:[%s2 + $0x174] sm:$0xf]
    %v178 = vld [vmem:[%s2 + $0x178] sm:$0xf]
    %v179 = vld [vmem:[%s2 + $0x17c] sm:$0xf]
    %v180 = vld [vmem:[%s3] sm:$0x1]
    %v181 = vld [vmem:[%s4] sm:$0x1]
    %v182 = vld [vmem:[%s0] sm:$0xff]
    %v183 = vld [vmem:[%s0 + $0x8] sm:$0xff]
    %v184 = vld [vmem:[%s0 + $0x10] sm:$0xff]
    %v185 = vld [vmem:[%s0 + $0x18] sm:$0xff]
    %v186 = vld [vmem:[%s0 + $0x20] sm:$0xff]
    %v187 = vld [vmem:[%s0 + $0x28] sm:$0xff]
    %v188 = vld [vmem:[%s0 + $0x30] sm:$0xff]
    %v189 = vld [vmem:[%s0 + $0x38] sm:$0xff]
    %v190 = vld [vmem:[%s0 + $0x40] sm:$0xff]
    %v191 = vld [vmem:[%s0 + $0x48] sm:$0xff]
    %v192 = vld [vmem:[%s0 + $0x50] sm:$0xff]
    %v193 = vld [vmem:[%s0 + $0x58] sm:$0xff]
    %v194 = vld [vmem:[%s0 + $0x60] sm:$0xff]
    %v195 = vld [vmem:[%s0 + $0x68] sm:$0xff]
    %v196 = vld [vmem:[%s0 + $0x70] sm:$0xff]
    %v197 = vld [vmem:[%s0 + $0x78] sm:$0xff]
    %v198 = vld [vmem:[%s0 + $0x80] sm:$0xff]
    %v199 = vld [vmem:[%s0 + $0x88] sm:$0xff]
    %v200 = vld [vmem:[%s0 + $0x90] sm:$0xff]
    %v201 = vld [vmem:[%s0 + $0x98] sm:$0xff]
    %v202 = vld [vmem:[%s0 + $0xa0] sm:$0xff]
    %v203 = vld [vmem:[%s0 + $0xa8] sm:$0xff]
    %v204 = vld [vmem:[%s0 + $0xb0] sm:$0xff]
    %v205 = vld [vmem:[%s0 + $0xb8] sm:$0xff]
    %v206 = vld [vmem:[%s0 + $0xc0] sm:$0xff]
    %v207 = vld [vmem:[%s0 + $0xc8] sm:$0xff]
    %v208 = vld [vmem:[%s0 + $0xd0] sm:$0xff]
    %v209 = vld [vmem:[%s0 + $0xd8] sm:$0xff]
    %v210 = vld [vmem:[%s0 + $0xe0] sm:$0xff]
    %v211 = vld [vmem:[%s0 + $0xe8] sm:$0xff]
    %v212 = vld [vmem:[%s0 + $0xf0] sm:$0xff]
    %v213 = vld [vmem:[%s0 + $0xf8] sm:$0xff]
    %v214 = vld [vmem:[%s0 + $0x100] sm:$0xff]
    %v215 = vld [vmem:[%s0 + $0x108] sm:$0xff]
    %v216 = vld [vmem:[%s0 + $0x110] sm:$0xff]
    %v217 = vld [vmem:[%s0 + $0x118] sm:$0xff]
    %v218 = vld [vmem:[%s0 + $0x120] sm:$0xff]
    %v219 = vld [vmem:[%s0 + $0x128] sm:$0xff]
    %v220 = vld [vmem:[%s0 + $0x130] sm:$0xff]
    %v221 = vld [vmem:[%s0 + $0x138] sm:$0xff]
    %v222 = vld [vmem:[%s0 + $0x140] sm:$0xff]
    %v223 = vld [vmem:[%s0 + $0x148] sm:$0xff]
    %v224 = vld [vmem:[%s0 + $0x150] sm:$0xff]
    %v225 = vld [vmem:[%s0 + $0x158] sm:$0xff]
    %v226 = vld [vmem:[%s0 + $0x160] sm:$0xff]
    %v227 = vld [vmem:[%s0 + $0x168] sm:$0xff]
    %v228 = vld [vmem:[%s0 + $0x170] sm:$0xff]
    %v229 = vld [vmem:[%s0 + $0x178] sm:$0xff]
    %v230 = vld [vmem:[%s0 + $0x180] sm:$0xff]
    %v231 = vld [vmem:[%s0 + $0x188] sm:$0xff]
    %v232 = vld [vmem:[%s0 + $0x190] sm:$0xff]
    %v233 = vld [vmem:[%s0 + $0x198] sm:$0xff]
    %v234 = vld [vmem:[%s0 + $0x1a0] sm:$0xff]
    %v235 = vld [vmem:[%s0 + $0x1a8] sm:$0xff]
    %v236 = vld [vmem:[%s0 + $0x1b0] sm:$0xff]
    %v237 = vld [vmem:[%s0 + $0x1b8] sm:$0xff]
    %v238 = vld [vmem:[%s0 + $0x1c0] sm:$0xff]
    %v239 = vld [vmem:[%s0 + $0x1c8] sm:$0xff]
    %v240 = vld [vmem:[%s0 + $0x1d0] sm:$0xff]
    %v241 = vld [vmem:[%s0 + $0x1d8] sm:$0xff]
    %v242 = vld [vmem:[%s0 + $0x1e0] sm:$0xff]
    %v243 = vld [vmem:[%s0 + $0x1e8] sm:$0xff]
    %v244 = vld [vmem:[%s0 + $0x1f0] sm:$0xff]
    %v245 = vld [vmem:[%s0 + $0x1f8] sm:$0xff]
    %v246 = vld [vmem:[%s0 + $0x200] sm:$0xff]
    %v247 = vld [vmem:[%s0 + $0x208] sm:$0xff]
    %v248 = vld [vmem:[%s0 + $0x210] sm:$0xff]
    %v249 = vld [vmem:[%s0 + $0x218] sm:$0xff]
    %v250 = vld [vmem:[%s0 + $0x220] sm:$0xff]
    %v251 = vld [vmem:[%s0 + $0x228] sm:$0xff]
    %v252 = vld [vmem:[%s0 + $0x230] sm:$0xff]
    %v253 = vld [vmem:[%s0 + $0x238] sm:$0xff]
    %v254 = vld [vmem:[%s0 + $0x240] sm:$0x33]
    %v255 = vld [vmem:[%s0 + $0x248] sm:$0x33]
    %v256 = vld [vmem:[%s0 + $0x250] sm:$0x33]
    %v332 = vunpack.c.l.b16 %v182
    %v333 = vunpack.c.h.b16 %v182
    %v334 = vunpack.c.l.b16 %v183
    %v335 = vunpack.c.h.b16 %v183
    %v336 = vunpack.c.l.b16 %v184
    %v337 = vunpack.c.h.b16 %v184
    %v338 = vunpack.c.l.b16 %v185
    %v339 = vunpack.c.h.b16 %v185
    %v340 = vunpack.c.l.b16 %v186
    %v341 = vunpack.c.h.b16 %v186
    %v342 = vunpack.c.l.b16 %v187
    %v343 = vunpack.c.h.b16 %v187
    %v344 = vunpack.c.l.b16 %v188
    %v345 = vunpack.c.h.b16 %v188
    %v346 = vunpack.c.l.b16 %v189
    %v347 = vunpack.c.h.b16 %v189
    %v348 = vunpack.c.l.b16 %v190
    %v349 = vunpack.c.h.b16 %v190
    %v350 = vunpack.c.l.b16 %v191
    %v351 = vunpack.c.h.b16 %v191
    %v352 = vunpack.c.l.b16 %v192
    %v353 = vunpack.c.h.b16 %v192
    %v354 = vunpack.c.l.b16 %v193
    %v355 = vunpack.c.h.b16 %v193
    %v356 = vunpack.c.l.b16 %v194
    %v357 = vunpack.c.h.b16 %v194
    %v358 = vunpack.c.l.b16 %v195
    %v359 = vunpack.c.h.b16 %v195
    %v360 = vunpack.c.l.b16 %v196
    %v361 = vunpack.c.h.b16 %v196
    %v362 = vunpack.c.l.b16 %v197
    %v363 = vunpack.c.h.b16 %v197
    %v364 = vunpack.c.l.b16 %v198
    %v365 = vunpack.c.h.b16 %v198
    %v366 = vunpack.c.l.b16 %v199
    %v367 = vunpack.c.h.b16 %v199
    %v368 = vunpack.c.l.b16 %v200
    %v369 = vunpack.c.h.b16 %v200
    %v370 = vunpack.c.l.b16 %v201
    %v371 = vunpack.c.h.b16 %v201
    %v372 = vunpack.c.l.b16 %v202
    %v373 = vunpack.c.h.b16 %v202
    %v374 = vunpack.c.l.b16 %v203
    %v375 = vunpack.c.h.b16 %v203
    %v376 = vunpack.c.l.b16 %v204
    %v377 = vunpack.c.h.b16 %v204
    %v378 = vunpack.c.l.b16 %v205
    %v379 = vunpack.c.h.b16 %v205
    %v380 = vunpack.c.l.b16 %v206
    %v381 = vunpack.c.h.b16 %v206
    %v382 = vunpack.c.l.b16 %v207
    %v383 = vunpack.c.h.b16 %v207
    %v384 = vunpack.c.l.b16 %v208
    %v385 = vunpack.c.h.b16 %v208
    %v386 = vunpack.c.l.b16 %v209
    %v387 = vunpack.c.h.b16 %v209
    %v388 = vunpack.c.l.b16 %v210
    %v389 = vunpack.c.h.b16 %v210
    %v390 = vunpack.c.l.b16 %v211
    %v391 = vunpack.c.h.b16 %v211
    %v392 = vunpack.c.l.b16 %v212
    %v393 = vunpack.c.h.b16 %v212
    %v394 = vunpack.c.l.b16 %v213
    %v395 = vunpack.c.h.b16 %v213
    %v396 = vunpack.c.l.b16 %v214
    %v397 = vunpack.c.h.b16 %v214
    %v398 = vunpack.c.l.b16 %v215
    %v399 = vunpack.c.h.b16 %v215
    %v400 = vunpack.c.l.b16 %v216
    %v401 = vunpack.c.h.b16 %v216
    %v402 = vunpack.c.l.b16 %v217
    %v403 = vunpack.c.h.b16 %v217
    %v404 = vunpack.c.l.b16 %v218
    %v405 = vunpack.c.h.b16 %v218
    %v406 = vunpack.c.l.b16 %v219
    %v407 = vunpack.c.h.b16 %v219
    %v408 = vunpack.c.l.b16 %v220
    %v409 = vunpack.c.h.b16 %v220
    %v410 = vunpack.c.l.b16 %v221
    %v411 = vunpack.c.h.b16 %v221
    %v412 = vunpack.c.l.b16 %v222
    %v413 = vunpack.c.h.b16 %v222
    %v414 = vunpack.c.l.b16 %v223
    %v415 = vunpack.c.h.b16 %v223
    %v416 = vunpack.c.l.b16 %v224
    %v417 = vunpack.c.h.b16 %v224
    %v418 = vunpack.c.l.b16 %v225
    %v419 = vunpack.c.h.b16 %v225
    %v420 = vunpack.c.l.b16 %v226
    %v421 = vunpack.c.h.b16 %v226
    %v422 = vunpack.c.l.b16 %v227
    %v423 = vunpack.c.h.b16 %v227
    %v424 = vunpack.c.l.b16 %v228
    %v425 = vunpack.c.h.b16 %v228
    %v426 = vunpack.c.l.b16 %v229
    %v427 = vunpack.c.h.b16 %v229
    %v428 = vunpack.c.l.b16 %v230
    %v429 = vunpack.c.h.b16 %v230
    %v430 = vunpack.c.l.b16 %v231
    %v431 = vunpack.c.h.b16 %v231
    %v432 = vunpack.c.l.b16 %v232
    %v433 = vunpack.c.h.b16 %v232
    %v434 = vunpack.c.l.b16 %v233
    %v435 = vunpack.c.h.b16 %v233
    %v436 = vunpack.c.l.b16 %v234
    %v437 = vunpack.c.h.b16 %v234
    %v438 = vunpack.c.l.b16 %v235
    %v439 = vunpack.c.h.b16 %v235
    %v440 = vunpack.c.l.b16 %v236
    %v441 = vunpack.c.h.b16 %v236
    %v442 = vunpack.c.l.b16 %v237
    %v443 = vunpack.c.h.b16 %v237
    %v444 = vunpack.c.l.b16 %v238
    %v445 = vunpack.c.h.b16 %v238
    %v446 = vunpack.c.l.b16 %v239
    %v447 = vunpack.c.h.b16 %v239
    %v448 = vunpack.c.l.b16 %v240
    %v449 = vunpack.c.h.b16 %v240
    %v450 = vunpack.c.l.b16 %v241
    %v451 = vunpack.c.h.b16 %v241
    %v452 = vunpack.c.l.b16 %v242
    %v453 = vunpack.c.h.b16 %v242
    %v454 = vunpack.c.l.b16 %v243
    %v455 = vunpack.c.h.b16 %v243
    %v456 = vunpack.c.l.b16 %v244
    %v457 = vunpack.c.h.b16 %v244
    %v458 = vunpack.c.l.b16 %v245
    %v459 = vunpack.c.h.b16 %v245
    %v460 = vunpack.c.l.b16 %v246
    %v461 = vunpack.c.h.b16 %v246
    %v462 = vunpack.c.l.b16 %v247
    %v463 = vunpack.c.h.b16 %v247
    %v464 = vunpack.c.l.b16 %v248
    %v465 = vunpack.c.h.b16 %v248
    %v466 = vunpack.c.l.b16 %v249
    %v467 = vunpack.c.h.b16 %v249
    %v468 = vunpack.c.l.b16 %v250
    %v469 = vunpack.c.h.b16 %v250
    %v470 = vunpack.c.l.b16 %v251
    %v471 = vunpack.c.h.b16 %v251
    %v472 = vunpack.c.l.b16 %v252
    %v473 = vunpack.c.h.b16 %v252
    %v474 = vunpack.c.l.b16 %v253
    %v475 = vunpack.c.h.b16 %v253
    %v476 = vunpack.c.l.b16 %v254
    %v477 = vunpack.c.h.b16 %v254
    %v478 = vunpack.c.l.b16 %v255
    %v479 = vunpack.c.h.b16 %v255
    %v480 = vunpack.c.l.b16 %v256
    %v481 = vunpack.c.h.b16 %v256
    %v482 = vpack.c.b16 %v338, %v332
    %v483 = vpack.c.b16 %v339, %v333
    %v484 = vpack.c.b16 %v340, %v334
    %v485 = vpack.c.b16 %v341, %v335
    %v486 = vpack.c.b16 %v342, %v336
    %v487 = vpack.c.b16 %v343, %v337
    %v488 = vpack.c.b16 %v350, %v344
    %v489 = vpack.c.b16 %v351, %v345
    %v490 = vpack.c.b16 %v352, %v346
    %v491 = vpack.c.b16 %v353, %v347
    %v492 = vpack.c.b16 %v354, %v348
    %v493 = vpack.c.b16 %v355, %v349
    %v494 = vpack.c.b16 %v362, %v356
    %v495 = vpack.c.b16 %v363, %v357
    %v496 = vpack.c.b16 %v364, %v358
    %v497 = vpack.c.b16 %v365, %v359
    %v498 = vpack.c.b16 %v366, %v360
    %v499 = vpack.c.b16 %v367, %v361
    %v500 = vpack.c.b16 %v374, %v368
    %v501 = vpack.c.b16 %v375, %v369
    %v502 = vpack.c.b16 %v376, %v370
    %v503 = vpack.c.b16 %v377, %v371
    %v504 = vpack.c.b16 %v378, %v372
    %v505 = vpack.c.b16 %v379, %v373
    %v506 = vpack.c.b16 %v386, %v380
    %v507 = vpack.c.b16 %v387, %v381
    %v508 = vpack.c.b16 %v388, %v382
    %v509 = vpack.c.b16 %v389, %v383
    %v510 = vpack.c.b16 %v390, %v384
    %v511 = vpack.c.b16 %v391, %v385
    %v512 = vpack.c.b16 %v398, %v392
    %v513 = vpack.c.b16 %v399, %v393
    %v514 = vpack.c.b16 %v400, %v394
    %v515 = vpack.c.b16 %v401, %v395
    %v516 = vpack.c.b16 %v402, %v396
    %v517 = vpack.c.b16 %v403, %v397
    %v518 = vpack.c.b16 %v410, %v404
    %v519 = vpack.c.b16 %v411, %v405
    %v520 = vpack.c.b16 %v412, %v406
    %v521 = vpack.c.b16 %v413, %v407
    %v522 = vpack.c.b16 %v414, %v408
    %v523 = vpack.c.b16 %v415, %v409
    %v524 = vpack.c.b16 %v422, %v416
    %v525 = vpack.c.b16 %v423, %v417
    %v526 = vpack.c.b16 %v424, %v418
    %v527 = vpack.c.b16 %v425, %v419
    %v528 = vpack.c.b16 %v426, %v420
    %v529 = vpack.c.b16 %v427, %v421
    %v530 = vpack.c.b16 %v434, %v428
    %v531 = vpack.c.b16 %v435, %v429
    %v532 = vpack.c.b16 %v436, %v430
    %v533 = vpack.c.b16 %v437, %v431
    %v534 = vpack.c.b16 %v438, %v432
    %v535 = vpack.c.b16 %v439, %v433
    %v536 = vpack.c.b16 %v446, %v440
    %v537 = vpack.c.b16 %v447, %v441
    %v538 = vpack.c.b16 %v448, %v442
    %v539 = vpack.c.b16 %v449, %v443
    %v540 = vpack.c.b16 %v450, %v444
    %v541 = vpack.c.b16 %v451, %v445
    %v542 = vpack.c.b16 %v458, %v452
    %v543 = vpack.c.b16 %v459, %v453
    %v544 = vpack.c.b16 %v460, %v454
    %v545 = vpack.c.b16 %v461, %v455
    %v546 = vpack.c.b16 %v462, %v456
    %v547 = vpack.c.b16 %v463, %v457
    %v548 = vpack.c.b16 %v470, %v464
    %v549 = vpack.c.b16 %v471, %v465
    %v550 = vpack.c.b16 %v472, %v466
    %v551 = vpack.c.b16 %v473, %v467
    %v552 = vpack.c.b16 %v474, %v468
    %v553 = vpack.c.b16 %v475, %v469
    %v554 = vpack.c.b16 %v476, %v476
    %v555 = vpack.c.b16 %v477, %v477
    %v556 = vpack.c.b16 %v478, %v478
    %v557 = vpack.c.b16 %v479, %v479
    %v558 = vpack.c.b16 %v480, %v480
    %v559 = vpack.c.b16 %v481, %v481
    %v734 = vunpack.c.l.b16 %v84
    %v735 = vunpack.c.l.b16 %v85
    %v736 = vunpack.c.l.b16 %v86
    %v737 = vunpack.c.l.b16 %v87
    %v738 = vunpack.c.l.b16 %v88
    %v739 = vunpack.c.l.b16 %v89
    %v740 = vunpack.c.l.b16 %v90
    %v741 = vunpack.c.l.b16 %v91
    %v742 = vunpack.c.l.b16 %v92
    %v743 = vunpack.c.l.b16 %v93
    %v744 = vunpack.c.l.b16 %v94
    %v745 = vunpack.c.l.b16 %v95
    %v746 = vunpack.c.l.b16 %v96
    %v747 = vunpack.c.l.b16 %v97
    %v748 = vunpack.c.l.b16 %v98
    %v749 = vunpack.c.l.b16 %v99
    %v750 = vunpack.c.l.b16 %v100
    %v751 = vunpack.c.l.b16 %v101
    %v752 = vunpack.c.l.b16 %v102
    %v753 = vunpack.c.l.b16 %v103
    %v754 = vunpack.c.l.b16 %v104
    %v755 = vunpack.c.l.b16 %v105
    %v756 = vunpack.c.l.b16 %v106
    %v757 = vunpack.c.l.b16 %v107
    %v758 = vunpack.c.l.b16 %v108
    %v759 = vunpack.c.l.b16 %v109
    %v760 = vunpack.c.l.b16 %v110
    %v761 = vunpack.c.l.b16 %v111
    %v762 = vunpack.c.l.b16 %v112
    %v763 = vunpack.c.l.b16 %v113
    %v764 = vunpack.c.l.b16 %v114
    %v765 = vunpack.c.l.b16 %v115
    %v766 = vunpack.c.l.b16 %v116
    %v767 = vunpack.c.l.b16 %v117
    %v768 = vunpack.c.l.b16 %v118
    %v769 = vunpack.c.l.b16 %v119
    %v770 = vunpack.c.l.b16 %v120
    %v771 = vunpack.c.l.b16 %v121
    %v772 = vunpack.c.l.b16 %v122
    %v773 = vunpack.c.l.b16 %v123
    %v774 = vunpack.c.l.b16 %v124
    %v775 = vunpack.c.l.b16 %v125
    %v776 = vunpack.c.l.b16 %v126
    %v777 = vunpack.c.l.b16 %v127
    %v778 = vunpack.c.l.b16 %v128
    %v779 = vunpack.c.l.b16 %v129
    %v780 = vunpack.c.l.b16 %v130
    %v781 = vunpack.c.l.b16 %v131
    %v782 = vunpack.c.l.b16 %v132
    %v783 = vunpack.c.l.b16 %v133
    %v784 = vunpack.c.l.b16 %v134
    %v785 = vunpack.c.l.b16 %v135
    %v786 = vunpack.c.l.b16 %v136
    %v787 = vunpack.c.l.b16 %v137
    %v788 = vunpack.c.l.b16 %v138
    %v789 = vunpack.c.l.b16 %v139
    %v790 = vunpack.c.l.b16 %v140
    %v791 = vunpack.c.l.b16 %v141
    %v792 = vunpack.c.l.b16 %v142
    %v793 = vunpack.c.l.b16 %v143
    %v794 = vunpack.c.l.b16 %v144
    %v795 = vunpack.c.l.b16 %v145
    %v796 = vunpack.c.l.b16 %v146
    %v797 = vunpack.c.l.b16 %v147
    %v798 = vunpack.c.l.b16 %v148
    %v799 = vunpack.c.l.b16 %v149
    %v800 = vunpack.c.l.b16 %v150
    %v801 = vunpack.c.l.b16 %v151
    %v802 = vunpack.c.l.b16 %v152
    %v803 = vunpack.c.l.b16 %v153
    %v804 = vunpack.c.l.b16 %v154
    %v805 = vunpack.c.l.b16 %v155
    %v806 = vunpack.c.l.b16 %v156
    %v807 = vunpack.c.l.b16 %v157
    %v808 = vunpack.c.l.b16 %v158
    %v809 = vunpack.c.l.b16 %v159
    %v810 = vunpack.c.l.b16 %v160
    %v811 = vunpack.c.l.b16 %v161
    %v812 = vunpack.c.l.b16 %v162
    %v813 = vunpack.c.l.b16 %v163
    %v814 = vunpack.c.l.b16 %v164
    %v815 = vunpack.c.l.b16 %v165
    %v816 = vunpack.c.l.b16 %v166
    %v817 = vunpack.c.l.b16 %v167
    %v818 = vunpack.c.l.b16 %v168
    %v819 = vunpack.c.l.b16 %v169
    %v820 = vunpack.c.l.b16 %v170
    %v821 = vunpack.c.l.b16 %v171
    %v822 = vunpack.c.l.b16 %v172
    %v823 = vunpack.c.l.b16 %v173
    %v824 = vunpack.c.l.b16 %v174
    %v825 = vunpack.c.l.b16 %v175
    %v826 = vunpack.c.l.b16 %v176
    %v827 = vunpack.c.l.b16 %v177
    %v828 = vunpack.c.l.b16 %v178
    %v829 = vunpack.c.l.b16 %v179
    %v830 = vpack.c.b16 %v735, %v734
    %v831 = vpack.c.b16 %v737, %v736
    %v832 = vpack.c.b16 %v739, %v738
    %v833 = vpack.c.b16 %v741, %v740
    %v834 = vpack.c.b16 %v743, %v742
    %v835 = vpack.c.b16 %v745, %v744
    %v836 = vpack.c.b16 %v747, %v746
    %v837 = vpack.c.b16 %v749, %v748
    %v838 = vpack.c.b16 %v751, %v750
    %v839 = vpack.c.b16 %v753, %v752
    %v840 = vpack.c.b16 %v755, %v754
    %v841 = vpack.c.b16 %v757, %v756
    %v842 = vpack.c.b16 %v759, %v758
    %v843 = vpack.c.b16 %v761, %v760
    %v844 = vpack.c.b16 %v763, %v762
    %v845 = vpack.c.b16 %v765, %v764
    %v846 = vpack.c.b16 %v767, %v766
    %v847 = vpack.c.b16 %v769, %v768
    %v848 = vpack.c.b16 %v771, %v770
    %v849 = vpack.c.b16 %v773, %v772
    %v850 = vpack.c.b16 %v775, %v774
    %v851 = vpack.c.b16 %v777, %v776
    %v852 = vpack.c.b16 %v779, %v778
    %v853 = vpack.c.b16 %v781, %v780
    %v854 = vpack.c.b16 %v783, %v782
    %v855 = vpack.c.b16 %v785, %v784
    %v856 = vpack.c.b16 %v787, %v786
    %v857 = vpack.c.b16 %v789, %v788
    %v858 = vpack.c.b16 %v791, %v790
    %v859 = vpack.c.b16 %v793, %v792
    %v860 = vpack.c.b16 %v795, %v794
    %v861 = vpack.c.b16 %v797, %v796
    %v862 = vpack.c.b16 %v799, %v798
    %v863 = vpack.c.b16 %v801, %v800
    %v864 = vpack.c.b16 %v803, %v802
    %v865 = vpack.c.b16 %v805, %v804
    %v866 = vpack.c.b16 %v807, %v806
    %v867 = vpack.c.b16 %v809, %v808
    %v868 = vpack.c.b16 %v811, %v810
    %v869 = vpack.c.b16 %v813, %v812
    %v870 = vpack.c.b16 %v815, %v814
    %v871 = vpack.c.b16 %v817, %v816
    %v872 = vpack.c.b16 %v819, %v818
    %v873 = vpack.c.b16 %v821, %v820
    %v874 = vpack.c.b16 %v823, %v822
    %v875 = vpack.c.b16 %v825, %v824
    %v876 = vpack.c.b16 %v827, %v826
    %v877 = vpack.c.b16 %v829, %v828
    %926 = vmatprep.subr.bf16.mxu0 0
    %927 = vmatpush1.bf16.msra.mxu0 %v837
    %928 = vmatprep.subr.bf16.mxu0 0
    %929 = vmatpush1.bf16.msra.mxu0 %v836
    %930 = vmatprep.subr.bf16.mxu0 0
    %931 = vmatpush1.bf16.msra.mxu0 %v835
    %932 = vmatprep.subr.bf16.mxu0 0
    %933 = vmatpush1.bf16.msra.mxu0 %v834
    %934 = vmatprep.subr.bf16.mxu0 0
    %935 = vmatpush1.bf16.msra.mxu0 %v833
    %936 = vmatprep.subr.bf16.mxu0 0
    %937 = vmatpush1.bf16.msra.mxu0 %v832
    %938 = vmatprep.subr.bf16.mxu0 0
    %939 = vmatpush1.bf16.msra.mxu0 %v831
    %940 = vmatprep.subr.bf16.mxu0 0
    %941 = vmatpush1.bf16.msra.mxu0 %v830
    %942 = vmatprep.subr.bf16.mxu0 0
    %943 = vmatpush2.bf16.msra.mxu0 %v845
    %944 = vmatprep.subr.bf16.mxu0 0
    %945 = vmatpush2.bf16.msra.mxu0 %v844
    %946 = vmatprep.subr.bf16.mxu0 0
    %947 = vmatpush2.bf16.msra.mxu0 %v843
    %948 = vmatprep.subr.bf16.mxu0 0
    %949 = vmatpush2.bf16.msra.mxu0 %v842
    %950 = vmatprep.subr.bf16.mxu0 0
    %951 = vmatpush2.bf16.msra.mxu0 %v841
    %952 = vmatprep.subr.bf16.mxu0 0
    %953 = vmatpush2.bf16.msra.mxu0 %v840
    %954 = vmatprep.subr.bf16.mxu0 0
    %955 = vmatpush2.bf16.msra.mxu0 %v839
    %956 = vmatprep.subr.bf16.mxu0 0
    %957 = vmatpush2.bf16.msra.mxu0 %v838
    %958 = vmatprep.mubr.bf16.mxu0 %v483
    %959 = vmatmul.mubr.bf16.gmra.mxu0 %v482
    %v960 = vpop.f32.mrf.mxu0
    %v961 = vadd.f32 0.0, %v960
    %v962 = vpop.f32.mrf.mxu0
    %v963 = vpop.f32.mrf.mxu0
    %v964 = vadd.f32 0.0, %v963
    %v965 = vpop.f32.mrf.mxu0
    %966 = vmatprep.mubr.bf16.mxu0 %v489
    %967 = vmatmul.mubr.bf16.gmra.mxu0 %v488
    %v968 = vpop.f32.mrf.mxu0
    %v969 = vadd.f32 0.0, %v968
    %v970 = vpop.f32.mrf.mxu0
    %v971 = vpop.f32.mrf.mxu0
    %v972 = vadd.f32 0.0, %v971
    %v973 = vpop.f32.mrf.mxu0
    %974 = vmatprep.mubr.bf16.mxu0 %v495
    %975 = vmatmul.mubr.bf16.gmra.mxu0 %v494
    %v976 = vpop.f32.mrf.mxu0
    %v977 = vadd.f32 0.0, %v976
    %v978 = vpop.f32.mrf.mxu0
    %v979 = vpop.f32.mrf.mxu0
    %v980 = vadd.f32 0.0, %v979
    %v981 = vpop.f32.mrf.mxu0
    %982 = vmatprep.mubr.bf16.mxu0 %v501
    %983 = vmatmul.mubr.bf16.gmra.mxu0 %v500
    %v984 = vpop.f32.mrf.mxu0
    %v985 = vadd.f32 0.0, %v984
    %v986 = vpop.f32.mrf.mxu0
    %v987 = vpop.f32.mrf.mxu0
    %v988 = vadd.f32 0.0, %v987
    %v989 = vpop.f32.mrf.mxu0
    %990 = vmatprep.mubr.bf16.mxu0 %v507
    %991 = vmatmul.mubr.bf16.gmra.mxu0 %v506
    %v992 = vpop.f32.mrf.mxu0
    %v993 = vadd.f32 0.0, %v992
    %v994 = vpop.f32.mrf.mxu0
    %v995 = vpop.f32.mrf.mxu0
    %v996 = vadd.f32 0.0, %v995
    %v997 = vpop.f32.mrf.mxu0
    %998 = vmatprep.mubr.bf16.mxu0 %v513
    %999 = vmatmul.mubr.bf16.gmra.mxu0 %v512
    %v1000 = vpop.f32.mrf.mxu0
    %v1001 = vadd.f32 0.0, %v1000
    %v1002 = vpop.f32.mrf.mxu0
    %v1003 = vpop.f32.mrf.mxu0
    %v1004 = vadd.f32 0.0, %v1003
    %v1005 = vpop.f32.mrf.mxu0
    %1006 = vmatprep.mubr.bf16.mxu0 %v519
    %1007 = vmatmul.mubr.bf16.gmra.mxu0 %v518
    %v1008 = vpop.f32.mrf.mxu0
    %v1009 = vadd.f32 0.0, %v1008
    %v1010 = vpop.f32.mrf.mxu0
    %v1011 = vpop.f32.mrf.mxu0
    %v1012 = vadd.f32 0.0, %v1011
    %v1013 = vpop.f32.mrf.mxu0
    %1014 = vmatprep.mubr.bf16.mxu0 %v525
    %1015 = vmatmul.mubr.bf16.gmra.mxu0 %v524
    %v1016 = vpop.f32.mrf.mxu0
    %v1017 = vadd.f32 0.0, %v1016
    %v1018 = vpop.f32.mrf.mxu0
    %v1019 = vpop.f32.mrf.mxu0
    %v1020 = vadd.f32 0.0, %v1019
    %v1021 = vpop.f32.mrf.mxu0
    %1022 = vmatprep.mubr.bf16.mxu0 %v531
    %1023 = vmatmul.mubr.bf16.gmra.mxu0 %v530
    %v1024 = vpop.f32.mrf.mxu0
    %v1025 = vadd.f32 0.0, %v1024
    %v1026 = vpop.f32.mrf.mxu0
    %v1027 = vpop.f32.mrf.mxu0
    %v1028 = vadd.f32 0.0, %v1027
    %v1029 = vpop.f32.mrf.mxu0
    %1030 = vmatprep.mubr.bf16.mxu0 %v537
    %1031 = vmatmul.mubr.bf16.gmra.mxu0 %v536
    %v1032 = vpop.f32.mrf.mxu0
    %v1033 = vadd.f32 0.0, %v1032
    %v1034 = vpop.f32.mrf.mxu0
    %v1035 = vpop.f32.mrf.mxu0
    %v1036 = vadd.f32 0.0, %v1035
    %v1037 = vpop.f32.mrf.mxu0
    %1038 = vmatprep.mubr.bf16.mxu0 %v543
    %1039 = vmatmul.mubr.bf16.gmra.mxu0 %v542
    %v1040 = vpop.f32.mrf.mxu0
    %v1041 = vadd.f32 0.0, %v1040
    %v1042 = vpop.f32.mrf.mxu0
    %v1043 = vpop.f32.mrf.mxu0
    %v1044 = vadd.f32 0.0, %v1043
    %v1045 = vpop.f32.mrf.mxu0
    %1046 = vmatprep.mubr.bf16.mxu0 %v549
    %1047 = vmatmul.mubr.bf16.gmra.mxu0 %v548
    %v1048 = vpop.f32.mrf.mxu0
    %v1049 = vadd.f32 0.0, %v1048
    %v1050 = vpop.f32.mrf.mxu0
    %v1051 = vpop.f32.mrf.mxu0
    %v1052 = vadd.f32 0.0, %v1051
    %v1053 = vpop.f32.mrf.mxu0
    %1054 = vmatprep.mubr.bf16.mxu0 %v555
    %1055 = vmatmul.mubr.bf16.gmra.mxu0 %v554
    %v1056 = vpop.f32.mrf.mxu0
    %v1057 = vadd.f32 0.0, %v1056
    %v1058 = vpop.f32.mrf.mxu0
    %v1059 = vpop.f32.mrf.mxu0
    %v1060 = vpop.f32.mrf.mxu0
    %1061 = vdwg.mxu0
    %1062 = vmatprep.subr.bf16.mxu0 0
    %1063 = vmatpush1.bf16.msra.mxu0 %v853
    %1064 = vmatprep.subr.bf16.mxu0 0
    %1065 = vmatpush1.bf16.msra.mxu0 %v852
    %1066 = vmatprep.subr.bf16.mxu0 0
    %1067 = vmatpush1.bf16.msra.mxu0 %v851
    %1068 = vmatprep.subr.bf16.mxu0 0
    %1069 = vmatpush1.bf16.msra.mxu0 %v850
    %1070 = vmatprep.subr.bf16.mxu0 0
    %1071 = vmatpush1.bf16.msra.mxu0 %v849
    %1072 = vmatprep.subr.bf16.mxu0 0
    %1073 = vmatpush1.bf16.msra.mxu0 %v848
    %1074 = vmatprep.subr.bf16.mxu0 0
    %1075 = vmatpush1.bf16.msra.mxu0 %v847
    %1076 = vmatprep.subr.bf16.mxu0 0
    %1077 = vmatpush1.bf16.msra.mxu0 %v846
    %1078 = vmatprep.subr.bf16.mxu0 0
    %1079 = vmatpush2.bf16.msra.mxu0 %v861
    %1080 = vmatprep.subr.bf16.mxu0 0
    %1081 = vmatpush2.bf16.msra.mxu0 %v860
    %1082 = vmatprep.subr.bf16.mxu0 0
    %1083 = vmatpush2.bf16.msra.mxu0 %v859
    %1084 = vmatprep.subr.bf16.mxu0 0
    %1085 = vmatpush2.bf16.msra.mxu0 %v858
    %1086 = vmatprep.subr.bf16.mxu0 0
    %1087 = vmatpush2.bf16.msra.mxu0 %v857
    %1088 = vmatprep.subr.bf16.mxu0 0
    %1089 = vmatpush2.bf16.msra.mxu0 %v856
    %1090 = vmatprep.subr.bf16.mxu0 0
    %1091 = vmatpush2.bf16.msra.mxu0 %v855
    %1092 = vmatprep.subr.bf16.mxu0 0
    %1093 = vmatpush2.bf16.msra.mxu0 %v854
    %1094 = vmatprep.mubr.bf16.mxu0 %v485
    %1095 = vmatmul.mubr.bf16.gmra.mxu0 %v484
    %v1096 = vpop.f32.mrf.mxu0
    %v1097 = vadd.f32 %v961, %v1096
    %v1098 = vpop.f32.mrf.mxu0
    %v1099 = vpop.f32.mrf.mxu0
    %v1100 = vadd.f32 %v964, %v1099
    %v1101 = vpop.f32.mrf.mxu0
    %1102 = vmatprep.mubr.bf16.mxu0 %v491
    %1103 = vmatmul.mubr.bf16.gmra.mxu0 %v490
    %v1104 = vpop.f32.mrf.mxu0
    %v1105 = vadd.f32 %v969, %v1104
    %v1106 = vpop.f32.mrf.mxu0
    %v1107 = vpop.f32.mrf.mxu0
    %v1108 = vadd.f32 %v972, %v1107
    %v1109 = vpop.f32.mrf.mxu0
    %1110 = vmatprep.mubr.bf16.mxu0 %v497
    %1111 = vmatmul.mubr.bf16.gmra.mxu0 %v496
    %v1112 = vpop.f32.mrf.mxu0
    %v1113 = vadd.f32 %v977, %v1112
    %v1114 = vpop.f32.mrf.mxu0
    %v1115 = vpop.f32.mrf.mxu0
    %v1116 = vadd.f32 %v980, %v1115
    %v1117 = vpop.f32.mrf.mxu0
    %1118 = vmatprep.mubr.bf16.mxu0 %v503
    %1119 = vmatmul.mubr.bf16.gmra.mxu0 %v502
    %v1120 = vpop.f32.mrf.mxu0
    %v1121 = vadd.f32 %v985, %v1120
    %v1122 = vpop.f32.mrf.mxu0
    %v1123 = vpop.f32.mrf.mxu0
    %v1124 = vadd.f32 %v988, %v1123
    %v1125 = vpop.f32.mrf.mxu0
    %1126 = vmatprep.mubr.bf16.mxu0 %v509
    %1127 = vmatmul.mubr.bf16.gmra.mxu0 %v508
    %v1128 = vpop.f32.mrf.mxu0
    %v1129 = vadd.f32 %v993, %v1128
    %v1130 = vpop.f32.mrf.mxu0
    %v1131 = vpop.f32.mrf.mxu0
    %v1132 = vadd.f32 %v996, %v1131
    %v1133 = vpop.f32.mrf.mxu0
    %1134 = vmatprep.mubr.bf16.mxu0 %v515
    %1135 = vmatmul.mubr.bf16.gmra.mxu0 %v514
    %v1136 = vpop.f32.mrf.mxu0
    %v1137 = vadd.f32 %v1001, %v1136
    %v1138 = vpop.f32.mrf.mxu0
    %v1139 = vpop.f32.mrf.mxu0
    %v1140 = vadd.f32 %v1004, %v1139
    %v1141 = vpop.f32.mrf.mxu0
    %1142 = vmatprep.mubr.bf16.mxu0 %v521
    %1143 = vmatmul.mubr.bf16.gmra.mxu0 %v520
    %v1144 = vpop.f32.mrf.mxu0
    %v1145 = vadd.f32 %v1009, %v1144
    %v1146 = vpop.f32.mrf.mxu0
    %v1147 = vpop.f32.mrf.mxu0
    %v1148 = vadd.f32 %v1012, %v1147
    %v1149 = vpop.f32.mrf.mxu0
    %1150 = vmatprep.mubr.bf16.mxu0 %v527
    %1151 = vmatmul.mubr.bf16.gmra.mxu0 %v526
    %v1152 = vpop.f32.mrf.mxu0
    %v1153 = vadd.f32 %v1017, %v1152
    %v1154 = vpop.f32.mrf.mxu0
    %v1155 = vpop.f32.mrf.mxu0
    %v1156 = vadd.f32 %v1020, %v1155
    %v1157 = vpop.f32.mrf.mxu0
    %1158 = vmatprep.mubr.bf16.mxu0 %v533
    %1159 = vmatmul.mubr.bf16.gmra.mxu0 %v532
    %v1160 = vpop.f32.mrf.mxu0
    %v1161 = vadd.f32 %v1025, %v1160
    %v1162 = vpop.f32.mrf.mxu0
    %v1163 = vpop.f32.mrf.mxu0
    %v1164 = vadd.f32 %v1028, %v1163
    %v1165 = vpop.f32.mrf.mxu0
    %1166 = vmatprep.mubr.bf16.mxu0 %v539
    %1167 = vmatmul.mubr.bf16.gmra.mxu0 %v538
    %v1168 = vpop.f32.mrf.mxu0
    %v1169 = vadd.f32 %v1033, %v1168
    %v1170 = vpop.f32.mrf.mxu0
    %v1171 = vpop.f32.mrf.mxu0
    %v1172 = vadd.f32 %v1036, %v1171
    %v1173 = vpop.f32.mrf.mxu0
    %1174 = vmatprep.mubr.bf16.mxu0 %v545
    %1175 = vmatmul.mubr.bf16.gmra.mxu0 %v544
    %v1176 = vpop.f32.mrf.mxu0
    %v1177 = vadd.f32 %v1041, %v1176
    %v1178 = vpop.f32.mrf.mxu0
    %v1179 = vpop.f32.mrf.mxu0
    %v1180 = vadd.f32 %v1044, %v1179
    %v1181 = vpop.f32.mrf.mxu0
    %1182 = vmatprep.mubr.bf16.mxu0 %v551
    %1183 = vmatmul.mubr.bf16.gmra.mxu0 %v550
    %v1184 = vpop.f32.mrf.mxu0
    %v1185 = vadd.f32 %v1049, %v1184
    %v1186 = vpop.f32.mrf.mxu0
    %v1187 = vpop.f32.mrf.mxu0
    %v1188 = vadd.f32 %v1052, %v1187
    %v1189 = vpop.f32.mrf.mxu0
    %1190 = vmatprep.mubr.bf16.mxu0 %v557
    %1191 = vmatmul.mubr.bf16.gmra.mxu0 %v556
    %v1192 = vpop.f32.mrf.mxu0
    %v1193 = vadd.f32 %v1057, %v1192
    %v1194 = vpop.f32.mrf.mxu0
    %v1195 = vpop.f32.mrf.mxu0
    %v1196 = vpop.f32.mrf.mxu0
    %1197 = vdwg.mxu0
    %1198 = vmatprep.subr.bf16.mxu0 0
    %1199 = vmatpush1.bf16.msra.mxu0 %v869
    %1200 = vmatprep.subr.bf16.mxu0 0
    %1201 = vmatpush1.bf16.msra.mxu0 %v868
    %1202 = vmatprep.subr.bf16.mxu0 0
    %1203 = vmatpush1.bf16.msra.mxu0 %v867
    %1204 = vmatprep.subr.bf16.mxu0 0
    %1205 = vmatpush1.bf16.msra.mxu0 %v866
    %1206 = vmatprep.subr.bf16.mxu0 0
    %1207 = vmatpush1.bf16.msra.mxu0 %v865
    %1208 = vmatprep.subr.bf16.mxu0 0
    %1209 = vmatpush1.bf16.msra.mxu0 %v864
    %1210 = vmatprep.subr.bf16.mxu0 0
    %1211 = vmatpush1.bf16.msra.mxu0 %v863
    %1212 = vmatprep.subr.bf16.mxu0 0
    %1213 = vmatpush1.bf16.msra.mxu0 %v862
    %1214 = vmatprep.subr.bf16.mxu0 0
    %1215 = vmatpush2.bf16.msra.mxu0 %v877
    %1216 = vmatprep.subr.bf16.mxu0 0
    %1217 = vmatpush2.bf16.msra.mxu0 %v876
    %1218 = vmatprep.subr.bf16.mxu0 0
    %1219 = vmatpush2.bf16.msra.mxu0 %v875
    %1220 = vmatprep.subr.bf16.mxu0 0
    %1221 = vmatpush2.bf16.msra.mxu0 %v874
    %1222 = vmatprep.subr.bf16.mxu0 0
    %1223 = vmatpush2.bf16.msra.mxu0 %v873
    %1224 = vmatprep.subr.bf16.mxu0 0
    %1225 = vmatpush2.bf16.msra.mxu0 %v872
    %1226 = vmatprep.subr.bf16.mxu0 0
    %1227 = vmatpush2.bf16.msra.mxu0 %v871
    %1228 = vmatprep.subr.bf16.mxu0 0
    %1229 = vmatpush2.bf16.msra.mxu0 %v870
    %1230 = vmatprep.mubr.bf16.mxu0 %v487
    %1231 = vmatmul.mubr.bf16.gmra.mxu0 %v486
    %v1232 = vpop.f32.mrf.mxu0
    %v1233 = vadd.f32 %v1097, %v1232
    %v1234 = vpop.f32.mrf.mxu0
    %v1235 = vpop.f32.mrf.mxu0
    %v1236 = vadd.f32 %v1100, %v1235
    %v1237 = vpop.f32.mrf.mxu0
    %1238 = vmatprep.mubr.bf16.mxu0 %v493
    %1239 = vmatmul.mubr.bf16.gmra.mxu0 %v492
    %v1240 = vpop.f32.mrf.mxu0
    %v1241 = vadd.f32 %v1105, %v1240
    %v1242 = vpop.f32.mrf.mxu0
    %v1243 = vpop.f32.mrf.mxu0
    %v1244 = vadd.f32 %v1108, %v1243
    %v1245 = vpop.f32.mrf.mxu0
    %1246 = vmatprep.mubr.bf16.mxu0 %v499
    %1247 = vmatmul.mubr.bf16.gmra.mxu0 %v498
    %v1248 = vpop.f32.mrf.mxu0
    %v1249 = vadd.f32 %v1113, %v1248
    %v1250 = vpop.f32.mrf.mxu0
    %v1251 = vpop.f32.mrf.mxu0
    %v1252 = vadd.f32 %v1116, %v1251
    %v1253 = vpop.f32.mrf.mxu0
    %1254 = vmatprep.mubr.bf16.mxu0 %v505
    %1255 = vmatmul.mubr.bf16.gmra.mxu0 %v504
    %v1256 = vpop.f32.mrf.mxu0
    %v1257 = vadd.f32 %v1121, %v1256
    %v1258 = vpop.f32.mrf.mxu0
    %v1259 = vpop.f32.mrf.mxu0
    %v1260 = vadd.f32 %v1124, %v1259
    %v1261 = vpop.f32.mrf.mxu0
    %1262 = vmatprep.mubr.bf16.mxu0 %v511
    %1263 = vmatmul.mubr.bf16.gmra.mxu0 %v510
    %v1264 = vpop.f32.mrf.mxu0
    %v1265 = vadd.f32 %v1129, %v1264
    %v1266 = vpop.f32.mrf.mxu0
    %v1267 = vpop.f32.mrf.mxu0
    %v1268 = vadd.f32 %v1132, %v1267
    %v1269 = vpop.f32.mrf.mxu0
    %1270 = vmatprep.mubr.bf16.mxu0 %v517
    %1271 = vmatmul.mubr.bf16.gmra.mxu0 %v516
    %v1272 = vpop.f32.mrf.mxu0
    %v1273 = vadd.f32 %v1137, %v1272
    %v1274 = vpop.f32.mrf.mxu0
    %v1275 = vpop.f32.mrf.mxu0
    %v1276 = vadd.f32 %v1140, %v1275
    %v1277 = vpop.f32.mrf.mxu0
    %1278 = vmatprep.mubr.bf16.mxu0 %v523
    %1279 = vmatmul.mubr.bf16.gmra.mxu0 %v522
    %v1280 = vpop.f32.mrf.mxu0
    %v1281 = vadd.f32 %v1145, %v1280
    %v1282 = vpop.f32.mrf.mxu0
    %v1283 = vpop.f32.mrf.mxu0
    %v1284 = vadd.f32 %v1148, %v1283
    %v1285 = vpop.f32.mrf.mxu0
    %1286 = vmatprep.mubr.bf16.mxu0 %v529
    %1287 = vmatmul.mubr.bf16.gmra.mxu0 %v528
    %v1288 = vpop.f32.mrf.mxu0
    %v1289 = vadd.f32 %v1153, %v1288
    %v1290 = vpop.f32.mrf.mxu0
    %v1291 = vpop.f32.mrf.mxu0
    %v1292 = vadd.f32 %v1156, %v1291
    %v1293 = vpop.f32.mrf.mxu0
    %1294 = vmatprep.mubr.bf16.mxu0 %v535
    %1295 = vmatmul.mubr.bf16.gmra.mxu0 %v534
    %v1296 = vpop.f32.mrf.mxu0
    %v1297 = vadd.f32 %v1161, %v1296
    %v1298 = vpop.f32.mrf.mxu0
    %v1299 = vpop.f32.mrf.mxu0
    %v1300 = vadd.f32 %v1164, %v1299
    %v1301 = vpop.f32.mrf.mxu0
    %1302 = vmatprep.mubr.bf16.mxu0 %v541
    %1303 = vmatmul.mubr.bf16.gmra.mxu0 %v540
    %v1304 = vpop.f32.mrf.mxu0
    %v1305 = vadd.f32 %v1169, %v1304
    %v1306 = vpop.f32.mrf.mxu0
    %v1307 = vpop.f32.mrf.mxu0
    %v1308 = vadd.f32 %v1172, %v1307
    %v1309 = vpop.f32.mrf.mxu0
    %1310 = vmatprep.mubr.bf16.mxu0 %v547
    %1311 = vmatmul.mubr.bf16.gmra.mxu0 %v546
    %v1312 = vpop.f32.mrf.mxu0
    %v1313 = vadd.f32 %v1177, %v1312
    %v1314 = vpop.f32.mrf.mxu0
    %v1315 = vpop.f32.mrf.mxu0
    %v1316 = vadd.f32 %v1180, %v1315
    %v1317 = vpop.f32.mrf.mxu0
    %1318 = vmatprep.mubr.bf16.mxu0 %v553
    %1319 = vmatmul.mubr.bf16.gmra.mxu0 %v552
    %v1320 = vpop.f32.mrf.mxu0
    %v1321 = vadd.f32 %v1185, %v1320
    %v1322 = vpop.f32.mrf.mxu0
    %v1323 = vpop.f32.mrf.mxu0
    %v1324 = vadd.f32 %v1188, %v1323
    %v1325 = vpop.f32.mrf.mxu0
    %1326 = vmatprep.mubr.bf16.mxu0 %v559
    %1327 = vmatmul.mubr.bf16.gmra.mxu0 %v558
    %v1328 = vpop.f32.mrf.mxu0
    %v1329 = vadd.f32 %v1193, %v1328
    %v1330 = vpop.f32.mrf.mxu0
    %v1331 = vpop.f32.mrf.mxu0
    %v1332 = vpop.f32.mrf.mxu0
    %1333 = vdwg.mxu0
    %v1335 = vlaneseq
    %v1336 = vshrl.u32 %v1335, 7
    %v1337 = vsub.s32 0, %v1336
    %v1338 = vrot.slane %v180, %v1337
    %v1340 = vmul.f32 %v1233, %v1338
    %v1341 = vmul.f32 %v1236, %v1338
    %v1342 = vmul.f32 %v1241, %v1338
    %v1343 = vmul.f32 %v1244, %v1338
    %v1344 = vmul.f32 %v1249, %v1338
    %v1345 = vmul.f32 %v1252, %v1338
    %v1346 = vmul.f32 %v1257, %v1338
    %v1347 = vmul.f32 %v1260, %v1338
    %v1348 = vmul.f32 %v1265, %v1338
    %v1349 = vmul.f32 %v1268, %v1338
    %v1350 = vmul.f32 %v1273, %v1338
    %v1351 = vmul.f32 %v1276, %v1338
    %v1352 = vmul.f32 %v1281, %v1338
    %v1353 = vmul.f32 %v1284, %v1338
    %v1354 = vmul.f32 %v1289, %v1338
    %v1355 = vmul.f32 %v1292, %v1338
    %v1356 = vmul.f32 %v1297, %v1338
    %v1357 = vmul.f32 %v1300, %v1338
    %v1358 = vmul.f32 %v1305, %v1338
    %v1359 = vmul.f32 %v1308, %v1338
    %v1360 = vmul.f32 %v1313, %v1338
    %v1361 = vmul.f32 %v1316, %v1338
    %v1362 = vmul.f32 %v1321, %v1338
    %v1363 = vmul.f32 %v1324, %v1338
    %v1364 = vmul.f32 %v1329, %v1338
    %v1366 = vlaneseq
    %v1367 = vshrl.u32 %v1366, 7
    %v1368 = vsub.s32 0, %v1367
    %v1369 = vrot.slane %v181, %v1368
    %v1371 = vadd.f32 %v1340, %v1369
    %v1372 = vadd.f32 %v1341, %v1369
    %v1373 = vadd.f32 %v1342, %v1369
    %v1374 = vadd.f32 %v1343, %v1369
    %v1375 = vadd.f32 %v1344, %v1369
    %v1376 = vadd.f32 %v1345, %v1369
    %v1377 = vadd.f32 %v1346, %v1369
    %v1378 = vadd.f32 %v1347, %v1369
    %v1379 = vadd.f32 %v1348, %v1369
    %v1380 = vadd.f32 %v1349, %v1369
    %v1381 = vadd.f32 %v1350, %v1369
    %v1382 = vadd.f32 %v1351, %v1369
    %v1383 = vadd.f32 %v1352, %v1369
    %v1384 = vadd.f32 %v1353, %v1369
    %v1385 = vadd.f32 %v1354, %v1369
    %v1386 = vadd.f32 %v1355, %v1369
    %v1387 = vadd.f32 %v1356, %v1369
    %v1388 = vadd.f32 %v1357, %v1369
    %v1389 = vadd.f32 %v1358, %v1369
    %v1390 = vadd.f32 %v1359, %v1369
    %v1391 = vadd.f32 %v1360, %v1369
    %v1392 = vadd.f32 %v1361, %v1369
    %v1393 = vadd.f32 %v1362, %v1369
    %v1394 = vadd.f32 %v1363, %v1369
    %v1395 = vadd.f32 %v1364, %v1369
    %v1396 = vxor.u32 %v1371, 2147483648
    %v1397 = vxor.u32 %v1372, 2147483648
    %v1398 = vxor.u32 %v1373, 2147483648
    %v1399 = vxor.u32 %v1374, 2147483648
    %v1400 = vxor.u32 %v1375, 2147483648
    %v1401 = vxor.u32 %v1376, 2147483648
    %v1402 = vxor.u32 %v1377, 2147483648
    %v1403 = vxor.u32 %v1378, 2147483648
    %v1404 = vxor.u32 %v1379, 2147483648
    %v1405 = vxor.u32 %v1380, 2147483648
    %v1406 = vxor.u32 %v1381, 2147483648
    %v1407 = vxor.u32 %v1382, 2147483648
    %v1408 = vxor.u32 %v1383, 2147483648
    %v1409 = vxor.u32 %v1384, 2147483648
    %v1410 = vxor.u32 %v1385, 2147483648
    %v1411 = vxor.u32 %v1386, 2147483648
    %v1412 = vxor.u32 %v1387, 2147483648
    %v1413 = vxor.u32 %v1388, 2147483648
    %v1414 = vxor.u32 %v1389, 2147483648
    %v1415 = vxor.u32 %v1390, 2147483648
    %v1416 = vxor.u32 %v1391, 2147483648
    %v1417 = vxor.u32 %v1392, 2147483648
    %v1418 = vxor.u32 %v1393, 2147483648
    %v1419 = vxor.u32 %v1394, 2147483648
    %v1420 = vxor.u32 %v1395, 2147483648
    %v1421 = vmul.f32 %v1396, 1.442695
    %v1422 = vpow.pop %v1421
    %v1423 = vmul.f32 %v1397, 1.442695
    %v1424 = vpow.pop %v1423
    %v1425 = vmul.f32 %v1398, 1.442695
    %v1426 = vpow.pop %v1425
    %v1427 = vmul.f32 %v1399, 1.442695
    %v1428 = vpow.pop %v1427
    %v1429 = vmul.f32 %v1400, 1.442695
    %v1430 = vpow.pop %v1429
    %v1431 = vmul.f32 %v1401, 1.442695
    %v1432 = vpow.pop %v1431
    %v1433 = vmul.f32 %v1402, 1.442695
    %v1434 = vpow.pop %v1433
    %v1435 = vmul.f32 %v1403, 1.442695
    %v1436 = vpow.pop %v1435
    %v1437 = vmul.f32 %v1404, 1.442695
    %v1438 = vpow.pop %v1437
    %v1439 = vmul.f32 %v1405, 1.442695
    %v1440 = vpow.pop %v1439
    %v1441 = vmul.f32 %v1406, 1.442695
    %v1442 = vpow.pop %v1441
    %v1443 = vmul.f32 %v1407, 1.442695
    %v1444 = vpow.pop %v1443
    %v1445 = vmul.f32 %v1408, 1.442695
    %v1446 = vpow.pop %v1445
    %v1447 = vmul.f32 %v1409, 1.442695
    %v1448 = vpow.pop %v1447
    %v1449 = vmul.f32 %v1410, 1.442695
    %v1450 = vpow.pop %v1449
    %v1451 = vmul.f32 %v1411, 1.442695
    %v1452 = vpow.pop %v1451
    %v1453 = vmul.f32 %v1412, 1.442695
    %v1454 = vpow.pop %v1453
    %v1455 = vmul.f32 %v1413, 1.442695
    %v1456 = vpow.pop %v1455
    %v1457 = vmul.f32 %v1414, 1.442695
    %v1458 = vpow.pop %v1457
    %v1459 = vmul.f32 %v1415, 1.442695
    %v1460 = vpow.pop %v1459
    %v1461 = vmul.f32 %v1416, 1.442695
    %v1462 = vpow.pop %v1461
    %v1463 = vmul.f32 %v1417, 1.442695
    %v1464 = vpow.pop %v1463
    %v1465 = vmul.f32 %v1418, 1.442695
    %v1466 = vpow.pop %v1465
    %v1467 = vmul.f32 %v1419, 1.442695
    %v1468 = vpow.pop %v1467
    %v1469 = vmul.f32 %v1420, 1.442695
    %v1470 = vpow.pop %v1469
    %v1471 = vadd.f32 %v1422, 1.0
    %v1472 = vadd.f32 %v1424, 1.0
    %v1473 = vadd.f32 %v1426, 1.0
    %v1474 = vadd.f32 %v1428, 1.0
    %v1475 = vadd.f32 %v1430, 1.0
    %v1476 = vadd.f32 %v1432, 1.0
    %v1477 = vadd.f32 %v1434, 1.0
    %v1478 = vadd.f32 %v1436, 1.0
    %v1479 = vadd.f32 %v1438, 1.0
    %v1480 = vadd.f32 %v1440, 1.0
    %v1481 = vadd.f32 %v1442, 1.0
    %v1482 = vadd.f32 %v1444, 1.0
    %v1483 = vadd.f32 %v1446, 1.0
    %v1484 = vadd.f32 %v1448, 1.0
    %v1485 = vadd.f32 %v1450, 1.0
    %v1486 = vadd.f32 %v1452, 1.0
    %v1487 = vadd.f32 %v1454, 1.0
    %v1488 = vadd.f32 %v1456, 1.0
    %v1489 = vadd.f32 %v1458, 1.0
    %v1490 = vadd.f32 %v1460, 1.0
    %v1491 = vadd.f32 %v1462, 1.0
    %v1492 = vadd.f32 %v1464, 1.0
    %v1493 = vadd.f32 %v1466, 1.0
    %v1494 = vadd.f32 %v1468, 1.0
    %v1495 = vadd.f32 %v1470, 1.0
    %v1496 = vrcp.pop %v1471
    %v1497 = vmul.f32 1.0, %v1496
    %v1498 = vrcp.pop %v1472
    %v1499 = vmul.f32 1.0, %v1498
    %v1500 = vrcp.pop %v1473
    %v1501 = vmul.f32 1.0, %v1500
    %v1502 = vrcp.pop %v1474
    %v1503 = vmul.f32 1.0, %v1502
    %v1504 = vrcp.pop %v1475
    %v1505 = vmul.f32 1.0, %v1504
    %v1506 = vrcp.pop %v1476
    %v1507 = vmul.f32 1.0, %v1506
    %v1508 = vrcp.pop %v1477
    %v1509 = vmul.f32 1.0, %v1508
    %v1510 = vrcp.pop %v1478
    %v1511 = vmul.f32 1.0, %v1510
    %v1512 = vrcp.pop %v1479
    %v1513 = vmul.f32 1.0, %v1512
    %v1514 = vrcp.pop %v1480
    %v1515 = vmul.f32 1.0, %v1514
    %v1516 = vrcp.pop %v1481
    %v1517 = vmul.f32 1.0, %v1516
    %v1518 = vrcp.pop %v1482
    %v1519 = vmul.f32 1.0, %v1518
    %v1520 = vrcp.pop %v1483
    %v1521 = vmul.f32 1.0, %v1520
    %v1522 = vrcp.pop %v1484
    %v1523 = vmul.f32 1.0, %v1522
    %v1524 = vrcp.pop %v1485
    %v1525 = vmul.f32 1.0, %v1524
    %v1526 = vrcp.pop %v1486
    %v1527 = vmul.f32 1.0, %v1526
    %v1528 = vrcp.pop %v1487
    %v1529 = vmul.f32 1.0, %v1528
    %v1530 = vrcp.pop %v1488
    %v1531 = vmul.f32 1.0, %v1530
    %v1532 = vrcp.pop %v1489
    %v1533 = vmul.f32 1.0, %v1532
    %v1534 = vrcp.pop %v1490
    %v1535 = vmul.f32 1.0, %v1534
    %v1536 = vrcp.pop %v1491
    %v1537 = vmul.f32 1.0, %v1536
    %v1538 = vrcp.pop %v1492
    %v1539 = vmul.f32 1.0, %v1538
    %v1540 = vrcp.pop %v1493
    %v1541 = vmul.f32 1.0, %v1540
    %v1542 = vrcp.pop %v1494
    %v1543 = vmul.f32 1.0, %v1542
    %v1544 = vrcp.pop %v1495
    %v1545 = vmul.f32 1.0, %v1544
    %vm1546 = vcmask 195584
    %v1547 = vsel %vm1546, %v1497, 0.0
    %1548 = vadd.xlane.f32.xlu0 %v1547
    %v1549 = vpop.xlane.xlu0 %1548
    %v1550 = vsel %vm1546, %v1499, 0.0
    %1551 = vadd.xlane.f32.xlu0 %v1550
    %v1552 = vpop.xlane.xlu0 %1551
    %v1553 = vsel %vm1546, %v1501, 0.0
    %1554 = vadd.xlane.f32.xlu0 %v1553
    %v1555 = vpop.xlane.xlu0 %1554
    %v1556 = vsel %vm1546, %v1503, 0.0
    %1557 = vadd.xlane.f32.xlu0 %v1556
    %v1558 = vpop.xlane.xlu0 %1557
    %v1559 = vsel %vm1546, %v1505, 0.0
    %1560 = vadd.xlane.f32.xlu0 %v1559
    %v1561 = vpop.xlane.xlu0 %1560
    %v1562 = vsel %vm1546, %v1507, 0.0
    %1563 = vadd.xlane.f32.xlu0 %v1562
    %v1564 = vpop.xlane.xlu0 %1563
    %v1565 = vsel %vm1546, %v1509, 0.0
    %1566 = vadd.xlane.f32.xlu0 %v1565
    %v1567 = vpop.xlane.xlu0 %1566
    %v1568 = vsel %vm1546, %v1511, 0.0
    %1569 = vadd.xlane.f32.xlu0 %v1568
    %v1570 = vpop.xlane.xlu0 %1569
    %v1571 = vsel %vm1546, %v1513, 0.0
    %1572 = vadd.xlane.f32.xlu0 %v1571
    %v1573 = vpop.xlane.xlu0 %1572
    %v1574 = vsel %vm1546, %v1515, 0.0
    %1575 = vadd.xlane.f32.xlu0 %v1574
    %v1576 = vpop.xlane.xlu0 %1575
    %v1577 = vsel %vm1546, %v1517, 0.0
    %1578 = vadd.xlane.f32.xlu0 %v1577
    %v1579 = vpop.xlane.xlu0 %1578
    %v1580 = vsel %vm1546, %v1519, 0.0
    %1581 = vadd.xlane.f32.xlu0 %v1580
    %v1582 = vpop.xlane.xlu0 %1581
    %v1583 = vsel %vm1546, %v1521, 0.0
    %1584 = vadd.xlane.f32.xlu0 %v1583
    %v1585 = vpop.xlane.xlu0 %1584
    %v1586 = vsel %vm1546, %v1523, 0.0
    %1587 = vadd.xlane.f32.xlu0 %v1586
    %v1588 = vpop.xlane.xlu0 %1587
    %v1589 = vsel %vm1546, %v1525, 0.0
    %1590 = vadd.xlane.f32.xlu0 %v1589
    %v1591 = vpop.xlane.xlu0 %1590
    %v1592 = vsel %vm1546, %v1527, 0.0
    %1593 = vadd.xlane.f32.xlu0 %v1592
    %v1594 = vpop.xlane.xlu0 %1593
    %v1595 = vsel %vm1546, %v1529, 0.0
    %1596 = vadd.xlane.f32.xlu0 %v1595
    %v1597 = vpop.xlane.xlu0 %1596
    %v1598 = vsel %vm1546, %v1531, 0.0
    %1599 = vadd.xlane.f32.xlu0 %v1598
    %v1600 = vpop.xlane.xlu0 %1599
    %v1601 = vsel %vm1546, %v1533, 0.0
    %1602 = vadd.xlane.f32.xlu0 %v1601
    %v1603 = vpop.xlane.xlu0 %1602
    %v1604 = vsel %vm1546, %v1535, 0.0
    %1605 = vadd.xlane.f32.xlu0 %v1604
    %v1606 = vpop.xlane.xlu0 %1605
    %v1607 = vsel %vm1546, %v1537, 0.0
    %1608 = vadd.xlane.f32.xlu0 %v1607
    %v1609 = vpop.xlane.xlu0 %1608
    %v1610 = vsel %vm1546, %v1539, 0.0
    %1611 = vadd.xlane.f32.xlu0 %v1610
    %v1612 = vpop.xlane.xlu0 %1611
    %v1613 = vsel %vm1546, %v1541, 0.0
    %1614 = vadd.xlane.f32.xlu0 %v1613
    %v1615 = vpop.xlane.xlu0 %1614
    %v1616 = vsel %vm1546, %v1543, 0.0
    %1617 = vadd.xlane.f32.xlu0 %v1616
    %v1618 = vpop.xlane.xlu0 %1617
    %vm1619 = vcmask 191488
    %v1620 = vsel %vm1619, %v1545, 0.0
    %1621 = vadd.xlane.f32.xlu0 %v1620
    %v1622 = vpop.xlane.xlu0 %1621
    %v1623 = vpack.c.bf16 %v1552, %v1549
    %v1624 = vpack.c.bf16 %v1558, %v1555
    %v1625 = vpack.c.bf16 %v1564, %v1561
    %v1626 = vpack.c.bf16 %v1570, %v1567
    %v1627 = vpack.c.bf16 %v1576, %v1573
    %v1628 = vpack.c.bf16 %v1582, %v1579
    %v1629 = vpack.c.bf16 %v1588, %v1585
    %v1630 = vpack.c.bf16 %v1594, %v1591
    %v1631 = vpack.c.bf16 %v1600, %v1597
    %v1632 = vpack.c.bf16 %v1606, %v1603
    %v1633 = vpack.c.bf16 %v1612, %v1609
    %v1634 = vpack.c.bf16 %v1618, %v1615
    %v1635 = vpack.c.bf16 %v1622, %v1622
    %1636 = vxpose.xlu0.c.b16.start [1/8] %v1623, 128
    %1637 = vxpose.xlu0.c.b16.cont [2/8] %v1624, 128
    %1638 = vxpose.xlu0.c.b16.cont [3/8] %v1625, 128
    %1639 = vxpose.xlu0.c.b16.cont [4/8] %v1626, 128
    %1640 = vxpose.xlu0.c.b16.cont [5/8] %v1627, 128
    %1641 = vxpose.xlu0.c.b16.cont [6/8] %v1628, 128
    %1642 = vxpose.xlu0.c.b16.cont [7/8] %v1629, 128
    %1643 = vxpose.xlu0.c.b16.end [8/8] %v1630, 128
    %v1644 = vpop.trf.xlu0
    %v1645 = vpop.trf.xlu0
    %v1646 = vpop.trf.xlu0
    %v1647 = vpop.trf.xlu0
    %v1648 = vpop.trf.xlu0
    %v1649 = vpop.trf.xlu0
    %v1650 = vpop.trf.xlu0
    %v1651 = vpop.trf.xlu0
    %1652 = vxpose.xlu0.c.b16.start [1/8] %v1631, 128
    %1653 = vxpose.xlu0.c.b16.cont [2/8] %v1632, 128
    %1654 = vxpose.xlu0.c.b16.cont [3/8] %v1633, 128
    %1655 = vxpose.xlu0.c.b16.cont [4/8] %v1634, 128
    %1656 = vxpose.xlu0.c.b16.cont [5/8] %v1635, 128
    %1657 = vxpose.xlu0.c.b16.cont [6/8] 0, 128
    %1658 = vxpose.xlu0.c.b16.cont [7/8] 0, 128
    %1659 = vxpose.xlu0.c.b16.end [8/8] 0, 128
    %v1660 = vpop.trf.xlu0
    %v1661 = vpop.trf.xlu0
    %v1662 = vpop.trf.xlu0
    %v1663 = vpop.trf.xlu0
    %v1664 = vpop.trf.xlu0
    %v1665 = vpop.trf.xlu0
    %v1666 = vpop.trf.xlu0
    %v1667 = vpop.trf.xlu0
    %vm1668 = vcmask 556032
    %v1670 = vsel %vm1668, %v1660, 0
    %vm1672 = vcmask 1041408
    %v1674 = vsel %vm1672, %v554, 0
    %v1677 = vsel %vm1672, %v555, 0
    %v1680 = vsel %vm1672, %v556, 0
    %v1683 = vsel %vm1672, %v557, 0
    %v1686 = vsel %vm1672, %v558, 0
    %v1689 = vsel %vm1672, %v559, 0
    %1691 = vmatprep.subr.bf16.mxu0 %v525
    %1692 = vmatpush1.bf16.msra.mxu0 %v524
    %1693 = vmatprep.subr.bf16.mxu0 %v519
    %1694 = vmatpush1.bf16.msra.mxu0 %v518
    %1695 = vmatprep.subr.bf16.mxu0 %v513
    %1696 = vmatpush1.bf16.msra.mxu0 %v512
    %1697 = vmatprep.subr.bf16.mxu0 %v507
    %1698 = vmatpush1.bf16.msra.mxu0 %v506
    %1699 = vmatprep.subr.bf16.mxu0 %v501
    %1700 = vmatpush1.bf16.msra.mxu0 %v500
    %1701 = vmatprep.subr.bf16.mxu0 %v495
    %1702 = vmatpush1.bf16.msra.mxu0 %v494
    %1703 = vmatprep.subr.bf16.mxu0 %v489
    %1704 = vmatpush1.bf16.msra.mxu0 %v488
    %1705 = vmatprep.subr.bf16.mxu0 %v483
    %1706 = vmatpush1.bf16.msra.mxu0 %v482
    %1707 = vmatprep.subr.bf16.mxu0 0
    %1708 = vmatpush2.bf16.msra.mxu0 0
    %1709 = vmatprep.subr.bf16.mxu0 0
    %1710 = vmatpush2.bf16.msra.mxu0 0
    %1711 = vmatprep.subr.bf16.mxu0 0
    %1712 = vmatpush2.bf16.msra.mxu0 0
    %1713 = vmatprep.subr.bf16.mxu0 %v1677
    %1714 = vmatpush2.bf16.msra.mxu0 %v1674
    %1715 = vmatprep.subr.bf16.mxu0 %v549
    %1716 = vmatpush2.bf16.msra.mxu0 %v548
    %1717 = vmatprep.subr.bf16.mxu0 %v543
    %1718 = vmatpush2.bf16.msra.mxu0 %v542
    %1719 = vmatprep.subr.bf16.mxu0 %v537
    %1720 = vmatpush2.bf16.msra.mxu0 %v536
    %1721 = vmatprep.subr.bf16.mxu0 %v531
    %1722 = vmatpush2.bf16.msra.mxu0 %v530
    %1723 = vmatprep.mubr.bf16.mxu0 %v1670
    %1724 = vmatmul.mubr.bf16.gmra.mxu0 %v1644
    %v1725 = vpop.f32.mrf.mxu0
    %v1726 = vadd.f32 0.0, %v1725
    %v1727 = vpop.f32.mrf.mxu0
    %v1728 = vadd.f32 0.0, %v1727
    %v1729 = vpop.f32.mrf.mxu0
    %v1730 = vpop.f32.mrf.mxu0
    %1731 = vdwg.mxu0
    %1732 = vmatprep.subr.bf16.mxu0 %v527
    %1733 = vmatpush1.bf16.msra.mxu0 %v526
    %1734 = vmatprep.subr.bf16.mxu0 %v521
    %1735 = vmatpush1.bf16.msra.mxu0 %v520
    %1736 = vmatprep.subr.bf16.mxu0 %v515
    %1737 = vmatpush1.bf16.msra.mxu0 %v514
    %1738 = vmatprep.subr.bf16.mxu0 %v509
    %1739 = vmatpush1.bf16.msra.mxu0 %v508
    %1740 = vmatprep.subr.bf16.mxu0 %v503
    %1741 = vmatpush1.bf16.msra.mxu0 %v502
    %1742 = vmatprep.subr.bf16.mxu0 %v497
    %1743 = vmatpush1.bf16.msra.mxu0 %v496
    %1744 = vmatprep.subr.bf16.mxu0 %v491
    %1745 = vmatpush1.bf16.msra.mxu0 %v490
    %1746 = vmatprep.subr.bf16.mxu0 %v485
    %1747 = vmatpush1.bf16.msra.mxu0 %v484
    %1748 = vmatprep.subr.bf16.mxu0 0
    %1749 = vmatpush2.bf16.msra.mxu0 0
    %1750 = vmatprep.subr.bf16.mxu0 0
    %1751 = vmatpush2.bf16.msra.mxu0 0
    %1752 = vmatprep.subr.bf16.mxu0 0
    %1753 = vmatpush2.bf16.msra.mxu0 0
    %1754 = vmatprep.subr.bf16.mxu0 %v1683
    %1755 = vmatpush2.bf16.msra.mxu0 %v1680
    %1756 = vmatprep.subr.bf16.mxu0 %v551
    %1757 = vmatpush2.bf16.msra.mxu0 %v550
    %1758 = vmatprep.subr.bf16.mxu0 %v545
    %1759 = vmatpush2.bf16.msra.mxu0 %v544
    %1760 = vmatprep.subr.bf16.mxu0 %v539
    %1761 = vmatpush2.bf16.msra.mxu0 %v538
    %1762 = vmatprep.subr.bf16.mxu0 %v533
    %1763 = vmatpush2.bf16.msra.mxu0 %v532
    %1764 = vmatprep.mubr.bf16.mxu0 %v1670
    %1765 = vmatmul.mubr.bf16.gmra.mxu0 %v1644
    %v1766 = vpop.f32.mrf.mxu0
    %v1767 = vadd.f32 0.0, %v1766
    %v1768 = vpop.f32.mrf.mxu0
    %v1769 = vadd.f32 0.0, %v1768
    %v1770 = vpop.f32.mrf.mxu0
    %v1771 = vpop.f32.mrf.mxu0
    %1772 = vdwg.mxu0
    %1773 = vmatprep.subr.bf16.mxu0 %v529
    %1774 = vmatpush1.bf16.msra.mxu0 %v528
    %1775 = vmatprep.subr.bf16.mxu0 %v523
    %1776 = vmatpush1.bf16.msra.mxu0 %v522
    %1777 = vmatprep.subr.bf16.mxu0 %v517
    %1778 = vmatpush1.bf16.msra.mxu0 %v516
    %1779 = vmatprep.subr.bf16.mxu0 %v511
    %1780 = vmatpush1.bf16.msra.mxu0 %v510
    %1781 = vmatprep.subr.bf16.mxu0 %v505
    %1782 = vmatpush1.bf16.msra.mxu0 %v504
    %1783 = vmatprep.subr.bf16.mxu0 %v499
    %1784 = vmatpush1.bf16.msra.mxu0 %v498
    %1785 = vmatprep.subr.bf16.mxu0 %v493
    %1786 = vmatpush1.bf16.msra.mxu0 %v492
    %1787 = vmatprep.subr.bf16.mxu0 %v487
    %1788 = vmatpush1.bf16.msra.mxu0 %v486
    %1789 = vmatprep.subr.bf16.mxu0 0
    %1790 = vmatpush2.bf16.msra.mxu0 0
    %1791 = vmatprep.subr.bf16.mxu0 0
    %1792 = vmatpush2.bf16.msra.mxu0 0
    %1793 = vmatprep.subr.bf16.mxu0 0
    %1794 = vmatpush2.bf16.msra.mxu0 0
    %1795 = vmatprep.subr.bf16.mxu0 %v1689
    %1796 = vmatpush2.bf16.msra.mxu0 %v1686
    %1797 = vmatprep.subr.bf16.mxu0 %v553
    %1798 = vmatpush2.bf16.msra.mxu0 %v552
    %1799 = vmatprep.subr.bf16.mxu0 %v547
    %1800 = vmatpush2.bf16.msra.mxu0 %v546
    %1801 = vmatprep.subr.bf16.mxu0 %v541
    %1802 = vmatpush2.bf16.msra.mxu0 %v540
    %1803 = vmatprep.subr.bf16.mxu0 %v535
    %1804 = vmatpush2.bf16.msra.mxu0 %v534
    %1805 = vmatprep.mubr.bf16.mxu0 %v1670
    %1806 = vmatmul.mubr.bf16.gmra.mxu0 %v1644
    %v1807 = vpop.f32.mrf.mxu0
    %v1808 = vadd.f32 0.0, %v1807
    %v1809 = vpop.f32.mrf.mxu0
    %v1810 = vadd.f32 0.0, %v1809
    %v1811 = vpop.f32.mrf.mxu0
    %v1812 = vpop.f32.mrf.mxu0
    %1813 = vdwg.mxu0
    %v1814 = vmul.f32 %v1726, 0.00021258503
    %v1815 = vmul.f32 %v1728, 0.00021258503
    %v1816 = vmul.f32 %v1767, 0.00021258503
    %v1817 = vmul.f32 %v1769, 0.00021258503
    %v1818 = vmul.f32 %v1808, 0.00021258503
    %v1819 = vmul.f32 %v1810, 0.00021258503
    %s1820 = scalar_lea.vmem %s0, 600
    %v1821 = vld [vmem:[%s1820] sm:$0xff]
    %v1822 = vld [vmem:[%s1820 + $0x8] sm:$0xff]
    %v1823 = vld [vmem:[%s1820 + $0x10] sm:$0xff]
    %v1824 = vld [vmem:[%s1820 + $0x18] sm:$0xff]
    %v1825 = vld [vmem:[%s1820 + $0x20] sm:$0xff]
    %v1826 = vld [vmem:[%s1820 + $0x28] sm:$0xff]
    %v1827 = vld [vmem:[%s1820 + $0x30] sm:$0xff]
    %v1828 = vld [vmem:[%s1820 + $0x38] sm:$0xff]
    %v1829 = vld [vmem:[%s1820 + $0x40] sm:$0xff]
    %v1830 = vld [vmem:[%s1820 + $0x48] sm:$0xff]
    %v1831 = vld [vmem:[%s1820 + $0x50] sm:$0xff]
    %v1832 = vld [vmem:[%s1820 + $0x58] sm:$0xff]
    %v1833 = vld [vmem:[%s1820 + $0x60] sm:$0xff]
    %v1834 = vld [vmem:[%s1820 + $0x68] sm:$0xff]
    %v1835 = vld [vmem:[%s1820 + $0x70] sm:$0xff]
    %v1836 = vld [vmem:[%s1820 + $0x78] sm:$0xff]
    %v1837 = vld [vmem:[%s1820 + $0x80] sm:$0xff]
    %v1838 = vld [vmem:[%s1820 + $0x88] sm:$0xff]
    %v1839 = vld [vmem:[%s1820 + $0x90] sm:$0xff]
    %v1840 = vld [vmem:[%s1820 + $0x98] sm:$0xff]
    %v1841 = vld [vmem:[%s1820 + $0xa0] sm:$0xff]
    %v1842 = vld [vmem:[%s1820 + $0xa8] sm:$0xff]
    %v1843 = vld [vmem:[%s1820 + $0xb0] sm:$0xff]
    %v1844 = vld [vmem:[%s1820 + $0xb8] sm:$0xff]
    %v1845 = vld [vmem:[%s1820 + $0xc0] sm:$0xff]
    %v1846 = vld [vmem:[%s1820 + $0xc8] sm:$0xff]
    %v1847 = vld [vmem:[%s1820 + $0xd0] sm:$0xff]
    %v1848 = vld [vmem:[%s1820 + $0xd8] sm:$0xff]
    %v1849 = vld [vmem:[%s1820 + $0xe0] sm:$0xff]
    %v1850 = vld [vmem:[%s1820 + $0xe8] sm:$0xff]
    %v1851 = vld [vmem:[%s1820 + $0xf0] sm:$0xff]
    %v1852 = vld [vmem:[%s1820 + $0xf8] sm:$0xff]
    %v1853 = vld [vmem:[%s1820 + $0x100] sm:$0xff]
    %v1854 = vld [vmem:[%s1820 + $0x108] sm:$0xff]
    %v1855 = vld [vmem:[%s1820 + $0x110] sm:$0xff]
    %v1856 = vld [vmem:[%s1820 + $0x118] sm:$0xff]
    %v1857 = vld [vmem:[%s1820 + $0x120] sm:$0xff]
    %v1858 = vld [vmem:[%s1820 + $0x128] sm:$0xff]
    %v1859 = vld [vmem:[%s1820 + $0x130] sm:$0xff]
    %v1860 = vld [vmem:[%s1820 + $0x138] sm:$0xff]
    %v1861 = vld [vmem:[%s1820 + $0x140] sm:$0xff]
    %v1862 = vld [vmem:[%s1820 + $0x148] sm:$0xff]
    %v1863 = vld [vmem:[%s1820 + $0x150] sm:$0xff]
    %v1864 = vld [vmem:[%s1820 + $0x158] sm:$0xff]
    %v1865 = vld [vmem:[%s1820 + $0x160] sm:$0xff]
    %v1866 = vld [vmem:[%s1820 + $0x168] sm:$0xff]
    %v1867 = vld [vmem:[%s1820 + $0x170] sm:$0xff]
    %v1868 = vld [vmem:[%s1820 + $0x178] sm:$0xff]
    %v1869 = vld [vmem:[%s1820 + $0x180] sm:$0xff]
    %v1870 = vld [vmem:[%s1820 + $0x188] sm:$0xff]
    %v1871 = vld [vmem:[%s1820 + $0x190] sm:$0xff]
    %v1872 = vld [vmem:[%s1820 + $0x198] sm:$0xff]
    %v1873 = vld [vmem:[%s1820 + $0x1a0] sm:$0xff]
    %v1874 = vld [vmem:[%s1820 + $0x1a8] sm:$0xff]
    %v1875 = vld [vmem:[%s1820 + $0x1b0] sm:$0xff]
    %v1876 = vld [vmem:[%s1820 + $0x1b8] sm:$0xff]
    %v1877 = vld [vmem:[%s1820 + $0x1c0] sm:$0xff]
    %v1878 = vld [vmem:[%s1820 + $0x1c8] sm:$0xff]
    %v1879 = vld [vmem:[%s1820 + $0x1d0] sm:$0xff]
    %v1880 = vld [vmem:[%s1820 + $0x1d8] sm:$0xff]
    %v1881 = vld [vmem:[%s1820 + $0x1e0] sm:$0xff]
    %v1882 = vld [vmem:[%s1820 + $0x1e8] sm:$0xff]
    %v1883 = vld [vmem:[%s1820 + $0x1f0] sm:$0xff]
    %v1884 = vld [vmem:[%s1820 + $0x1f8] sm:$0xff]
    %v1885 = vld [vmem:[%s1820 + $0x200] sm:$0xff]
    %v1886 = vld [vmem:[%s1820 + $0x208] sm:$0xff]
    %v1887 = vld [vmem:[%s1820 + $0x210] sm:$0xff]
    %v1888 = vld [vmem:[%s1820 + $0x218] sm:$0xff]
    %v1889 = vld [vmem:[%s1820 + $0x220] sm:$0xff]
    %v1890 = vld [vmem:[%s1820 + $0x228] sm:$0xff]
    %v1891 = vld [vmem:[%s1820 + $0x230] sm:$0xff]
    %v1892 = vld [vmem:[%s1820 + $0x238] sm:$0xff]
    %v1893 = vld [vmem:[%s1820 + $0x240] sm:$0x33]
    %v1894 = vld [vmem:[%s1820 + $0x248] sm:$0x33]
    %v1895 = vld [vmem:[%s1820 + $0x250] sm:$0x33]
    %v1971 = vunpack.c.l.b16 %v1821
    %v1972 = vunpack.c.h.b16 %v1821
    %v1973 = vunpack.c.l.b16 %v1822
    %v1974 = vunpack.c.h.b16 %v1822
    %v1975 = vunpack.c.l.b16 %v1823
    %v1976 = vunpack.c.h.b16 %v1823
    %v1977 = vunpack.c.l.b16 %v1824
    %v1978 = vunpack.c.h.b16 %v1824
    %v1979 = vunpack.c.l.b16 %v1825
    %v1980 = vunpack.c.h.b16 %v1825
    %v1981 = vunpack.c.l.b16 %v1826
    %v1982 = vunpack.c.h.b16 %v1826
    %v1983 = vunpack.c.l.b16 %v1827
    %v1984 = vunpack.c.h.b16 %v1827
    %v1985 = vunpack.c.l.b16 %v1828
    %v1986 = vunpack.c.h.b16 %v1828
    %v1987 = vunpack.c.l.b16 %v1829
    %v1988 = vunpack.c.h.b16 %v1829
    %v1989 = vunpack.c.l.b16 %v1830
    %v1990 = vunpack.c.h.b16 %v1830
    %v1991 = vunpack.c.l.b16 %v1831
    %v1992 = vunpack.c.h.b16 %v1831
    %v1993 = vunpack.c.l.b16 %v1832
    %v1994 = vunpack.c.h.b16 %v1832
    %v1995 = vunpack.c.l.b16 %v1833
    %v1996 = vunpack.c.h.b16 %v1833
    %v1997 = vunpack.c.l.b16 %v1834
    %v1998 = vunpack.c.h.b16 %v1834
    %v1999 = vunpack.c.l.b16 %v1835
    %v2000 = vunpack.c.h.b16 %v1835
    %v2001 = vunpack.c.l.b16 %v1836
    %v2002 = vunpack.c.h.b16 %v1836
    %v2003 = vunpack.c.l.b16 %v1837
    %v2004 = vunpack.c.h.b16 %v1837
    %v2005 = vunpack.c.l.b16 %v1838
    %v2006 = vunpack.c.h.b16 %v1838
    %v2007 = vunpack.c.l.b16 %v1839
    %v2008 = vunpack.c.h.b16 %v1839
    %v2009 = vunpack.c.l.b16 %v1840
    %v2010 = vunpack.c.h.b16 %v1840
    %v2011 = vunpack.c.l.b16 %v1841
    %v2012 = vunpack.c.h.b16 %v1841
    %v2013 = vunpack.c.l.b16 %v1842
    %v2014 = vunpack.c.h.b16 %v1842
    %v2015 = vunpack.c.l.b16 %v1843
    %v2016 = vunpack.c.h.b16 %v1843
    %v2017 = vunpack.c.l.b16 %v1844
    %v2018 = vunpack.c.h.b16 %v1844
    %v2019 = vunpack.c.l.b16 %v1845
    %v2020 = vunpack.c.h.b16 %v1845
    %v2021 = vunpack.c.l.b16 %v1846
    %v2022 = vunpack.c.h.b16 %v1846
    %v2023 = vunpack.c.l.b16 %v1847
    %v2024 = vunpack.c.h.b16 %v1847
    %v2025 = vunpack.c.l.b16 %v1848
    %v2026 = vunpack.c.h.b16 %v1848
    %v2027 = vunpack.c.l.b16 %v1849
    %v2028 = vunpack.c.h.b16 %v1849
    %v2029 = vunpack.c.l.b16 %v1850
    %v2030 = vunpack.c.h.b16 %v1850
    %v2031 = vunpack.c.l.b16 %v1851
    %v2032 = vunpack.c.h.b16 %v1851
    %v2033 = vunpack.c.l.b16 %v1852
    %v2034 = vunpack.c.h.b16 %v1852
    %v2035 = vunpack.c.l.b16 %v1853
    %v2036 = vunpack.c.h.b16 %v1853
    %v2037 = vunpack.c.l.b16 %v1854
    %v2038 = vunpack.c.h.b16 %v1854
    %v2039 = vunpack.c.l.b16 %v1855
    %v2040 = vunpack.c.h.b16 %v1855
    %v2041 = vunpack.c.l.b16 %v1856
    %v2042 = vunpack.c.h.b16 %v1856
    %v2043 = vunpack.c.l.b16 %v1857
    %v2044 = vunpack.c.h.b16 %v1857
    %v2045 = vunpack.c.l.b16 %v1858
    %v2046 = vunpack.c.h.b16 %v1858
    %v2047 = vunpack.c.l.b16 %v1859
    %v2048 = vunpack.c.h.b16 %v1859
    %v2049 = vunpack.c.l.b16 %v1860
    %v2050 = vunpack.c.h.b16 %v1860
    %v2051 = vunpack.c.l.b16 %v1861
    %v2052 = vunpack.c.h.b16 %v1861
    %v2053 = vunpack.c.l.b16 %v1862
    %v2054 = vunpack.c.h.b16 %v1862
    %v2055 = vunpack.c.l.b16 %v1863
    %v2056 = vunpack.c.h.b16 %v1863
    %v2057 = vunpack.c.l.b16 %v1864
    %v2058 = vunpack.c.h.b16 %v1864
    %v2059 = vunpack.c.l.b16 %v1865
    %v2060 = vunpack.c.h.b16 %v1865
    %v2061 = vunpack.c.l.b16 %v1866
    %v2062 = vunpack.c.h.b16 %v1866
    %v2063 = vunpack.c.l.b16 %v1867
    %v2064 = vunpack.c.h.b16 %v1867
    %v2065 = vunpack.c.l.b16 %v1868
    %v2066 = vunpack.c.h.b16 %v1868
    %v2067 = vunpack.c.l.b16 %v1869
    %v2068 = vunpack.c.h.b16 %v1869
    %v2069 = vunpack.c.l.b16 %v1870
    %v2070 = vunpack.c.h.b16 %v1870
    %v2071 = vunpack.c.l.b16 %v1871
    %v2072 = vunpack.c.h.b16 %v1871
    %v2073 = vunpack.c.l.b16 %v1872
    %v2074 = vunpack.c.h.b16 %v1872
    %v2075 = vunpack.c.l.b16 %v1873
    %v2076 = vunpack.c.h.b16 %v1873
    %v2077 = vunpack.c.l.b16 %v1874
    %v2078 = vunpack.c.h.b16 %v1874
    %v2079 = vunpack.c.l.b16 %v1875
    %v2080 = vunpack.c.h.b16 %v1875
    %v2081 = vunpack.c.l.b16 %v1876
    %v2082 = vunpack.c.h.b16 %v1876
    %v2083 = vunpack.c.l.b16 %v1877
    %v2084 = vunpack.c.h.b16 %v1877
    %v2085 = vunpack.c.l.b16 %v1878
    %v2086 = vunpack.c.h.b16 %v1878
    %v2087 = vunpack.c.l.b16 %v1879
    %v2088 = vunpack.c.h.b16 %v1879
    %v2089 = vunpack.c.l.b16 %v1880
    %v2090 = vunpack.c.h.b16 %v1880
    %v2091 = vunpack.c.l.b16 %v1881
    %v2092 = vunpack.c.h.b16 %v1881
    %v2093 = vunpack.c.l.b16 %v1882
    %v2094 = vunpack.c.h.b16 %v1882
    %v2095 = vunpack.c.l.b16 %v1883
    %v2096 = vunpack.c.h.b16 %v1883
    %v2097 = vunpack.c.l.b16 %v1884
    %v2098 = vunpack.c.h.b16 %v1884
    %v2099 = vunpack.c.l.b16 %v1885
    %v2100 = vunpack.c.h.b16 %v1885
    %v2101 = vunpack.c.l.b16 %v1886
    %v2102 = vunpack.c.h.b16 %v1886
    %v2103 = vunpack.c.l.b16 %v1887
    %v2104 = vunpack.c.h.b16 %v1887
    %v2105 = vunpack.c.l.b16 %v1888
    %v2106 = vunpack.c.h.b16 %v1888
    %v2107 = vunpack.c.l.b16 %v1889
    %v2108 = vunpack.c.h.b16 %v1889
    %v2109 = vunpack.c.l.b16 %v1890
    %v2110 = vunpack.c.h.b16 %v1890
    %v2111 = vunpack.c.l.b16 %v1891
    %v2112 = vunpack.c.h.b16 %v1891
    %v2113 = vunpack.c.l.b16 %v1892
    %v2114 = vunpack.c.h.b16 %v1892
    %v2115 = vunpack.c.l.b16 %v1893
    %v2116 = vunpack.c.h.b16 %v1893
    %v2117 = vunpack.c.l.b16 %v1894
    %v2118 = vunpack.c.h.b16 %v1894
    %v2119 = vunpack.c.l.b16 %v1895
    %v2120 = vunpack.c.h.b16 %v1895
    %v2121 = vpack.c.b16 %v1977, %v1971
    %v2122 = vpack.c.b16 %v1978, %v1972
    %v2123 = vpack.c.b16 %v1979, %v1973
    %v2124 = vpack.c.b16 %v1980, %v1974
    %v2125 = vpack.c.b16 %v1981, %v1975
    %v2126 = vpack.c.b16 %v1982, %v1976
    %v2127 = vpack.c.b16 %v1989, %v1983
    %v2128 = vpack.c.b16 %v1990, %v1984
    %v2129 = vpack.c.b16 %v1991, %v1985
    %v2130 = vpack.c.b16 %v1992, %v1986
    %v2131 = vpack.c.b16 %v1993, %v1987
    %v2132 = vpack.c.b16 %v1994, %v1988
    %v2133 = vpack.c.b16 %v2001, %v1995
    %v2134 = vpack.c.b16 %v2002, %v1996
    %v2135 = vpack.c.b16 %v2003, %v1997
    %v2136 = vpack.c.b16 %v2004, %v1998
    %v2137 = vpack.c.b16 %v2005, %v1999
    %v2138 = vpack.c.b16 %v2006, %v2000
    %v2139 = vpack.c.b16 %v2013, %v2007
    %v2140 = vpack.c.b16 %v2014, %v2008
    %v2141 = vpack.c.b16 %v2015, %v2009
    %v2142 = vpack.c.b16 %v2016, %v2010
    %v2143 = vpack.c.b16 %v2017, %v2011
    %v2144 = vpack.c.b16 %v2018, %v2012
    %v2145 = vpack.c.b16 %v2025, %v2019
    %v2146 = vpack.c.b16 %v2026, %v2020
    %v2147 = vpack.c.b16 %v2027, %v2021
    %v2148 = vpack.c.b16 %v2028, %v2022
    %v2149 = vpack.c.b16 %v2029, %v2023
    %v2150 = vpack.c.b16 %v2030, %v2024
    %v2151 = vpack.c.b16 %v2037, %v2031
    %v2152 = vpack.c.b16 %v2038, %v2032
    %v2153 = vpack.c.b16 %v2039, %v2033
    %v2154 = vpack.c.b16 %v2040, %v2034
    %v2155 = vpack.c.b16 %v2041, %v2035
    %v2156 = vpack.c.b16 %v2042, %v2036
    %v2157 = vpack.c.b16 %v2049, %v2043
    %v2158 = vpack.c.b16 %v2050, %v2044
    %v2159 = vpack.c.b16 %v2051, %v2045
    %v2160 = vpack.c.b16 %v2052, %v2046
    %v2161 = vpack.c.b16 %v2053, %v2047
    %v2162 = vpack.c.b16 %v2054, %v2048
    %v2163 = vpack.c.b16 %v2061, %v2055
    %v2164 = vpack.c.b16 %v2062, %v2056
    %v2165 = vpack.c.b16 %v2063, %v2057
    %v2166 = vpack.c.b16 %v2064, %v2058
    %v2167 = vpack.c.b16 %v2065, %v2059
    %v2168 = vpack.c.b16 %v2066, %v2060
    %v2169 = vpack.c.b16 %v2073, %v2067
    %v2170 = vpack.c.b16 %v2074, %v2068
    %v2171 = vpack.c.b16 %v2075, %v2069
    %v2172 = vpack.c.b16 %v2076, %v2070
    %v2173 = vpack.c.b16 %v2077, %v2071
    %v2174 = vpack.c.b16 %v2078, %v2072
    %v2175 = vpack.c.b16 %v2085, %v2079
    %v2176 = vpack.c.b16 %v2086, %v2080
    %v2177 = vpack.c.b16 %v2087, %v2081
    %v2178 = vpack.c.b16 %v2088, %v2082
    %v2179 = vpack.c.b16 %v2089, %v2083
    %v2180 = vpack.c.b16 %v2090, %v2084
    %v2181 = vpack.c.b16 %v2097, %v2091
    %v2182 = vpack.c.b16 %v2098, %v2092
    %v2183 = vpack.c.b16 %v2099, %v2093
    %v2184 = vpack.c.b16 %v2100, %v2094
    %v2185 = vpack.c.b16 %v2101, %v2095
    %v2186 = vpack.c.b16 %v2102, %v2096
    %v2187 = vpack.c.b16 %v2109, %v2103
    %v2188 = vpack.c.b16 %v2110, %v2104
    %v2189 = vpack.c.b16 %v2111, %v2105
    %v2190 = vpack.c.b16 %v2112, %v2106
    %v2191 = vpack.c.b16 %v2113, %v2107
    %v2192 = vpack.c.b16 %v2114, %v2108
    %v2193 = vpack.c.b16 %v2115, %v2115
    %v2194 = vpack.c.b16 %v2116, %v2116
    %v2195 = vpack.c.b16 %v2117, %v2117
    %v2196 = vpack.c.b16 %v2118, %v2118
    %v2197 = vpack.c.b16 %v2119, %v2119
    %v2198 = vpack.c.b16 %v2120, %v2120
    %2277 = vmatprep.subr.bf16.mxu0 0
    %2278 = vmatpush1.bf16.msra.mxu0 %v837
    %2279 = vmatprep.subr.bf16.mxu0 0
    %2280 = vmatpush1.bf16.msra.mxu0 %v836
    %2281 = vmatprep.subr.bf16.mxu0 0
    %2282 = vmatpush1.bf16.msra.mxu0 %v835
    %2283 = vmatprep.subr.bf16.mxu0 0
    %2284 = vmatpush1.bf16.msra.mxu0 %v834
    %2285 = vmatprep.subr.bf16.mxu0 0
    %2286 = vmatpush1.bf16.msra.mxu0 %v833
    %2287 = vmatprep.subr.bf16.mxu0 0
    %2288 = vmatpush1.bf16.msra.mxu0 %v832
    %2289 = vmatprep.subr.bf16.mxu0 0
    %2290 = vmatpush1.bf16.msra.mxu0 %v831
    %2291 = vmatprep.subr.bf16.mxu0 0
    %2292 = vmatpush1.bf16.msra.mxu0 %v830
    %2293 = vmatprep.subr.bf16.mxu0 0
    %2294 = vmatpush2.bf16.msra.mxu0 %v845
    %2295 = vmatprep.subr.bf16.mxu0 0
    %2296 = vmatpush2.bf16.msra.mxu0 %v844
    %2297 = vmatprep.subr.bf16.mxu0 0
    %2298 = vmatpush2.bf16.msra.mxu0 %v843
    %2299 = vmatprep.subr.bf16.mxu0 0
    %2300 = vmatpush2.bf16.msra.mxu0 %v842
    %2301 = vmatprep.subr.bf16.mxu0 0
    %2302 = vmatpush2.bf16.msra.mxu0 %v841
    %2303 = vmatprep.subr.bf16.mxu0 0
    %2304 = vmatpush2.bf16.msra.mxu0 %v840
    %2305 = vmatprep.subr.bf16.mxu0 0
    %2306 = vmatpush2.bf16.msra.mxu0 %v839
    %2307 = vmatprep.subr.bf16.mxu0 0
    %2308 = vmatpush2.bf16.msra.mxu0 %v838
    %2309 = vmatprep.mubr.bf16.mxu0 %v2122
    %2310 = vmatmul.mubr.bf16.gmra.mxu0 %v2121
    %v2311 = vpop.f32.mrf.mxu0
    %v2312 = vadd.f32 0.0, %v2311
    %v2313 = vpop.f32.mrf.mxu0
    %v2314 = vpop.f32.mrf.mxu0
    %v2315 = vadd.f32 0.0, %v2314
    %v2316 = vpop.f32.mrf.mxu0
    %2317 = vmatprep.mubr.bf16.mxu0 %v2128
    %2318 = vmatmul.mubr.bf16.gmra.mxu0 %v2127
    %v2319 = vpop.f32.mrf.mxu0
    %v2320 = vadd.f32 0.0, %v2319
    %v2321 = vpop.f32.mrf.mxu0
    %v2322 = vpop.f32.mrf.mxu0
    %v2323 = vadd.f32 0.0, %v2322
    %v2324 = vpop.f32.mrf.mxu0
    %2325 = vmatprep.mubr.bf16.mxu0 %v2134
    %2326 = vmatmul.mubr.bf16.gmra.mxu0 %v2133
    %v2327 = vpop.f32.mrf.mxu0
    %v2328 = vadd.f32 0.0, %v2327
    %v2329 = vpop.f32.mrf.mxu0
    %v2330 = vpop.f32.mrf.mxu0
    %v2331 = vadd.f32 0.0, %v2330
    %v2332 = vpop.f32.mrf.mxu0
    %2333 = vmatprep.mubr.bf16.mxu0 %v2140
    %2334 = vmatmul.mubr.bf16.gmra.mxu0 %v2139
    %v2335 = vpop.f32.mrf.mxu0
    %v2336 = vadd.f32 0.0, %v2335
    %v2337 = vpop.f32.mrf.mxu0
    %v2338 = vpop.f32.mrf.mxu0
    %v2339 = vadd.f32 0.0, %v2338
    %v2340 = vpop.f32.mrf.mxu0
    %2341 = vmatprep.mubr.bf16.mxu0 %v2146
    %2342 = vmatmul.mubr.bf16.gmra.mxu0 %v2145
    %v2343 = vpop.f32.mrf.mxu0
    %v2344 = vadd.f32 0.0, %v2343
    %v2345 = vpop.f32.mrf.mxu0
    %v2346 = vpop.f32.mrf.mxu0
    %v2347 = vadd.f32 0.0, %v2346
    %v2348 = vpop.f32.mrf.mxu0
    %2349 = vmatprep.mubr.bf16.mxu0 %v2152
    %2350 = vmatmul.mubr.bf16.gmra.mxu0 %v2151
    %v2351 = vpop.f32.mrf.mxu0
    %v2352 = vadd.f32 0.0, %v2351
    %v2353 = vpop.f32.mrf.mxu0
    %v2354 = vpop.f32.mrf.mxu0
    %v2355 = vadd.f32 0.0, %v2354
    %v2356 = vpop.f32.mrf.mxu0
    %2357 = vmatprep.mubr.bf16.mxu0 %v2158
    %2358 = vmatmul.mubr.bf16.gmra.mxu0 %v2157
    %v2359 = vpop.f32.mrf.mxu0
    %v2360 = vadd.f32 0.0, %v2359
    %v2361 = vpop.f32.mrf.mxu0
    %v2362 = vpop.f32.mrf.mxu0
    %v2363 = vadd.f32 0.0, %v2362
    %v2364 = vpop.f32.mrf.mxu0
    %2365 = vmatprep.mubr.bf16.mxu0 %v2164
    %2366 = vmatmul.mubr.bf16.gmra.mxu0 %v2163
    %v2367 = vpop.f32.mrf.mxu0
    %v2368 = vadd.f32 0.0, %v2367
    %v2369 = vpop.f32.mrf.mxu0
    %v2370 = vpop.f32.mrf.mxu0
    %v2371 = vadd.f32 0.0, %v2370
    %v2372 = vpop.f32.mrf.mxu0
    %2373 = vmatprep.mubr.bf16.mxu0 %v2170
    %2374 = vmatmul.mubr.bf16.gmra.mxu0 %v2169
    %v2375 = vpop.f32.mrf.mxu0
    %v2376 = vadd.f32 0.0, %v2375
    %v2377 = vpop.f32.mrf.mxu0
    %v2378 = vpop.f32.mrf.mxu0
    %v2379 = vadd.f32 0.0, %v2378
    %v2380 = vpop.f32.mrf.mxu0
    %2381 = vmatprep.mubr.bf16.mxu0 %v2176
    %2382 = vmatmul.mubr.bf16.gmra.mxu0 %v2175
    %v2383 = vpop.f32.mrf.mxu0
    %v2384 = vadd.f32 0.0, %v2383
    %v2385 = vpop.f32.mrf.mxu0
    %v2386 = vpop.f32.mrf.mxu0
    %v2387 = vadd.f32 0.0, %v2386
    %v2388 = vpop.f32.mrf.mxu0
    %2389 = vmatprep.mubr.bf16.mxu0 %v2182
    %2390 = vmatmul.mubr.bf16.gmra.mxu0 %v2181
    %v2391 = vpop.f32.mrf.mxu0
    %v2392 = vadd.f32 0.0, %v2391
    %v2393 = vpop.f32.mrf.mxu0
    %v2394 = vpop.f32.mrf.mxu0
    %v2395 = vadd.f32 0.0, %v2394
    %v2396 = vpop.f32.mrf.mxu0
    %2397 = vmatprep.mubr.bf16.mxu0 %v2188
    %2398 = vmatmul.mubr.bf16.gmra.mxu0 %v2187
    %v2399 = vpop.f32.mrf.mxu0
    %v2400 = vadd.f32 0.0, %v2399
    %v2401 = vpop.f32.mrf.mxu0
    %v2402 = vpop.f32.mrf.mxu0
    %v2403 = vadd.f32 0.0, %v2402
    %v2404 = vpop.f32.mrf.mxu0
    %2405 = vmatprep.mubr.bf16.mxu0 %v2194
    %2406 = vmatmul.mubr.bf16.gmra.mxu0 %v2193
    %v2407 = vpop.f32.mrf.mxu0
    %v2408 = vadd.f32 0.0, %v2407
    %v2409 = vpop.f32.mrf.mxu0
    %v2410 = vpop.f32.mrf.mxu0
    %v2411 = vpop.f32.mrf.mxu0
    %2412 = vdwg.mxu0
    %2413 = vmatprep.subr.bf16.mxu0 0
    %2414 = vmatpush1.bf16.msra.mxu0 %v853
    %2415 = vmatprep.subr.bf16.mxu0 0
    %2416 = vmatpush1.bf16.msra.mxu0 %v852
    %2417 = vmatprep.subr.bf16.mxu0 0
    %2418 = vmatpush1.bf16.msra.mxu0 %v851
    %2419 = vmatprep.subr.bf16.mxu0 0
    %2420 = vmatpush1.bf16.msra.mxu0 %v850
    %2421 = vmatprep.subr.bf16.mxu0 0
    %2422 = vmatpush1.bf16.msra.mxu0 %v849
    %2423 = vmatprep.subr.bf16.mxu0 0
    %2424 = vmatpush1.bf16.msra.mxu0 %v848
    %2425 = vmatprep.subr.bf16.mxu0 0
    %2426 = vmatpush1.bf16.msra.mxu0 %v847
    %2427 = vmatprep.subr.bf16.mxu0 0
    %2428 = vmatpush1.bf16.msra.mxu0 %v846
    %2429 = vmatprep.subr.bf16.mxu0 0
    %2430 = vmatpush2.bf16.msra.mxu0 %v861
    %2431 = vmatprep.subr.bf16.mxu0 0
    %2432 = vmatpush2.bf16.msra.mxu0 %v860
    %2433 = vmatprep.subr.bf16.mxu0 0
    %2434 = vmatpush2.bf16.msra.mxu0 %v859
    %2435 = vmatprep.subr.bf16.mxu0 0
    %2436 = vmatpush2.bf16.msra.mxu0 %v858
    %2437 = vmatprep.subr.bf16.mxu0 0
    %2438 = vmatpush2.bf16.msra.mxu0 %v857
    %2439 = vmatprep.subr.bf16.mxu0 0
    %2440 = vmatpush2.bf16.msra.mxu0 %v856
    %2441 = vmatprep.subr.bf16.mxu0 0
    %2442 = vmatpush2.bf16.msra.mxu0 %v855
    %2443 = vmatprep.subr.bf16.mxu0 0
    %2444 = vmatpush2.bf16.msra.mxu0 %v854
    %2445 = vmatprep.mubr.bf16.mxu0 %v2124
    %2446 = vmatmul.mubr.bf16.gmra.mxu0 %v2123
    %v2447 = vpop.f32.mrf.mxu0
    %v2448 = vadd.f32 %v2312, %v2447
    %v2449 = vpop.f32.mrf.mxu0
    %v2450 = vpop.f32.mrf.mxu0
    %v2451 = vadd.f32 %v2315, %v2450
    %v2452 = vpop.f32.mrf.mxu0
    %2453 = vmatprep.mubr.bf16.mxu0 %v2130
    %2454 = vmatmul.mubr.bf16.gmra.mxu0 %v2129
    %v2455 = vpop.f32.mrf.mxu0
    %v2456 = vadd.f32 %v2320, %v2455
    %v2457 = vpop.f32.mrf.mxu0
    %v2458 = vpop.f32.mrf.mxu0
    %v2459 = vadd.f32 %v2323, %v2458
    %v2460 = vpop.f32.mrf.mxu0
    %2461 = vmatprep.mubr.bf16.mxu0 %v2136
    %2462 = vmatmul.mubr.bf16.gmra.mxu0 %v2135
    %v2463 = vpop.f32.mrf.mxu0
    %v2464 = vadd.f32 %v2328, %v2463
    %v2465 = vpop.f32.mrf.mxu0
    %v2466 = vpop.f32.mrf.mxu0
    %v2467 = vadd.f32 %v2331, %v2466
    %v2468 = vpop.f32.mrf.mxu0
    %2469 = vmatprep.mubr.bf16.mxu0 %v2142
    %2470 = vmatmul.mubr.bf16.gmra.mxu0 %v2141
    %v2471 = vpop.f32.mrf.mxu0
    %v2472 = vadd.f32 %v2336, %v2471
    %v2473 = vpop.f32.mrf.mxu0
    %v2474 = vpop.f32.mrf.mxu0
    %v2475 = vadd.f32 %v2339, %v2474
    %v2476 = vpop.f32.mrf.mxu0
    %2477 = vmatprep.mubr.bf16.mxu0 %v2148
    %2478 = vmatmul.mubr.bf16.gmra.mxu0 %v2147
    %v2479 = vpop.f32.mrf.mxu0
    %v2480 = vadd.f32 %v2344, %v2479
    %v2481 = vpop.f32.mrf.mxu0
    %v2482 = vpop.f32.mrf.mxu0
    %v2483 = vadd.f32 %v2347, %v2482
    %v2484 = vpop.f32.mrf.mxu0
    %2485 = vmatprep.mubr.bf16.mxu0 %v2154
    %2486 = vmatmul.mubr.bf16.gmra.mxu0 %v2153
    %v2487 = vpop.f32.mrf.mxu0
    %v2488 = vadd.f32 %v2352, %v2487
    %v2489 = vpop.f32.mrf.mxu0
    %v2490 = vpop.f32.mrf.mxu0
    %v2491 = vadd.f32 %v2355, %v2490
    %v2492 = vpop.f32.mrf.mxu0
    %2493 = vmatprep.mubr.bf16.mxu0 %v2160
    %2494 = vmatmul.mubr.bf16.gmra.mxu0 %v2159
    %v2495 = vpop.f32.mrf.mxu0
    %v2496 = vadd.f32 %v2360, %v2495
    %v2497 = vpop.f32.mrf.mxu0
    %v2498 = vpop.f32.mrf.mxu0
    %v2499 = vadd.f32 %v2363, %v2498
    %v2500 = vpop.f32.mrf.mxu0
    %2501 = vmatprep.mubr.bf16.mxu0 %v2166
    %2502 = vmatmul.mubr.bf16.gmra.mxu0 %v2165
    %v2503 = vpop.f32.mrf.mxu0
    %v2504 = vadd.f32 %v2368, %v2503
    %v2505 = vpop.f32.mrf.mxu0
    %v2506 = vpop.f32.mrf.mxu0
    %v2507 = vadd.f32 %v2371, %v2506
    %v2508 = vpop.f32.mrf.mxu0
    %2509 = vmatprep.mubr.bf16.mxu0 %v2172
    %2510 = vmatmul.mubr.bf16.gmra.mxu0 %v2171
    %v2511 = vpop.f32.mrf.mxu0
    %v2512 = vadd.f32 %v2376, %v2511
    %v2513 = vpop.f32.mrf.mxu0
    %v2514 = vpop.f32.mrf.mxu0
    %v2515 = vadd.f32 %v2379, %v2514
    %v2516 = vpop.f32.mrf.mxu0
    %2517 = vmatprep.mubr.bf16.mxu0 %v2178
    %2518 = vmatmul.mubr.bf16.gmra.mxu0 %v2177
    %v2519 = vpop.f32.mrf.mxu0
    %v2520 = vadd.f32 %v2384, %v2519
    %v2521 = vpop.f32.mrf.mxu0
    %v2522 = vpop.f32.mrf.mxu0
    %v2523 = vadd.f32 %v2387, %v2522
    %v2524 = vpop.f32.mrf.mxu0
    %2525 = vmatprep.mubr.bf16.mxu0 %v2184
    %2526 = vmatmul.mubr.bf16.gmra.mxu0 %v2183
    %v2527 = vpop.f32.mrf.mxu0
    %v2528 = vadd.f32 %v2392, %v2527
    %v2529 = vpop.f32.mrf.mxu0
    %v2530 = vpop.f32.mrf.mxu0
    %v2531 = vadd.f32 %v2395, %v2530
    %v2532 = vpop.f32.mrf.mxu0
    %2533 = vmatprep.mubr.bf16.mxu0 %v2190
    %2534 = vmatmul.mubr.bf16.gmra.mxu0 %v2189
    %v2535 = vpop.f32.mrf.mxu0
    %v2536 = vadd.f32 %v2400, %v2535
    %v2537 = vpop.f32.mrf.mxu0
    %v2538 = vpop.f32.mrf.mxu0
    %v2539 = vadd.f32 %v2403, %v2538
    %v2540 = vpop.f32.mrf.mxu0
    %2541 = vmatprep.mubr.bf16.mxu0 %v2196
    %2542 = vmatmul.mubr.bf16.gmra.mxu0 %v2195
    %v2543 = vpop.f32.mrf.mxu0
    %v2544 = vadd.f32 %v2408, %v2543
    %v2545 = vpop.f32.mrf.mxu0
    %v2546 = vpop.f32.mrf.mxu0
    %v2547 = vpop.f32.mrf.mxu0
    %2548 = vdwg.mxu0
    %2549 = vmatprep.subr.bf16.mxu0 0
    %2550 = vmatpush1.bf16.msra.mxu0 %v869
    %2551 = vmatprep.subr.bf16.mxu0 0
    %2552 = vmatpush1.bf16.msra.mxu0 %v868
    %2553 = vmatprep.subr.bf16.mxu0 0
    %2554 = vmatpush1.bf16.msra.mxu0 %v867
    %2555 = vmatprep.subr.bf16.mxu0 0
    %2556 = vmatpush1.bf16.msra.mxu0 %v866
    %2557 = vmatprep.subr.bf16.mxu0 0
    %2558 = vmatpush1.bf16.msra.mxu0 %v865
    %2559 = vmatprep.subr.bf16.mxu0 0
    %2560 = vmatpush1.bf16.msra.mxu0 %v864
    %2561 = vmatprep.subr.bf16.mxu0 0
    %2562 = vmatpush1.bf16.msra.mxu0 %v863
    %2563 = vmatprep.subr.bf16.mxu0 0
    %2564 = vmatpush1.bf16.msra.mxu0 %v862
    %2565 = vmatprep.subr.bf16.mxu0 0
    %2566 = vmatpush2.bf16.msra.mxu0 %v877
    %2567 = vmatprep.subr.bf16.mxu0 0
    %2568 = vmatpush2.bf16.msra.mxu0 %v876
    %2569 = vmatprep.subr.bf16.mxu0 0
    %2570 = vmatpush2.bf16.msra.mxu0 %v875
    %2571 = vmatprep.subr.bf16.mxu0 0
    %2572 = vmatpush2.bf16.msra.mxu0 %v874
    %2573 = vmatprep.subr.bf16.mxu0 0
    %2574 = vmatpush2.bf16.msra.mxu0 %v873
    %2575 = vmatprep.subr.bf16.mxu0 0
    %2576 = vmatpush2.bf16.msra.mxu0 %v872
    %2577 = vmatprep.subr.bf16.mxu0 0
    %2578 = vmatpush2.bf16.msra.mxu0 %v871
    %2579 = vmatprep.subr.bf16.mxu0 0
    %2580 = vmatpush2.bf16.msra.mxu0 %v870
    %2581 = vmatprep.mubr.bf16.mxu0 %v2126
    %2582 = vmatmul.mubr.bf16.gmra.mxu0 %v2125
    %v2583 = vpop.f32.mrf.mxu0
    %v2584 = vadd.f32 %v2448, %v2583
    %v2585 = vpop.f32.mrf.mxu0
    %v2586 = vpop.f32.mrf.mxu0
    %v2587 = vadd.f32 %v2451, %v2586
    %v2588 = vpop.f32.mrf.mxu0
    %2589 = vmatprep.mubr.bf16.mxu0 %v2132
    %2590 = vmatmul.mubr.bf16.gmra.mxu0 %v2131
    %v2591 = vpop.f32.mrf.mxu0
    %v2592 = vadd.f32 %v2456, %v2591
    %v2593 = vpop.f32.mrf.mxu0
    %v2594 = vpop.f32.mrf.mxu0
    %v2595 = vadd.f32 %v2459, %v2594
    %v2596 = vpop.f32.mrf.mxu0
    %2597 = vmatprep.mubr.bf16.mxu0 %v2138
    %2598 = vmatmul.mubr.bf16.gmra.mxu0 %v2137
    %v2599 = vpop.f32.mrf.mxu0
    %v2600 = vadd.f32 %v2464, %v2599
    %v2601 = vpop.f32.mrf.mxu0
    %v2602 = vpop.f32.mrf.mxu0
    %v2603 = vadd.f32 %v2467, %v2602
    %v2604 = vpop.f32.mrf.mxu0
    %2605 = vmatprep.mubr.bf16.mxu0 %v2144
    %2606 = vmatmul.mubr.bf16.gmra.mxu0 %v2143
    %v2607 = vpop.f32.mrf.mxu0
    %v2608 = vadd.f32 %v2472, %v2607
    %v2609 = vpop.f32.mrf.mxu0
    %v2610 = vpop.f32.mrf.mxu0
    %v2611 = vadd.f32 %v2475, %v2610
    %v2612 = vpop.f32.mrf.mxu0
    %2613 = vmatprep.mubr.bf16.mxu0 %v2150
    %2614 = vmatmul.mubr.bf16.gmra.mxu0 %v2149
    %v2615 = vpop.f32.mrf.mxu0
    %v2616 = vadd.f32 %v2480, %v2615
    %v2617 = vpop.f32.mrf.mxu0
    %v2618 = vpop.f32.mrf.mxu0
    %v2619 = vadd.f32 %v2483, %v2618
    %v2620 = vpop.f32.mrf.mxu0
    %2621 = vmatprep.mubr.bf16.mxu0 %v2156
    %2622 = vmatmul.mubr.bf16.gmra.mxu0 %v2155
    %v2623 = vpop.f32.mrf.mxu0
    %v2624 = vadd.f32 %v2488, %v2623
    %v2625 = vpop.f32.mrf.mxu0
    %v2626 = vpop.f32.mrf.mxu0
    %v2627 = vadd.f32 %v2491, %v2626
    %v2628 = vpop.f32.mrf.mxu0
    %2629 = vmatprep.mubr.bf16.mxu0 %v2162
    %2630 = vmatmul.mubr.bf16.gmra.mxu0 %v2161
    %v2631 = vpop.f32.mrf.mxu0
    %v2632 = vadd.f32 %v2496, %v2631
    %v2633 = vpop.f32.mrf.mxu0
    %v2634 = vpop.f32.mrf.mxu0
    %v2635 = vadd.f32 %v2499, %v2634
    %v2636 = vpop.f32.mrf.mxu0
    %2637 = vmatprep.mubr.bf16.mxu0 %v2168
    %2638 = vmatmul.mubr.bf16.gmra.mxu0 %v2167
    %v2639 = vpop.f32.mrf.mxu0
    %v2640 = vadd.f32 %v2504, %v2639
    %v2641 = vpop.f32.mrf.mxu0
    %v2642 = vpop.f32.mrf.mxu0
    %v2643 = vadd.f32 %v2507, %v2642
    %v2644 = vpop.f32.mrf.mxu0
    %2645 = vmatprep.mubr.bf16.mxu0 %v2174
    %2646 = vmatmul.mubr.bf16.gmra.mxu0 %v2173
    %v2647 = vpop.f32.mrf.mxu0
    %v2648 = vadd.f32 %v2512, %v2647
    %v2649 = vpop.f32.mrf.mxu0
    %v2650 = vpop.f32.mrf.mxu0
    %v2651 = vadd.f32 %v2515, %v2650
    %v2652 = vpop.f32.mrf.mxu0
    %2653 = vmatprep.mubr.bf16.mxu0 %v2180
    %2654 = vmatmul.mubr.bf16.gmra.mxu0 %v2179
    %v2655 = vpop.f32.mrf.mxu0
    %v2656 = vadd.f32 %v2520, %v2655
    %v2657 = vpop.f32.mrf.mxu0
    %v2658 = vpop.f32.mrf.mxu0
    %v2659 = vadd.f32 %v2523, %v2658
    %v2660 = vpop.f32.mrf.mxu0
    %2661 = vmatprep.mubr.bf16.mxu0 %v2186
    %2662 = vmatmul.mubr.bf16.gmra.mxu0 %v2185
    %v2663 = vpop.f32.mrf.mxu0
    %v2664 = vadd.f32 %v2528, %v2663
    %v2665 = vpop.f32.mrf.mxu0
    %v2666 = vpop.f32.mrf.mxu0
    %v2667 = vadd.f32 %v2531, %v2666
    %v2668 = vpop.f32.mrf.mxu0
    %2669 = vmatprep.mubr.bf16.mxu0 %v2192
    %2670 = vmatmul.mubr.bf16.gmra.mxu0 %v2191
    %v2671 = vpop.f32.mrf.mxu0
    %v2672 = vadd.f32 %v2536, %v2671
    %v2673 = vpop.f32.mrf.mxu0
    %v2674 = vpop.f32.mrf.mxu0
    %v2675 = vadd.f32 %v2539, %v2674
    %v2676 = vpop.f32.mrf.mxu0
    %2677 = vmatprep.mubr.bf16.mxu0 %v2198
    %2678 = vmatmul.mubr.bf16.gmra.mxu0 %v2197
    %v2679 = vpop.f32.mrf.mxu0
    %v2680 = vadd.f32 %v2544, %v2679
    %v2681 = vpop.f32.mrf.mxu0
    %v2682 = vpop.f32.mrf.mxu0
    %v2683 = vpop.f32.mrf.mxu0
    %2684 = vdwg.mxu0
    %v2685 = vmul.f32 %v2584, %v1338
    %v2686 = vmul.f32 %v2587, %v1338
    %v2687 = vmul.f32 %v2592, %v1338
    %v2688 = vmul.f32 %v2595, %v1338
    %v2689 = vmul.f32 %v2600, %v1338
    %v2690 = vmul.f32 %v2603, %v1338
    %v2691 = vmul.f32 %v2608, %v1338
    %v2692 = vmul.f32 %v2611, %v1338
    %v2693 = vmul.f32 %v2616, %v1338
    %v2694 = vmul.f32 %v2619, %v1338
    %v2695 = vmul.f32 %v2624, %v1338
    %v2696 = vmul.f32 %v2627, %v1338
    %v2697 = vmul.f32 %v2632, %v1338
    %v2698 = vmul.f32 %v2635, %v1338
    %v2699 = vmul.f32 %v2640, %v1338
    %v2700 = vmul.f32 %v2643, %v1338
    %v2701 = vmul.f32 %v2648, %v1338
    %v2702 = vmul.f32 %v2651, %v1338
    %v2703 = vmul.f32 %v2656, %v1338
    %v2704 = vmul.f32 %v2659, %v1338
    %v2705 = vmul.f32 %v2664, %v1338
    %v2706 = vmul.f32 %v2667, %v1338
    %v2707 = vmul.f32 %v2672, %v1338
    %v2708 = vmul.f32 %v2675, %v1338
    %v2709 = vmul.f32 %v2680, %v1338
    %v2710 = vadd.f32 %v2685, %v1369
    %v2711 = vadd.f32 %v2686, %v1369
    %v2712 = vadd.f32 %v2687, %v1369
    %v2713 = vadd.f32 %v2688, %v1369
    %v2714 = vadd.f32 %v2689, %v1369
    %v2715 = vadd.f32 %v2690, %v1369
    %v2716 = vadd.f32 %v2691, %v1369
    %v2717 = vadd.f32 %v2692, %v1369
    %v2718 = vadd.f32 %v2693, %v1369
    %v2719 = vadd.f32 %v2694, %v1369
    %v2720 = vadd.f32 %v2695, %v1369
    %v2721 = vadd.f32 %v2696, %v1369
    %v2722 = vadd.f32 %v2697, %v1369
    %v2723 = vadd.f32 %v2698, %v1369
    %v2724 = vadd.f32 %v2699, %v1369
    %v2725 = vadd.f32 %v2700, %v1369
    %v2726 = vadd.f32 %v2701, %v1369
    %v2727 = vadd.f32 %v2702, %v1369
    %v2728 = vadd.f32 %v2703, %v1369
    %v2729 = vadd.f32 %v2704, %v1369
    %v2730 = vadd.f32 %v2705, %v1369
    %v2731 = vadd.f32 %v2706, %v1369
    %v2732 = vadd.f32 %v2707, %v1369
    %v2733 = vadd.f32 %v2708, %v1369
    %v2734 = vadd.f32 %v2709, %v1369
    %v2735 = vxor.u32 %v2710, 2147483648
    %v2736 = vxor.u32 %v2711, 2147483648
    %v2737 = vxor.u32 %v2712, 2147483648
    %v2738 = vxor.u32 %v2713, 2147483648
    %v2739 = vxor.u32 %v2714, 2147483648
    %v2740 = vxor.u32 %v2715, 2147483648
    %v2741 = vxor.u32 %v2716, 2147483648
    %v2742 = vxor.u32 %v2717, 2147483648
    %v2743 = vxor.u32 %v2718, 2147483648
    %v2744 = vxor.u32 %v2719, 2147483648
    %v2745 = vxor.u32 %v2720, 2147483648
    %v2746 = vxor.u32 %v2721, 2147483648
    %v2747 = vxor.u32 %v2722, 2147483648
    %v2748 = vxor.u32 %v2723, 2147483648
    %v2749 = vxor.u32 %v2724, 2147483648
    %v2750 = vxor.u32 %v2725, 2147483648
    %v2751 = vxor.u32 %v2726, 2147483648
    %v2752 = vxor.u32 %v2727, 2147483648
    %v2753 = vxor.u32 %v2728, 2147483648
    %v2754 = vxor.u32 %v2729, 2147483648
    %v2755 = vxor.u32 %v2730, 2147483648
    %v2756 = vxor.u32 %v2731, 2147483648
    %v2757 = vxor.u32 %v2732, 2147483648
    %v2758 = vxor.u32 %v2733, 2147483648
    %v2759 = vxor.u32 %v2734, 2147483648
    %v2760 = vmul.f32 %v2735, 1.442695
    %v2761 = vpow.pop %v2760
    %v2762 = vmul.f32 %v2736, 1.442695
    %v2763 = vpow.pop %v2762
    %v2764 = vmul.f32 %v2737, 1.442695
    %v2765 = vpow.pop %v2764
    %v2766 = vmul.f32 %v2738, 1.442695
    %v2767 = vpow.pop %v2766
    %v2768 = vmul.f32 %v2739, 1.442695
    %v2769 = vpow.pop %v2768
    %v2770 = vmul.f32 %v2740, 1.442695
    %v2771 = vpow.pop %v2770
    %v2772 = vmul.f32 %v2741, 1.442695
    %v2773 = vpow.pop %v2772
    %v2774 = vmul.f32 %v2742, 1.442695
    %v2775 = vpow.pop %v2774
    %v2776 = vmul.f32 %v2743, 1.442695
    %v2777 = vpow.pop %v2776
    %v2778 = vmul.f32 %v2744, 1.442695
    %v2779 = vpow.pop %v2778
    %v2780 = vmul.f32 %v2745, 1.442695
    %v2781 = vpow.pop %v2780
    %v2782 = vmul.f32 %v2746, 1.442695
    %v2783 = vpow.pop %v2782
    %v2784 = vmul.f32 %v2747, 1.442695
    %v2785 = vpow.pop %v2784
    %v2786 = vmul.f32 %v2748, 1.442695
    %v2787 = vpow.pop %v2786
    %v2788 = vmul.f32 %v2749, 1.442695
    %v2789 = vpow.pop %v2788
    %v2790 = vmul.f32 %v2750, 1.442695
    %v2791 = vpow.pop %v2790
    %v2792 = vmul.f32 %v2751, 1.442695
    %v2793 = vpow.pop %v2792
    %v2794 = vmul.f32 %v2752, 1.442695
    %v2795 = vpow.pop %v2794
    %v2796 = vmul.f32 %v2753, 1.442695
    %v2797 = vpow.pop %v2796
    %v2798 = vmul.f32 %v2754, 1.442695
    %v2799 = vpow.pop %v2798
    %v2800 = vmul.f32 %v2755, 1.442695
    %v2801 = vpow.pop %v2800
    %v2802 = vmul.f32 %v2756, 1.442695
    %v2803 = vpow.pop %v2802
    %v2804 = vmul.f32 %v2757, 1.442695
    %v2805 = vpow.pop %v2804
    %v2806 = vmul.f32 %v2758, 1.442695
    %v2807 = vpow.pop %v2806
    %v2808 = vmul.f32 %v2759, 1.442695
    %v2809 = vpow.pop %v2808
    %v2810 = vadd.f32 %v2761, 1.0
    %v2811 = vadd.f32 %v2763, 1.0
    %v2812 = vadd.f32 %v2765, 1.0
    %v2813 = vadd.f32 %v2767, 1.0
    %v2814 = vadd.f32 %v2769, 1.0
    %v2815 = vadd.f32 %v2771, 1.0
    %v2816 = vadd.f32 %v2773, 1.0
    %v2817 = vadd.f32 %v2775, 1.0
    %v2818 = vadd.f32 %v2777, 1.0
    %v2819 = vadd.f32 %v2779, 1.0
    %v2820 = vadd.f32 %v2781, 1.0
    %v2821 = vadd.f32 %v2783, 1.0
    %v2822 = vadd.f32 %v2785, 1.0
    %v2823 = vadd.f32 %v2787, 1.0
    %v2824 = vadd.f32 %v2789, 1.0
    %v2825 = vadd.f32 %v2791, 1.0
    %v2826 = vadd.f32 %v2793, 1.0
    %v2827 = vadd.f32 %v2795, 1.0
    %v2828 = vadd.f32 %v2797, 1.0
    %v2829 = vadd.f32 %v2799, 1.0
    %v2830 = vadd.f32 %v2801, 1.0
    %v2831 = vadd.f32 %v2803, 1.0
    %v2832 = vadd.f32 %v2805, 1.0
    %v2833 = vadd.f32 %v2807, 1.0
    %v2834 = vadd.f32 %v2809, 1.0
    %v2835 = vrcp.pop %v2810
    %v2836 = vmul.f32 1.0, %v2835
    %v2837 = vrcp.pop %v2811
    %v2838 = vmul.f32 1.0, %v2837
    %v2839 = vrcp.pop %v2812
    %v2840 = vmul.f32 1.0, %v2839
    %v2841 = vrcp.pop %v2813
    %v2842 = vmul.f32 1.0, %v2841
    %v2843 = vrcp.pop %v2814
    %v2844 = vmul.f32 1.0, %v2843
    %v2845 = vrcp.pop %v2815
    %v2846 = vmul.f32 1.0, %v2845
    %v2847 = vrcp.pop %v2816
    %v2848 = vmul.f32 1.0, %v2847
    %v2849 = vrcp.pop %v2817
    %v2850 = vmul.f32 1.0, %v2849
    %v2851 = vrcp.pop %v2818
    %v2852 = vmul.f32 1.0, %v2851
    %v2853 = vrcp.pop %v2819
    %v2854 = vmul.f32 1.0, %v2853
    %v2855 = vrcp.pop %v2820
    %v2856 = vmul.f32 1.0, %v2855
    %v2857 = vrcp.pop %v2821
    %v2858 = vmul.f32 1.0, %v2857
    %v2859 = vrcp.pop %v2822
    %v2860 = vmul.f32 1.0, %v2859
    %v2861 = vrcp.pop %v2823
    %v2862 = vmul.f32 1.0, %v2861
    %v2863 = vrcp.pop %v2824
    %v2864 = vmul.f32 1.0, %v2863
    %v2865 = vrcp.pop %v2825
    %v2866 = vmul.f32 1.0, %v2865
    %v2867 = vrcp.pop %v2826
    %v2868 = vmul.f32 1.0, %v2867
    %v2869 = vrcp.pop %v2827
    %v2870 = vmul.f32 1.0, %v2869
    %v2871 = vrcp.pop %v2828
    %v2872 = vmul.f32 1.0, %v2871
    %v2873 = vrcp.pop %v2829
    %v2874 = vmul.f32 1.0, %v2873
    %v2875 = vrcp.pop %v2830
    %v2876 = vmul.f32 1.0, %v2875
    %v2877 = vrcp.pop %v2831
    %v2878 = vmul.f32 1.0, %v2877
    %v2879 = vrcp.pop %v2832
    %v2880 = vmul.f32 1.0, %v2879
    %v2881 = vrcp.pop %v2833
    %v2882 = vmul.f32 1.0, %v2881
    %v2883 = vrcp.pop %v2834
    %v2884 = vmul.f32 1.0, %v2883
    %v2885 = vsel %vm1546, %v2836, 0.0
    %2886 = vadd.xlane.f32.xlu0 %v2885
    %v2887 = vpop.xlane.xlu0 %2886
    %v2888 = vsel %vm1546, %v2838, 0.0
    %2889 = vadd.xlane.f32.xlu0 %v2888
    %v2890 = vpop.xlane.xlu0 %2889
    %v2891 = vsel %vm1546, %v2840, 0.0
    %2892 = vadd.xlane.f32.xlu0 %v2891
    %v2893 = vpop.xlane.xlu0 %2892
    %v2894 = vsel %vm1546, %v2842, 0.0
    %2895 = vadd.xlane.f32.xlu0 %v2894
    %v2896 = vpop.xlane.xlu0 %2895
    %v2897 = vsel %vm1546, %v2844, 0.0
    %2898 = vadd.xlane.f32.xlu0 %v2897
    %v2899 = vpop.xlane.xlu0 %2898
    %v2900 = vsel %vm1546, %v2846, 0.0
    %2901 = vadd.xlane.f32.xlu0 %v2900
    %v2902 = vpop.xlane.xlu0 %2901
    %v2903 = vsel %vm1546, %v2848, 0.0
    %2904 = vadd.xlane.f32.xlu0 %v2903
    %v2905 = vpop.xlane.xlu0 %2904
    %v2906 = vsel %vm1546, %v2850, 0.0
    %2907 = vadd.xlane.f32.xlu0 %v2906
    %v2908 = vpop.xlane.xlu0 %2907
    %v2909 = vsel %vm1546, %v2852, 0.0
    %2910 = vadd.xlane.f32.xlu0 %v2909
    %v2911 = vpop.xlane.xlu0 %2910
    %v2912 = vsel %vm1546, %v2854, 0.0
    %2913 = vadd.xlane.f32.xlu0 %v2912
    %v2914 = vpop.xlane.xlu0 %2913
    %v2915 = vsel %vm1546, %v2856, 0.0
    %2916 = vadd.xlane.f32.xlu0 %v2915
    %v2917 = vpop.xlane.xlu0 %2916
    %v2918 = vsel %vm1546, %v2858, 0.0
    %2919 = vadd.xlane.f32.xlu0 %v2918
    %v2920 = vpop.xlane.xlu0 %2919
    %v2921 = vsel %vm1546, %v2860, 0.0
    %2922 = vadd.xlane.f32.xlu0 %v2921
    %v2923 = vpop.xlane.xlu0 %2922
    %v2924 = vsel %vm1546, %v2862, 0.0
    %2925 = vadd.xlane.f32.xlu0 %v2924
    %v2926 = vpop.xlane.xlu0 %2925
    %v2927 = vsel %vm1546, %v2864, 0.0
    %2928 = vadd.xlane.f32.xlu0 %v2927
    %v2929 = vpop.xlane.xlu0 %2928
    %v2930 = vsel %vm1546, %v2866, 0.0
    %2931 = vadd.xlane.f32.xlu0 %v2930
    %v2932 = vpop.xlane.xlu0 %2931
    %v2933 = vsel %vm1546, %v2868, 0.0
    %2934 = vadd.xlane.f32.xlu0 %v2933
    %v2935 = vpop.xlane.xlu0 %2934
    %v2936 = vsel %vm1546, %v2870, 0.0
    %2937 = vadd.xlane.f32.xlu0 %v2936
    %v2938 = vpop.xlane.xlu0 %2937
    %v2939 = vsel %vm1546, %v2872, 0.0
    %2940 = vadd.xlane.f32.xlu0 %v2939
    %v2941 = vpop.xlane.xlu0 %2940
    %v2942 = vsel %vm1546, %v2874, 0.0
    %2943 = vadd.xlane.f32.xlu0 %v2942
    %v2944 = vpop.xlane.xlu0 %2943
    %v2945 = vsel %vm1546, %v2876, 0.0
    %2946 = vadd.xlane.f32.xlu0 %v2945
    %v2947 = vpop.xlane.xlu0 %2946
    %v2948 = vsel %vm1546, %v2878, 0.0
    %2949 = vadd.xlane.f32.xlu0 %v2948
    %v2950 = vpop.xlane.xlu0 %2949
    %v2951 = vsel %vm1546, %v2880, 0.0
    %2952 = vadd.xlane.f32.xlu0 %v2951
    %v2953 = vpop.xlane.xlu0 %2952
    %v2954 = vsel %vm1546, %v2882, 0.0
    %2955 = vadd.xlane.f32.xlu0 %v2954
    %v2956 = vpop.xlane.xlu0 %2955
    %v2957 = vsel %vm1619, %v2884, 0.0
    %2958 = vadd.xlane.f32.xlu0 %v2957
    %v2959 = vpop.xlane.xlu0 %2958
    %v2960 = vpack.c.bf16 %v2890, %v2887
    %v2961 = vpack.c.bf16 %v2896, %v2893
    %v2962 = vpack.c.bf16 %v2902, %v2899
    %v2963 = vpack.c.bf16 %v2908, %v2905
    %v2964 = vpack.c.bf16 %v2914, %v2911
    %v2965 = vpack.c.bf16 %v2920, %v2917
    %v2966 = vpack.c.bf16 %v2926, %v2923
    %v2967 = vpack.c.bf16 %v2932, %v2929
    %v2968 = vpack.c.bf16 %v2938, %v2935
    %v2969 = vpack.c.bf16 %v2944, %v2941
    %v2970 = vpack.c.bf16 %v2950, %v2947
    %v2971 = vpack.c.bf16 %v2956, %v2953
    %v2972 = vpack.c.bf16 %v2959, %v2959
    %2973 = vxpose.xlu0.c.b16.start [1/8] %v2960, 128
    %2974 = vxpose.xlu0.c.b16.cont [2/8] %v2961, 128
    %2975 = vxpose.xlu0.c.b16.cont [3/8] %v2962, 128
    %2976 = vxpose.xlu0.c.b16.cont [4/8] %v2963, 128
    %2977 = vxpose.xlu0.c.b16.cont [5/8] %v2964, 128
    %2978 = vxpose.xlu0.c.b16.cont [6/8] %v2965, 128
    %2979 = vxpose.xlu0.c.b16.cont [7/8] %v2966, 128
    %2980 = vxpose.xlu0.c.b16.end [8/8] %v2967, 128
    %v2981 = vpop.trf.xlu0
    %v2982 = vpop.trf.xlu0
    %v2983 = vpop.trf.xlu0
    %v2984 = vpop.trf.xlu0
    %v2985 = vpop.trf.xlu0
    %v2986 = vpop.trf.xlu0
    %v2987 = vpop.trf.xlu0
    %v2988 = vpop.trf.xlu0
    %2989 = vxpose.xlu0.c.b16.start [1/8] %v2968, 128
    %2990 = vxpose.xlu0.c.b16.cont [2/8] %v2969, 128
    %2991 = vxpose.xlu0.c.b16.cont [3/8] %v2970, 128
    %2992 = vxpose.xlu0.c.b16.cont [4/8] %v2971, 128
    %2993 = vxpose.xlu0.c.b16.cont [5/8] %v2972, 128
    %2994 = vxpose.xlu0.c.b16.cont [6/8] 0, 128
    %2995 = vxpose.xlu0.c.b16.cont [7/8] 0, 128
    %2996 = vxpose.xlu0.c.b16.end [8/8] 0, 128
    %v2997 = vpop.trf.xlu0
    %v2998 = vpop.trf.xlu0
    %v2999 = vpop.trf.xlu0
    %v3000 = vpop.trf.xlu0
    %v3001 = vpop.trf.xlu0
    %v3002 = vpop.trf.xlu0
    %v3003 = vpop.trf.xlu0
    %v3004 = vpop.trf.xlu0
    %v3006 = vsel %vm1668, %v2997, 0
    %v3009 = vsel %vm1672, %v2193, 0
    %v3012 = vsel %vm1672, %v2194, 0
    %v3015 = vsel %vm1672, %v2195, 0
    %v3018 = vsel %vm1672, %v2196, 0
    %v3021 = vsel %vm1672, %v2197, 0
    %v3024 = vsel %vm1672, %v2198, 0
    %3026 = vmatprep.subr.bf16.mxu0 %v2164
    %3027 = vmatpush1.bf16.msra.mxu0 %v2163
    %3028 = vmatprep.subr.bf16.mxu0 %v2158
    %3029 = vmatpush1.bf16.msra.mxu0 %v2157
    %3030 = vmatprep.subr.bf16.mxu0 %v2152
    %3031 = vmatpush1.bf16.msra.mxu0 %v2151
    %3032 = vmatprep.subr.bf16.mxu0 %v2146
    %3033 = vmatpush1.bf16.msra.mxu0 %v2145
    %3034 = vmatprep.subr.bf16.mxu0 %v2140
    %3035 = vmatpush1.bf16.msra.mxu0 %v2139
    %3036 = vmatprep.subr.bf16.mxu0 %v2134
    %3037 = vmatpush1.bf16.msra.mxu0 %v2133
    %3038 = vmatprep.subr.bf16.mxu0 %v2128
    %3039 = vmatpush1.bf16.msra.mxu0 %v2127
    %3040 = vmatprep.subr.bf16.mxu0 %v2122
    %3041 = vmatpush1.bf16.msra.mxu0 %v2121
    %3042 = vmatprep.subr.bf16.mxu0 0
    %3043 = vmatpush2.bf16.msra.mxu0 0
    %3044 = vmatprep.subr.bf16.mxu0 0
    %3045 = vmatpush2.bf16.msra.mxu0 0
    %3046 = vmatprep.subr.bf16.mxu0 0
    %3047 = vmatpush2.bf16.msra.mxu0 0
    %3048 = vmatprep.subr.bf16.mxu0 %v3012
    %3049 = vmatpush2.bf16.msra.mxu0 %v3009
    %3050 = vmatprep.subr.bf16.mxu0 %v2188
    %3051 = vmatpush2.bf16.msra.mxu0 %v2187
    %3052 = vmatprep.subr.bf16.mxu0 %v2182
    %3053 = vmatpush2.bf16.msra.mxu0 %v2181
    %3054 = vmatprep.subr.bf16.mxu0 %v2176
    %3055 = vmatpush2.bf16.msra.mxu0 %v2175
    %3056 = vmatprep.subr.bf16.mxu0 %v2170
    %3057 = vmatpush2.bf16.msra.mxu0 %v2169
    %3058 = vmatprep.mubr.bf16.mxu0 %v3006
    %3059 = vmatmul.mubr.bf16.gmra.mxu0 %v2981
    %v3060 = vpop.f32.mrf.mxu0
    %v3061 = vadd.f32 0.0, %v3060
    %v3062 = vpop.f32.mrf.mxu0
    %v3063 = vadd.f32 0.0, %v3062
    %v3064 = vpop.f32.mrf.mxu0
    %v3065 = vpop.f32.mrf.mxu0
    %3066 = vdwg.mxu0
    %3067 = vmatprep.subr.bf16.mxu0 %v2166
    %3068 = vmatpush1.bf16.msra.mxu0 %v2165
    %3069 = vmatprep.subr.bf16.mxu0 %v2160
    %3070 = vmatpush1.bf16.msra.mxu0 %v2159
    %3071 = vmatprep.subr.bf16.mxu0 %v2154
    %3072 = vmatpush1.bf16.msra.mxu0 %v2153
    %3073 = vmatprep.subr.bf16.mxu0 %v2148
    %3074 = vmatpush1.bf16.msra.mxu0 %v2147
    %3075 = vmatprep.subr.bf16.mxu0 %v2142
    %3076 = vmatpush1.bf16.msra.mxu0 %v2141
    %3077 = vmatprep.subr.bf16.mxu0 %v2136
    %3078 = vmatpush1.bf16.msra.mxu0 %v2135
    %3079 = vmatprep.subr.bf16.mxu0 %v2130
    %3080 = vmatpush1.bf16.msra.mxu0 %v2129
    %3081 = vmatprep.subr.bf16.mxu0 %v2124
    %3082 = vmatpush1.bf16.msra.mxu0 %v2123
    %3083 = vmatprep.subr.bf16.mxu0 0
    %3084 = vmatpush2.bf16.msra.mxu0 0
    %3085 = vmatprep.subr.bf16.mxu0 0
    %3086 = vmatpush2.bf16.msra.mxu0 0
    %3087 = vmatprep.subr.bf16.mxu0 0
    %3088 = vmatpush2.bf16.msra.mxu0 0
    %3089 = vmatprep.subr.bf16.mxu0 %v3018
    %3090 = vmatpush2.bf16.msra.mxu0 %v3015
    %3091 = vmatprep.subr.bf16.mxu0 %v2190
    %3092 = vmatpush2.bf16.msra.mxu0 %v2189
    %3093 = vmatprep.subr.bf16.mxu0 %v2184
    %3094 = vmatpush2.bf16.msra.mxu0 %v2183
    %3095 = vmatprep.subr.bf16.mxu0 %v2178
    %3096 = vmatpush2.bf16.msra.mxu0 %v2177
    %3097 = vmatprep.subr.bf16.mxu0 %v2172
    %3098 = vmatpush2.bf16.msra.mxu0 %v2171
    %3099 = vmatprep.mubr.bf16.mxu0 %v3006
    %3100 = vmatmul.mubr.bf16.gmra.mxu0 %v2981
    %v3101 = vpop.f32.mrf.mxu0
    %v3102 = vadd.f32 0.0, %v3101
    %v3103 = vpop.f32.mrf.mxu0
    %v3104 = vadd.f32 0.0, %v3103
    %v3105 = vpop.f32.mrf.mxu0
    %v3106 = vpop.f32.mrf.mxu0
    %3107 = vdwg.mxu0
    %3108 = vmatprep.subr.bf16.mxu0 %v2168
    %3109 = vmatpush1.bf16.msra.mxu0 %v2167
    %3110 = vmatprep.subr.bf16.mxu0 %v2162
    %3111 = vmatpush1.bf16.msra.mxu0 %v2161
    %3112 = vmatprep.subr.bf16.mxu0 %v2156
    %3113 = vmatpush1.bf16.msra.mxu0 %v2155
    %3114 = vmatprep.subr.bf16.mxu0 %v2150
    %3115 = vmatpush1.bf16.msra.mxu0 %v2149
    %3116 = vmatprep.subr.bf16.mxu0 %v2144
    %3117 = vmatpush1.bf16.msra.mxu0 %v2143
    %3118 = vmatprep.subr.bf16.mxu0 %v2138
    %3119 = vmatpush1.bf16.msra.mxu0 %v2137
    %3120 = vmatprep.subr.bf16.mxu0 %v2132
    %3121 = vmatpush1.bf16.msra.mxu0 %v2131
    %3122 = vmatprep.subr.bf16.mxu0 %v2126
    %3123 = vmatpush1.bf16.msra.mxu0 %v2125
    %3124 = vmatprep.subr.bf16.mxu0 0
    %3125 = vmatpush2.bf16.msra.mxu0 0
    %3126 = vmatprep.subr.bf16.mxu0 0
    %3127 = vmatpush2.bf16.msra.mxu0 0
    %3128 = vmatprep.subr.bf16.mxu0 0
    %3129 = vmatpush2.bf16.msra.mxu0 0
    %3130 = vmatprep.subr.bf16.mxu0 %v3024
    %3131 = vmatpush2.bf16.msra.mxu0 %v3021
    %3132 = vmatprep.subr.bf16.mxu0 %v2192
    %3133 = vmatpush2.bf16.msra.mxu0 %v2191
    %3134 = vmatprep.subr.bf16.mxu0 %v2186
    %3135 = vmatpush2.bf16.msra.mxu0 %v2185
    %3136 = vmatprep.subr.bf16.mxu0 %v2180
    %3137 = vmatpush2.bf16.msra.mxu0 %v2179
    %3138 = vmatprep.subr.bf16.mxu0 %v2174
    %3139 = vmatpush2.bf16.msra.mxu0 %v2173
    %3140 = vmatprep.mubr.bf16.mxu0 %v3006
    %3141 = vmatmul.mubr.bf16.gmra.mxu0 %v2981
    %v3142 = vpop.f32.mrf.mxu0
    %v3143 = vadd.f32 0.0, %v3142
    %v3144 = vpop.f32.mrf.mxu0
    %v3145 = vadd.f32 0.0, %v3144
    %v3146 = vpop.f32.mrf.mxu0
    %v3147 = vpop.f32.mrf.mxu0
    %3148 = vdwg.mxu0
    %v3149 = vmul.f32 %v3061, 0.00021258503
    %v3150 = vmul.f32 %v3063, 0.00021258503
    %v3151 = vmul.f32 %v3102, 0.00021258503
    %v3152 = vmul.f32 %v3104, 0.00021258503
    %v3153 = vmul.f32 %v3143, 0.00021258503
    %v3154 = vmul.f32 %v3145, 0.00021258503
    %v3161 = vrot.slane %v3149, 7
    %v3162 = vrot.slane %v3150, 7
    %v3163 = vrot.slane %v3151, 7
    %v3164 = vrot.slane %v3152, 7
    %v3165 = vrot.slane %v3153, 7
    %v3166 = vrot.slane %v3154, 7
    %vm3173 = vcmask 1040384
    %v3174 = vsel %vm3173, %v1814, %v3161
    %v3175 = vsel %vm3173, %v1815, %v3162
    %v3176 = vsel %vm3173, %v1816, %v3163
    %v3177 = vsel %vm3173, %v1817, %v3164
    %v3178 = vsel %vm3173, %v1818, %v3165
    %v3179 = vsel %vm3173, %v1819, %v3166
    %v3180 = vpack.c.bf16 %v3174, %v3174
    %v3181 = vpack.c.bf16 %v3175, %v3175
    %v3182 = vpack.c.bf16 %v3176, %v3176
    %v3183 = vpack.c.bf16 %v3177, %v3177
    %v3184 = vpack.c.bf16 %v3178, %v3178
    %v3185 = vpack.c.bf16 %v3179, %v3179
    %v3186 = vld [vmem:[%s5] sm:$0xff]
    %v3187 = vld [vmem:[%s5 + $0x8] sm:$0xff]
    %v3188 = vld [vmem:[%s5 + $0x10] sm:$0xff]
    %v3189 = vld [vmem:[%s5 + $0x18] sm:$0xff]
    %v3190 = vld [vmem:[%s5 + $0x20] sm:$0xff]
    %v3191 = vld [vmem:[%s5 + $0x28] sm:$0xff]
    %v3192 = vld [vmem:[%s5 + $0x30] sm:$0xff]
    %v3193 = vld [vmem:[%s5 + $0x38] sm:$0xff]
    %v3194 = vld [vmem:[%s5 + $0x40] sm:$0xff]
    %v3195 = vld [vmem:[%s5 + $0x48] sm:$0xff]
    %v3196 = vld [vmem:[%s5 + $0x50] sm:$0xff]
    %v3197 = vld [vmem:[%s5 + $0x58] sm:$0xff]
    %v3198 = vld [vmem:[%s5 + $0x60] sm:$0xff]
    %v3199 = vld [vmem:[%s5 + $0x68] sm:$0xff]
    %v3200 = vld [vmem:[%s5 + $0x70] sm:$0xff]
    %v3201 = vld [vmem:[%s5 + $0x78] sm:$0xff]
    %v3202 = vld [vmem:[%s5 + $0x80] sm:$0xff]
    %v3203 = vld [vmem:[%s5 + $0x88] sm:$0xff]
    %v3204 = vld [vmem:[%s5 + $0x90] sm:$0xff]
    %v3205 = vld [vmem:[%s5 + $0x98] sm:$0xff]
    %v3206 = vld [vmem:[%s5 + $0xa0] sm:$0xff]
    %v3207 = vld [vmem:[%s5 + $0xa8] sm:$0xff]
    %v3208 = vld [vmem:[%s5 + $0xb0] sm:$0xff]
    %v3209 = vld [vmem:[%s5 + $0xb8] sm:$0xff]
    %v3210 = vld [vmem:[%s5 + $0xc0] sm:$0xff]
    %v3211 = vld [vmem:[%s5 + $0xc8] sm:$0xff]
    %v3212 = vld [vmem:[%s5 + $0xd0] sm:$0xff]
    %v3213 = vld [vmem:[%s5 + $0xd8] sm:$0xff]
    %v3214 = vld [vmem:[%s5 + $0xe0] sm:$0xff]
    %v3215 = vld [vmem:[%s5 + $0xe8] sm:$0xff]
    %v3216 = vld [vmem:[%s5 + $0xf0] sm:$0xff]
    %v3217 = vld [vmem:[%s5 + $0xf8] sm:$0xff]
    %v3218 = vld [vmem:[%s5 + $0x100] sm:$0xff]
    %v3219 = vld [vmem:[%s5 + $0x108] sm:$0xff]
    %v3220 = vld [vmem:[%s5 + $0x110] sm:$0xff]
    %v3221 = vld [vmem:[%s5 + $0x118] sm:$0xff]
    %v3222 = vld [vmem:[%s5 + $0x120] sm:$0xff]
    %v3223 = vld [vmem:[%s5 + $0x128] sm:$0xff]
    %v3224 = vld [vmem:[%s5 + $0x130] sm:$0xff]
    %v3225 = vld [vmem:[%s5 + $0x138] sm:$0xff]
    %v3226 = vld [vmem:[%s5 + $0x140] sm:$0xff]
    %v3227 = vld [vmem:[%s5 + $0x148] sm:$0xff]
    %v3228 = vld [vmem:[%s5 + $0x150] sm:$0xff]
    %v3229 = vld [vmem:[%s5 + $0x158] sm:$0xff]
    %v3230 = vld [vmem:[%s5 + $0x160] sm:$0xff]
    %v3231 = vld [vmem:[%s5 + $0x168] sm:$0xff]
    %v3232 = vld [vmem:[%s5 + $0x170] sm:$0xff]
    %v3233 = vld [vmem:[%s5 + $0x178] sm:$0xff]
    %v3234 = vld [vmem:[%s5 + $0x180] sm:$0xff]
    %v3235 = vld [vmem:[%s5 + $0x188] sm:$0xff]
    %v3236 = vld [vmem:[%s5 + $0x190] sm:$0xff]
    %v3237 = vld [vmem:[%s5 + $0x198] sm:$0xff]
    %v3238 = vld [vmem:[%s5 + $0x1a0] sm:$0xff]
    %v3239 = vld [vmem:[%s5 + $0x1a8] sm:$0xff]
    %v3240 = vld [vmem:[%s5 + $0x1b0] sm:$0xff]
    %v3241 = vld [vmem:[%s5 + $0x1b8] sm:$0xff]
    %v3242 = vld [vmem:[%s5 + $0x1c0] sm:$0xff]
    %v3243 = vld [vmem:[%s5 + $0x1c8] sm:$0xff]
    %v3244 = vld [vmem:[%s5 + $0x1d0] sm:$0xff]
    %v3245 = vld [vmem:[%s5 + $0x1d8] sm:$0xff]
    %v3246 = vld [vmem:[%s5 + $0x1e0] sm:$0xff]
    %v3247 = vld [vmem:[%s5 + $0x1e8] sm:$0xff]
    %v3248 = vld [vmem:[%s5 + $0x1f0] sm:$0xff]
    %v3249 = vld [vmem:[%s5 + $0x1f8] sm:$0xff]
    %v3250 = vld [vmem:[%s5 + $0x200] sm:$0xff]
    %v3251 = vld [vmem:[%s5 + $0x208] sm:$0xff]
    %v3252 = vld [vmem:[%s5 + $0x210] sm:$0xff]
    %v3253 = vld [vmem:[%s5 + $0x218] sm:$0xff]
    %v3254 = vld [vmem:[%s5 + $0x220] sm:$0xff]
    %v3255 = vld [vmem:[%s5 + $0x228] sm:$0xff]
    %v3256 = vld [vmem:[%s5 + $0x230] sm:$0xff]
    %v3257 = vld [vmem:[%s5 + $0x238] sm:$0xff]
    %v3258 = vld [vmem:[%s5 + $0x240] sm:$0xff]
    %v3259 = vld [vmem:[%s5 + $0x248] sm:$0xff]
    %v3260 = vld [vmem:[%s5 + $0x250] sm:$0xff]
    %v3261 = vld [vmem:[%s5 + $0x258] sm:$0xff]
    %v3262 = vld [vmem:[%s5 + $0x260] sm:$0xff]
    %v3263 = vld [vmem:[%s5 + $0x268] sm:$0xff]
    %v3264 = vld [vmem:[%s5 + $0x270] sm:$0xff]
    %v3265 = vld [vmem:[%s5 + $0x278] sm:$0xff]
    %v3266 = vld [vmem:[%s5 + $0x280] sm:$0xff]
    %v3267 = vld [vmem:[%s5 + $0x288] sm:$0xff]
    %v3268 = vld [vmem:[%s5 + $0x290] sm:$0xff]
    %v3269 = vld [vmem:[%s5 + $0x298] sm:$0xff]
    %v3270 = vld [vmem:[%s5 + $0x2a0] sm:$0xff]
    %v3271 = vld [vmem:[%s5 + $0x2a8] sm:$0xff]
    %v3272 = vld [vmem:[%s5 + $0x2b0] sm:$0xff]
    %v3273 = vld [vmem:[%s5 + $0x2b8] sm:$0xff]
    %v3274 = vld [vmem:[%s5 + $0x2c0] sm:$0xff]
    %v3275 = vld [vmem:[%s5 + $0x2c8] sm:$0xff]
    %v3276 = vld [vmem:[%s5 + $0x2d0] sm:$0xff]
    %v3277 = vld [vmem:[%s5 + $0x2d8] sm:$0xff]
    %v3278 = vld [vmem:[%s5 + $0x2e0] sm:$0xff]
    %v3279 = vld [vmem:[%s5 + $0x2e8] sm:$0xff]
    %v3280 = vld [vmem:[%s5 + $0x2f0] sm:$0xff]
    %v3281 = vld [vmem:[%s5 + $0x2f8] sm:$0xff]
    %v3282 = vld [vmem:[%s5 + $0x300] sm:$0xff]
    %v3283 = vld [vmem:[%s5 + $0x308] sm:$0xff]
    %v3284 = vld [vmem:[%s5 + $0x310] sm:$0xff]
    %v3285 = vld [vmem:[%s5 + $0x318] sm:$0xff]
    %v3286 = vld [vmem:[%s5 + $0x320] sm:$0xff]
    %v3287 = vld [vmem:[%s5 + $0x328] sm:$0xff]
    %v3288 = vld [vmem:[%s5 + $0x330] sm:$0xff]
    %v3289 = vld [vmem:[%s5 + $0x338] sm:$0xff]
    %v3290 = vld [vmem:[%s5 + $0x340] sm:$0xff]
    %v3291 = vld [vmem:[%s5 + $0x348] sm:$0xff]
    %v3292 = vld [vmem:[%s5 + $0x350] sm:$0xff]
    %v3293 = vld [vmem:[%s5 + $0x358] sm:$0xff]
    %v3294 = vld [vmem:[%s5 + $0x360] sm:$0xff]
    %v3295 = vld [vmem:[%s5 + $0x368] sm:$0xff]
    %v3296 = vld [vmem:[%s5 + $0x370] sm:$0xff]
    %v3297 = vld [vmem:[%s5 + $0x378] sm:$0xff]
    %v3298 = vld [vmem:[%s5 + $0x380] sm:$0xff]
    %v3299 = vld [vmem:[%s5 + $0x388] sm:$0xff]
    %v3300 = vld [vmem:[%s5 + $0x390] sm:$0xff]
    %v3301 = vld [vmem:[%s5 + $0x398] sm:$0xff]
    %v3302 = vld [vmem:[%s5 + $0x3a0] sm:$0xff]
    %v3303 = vld [vmem:[%s5 + $0x3a8] sm:$0xff]
    %v3304 = vld [vmem:[%s5 + $0x3b0] sm:$0xff]
    %v3305 = vld [vmem:[%s5 + $0x3b8] sm:$0xff]
    %v3306 = vld [vmem:[%s5 + $0x3c0] sm:$0xff]
    %v3307 = vld [vmem:[%s5 + $0x3c8] sm:$0xff]
    %v3308 = vld [vmem:[%s5 + $0x3d0] sm:$0xff]
    %v3309 = vld [vmem:[%s5 + $0x3d8] sm:$0xff]
    %v3310 = vld [vmem:[%s5 + $0x3e0] sm:$0xff]
    %v3311 = vld [vmem:[%s5 + $0x3e8] sm:$0xff]
    %v3312 = vld [vmem:[%s5 + $0x3f0] sm:$0xff]
    %v3313 = vld [vmem:[%s5 + $0x3f8] sm:$0xff]
    %v3314 = vld [vmem:[%s5 + $0x400] sm:$0xff]
    %v3315 = vld [vmem:[%s5 + $0x408] sm:$0xff]
    %v3316 = vld [vmem:[%s5 + $0x410] sm:$0xff]
    %v3317 = vld [vmem:[%s5 + $0x418] sm:$0xff]
    %v3318 = vld [vmem:[%s5 + $0x420] sm:$0xff]
    %v3319 = vld [vmem:[%s5 + $0x428] sm:$0xff]
    %v3320 = vld [vmem:[%s5 + $0x430] sm:$0xff]
    %v3321 = vld [vmem:[%s5 + $0x438] sm:$0xff]
    %v3322 = vld [vmem:[%s5 + $0x440] sm:$0xff]
    %v3323 = vld [vmem:[%s5 + $0x448] sm:$0xff]
    %v3324 = vld [vmem:[%s5 + $0x450] sm:$0xff]
    %v3325 = vld [vmem:[%s5 + $0x458] sm:$0xff]
    %v3326 = vld [vmem:[%s5 + $0x460] sm:$0xff]
    %v3327 = vld [vmem:[%s5 + $0x468] sm:$0xff]
    %v3328 = vld [vmem:[%s5 + $0x470] sm:$0xff]
    %v3329 = vld [vmem:[%s5 + $0x478] sm:$0xff]
    %v3330 = vld [vmem:[%s5 + $0x480] sm:$0xff]
    %v3331 = vld [vmem:[%s5 + $0x488] sm:$0xff]
    %v3332 = vld [vmem:[%s5 + $0x490] sm:$0xff]
    %v3333 = vld [vmem:[%s5 + $0x498] sm:$0xff]
    %v3334 = vld [vmem:[%s5 + $0x4a0] sm:$0xff]
    %v3335 = vld [vmem:[%s5 + $0x4a8] sm:$0xff]
    %v3336 = vld [vmem:[%s5 + $0x4b0] sm:$0xff]
    %v3337 = vld [vmem:[%s5 + $0x4b8] sm:$0xff]
    %v3338 = vld [vmem:[%s5 + $0x4c0] sm:$0xff]
    %v3339 = vld [vmem:[%s5 + $0x4c8] sm:$0xff]
    %v3340 = vld [vmem:[%s5 + $0x4d0] sm:$0xff]
    %v3341 = vld [vmem:[%s5 + $0x4d8] sm:$0xff]
    %v3342 = vld [vmem:[%s5 + $0x4e0] sm:$0xff]
    %v3343 = vld [vmem:[%s5 + $0x4e8] sm:$0xff]
    %v3344 = vld [vmem:[%s5 + $0x4f0] sm:$0xff]
    %v3345 = vld [vmem:[%s5 + $0x4f8] sm:$0xff]
    %v3346 = vld [vmem:[%s5 + $0x500] sm:$0xff]
    %v3347 = vld [vmem:[%s5 + $0x508] sm:$0xff]
    %v3348 = vld [vmem:[%s5 + $0x510] sm:$0xff]
    %v3349 = vld [vmem:[%s5 + $0x518] sm:$0xff]
    %v3350 = vld [vmem:[%s5 + $0x520] sm:$0xff]
    %v3351 = vld [vmem:[%s5 + $0x528] sm:$0xff]
    %v3352 = vld [vmem:[%s5 + $0x530] sm:$0xff]
    %v3353 = vld [vmem:[%s5 + $0x538] sm:$0xff]
    %v3354 = vld [vmem:[%s5 + $0x540] sm:$0xff]
    %v3355 = vld [vmem:[%s5 + $0x548] sm:$0xff]
    %v3356 = vld [vmem:[%s5 + $0x550] sm:$0xff]
    %v3357 = vld [vmem:[%s5 + $0x558] sm:$0xff]
    %v3358 = vld [vmem:[%s5 + $0x560] sm:$0xff]
    %v3359 = vld [vmem:[%s5 + $0x568] sm:$0xff]
    %v3360 = vld [vmem:[%s5 + $0x570] sm:$0xff]
    %v3361 = vld [vmem:[%s5 + $0x578] sm:$0xff]
    %v3362 = vld [vmem:[%s5 + $0x580] sm:$0xff]
    %v3363 = vld [vmem:[%s5 + $0x588] sm:$0xff]
    %v3364 = vld [vmem:[%s5 + $0x590] sm:$0xff]
    %v3365 = vld [vmem:[%s5 + $0x598] sm:$0xff]
    %v3366 = vld [vmem:[%s5 + $0x5a0] sm:$0xff]
    %v3367 = vld [vmem:[%s5 + $0x5a8] sm:$0xff]
    %v3368 = vld [vmem:[%s5 + $0x5b0] sm:$0xff]
    %v3369 = vld [vmem:[%s5 + $0x5b8] sm:$0xff]
    %v3370 = vld [vmem:[%s5 + $0x5c0] sm:$0xff]
    %v3371 = vld [vmem:[%s5 + $0x5c8] sm:$0xff]
    %v3372 = vld [vmem:[%s5 + $0x5d0] sm:$0xff]
    %v3373 = vld [vmem:[%s5 + $0x5d8] sm:$0xff]
    %v3374 = vld [vmem:[%s5 + $0x5e0] sm:$0xff]
    %v3375 = vld [vmem:[%s5 + $0x5e8] sm:$0xff]
    %v3376 = vld [vmem:[%s5 + $0x5f0] sm:$0xff]
    %v3377 = vld [vmem:[%s5 + $0x5f8] sm:$0xff]
    %v3378 = vld [vmem:[%s5 + $0x600] sm:$0xff]
    %v3379 = vld [vmem:[%s5 + $0x608] sm:$0xff]
    %v3380 = vld [vmem:[%s5 + $0x610] sm:$0xff]
    %v3381 = vld [vmem:[%s5 + $0x618] sm:$0xff]
    %v3382 = vld [vmem:[%s5 + $0x620] sm:$0xff]
    %v3383 = vld [vmem:[%s5 + $0x628] sm:$0xff]
    %v3384 = vld [vmem:[%s5 + $0x630] sm:$0xff]
    %v3385 = vld [vmem:[%s5 + $0x638] sm:$0xff]
    %v3386 = vld [vmem:[%s5 + $0x640] sm:$0xff]
    %v3387 = vld [vmem:[%s5 + $0x648] sm:$0xff]
    %v3388 = vld [vmem:[%s5 + $0x650] sm:$0xff]
    %v3389 = vld [vmem:[%s5 + $0x658] sm:$0xff]
    %v3390 = vld [vmem:[%s5 + $0x660] sm:$0xff]
    %v3391 = vld [vmem:[%s5 + $0x668] sm:$0xff]
    %v3392 = vld [vmem:[%s5 + $0x670] sm:$0xff]
    %v3393 = vld [vmem:[%s5 + $0x678] sm:$0xff]
    %v3394 = vld [vmem:[%s5 + $0x680] sm:$0xff]
    %v3395 = vld [vmem:[%s5 + $0x688] sm:$0xff]
    %v3396 = vld [vmem:[%s5 + $0x690] sm:$0xff]
    %v3397 = vld [vmem:[%s5 + $0x698] sm:$0xff]
    %v3398 = vld [vmem:[%s5 + $0x6a0] sm:$0xff]
    %v3399 = vld [vmem:[%s5 + $0x6a8] sm:$0xff]
    %v3400 = vld [vmem:[%s5 + $0x6b0] sm:$0xff]
    %v3401 = vld [vmem:[%s5 + $0x6b8] sm:$0xff]
    %v3402 = vld [vmem:[%s5 + $0x6c0] sm:$0xff]
    %v3403 = vld [vmem:[%s5 + $0x6c8] sm:$0xff]
    %v3404 = vld [vmem:[%s5 + $0x6d0] sm:$0xff]
    %v3405 = vld [vmem:[%s5 + $0x6d8] sm:$0xff]
    %v3406 = vld [vmem:[%s5 + $0x6e0] sm:$0xff]
    %v3407 = vld [vmem:[%s5 + $0x6e8] sm:$0xff]
    %v3408 = vld [vmem:[%s5 + $0x6f0] sm:$0xff]
    %v3409 = vld [vmem:[%s5 + $0x6f8] sm:$0xff]
    %v3410 = vld [vmem:[%s5 + $0x700] sm:$0xff]
    %v3411 = vld [vmem:[%s5 + $0x708] sm:$0xff]
    %v3412 = vld [vmem:[%s5 + $0x710] sm:$0xff]
    %v3413 = vld [vmem:[%s5 + $0x718] sm:$0xff]
    %v3414 = vld [vmem:[%s5 + $0x720] sm:$0xff]
    %v3415 = vld [vmem:[%s5 + $0x728] sm:$0xff]
    %v3416 = vld [vmem:[%s5 + $0x730] sm:$0xff]
    %v3417 = vld [vmem:[%s5 + $0x738] sm:$0xff]
    %v3418 = vld [vmem:[%s5 + $0x740] sm:$0xff]
    %v3419 = vld [vmem:[%s5 + $0x748] sm:$0xff]
    %v3420 = vld [vmem:[%s5 + $0x750] sm:$0xff]
    %v3421 = vld [vmem:[%s5 + $0x758] sm:$0xff]
    %v3422 = vld [vmem:[%s5 + $0x760] sm:$0xff]
    %v3423 = vld [vmem:[%s5 + $0x768] sm:$0xff]
    %v3424 = vld [vmem:[%s5 + $0x770] sm:$0xff]
    %v3425 = vld [vmem:[%s5 + $0x778] sm:$0xff]
    %v3426 = vld [vmem:[%s5 + $0x780] sm:$0xff]
    %v3427 = vld [vmem:[%s5 + $0x788] sm:$0xff]
    %v3428 = vld [vmem:[%s5 + $0x790] sm:$0xff]
    %v3429 = vld [vmem:[%s5 + $0x798] sm:$0xff]
    %v3430 = vld [vmem:[%s5 + $0x7a0] sm:$0xff]
    %v3431 = vld [vmem:[%s5 + $0x7a8] sm:$0xff]
    %v3432 = vld [vmem:[%s5 + $0x7b0] sm:$0xff]
    %v3433 = vld [vmem:[%s5 + $0x7b8] sm:$0xff]
    %v3434 = vld [vmem:[%s5 + $0x7c0] sm:$0xff]
    %v3435 = vld [vmem:[%s5 + $0x7c8] sm:$0xff]
    %v3436 = vld [vmem:[%s5 + $0x7d0] sm:$0xff]
    %v3437 = vld [vmem:[%s5 + $0x7d8] sm:$0xff]
    %v3438 = vld [vmem:[%s5 + $0x7e0] sm:$0xff]
    %v3439 = vld [vmem:[%s5 + $0x7e8] sm:$0xff]
    %v3440 = vld [vmem:[%s5 + $0x7f0] sm:$0xff]
    %v3441 = vld [vmem:[%s5 + $0x7f8] sm:$0xff]
    %v3442 = vld [vmem:[%s5 + $0x800] sm:$0xff]
    %v3443 = vld [vmem:[%s5 + $0x808] sm:$0xff]
    %v3444 = vld [vmem:[%s5 + $0x810] sm:$0xff]
    %v3445 = vld [vmem:[%s5 + $0x818] sm:$0xff]
    %v3446 = vld [vmem:[%s5 + $0x820] sm:$0xff]
    %v3447 = vld [vmem:[%s5 + $0x828] sm:$0xff]
    %v3448 = vld [vmem:[%s5 + $0x830] sm:$0xff]
    %v3449 = vld [vmem:[%s5 + $0x838] sm:$0xff]
    %v3450 = vld [vmem:[%s5 + $0x840] sm:$0xff]
    %v3451 = vld [vmem:[%s5 + $0x848] sm:$0xff]
    %v3452 = vld [vmem:[%s5 + $0x850] sm:$0xff]
    %v3453 = vld [vmem:[%s5 + $0x858] sm:$0xff]
    %v3454 = vld [vmem:[%s5 + $0x860] sm:$0xff]
    %v3455 = vld [vmem:[%s5 + $0x868] sm:$0xff]
    %v3456 = vld [vmem:[%s5 + $0x870] sm:$0xff]
    %v3457 = vld [vmem:[%s5 + $0x878] sm:$0xff]
    %v3458 = vld [vmem:[%s5 + $0x880] sm:$0xff]
    %v3459 = vld [vmem:[%s5 + $0x888] sm:$0xff]
    %v3460 = vld [vmem:[%s5 + $0x890] sm:$0xff]
    %v3461 = vld [vmem:[%s5 + $0x898] sm:$0xff]
    %v3462 = vld [vmem:[%s5 + $0x8a0] sm:$0xff]
    %v3463 = vld [vmem:[%s5 + $0x8a8] sm:$0xff]
    %v3464 = vld [vmem:[%s5 + $0x8b0] sm:$0xff]
    %v3465 = vld [vmem:[%s5 + $0x8b8] sm:$0xff]
    %v3466 = vld [vmem:[%s5 + $0x8c0] sm:$0xff]
    %v3467 = vld [vmem:[%s5 + $0x8c8] sm:$0xff]
    %v3468 = vld [vmem:[%s5 + $0x8d0] sm:$0xff]
    %v3469 = vld [vmem:[%s5 + $0x8d8] sm:$0xff]
    %v3470 = vld [vmem:[%s5 + $0x8e0] sm:$0xff]
    %v3471 = vld [vmem:[%s5 + $0x8e8] sm:$0xff]
    %v3472 = vld [vmem:[%s5 + $0x8f0] sm:$0xff]
    %v3473 = vld [vmem:[%s5 + $0x8f8] sm:$0xff]
    %v3474 = vld [vmem:[%s5 + $0x900] sm:$0xff]
    %v3475 = vld [vmem:[%s5 + $0x908] sm:$0xff]
    %v3476 = vld [vmem:[%s5 + $0x910] sm:$0xff]
    %v3477 = vld [vmem:[%s5 + $0x918] sm:$0xff]
    %v3478 = vld [vmem:[%s5 + $0x920] sm:$0xff]
    %v3479 = vld [vmem:[%s5 + $0x928] sm:$0xff]
    %v3480 = vld [vmem:[%s5 + $0x930] sm:$0xff]
    %v3481 = vld [vmem:[%s5 + $0x938] sm:$0xff]
    %v3482 = vld [vmem:[%s5 + $0x940] sm:$0xff]
    %v3483 = vld [vmem:[%s5 + $0x948] sm:$0xff]
    %v3484 = vld [vmem:[%s5 + $0x950] sm:$0xff]
    %v3485 = vld [vmem:[%s5 + $0x958] sm:$0xff]
    %v3486 = vld [vmem:[%s5 + $0x960] sm:$0xff]
    %v3487 = vld [vmem:[%s5 + $0x968] sm:$0xff]
    %v3488 = vld [vmem:[%s5 + $0x970] sm:$0xff]
    %v3489 = vld [vmem:[%s5 + $0x978] sm:$0xff]
    %v3490 = vld [vmem:[%s5 + $0x980] sm:$0xff]
    %v3491 = vld [vmem:[%s5 + $0x988] sm:$0xff]
    %v3492 = vld [vmem:[%s5 + $0x990] sm:$0xff]
    %v3493 = vld [vmem:[%s5 + $0x998] sm:$0xff]
    %v3494 = vld [vmem:[%s5 + $0x9a0] sm:$0xff]
    %v3495 = vld [vmem:[%s5 + $0x9a8] sm:$0xff]
    %v3496 = vld [vmem:[%s5 + $0x9b0] sm:$0xff]
    %v3497 = vld [vmem:[%s5 + $0x9b8] sm:$0xff]
    %v3498 = vld [vmem:[%s5 + $0x9c0] sm:$0xff]
    %v3499 = vld [vmem:[%s5 + $0x9c8] sm:$0xff]
    %v3500 = vld [vmem:[%s5 + $0x9d0] sm:$0xff]
    %v3501 = vld [vmem:[%s5 + $0x9d8] sm:$0xff]
    %v3502 = vld [vmem:[%s5 + $0x9e0] sm:$0xff]
    %v3503 = vld [vmem:[%s5 + $0x9e8] sm:$0xff]
    %v3504 = vld [vmem:[%s5 + $0x9f0] sm:$0xff]
    %v3505 = vld [vmem:[%s5 + $0x9f8] sm:$0xff]
    %v3506 = vld [vmem:[%s5 + $0xa00] sm:$0xff]
    %v3507 = vld [vmem:[%s5 + $0xa08] sm:$0xff]
    %v3508 = vld [vmem:[%s5 + $0xa10] sm:$0xff]
    %v3509 = vld [vmem:[%s5 + $0xa18] sm:$0xff]
    %v3510 = vld [vmem:[%s5 + $0xa20] sm:$0xff]
    %v3511 = vld [vmem:[%s5 + $0xa28] sm:$0xff]
    %v3512 = vld [vmem:[%s5 + $0xa30] sm:$0xff]
    %v3513 = vld [vmem:[%s5 + $0xa38] sm:$0xff]
    %v3514 = vld [vmem:[%s5 + $0xa40] sm:$0xff]
    %v3515 = vld [vmem:[%s5 + $0xa48] sm:$0xff]
    %v3516 = vld [vmem:[%s5 + $0xa50] sm:$0xff]
    %v3517 = vld [vmem:[%s5 + $0xa58] sm:$0xff]
    %v3518 = vld [vmem:[%s5 + $0xa60] sm:$0xff]
    %v3519 = vld [vmem:[%s5 + $0xa68] sm:$0xff]
    %v3520 = vld [vmem:[%s5 + $0xa70] sm:$0xff]
    %v3521 = vld [vmem:[%s5 + $0xa78] sm:$0xff]
    %v3522 = vld [vmem:[%s5 + $0xa80] sm:$0xff]
    %v3523 = vld [vmem:[%s5 + $0xa88] sm:$0xff]
    %v3524 = vld [vmem:[%s5 + $0xa90] sm:$0xff]
    %v3525 = vld [vmem:[%s5 + $0xa98] sm:$0xff]
    %v3526 = vld [vmem:[%s5 + $0xaa0] sm:$0xff]
    %v3527 = vld [vmem:[%s5 + $0xaa8] sm:$0xff]
    %v3528 = vld [vmem:[%s5 + $0xab0] sm:$0xff]
    %v3529 = vld [vmem:[%s5 + $0xab8] sm:$0xff]
    %v3530 = vld [vmem:[%s5 + $0xac0] sm:$0xff]
    %v3531 = vld [vmem:[%s5 + $0xac8] sm:$0xff]
    %v3532 = vld [vmem:[%s5 + $0xad0] sm:$0xff]
    %v3533 = vld [vmem:[%s5 + $0xad8] sm:$0xff]
    %v3534 = vld [vmem:[%s5 + $0xae0] sm:$0xff]
    %v3535 = vld [vmem:[%s5 + $0xae8] sm:$0xff]
    %v3536 = vld [vmem:[%s5 + $0xaf0] sm:$0xff]
    %v3537 = vld [vmem:[%s5 + $0xaf8] sm:$0xff]
    %v3538 = vld [vmem:[%s5 + $0xb00] sm:$0xff]
    %v3539 = vld [vmem:[%s5 + $0xb08] sm:$0xff]
    %v3540 = vld [vmem:[%s5 + $0xb10] sm:$0xff]
    %v3541 = vld [vmem:[%s5 + $0xb18] sm:$0xff]
    %v3542 = vld [vmem:[%s5 + $0xb20] sm:$0xff]
    %v3543 = vld [vmem:[%s5 + $0xb28] sm:$0xff]
    %v3544 = vld [vmem:[%s5 + $0xb30] sm:$0xff]
    %v3545 = vld [vmem:[%s5 + $0xb38] sm:$0xff]
    %v3546 = vld [vmem:[%s5 + $0xb40] sm:$0xff]
    %v3547 = vld [vmem:[%s5 + $0xb48] sm:$0xff]
    %v3548 = vld [vmem:[%s5 + $0xb50] sm:$0xff]
    %v3549 = vld [vmem:[%s5 + $0xb58] sm:$0xff]
    %v3550 = vld [vmem:[%s5 + $0xb60] sm:$0xff]
    %v3551 = vld [vmem:[%s5 + $0xb68] sm:$0xff]
    %v3552 = vld [vmem:[%s5 + $0xb70] sm:$0xff]
    %v3553 = vld [vmem:[%s5 + $0xb78] sm:$0xff]
    %v3554 = vld [vmem:[%s5 + $0xb80] sm:$0xff]
    %v3555 = vld [vmem:[%s5 + $0xb88] sm:$0xff]
    %v3556 = vld [vmem:[%s5 + $0xb90] sm:$0xff]
    %v3557 = vld [vmem:[%s5 + $0xb98] sm:$0xff]
    %v3558 = vld [vmem:[%s5 + $0xba0] sm:$0xff]
    %v3559 = vld [vmem:[%s5 + $0xba8] sm:$0xff]
    %v3560 = vld [vmem:[%s5 + $0xbb0] sm:$0xff]
    %v3561 = vld [vmem:[%s5 + $0xbb8] sm:$0xff]
    %v3562 = vld [vmem:[%s5 + $0xbc0] sm:$0xff]
    %v3563 = vld [vmem:[%s5 + $0xbc8] sm:$0xff]
    %v3564 = vld [vmem:[%s5 + $0xbd0] sm:$0xff]
    %v3565 = vld [vmem:[%s5 + $0xbd8] sm:$0xff]
    %v3566 = vld [vmem:[%s5 + $0xbe0] sm:$0xff]
    %v3567 = vld [vmem:[%s5 + $0xbe8] sm:$0xff]
    %v3568 = vld [vmem:[%s5 + $0xbf0] sm:$0xff]
    %v3569 = vld [vmem:[%s5 + $0xbf8] sm:$0xff]
    %v3570 = vld [vmem:[%s5 + $0xc00] sm:$0xff]
    %v3571 = vld [vmem:[%s5 + $0xc08] sm:$0xff]
    %v3572 = vld [vmem:[%s5 + $0xc10] sm:$0xff]
    %v3573 = vld [vmem:[%s5 + $0xc18] sm:$0xff]
    %v3574 = vld [vmem:[%s5 + $0xc20] sm:$0xff]
    %v3575 = vld [vmem:[%s5 + $0xc28] sm:$0xff]
    %v3576 = vld [vmem:[%s5 + $0xc30] sm:$0xff]
    %v3577 = vld [vmem:[%s5 + $0xc38] sm:$0xff]
    %v3578 = vld [vmem:[%s5 + $0xc40] sm:$0xff]
    %v3579 = vld [vmem:[%s5 + $0xc48] sm:$0xff]
    %v3580 = vld [vmem:[%s5 + $0xc50] sm:$0xff]
    %v3581 = vld [vmem:[%s5 + $0xc58] sm:$0xff]
    %v3582 = vld [vmem:[%s5 + $0xc60] sm:$0xff]
    %v3583 = vld [vmem:[%s5 + $0xc68] sm:$0xff]
    %v3584 = vld [vmem:[%s5 + $0xc70] sm:$0xff]
    %v3585 = vld [vmem:[%s5 + $0xc78] sm:$0xff]
    %v3586 = vld [vmem:[%s5 + $0xc80] sm:$0xff]
    %v3587 = vld [vmem:[%s5 + $0xc88] sm:$0xff]
    %v3588 = vld [vmem:[%s5 + $0xc90] sm:$0xff]
    %v3589 = vld [vmem:[%s5 + $0xc98] sm:$0xff]
    %v3590 = vld [vmem:[%s5 + $0xca0] sm:$0xff]
    %v3591 = vld [vmem:[%s5 + $0xca8] sm:$0xff]
    %v3592 = vld [vmem:[%s5 + $0xcb0] sm:$0xff]
    %v3593 = vld [vmem:[%s5 + $0xcb8] sm:$0xff]
    %v3594 = vld [vmem:[%s5 + $0xcc0] sm:$0xff]
    %v3595 = vld [vmem:[%s5 + $0xcc8] sm:$0xff]
    %v3596 = vld [vmem:[%s5 + $0xcd0] sm:$0xff]
    %v3597 = vld [vmem:[%s5 + $0xcd8] sm:$0xff]
    %v3598 = vld [vmem:[%s5 + $0xce0] sm:$0xff]
    %v3599 = vld [vmem:[%s5 + $0xce8] sm:$0xff]
    %v3600 = vld [vmem:[%s5 + $0xcf0] sm:$0xff]
    %v3601 = vld [vmem:[%s5 + $0xcf8] sm:$0xff]
    %v3602 = vld [vmem:[%s5 + $0xd00] sm:$0xff]
    %v3603 = vld [vmem:[%s5 + $0xd08] sm:$0xff]
    %v3604 = vld [vmem:[%s5 + $0xd10] sm:$0xff]
    %v3605 = vld [vmem:[%s5 + $0xd18] sm:$0xff]
    %v3606 = vld [vmem:[%s5 + $0xd20] sm:$0xff]
    %v3607 = vld [vmem:[%s5 + $0xd28] sm:$0xff]
    %v3608 = vld [vmem:[%s5 + $0xd30] sm:$0xff]
    %v3609 = vld [vmem:[%s5 + $0xd38] sm:$0xff]
    %v3610 = vld [vmem:[%s5 + $0xd40] sm:$0xff]
    %v3611 = vld [vmem:[%s5 + $0xd48] sm:$0xff]
    %v3612 = vld [vmem:[%s5 + $0xd50] sm:$0xff]
    %v3613 = vld [vmem:[%s5 + $0xd58] sm:$0xff]
    %v3614 = vld [vmem:[%s5 + $0xd60] sm:$0xff]
    %v3615 = vld [vmem:[%s5 + $0xd68] sm:$0xff]
    %v3616 = vld [vmem:[%s5 + $0xd70] sm:$0xff]
    %v3617 = vld [vmem:[%s5 + $0xd78] sm:$0xff]
    %v3618 = vld [vmem:[%s5 + $0xd80] sm:$0xff]
    %v3619 = vld [vmem:[%s5 + $0xd88] sm:$0xff]
    %v3620 = vld [vmem:[%s5 + $0xd90] sm:$0xff]
    %v3621 = vld [vmem:[%s5 + $0xd98] sm:$0xff]
    %v3622 = vld [vmem:[%s5 + $0xda0] sm:$0xff]
    %v3623 = vld [vmem:[%s5 + $0xda8] sm:$0xff]
    %v3624 = vld [vmem:[%s5 + $0xdb0] sm:$0xff]
    %v3625 = vld [vmem:[%s5 + $0xdb8] sm:$0xff]
    %v3626 = vld [vmem:[%s5 + $0xdc0] sm:$0xff]
    %v3627 = vld [vmem:[%s5 + $0xdc8] sm:$0xff]
    %v3628 = vld [vmem:[%s5 + $0xdd0] sm:$0xff]
    %v3629 = vld [vmem:[%s5 + $0xdd8] sm:$0xff]
    %v3630 = vld [vmem:[%s5 + $0xde0] sm:$0xff]
    %v3631 = vld [vmem:[%s5 + $0xde8] sm:$0xff]
    %v3632 = vld [vmem:[%s5 + $0xdf0] sm:$0xff]
    %v3633 = vld [vmem:[%s5 + $0xdf8] sm:$0xff]
    %v3634 = vld [vmem:[%s5 + $0xe00] sm:$0xff]
    %v3635 = vld [vmem:[%s5 + $0xe08] sm:$0xff]
    %v3636 = vld [vmem:[%s5 + $0xe10] sm:$0xff]
    %v3637 = vld [vmem:[%s5 + $0xe18] sm:$0xff]
    %v3638 = vld [vmem:[%s5 + $0xe20] sm:$0xff]
    %v3639 = vld [vmem:[%s5 + $0xe28] sm:$0xff]
    %v3640 = vld [vmem:[%s5 + $0xe30] sm:$0xff]
    %v3641 = vld [vmem:[%s5 + $0xe38] sm:$0xff]
    %v3642 = vld [vmem:[%s5 + $0xe40] sm:$0xff]
    %v3643 = vld [vmem:[%s5 + $0xe48] sm:$0xff]
    %v3644 = vld [vmem:[%s5 + $0xe50] sm:$0xff]
    %v3645 = vld [vmem:[%s5 + $0xe58] sm:$0xff]
    %v3646 = vld [vmem:[%s5 + $0xe60] sm:$0xff]
    %v3647 = vld [vmem:[%s5 + $0xe68] sm:$0xff]
    %v3648 = vld [vmem:[%s5 + $0xe70] sm:$0xff]
    %v3649 = vld [vmem:[%s5 + $0xe78] sm:$0xff]
    %v3650 = vld [vmem:[%s5 + $0xe80] sm:$0xff]
    %v3651 = vld [vmem:[%s5 + $0xe88] sm:$0xff]
    %v3652 = vld [vmem:[%s5 + $0xe90] sm:$0xff]
    %v3653 = vld [vmem:[%s5 + $0xe98] sm:$0xff]
    %v3654 = vld [vmem:[%s5 + $0xea0] sm:$0xff]
    %v3655 = vld [vmem:[%s5 + $0xea8] sm:$0xff]
    %v3656 = vld [vmem:[%s5 + $0xeb0] sm:$0xff]
    %v3657 = vld [vmem:[%s5 + $0xeb8] sm:$0xff]
    %v3658 = vld [vmem:[%s5 + $0xec0] sm:$0xff]
    %v3659 = vld [vmem:[%s5 + $0xec8] sm:$0xff]
    %v3660 = vld [vmem:[%s5 + $0xed0] sm:$0xff]
    %v3661 = vld [vmem:[%s5 + $0xed8] sm:$0xff]
    %v3662 = vld [vmem:[%s5 + $0xee0] sm:$0xff]
    %v3663 = vld [vmem:[%s5 + $0xee8] sm:$0xff]
    %v3664 = vld [vmem:[%s5 + $0xef0] sm:$0xff]
    %v3665 = vld [vmem:[%s5 + $0xef8] sm:$0xff]
    %v3666 = vld [vmem:[%s5 + $0xf00] sm:$0xff]
    %v3667 = vld [vmem:[%s5 + $0xf08] sm:$0xff]
    %v3668 = vld [vmem:[%s5 + $0xf10] sm:$0xff]
    %v3669 = vld [vmem:[%s5 + $0xf18] sm:$0xff]
    %v3670 = vld [vmem:[%s5 + $0xf20] sm:$0xff]
    %v3671 = vld [vmem:[%s5 + $0xf28] sm:$0xff]
    %v3672 = vld [vmem:[%s5 + $0xf30] sm:$0xff]
    %v3673 = vld [vmem:[%s5 + $0xf38] sm:$0xff]
    %v3674 = vld [vmem:[%s5 + $0xf40] sm:$0xff]
    %v3675 = vld [vmem:[%s5 + $0xf48] sm:$0xff]
    %v3676 = vld [vmem:[%s5 + $0xf50] sm:$0xff]
    %v3677 = vld [vmem:[%s5 + $0xf58] sm:$0xff]
    %v3678 = vld [vmem:[%s5 + $0xf60] sm:$0xff]
    %v3679 = vld [vmem:[%s5 + $0xf68] sm:$0xff]
    %v3680 = vld [vmem:[%s5 + $0xf70] sm:$0xff]
    %v3681 = vld [vmem:[%s5 + $0xf78] sm:$0xff]
    %v3682 = vld [vmem:[%s5 + $0xf80] sm:$0xff]
    %v3683 = vld [vmem:[%s5 + $0xf88] sm:$0xff]
    %v3684 = vld [vmem:[%s5 + $0xf90] sm:$0xff]
    %v3685 = vld [vmem:[%s5 + $0xf98] sm:$0xff]
    %v3686 = vld [vmem:[%s5 + $0xfa0] sm:$0xff]
    %v3687 = vld [vmem:[%s5 + $0xfa8] sm:$0xff]
    %v3688 = vld [vmem:[%s5 + $0xfb0] sm:$0xff]
    %v3689 = vld [vmem:[%s5 + $0xfb8] sm:$0xff]
    %v3690 = vld [vmem:[%s5 + $0xfc0] sm:$0xff]
    %v3691 = vld [vmem:[%s5 + $0xfc8] sm:$0xff]
    %v3692 = vld [vmem:[%s5 + $0xfd0] sm:$0xff]
    %v3693 = vld [vmem:[%s5 + $0xfd8] sm:$0xff]
    %v3694 = vld [vmem:[%s5 + $0xfe0] sm:$0xff]
    %v3695 = vld [vmem:[%s5 + $0xfe8] sm:$0xff]
    %v3696 = vld [vmem:[%s5 + $0xff0] sm:$0xff]
    %v3697 = vld [vmem:[%s5 + $0xff8] sm:$0xff]
    %v3698 = vld [vmem:[%s5 + $0x1000] sm:$0xff]
    %v3699 = vld [vmem:[%s5 + $0x1008] sm:$0xff]
    %v3700 = vld [vmem:[%s5 + $0x1010] sm:$0xff]
    %v3701 = vld [vmem:[%s5 + $0x1018] sm:$0xff]
    %v3702 = vld [vmem:[%s5 + $0x1020] sm:$0xff]
    %v3703 = vld [vmem:[%s5 + $0x1028] sm:$0xff]
    %v3704 = vld [vmem:[%s5 + $0x1030] sm:$0xff]
    %v3705 = vld [vmem:[%s5 + $0x1038] sm:$0xff]
    %v3706 = vld [vmem:[%s5 + $0x1040] sm:$0xff]
    %v3707 = vld [vmem:[%s5 + $0x1048] sm:$0xff]
    %v3708 = vld [vmem:[%s5 + $0x1050] sm:$0xff]
    %v3709 = vld [vmem:[%s5 + $0x1058] sm:$0xff]
    %v3710 = vld [vmem:[%s5 + $0x1060] sm:$0xff]
    %v3711 = vld [vmem:[%s5 + $0x1068] sm:$0xff]
    %v3712 = vld [vmem:[%s5 + $0x1070] sm:$0xff]
    %v3713 = vld [vmem:[%s5 + $0x1078] sm:$0xff]
    %v3714 = vld [vmem:[%s5 + $0x1080] sm:$0xff]
    %v3715 = vld [vmem:[%s5 + $0x1088] sm:$0xff]
    %v3716 = vld [vmem:[%s5 + $0x1090] sm:$0xff]
    %v3717 = vld [vmem:[%s5 + $0x1098] sm:$0xff]
    %v3718 = vld [vmem:[%s5 + $0x10a0] sm:$0xff]
    %v3719 = vld [vmem:[%s5 + $0x10a8] sm:$0xff]
    %v3720 = vld [vmem:[%s5 + $0x10b0] sm:$0xff]
    %v3721 = vld [vmem:[%s5 + $0x10b8] sm:$0xff]
    %v3722 = vld [vmem:[%s5 + $0x10c0] sm:$0xff]
    %v3723 = vld [vmem:[%s5 + $0x10c8] sm:$0xff]
    %v3724 = vld [vmem:[%s5 + $0x10d0] sm:$0xff]
    %v3725 = vld [vmem:[%s5 + $0x10d8] sm:$0xff]
    %v3726 = vld [vmem:[%s5 + $0x10e0] sm:$0xff]
    %v3727 = vld [vmem:[%s5 + $0x10e8] sm:$0xff]
    %v3728 = vld [vmem:[%s5 + $0x10f0] sm:$0xff]
    %v3729 = vld [vmem:[%s5 + $0x10f8] sm:$0xff]
    %v3730 = vld [vmem:[%s5 + $0x1100] sm:$0xff]
    %v3731 = vld [vmem:[%s5 + $0x1108] sm:$0xff]
    %v3732 = vld [vmem:[%s5 + $0x1110] sm:$0xff]
    %v3733 = vld [vmem:[%s5 + $0x1118] sm:$0xff]
    %v3734 = vld [vmem:[%s5 + $0x1120] sm:$0xff]
    %v3735 = vld [vmem:[%s5 + $0x1128] sm:$0xff]
    %v3736 = vld [vmem:[%s5 + $0x1130] sm:$0xff]
    %v3737 = vld [vmem:[%s5 + $0x1138] sm:$0xff]
    %v3738 = vld [vmem:[%s5 + $0x1140] sm:$0xff]
    %v3739 = vld [vmem:[%s5 + $0x1148] sm:$0xff]
    %v3740 = vld [vmem:[%s5 + $0x1150] sm:$0xff]
    %v3741 = vld [vmem:[%s5 + $0x1158] sm:$0xff]
    %v3742 = vld [vmem:[%s5 + $0x1160] sm:$0xff]
    %v3743 = vld [vmem:[%s5 + $0x1168] sm:$0xff]
    %v3744 = vld [vmem:[%s5 + $0x1170] sm:$0xff]
    %v3745 = vld [vmem:[%s5 + $0x1178] sm:$0xff]
    %v3746 = vld [vmem:[%s5 + $0x1180] sm:$0xff]
    %v3747 = vld [vmem:[%s5 + $0x1188] sm:$0xff]
    %v3748 = vld [vmem:[%s5 + $0x1190] sm:$0xff]
    %v3749 = vld [vmem:[%s5 + $0x1198] sm:$0xff]
    %v3750 = vld [vmem:[%s5 + $0x11a0] sm:$0xff]
    %v3751 = vld [vmem:[%s5 + $0x11a8] sm:$0xff]
    %v3752 = vld [vmem:[%s5 + $0x11b0] sm:$0xff]
    %v3753 = vld [vmem:[%s5 + $0x11b8] sm:$0xff]
    %v3754 = vld [vmem:[%s5 + $0x11c0] sm:$0xff]
    %v3755 = vld [vmem:[%s5 + $0x11c8] sm:$0xff]
    %v3756 = vld [vmem:[%s5 + $0x11d0] sm:$0xff]
    %v3757 = vld [vmem:[%s5 + $0x11d8] sm:$0xff]
    %v3758 = vld [vmem:[%s5 + $0x11e0] sm:$0xff]
    %v3759 = vld [vmem:[%s5 + $0x11e8] sm:$0xff]
    %v3760 = vld [vmem:[%s5 + $0x11f0] sm:$0xff]
    %v3761 = vld [vmem:[%s5 + $0x11f8] sm:$0xff]
    %v3762 = vld [vmem:[%s6] sm:$0xff]
    %v3763 = vld [vmem:[%s6 + $0x8] sm:$0xf]
    %v3766 = vlaneseq
    %v3767 = vshrl.u32 %v3766, 7
    %v3768 = vsub.s32 0, %v3767
    %v3769 = vrot.slane %v3762, %v3768
    %v3770 = vlaneseq
    %v3771 = vshrl.u32 %v3770, 7
    %v3772 = vsub.s32 1, %v3771
    %v3773 = vrot.slane %v3762, %v3772
    %v3774 = vlaneseq
    %v3775 = vshrl.u32 %v3774, 7
    %v3776 = vsub.s32 2, %v3775
    %v3777 = vrot.slane %v3762, %v3776
    %v3778 = vlaneseq
    %v3779 = vshrl.u32 %v3778, 7
    %v3780 = vsub.s32 3, %v3779
    %v3781 = vrot.slane %v3762, %v3780
    %v3782 = vlaneseq
    %v3783 = vshrl.u32 %v3782, 7
    %v3784 = vsub.s32 4, %v3783
    %v3785 = vrot.slane %v3762, %v3784
    %v3786 = vlaneseq
    %v3787 = vshrl.u32 %v3786, 7
    %v3788 = vsub.s32 5, %v3787
    %v3789 = vrot.slane %v3762, %v3788
    %v3790 = vlaneseq
    %v3791 = vshrl.u32 %v3790, 7
    %v3792 = vsub.s32 6, %v3791
    %v3793 = vrot.slane %v3762, %v3792
    %v3794 = vlaneseq
    %v3795 = vshrl.u32 %v3794, 7
    %v3796 = vsub.s32 7, %v3795
    %v3797 = vrot.slane %v3762, %v3796
    %v3798 = vlaneseq
    %v3799 = vshrl.u32 %v3798, 7
    %v3800 = vsub.s32 0, %v3799
    %v3801 = vrot.slane %v3763, %v3800
    %v3802 = vlaneseq
    %v3803 = vshrl.u32 %v3802, 7
    %v3804 = vsub.s32 1, %v3803
    %v3805 = vrot.slane %v3763, %v3804
    %v3806 = vlaneseq
    %v3807 = vshrl.u32 %v3806, 7
    %v3808 = vsub.s32 2, %v3807
    %v3809 = vrot.slane %v3763, %v3808
    %v3810 = vlaneseq
    %v3811 = vshrl.u32 %v3810, 7
    %v3812 = vsub.s32 3, %v3811
    %v3813 = vrot.slane %v3763, %v3812
    %v4402 = vunpack.c.l.b16 %v3186
    %v4403 = vunpack.c.h.b16 %v3186
    %v4404 = vunpack.c.l.b16 %v3187
    %v4405 = vunpack.c.h.b16 %v3187
    %v4406 = vunpack.c.l.b16 %v3188
    %v4407 = vunpack.c.h.b16 %v3188
    %v4408 = vunpack.c.l.b16 %v3189
    %v4409 = vunpack.c.h.b16 %v3189
    %v4410 = vunpack.c.l.b16 %v3190
    %v4411 = vunpack.c.h.b16 %v3190
    %v4412 = vunpack.c.l.b16 %v3191
    %v4413 = vunpack.c.h.b16 %v3191
    %v4414 = vunpack.c.l.b16 %v3192
    %v4415 = vunpack.c.h.b16 %v3192
    %v4416 = vunpack.c.l.b16 %v3193
    %v4417 = vunpack.c.h.b16 %v3193
    %v4418 = vunpack.c.l.b16 %v3194
    %v4419 = vunpack.c.h.b16 %v3194
    %v4420 = vunpack.c.l.b16 %v3195
    %v4421 = vunpack.c.h.b16 %v3195
    %v4422 = vunpack.c.l.b16 %v3196
    %v4423 = vunpack.c.h.b16 %v3196
    %v4424 = vunpack.c.l.b16 %v3197
    %v4425 = vunpack.c.h.b16 %v3197
    %v4426 = vunpack.c.l.b16 %v3198
    %v4427 = vunpack.c.h.b16 %v3198
    %v4428 = vunpack.c.l.b16 %v3199
    %v4429 = vunpack.c.h.b16 %v3199
    %v4430 = vunpack.c.l.b16 %v3200
    %v4431 = vunpack.c.h.b16 %v3200
    %v4432 = vunpack.c.l.b16 %v3201
    %v4433 = vunpack.c.h.b16 %v3201
    %v4434 = vunpack.c.l.b16 %v3202
    %v4435 = vunpack.c.h.b16 %v3202
    %v4436 = vunpack.c.l.b16 %v3203
    %v4437 = vunpack.c.h.b16 %v3203
    %v4438 = vunpack.c.l.b16 %v3204
    %v4439 = vunpack.c.h.b16 %v3204
    %v4440 = vunpack.c.l.b16 %v3205
    %v4441 = vunpack.c.h.b16 %v3205
    %v4442 = vunpack.c.l.b16 %v3206
    %v4443 = vunpack.c.h.b16 %v3206
    %v4444 = vunpack.c.l.b16 %v3207
    %v4445 = vunpack.c.h.b16 %v3207
    %v4446 = vunpack.c.l.b16 %v3208
    %v4447 = vunpack.c.h.b16 %v3208
    %v4448 = vunpack.c.l.b16 %v3209
    %v4449 = vunpack.c.h.b16 %v3209
    %v4450 = vunpack.c.l.b16 %v3210
    %v4451 = vunpack.c.h.b16 %v3210
    %v4452 = vunpack.c.l.b16 %v3211
    %v4453 = vunpack.c.h.b16 %v3211
    %v4454 = vunpack.c.l.b16 %v3212
    %v4455 = vunpack.c.h.b16 %v3212
    %v4456 = vunpack.c.l.b16 %v3213
    %v4457 = vunpack.c.h.b16 %v3213
    %v4458 = vunpack.c.l.b16 %v3214
    %v4459 = vunpack.c.h.b16 %v3214
    %v4460 = vunpack.c.l.b16 %v3215
    %v4461 = vunpack.c.h.b16 %v3215
    %v4462 = vunpack.c.l.b16 %v3216
    %v4463 = vunpack.c.h.b16 %v3216
    %v4464 = vunpack.c.l.b16 %v3217
    %v4465 = vunpack.c.h.b16 %v3217
    %v4466 = vunpack.c.l.b16 %v3218
    %v4467 = vunpack.c.h.b16 %v3218
    %v4468 = vunpack.c.l.b16 %v3219
    %v4469 = vunpack.c.h.b16 %v3219
    %v4470 = vunpack.c.l.b16 %v3220
    %v4471 = vunpack.c.h.b16 %v3220
    %v4472 = vunpack.c.l.b16 %v3221
    %v4473 = vunpack.c.h.b16 %v3221
    %v4474 = vunpack.c.l.b16 %v3222
    %v4475 = vunpack.c.h.b16 %v3222
    %v4476 = vunpack.c.l.b16 %v3223
    %v4477 = vunpack.c.h.b16 %v3223
    %v4478 = vunpack.c.l.b16 %v3224
    %v4479 = vunpack.c.h.b16 %v3224
    %v4480 = vunpack.c.l.b16 %v3225
    %v4481 = vunpack.c.h.b16 %v3225
    %v4482 = vunpack.c.l.b16 %v3226
    %v4483 = vunpack.c.h.b16 %v3226
    %v4484 = vunpack.c.l.b16 %v3227
    %v4485 = vunpack.c.h.b16 %v3227
    %v4486 = vunpack.c.l.b16 %v3228
    %v4487 = vunpack.c.h.b16 %v3228
    %v4488 = vunpack.c.l.b16 %v3229
    %v4489 = vunpack.c.h.b16 %v3229
    %v4490 = vunpack.c.l.b16 %v3230
    %v4491 = vunpack.c.h.b16 %v3230
    %v4492 = vunpack.c.l.b16 %v3231
    %v4493 = vunpack.c.h.b16 %v3231
    %v4494 = vunpack.c.l.b16 %v3232
    %v4495 = vunpack.c.h.b16 %v3232
    %v4496 = vunpack.c.l.b16 %v3233
    %v4497 = vunpack.c.h.b16 %v3233
    %v4498 = vunpack.c.l.b16 %v3234
    %v4499 = vunpack.c.h.b16 %v3234
    %v4500 = vunpack.c.l.b16 %v3235
    %v4501 = vunpack.c.h.b16 %v3235
    %v4502 = vunpack.c.l.b16 %v3236
    %v4503 = vunpack.c.h.b16 %v3236
    %v4504 = vunpack.c.l.b16 %v3237
    %v4505 = vunpack.c.h.b16 %v3237
    %v4506 = vunpack.c.l.b16 %v3238
    %v4507 = vunpack.c.h.b16 %v3238
    %v4508 = vunpack.c.l.b16 %v3239
    %v4509 = vunpack.c.h.b16 %v3239
    %v4510 = vunpack.c.l.b16 %v3240
    %v4511 = vunpack.c.h.b16 %v3240
    %v4512 = vunpack.c.l.b16 %v3241
    %v4513 = vunpack.c.h.b16 %v3241
    %v4514 = vunpack.c.l.b16 %v3242
    %v4515 = vunpack.c.h.b16 %v3242
    %v4516 = vunpack.c.l.b16 %v3243
    %v4517 = vunpack.c.h.b16 %v3243
    %v4518 = vunpack.c.l.b16 %v3244
    %v4519 = vunpack.c.h.b16 %v3244
    %v4520 = vunpack.c.l.b16 %v3245
    %v4521 = vunpack.c.h.b16 %v3245
    %v4522 = vunpack.c.l.b16 %v3246
    %v4523 = vunpack.c.h.b16 %v3246
    %v4524 = vunpack.c.l.b16 %v3247
    %v4525 = vunpack.c.h.b16 %v3247
    %v4526 = vunpack.c.l.b16 %v3248
    %v4527 = vunpack.c.h.b16 %v3248
    %v4528 = vunpack.c.l.b16 %v3249
    %v4529 = vunpack.c.h.b16 %v3249
    %v4530 = vunpack.c.l.b16 %v3250
    %v4531 = vunpack.c.h.b16 %v3250
    %v4532 = vunpack.c.l.b16 %v3251
    %v4533 = vunpack.c.h.b16 %v3251
    %v4534 = vunpack.c.l.b16 %v3252
    %v4535 = vunpack.c.h.b16 %v3252
    %v4536 = vunpack.c.l.b16 %v3253
    %v4537 = vunpack.c.h.b16 %v3253
    %v4538 = vunpack.c.l.b16 %v3254
    %v4539 = vunpack.c.h.b16 %v3254
    %v4540 = vunpack.c.l.b16 %v3255
    %v4541 = vunpack.c.h.b16 %v3255
    %v4542 = vunpack.c.l.b16 %v3256
    %v4543 = vunpack.c.h.b16 %v3256
    %v4544 = vunpack.c.l.b16 %v3257
    %v4545 = vunpack.c.h.b16 %v3257
    %v4546 = vunpack.c.l.b16 %v3258
    %v4547 = vunpack.c.h.b16 %v3258
    %v4548 = vunpack.c.l.b16 %v3259
    %v4549 = vunpack.c.h.b16 %v3259
    %v4550 = vunpack.c.l.b16 %v3260
    %v4551 = vunpack.c.h.b16 %v3260
    %v4552 = vunpack.c.l.b16 %v3261
    %v4553 = vunpack.c.h.b16 %v3261
    %v4554 = vunpack.c.l.b16 %v3262
    %v4555 = vunpack.c.h.b16 %v3262
    %v4556 = vunpack.c.l.b16 %v3263
    %v4557 = vunpack.c.h.b16 %v3263
    %v4558 = vunpack.c.l.b16 %v3264
    %v4559 = vunpack.c.h.b16 %v3264
    %v4560 = vunpack.c.l.b16 %v3265
    %v4561 = vunpack.c.h.b16 %v3265
    %v4562 = vunpack.c.l.b16 %v3266
    %v4563 = vunpack.c.h.b16 %v3266
    %v4564 = vunpack.c.l.b16 %v3267
    %v4565 = vunpack.c.h.b16 %v3267
    %v4566 = vunpack.c.l.b16 %v3268
    %v4567 = vunpack.c.h.b16 %v3268
    %v4568 = vunpack.c.l.b16 %v3269
    %v4569 = vunpack.c.h.b16 %v3269
    %v4570 = vunpack.c.l.b16 %v3270
    %v4571 = vunpack.c.h.b16 %v3270
    %v4572 = vunpack.c.l.b16 %v3271
    %v4573 = vunpack.c.h.b16 %v3271
    %v4574 = vunpack.c.l.b16 %v3272
    %v4575 = vunpack.c.h.b16 %v3272
    %v4576 = vunpack.c.l.b16 %v3273
    %v4577 = vunpack.c.h.b16 %v3273
    %v4578 = vunpack.c.l.b16 %v3274
    %v4579 = vunpack.c.h.b16 %v3274
    %v4580 = vunpack.c.l.b16 %v3275
    %v4581 = vunpack.c.h.b16 %v3275
    %v4582 = vunpack.c.l.b16 %v3276
    %v4583 = vunpack.c.h.b16 %v3276
    %v4584 = vunpack.c.l.b16 %v3277
    %v4585 = vunpack.c.h.b16 %v3277
    %v4586 = vunpack.c.l.b16 %v3278
    %v4587 = vunpack.c.h.b16 %v3278
    %v4588 = vunpack.c.l.b16 %v3279
    %v4589 = vunpack.c.h.b16 %v3279
    %v4590 = vunpack.c.l.b16 %v3280
    %v4591 = vunpack.c.h.b16 %v3280
    %v4592 = vunpack.c.l.b16 %v3281
    %v4593 = vunpack.c.h.b16 %v3281
    %v4594 = vunpack.c.l.b16 %v3282
    %v4595 = vunpack.c.h.b16 %v3282
    %v4596 = vunpack.c.l.b16 %v3283
    %v4597 = vunpack.c.h.b16 %v3283
    %v4598 = vunpack.c.l.b16 %v3284
    %v4599 = vunpack.c.h.b16 %v3284
    %v4600 = vunpack.c.l.b16 %v3285
    %v4601 = vunpack.c.h.b16 %v3285
    %v4602 = vunpack.c.l.b16 %v3286
    %v4603 = vunpack.c.h.b16 %v3286
    %v4604 = vunpack.c.l.b16 %v3287
    %v4605 = vunpack.c.h.b16 %v3287
    %v4606 = vunpack.c.l.b16 %v3288
    %v4607 = vunpack.c.h.b16 %v3288
    %v4608 = vunpack.c.l.b16 %v3289
    %v4609 = vunpack.c.h.b16 %v3289
    %v4610 = vunpack.c.l.b16 %v3290
    %v4611 = vunpack.c.h.b16 %v3290
    %v4612 = vunpack.c.l.b16 %v3291
    %v4613 = vunpack.c.h.b16 %v3291
    %v4614 = vunpack.c.l.b16 %v3292
    %v4615 = vunpack.c.h.b16 %v3292
    %v4616 = vunpack.c.l.b16 %v3293
    %v4617 = vunpack.c.h.b16 %v3293
    %v4618 = vunpack.c.l.b16 %v3294
    %v4619 = vunpack.c.h.b16 %v3294
    %v4620 = vunpack.c.l.b16 %v3295
    %v4621 = vunpack.c.h.b16 %v3295
    %v4622 = vunpack.c.l.b16 %v3296
    %v4623 = vunpack.c.h.b16 %v3296
    %v4624 = vunpack.c.l.b16 %v3297
    %v4625 = vunpack.c.h.b16 %v3297
    %v4626 = vunpack.c.l.b16 %v3298
    %v4627 = vunpack.c.h.b16 %v3298
    %v4628 = vunpack.c.l.b16 %v3299
    %v4629 = vunpack.c.h.b16 %v3299
    %v4630 = vunpack.c.l.b16 %v3300
    %v4631 = vunpack.c.h.b16 %v3300
    %v4632 = vunpack.c.l.b16 %v3301
    %v4633 = vunpack.c.h.b16 %v3301
    %v4634 = vunpack.c.l.b16 %v3302
    %v4635 = vunpack.c.h.b16 %v3302
    %v4636 = vunpack.c.l.b16 %v3303
    %v4637 = vunpack.c.h.b16 %v3303
    %v4638 = vunpack.c.l.b16 %v3304
    %v4639 = vunpack.c.h.b16 %v3304
    %v4640 = vunpack.c.l.b16 %v3305
    %v4641 = vunpack.c.h.b16 %v3305
    %v4642 = vunpack.c.l.b16 %v3306
    %v4643 = vunpack.c.h.b16 %v3306
    %v4644 = vunpack.c.l.b16 %v3307
    %v4645 = vunpack.c.h.b16 %v3307
    %v4646 = vunpack.c.l.b16 %v3308
    %v4647 = vunpack.c.h.b16 %v3308
    %v4648 = vunpack.c.l.b16 %v3309
    %v4649 = vunpack.c.h.b16 %v3309
    %v4650 = vunpack.c.l.b16 %v3310
    %v4651 = vunpack.c.h.b16 %v3310
    %v4652 = vunpack.c.l.b16 %v3311
    %v4653 = vunpack.c.h.b16 %v3311
    %v4654 = vunpack.c.l.b16 %v3312
    %v4655 = vunpack.c.h.b16 %v3312
    %v4656 = vunpack.c.l.b16 %v3313
    %v4657 = vunpack.c.h.b16 %v3313
    %v4658 = vunpack.c.l.b16 %v3314
    %v4659 = vunpack.c.h.b16 %v3314
    %v4660 = vunpack.c.l.b16 %v3315
    %v4661 = vunpack.c.h.b16 %v3315
    %v4662 = vunpack.c.l.b16 %v3316
    %v4663 = vunpack.c.h.b16 %v3316
    %v4664 = vunpack.c.l.b16 %v3317
    %v4665 = vunpack.c.h.b16 %v3317
    %v4666 = vunpack.c.l.b16 %v3318
    %v4667 = vunpack.c.h.b16 %v3318
    %v4668 = vunpack.c.l.b16 %v3319
    %v4669 = vunpack.c.h.b16 %v3319
    %v4670 = vunpack.c.l.b16 %v3320
    %v4671 = vunpack.c.h.b16 %v3320
    %v4672 = vunpack.c.l.b16 %v3321
    %v4673 = vunpack.c.h.b16 %v3321
    %v4674 = vunpack.c.l.b16 %v3322
    %v4675 = vunpack.c.h.b16 %v3322
    %v4676 = vunpack.c.l.b16 %v3323
    %v4677 = vunpack.c.h.b16 %v3323
    %v4678 = vunpack.c.l.b16 %v3324
    %v4679 = vunpack.c.h.b16 %v3324
    %v4680 = vunpack.c.l.b16 %v3325
    %v4681 = vunpack.c.h.b16 %v3325
    %v4682 = vunpack.c.l.b16 %v3326
    %v4683 = vunpack.c.h.b16 %v3326
    %v4684 = vunpack.c.l.b16 %v3327
    %v4685 = vunpack.c.h.b16 %v3327
    %v4686 = vunpack.c.l.b16 %v3328
    %v4687 = vunpack.c.h.b16 %v3328
    %v4688 = vunpack.c.l.b16 %v3329
    %v4689 = vunpack.c.h.b16 %v3329
    %v4690 = vunpack.c.l.b16 %v3330
    %v4691 = vunpack.c.h.b16 %v3330
    %v4692 = vunpack.c.l.b16 %v3331
    %v4693 = vunpack.c.h.b16 %v3331
    %v4694 = vunpack.c.l.b16 %v3332
    %v4695 = vunpack.c.h.b16 %v3332
    %v4696 = vunpack.c.l.b16 %v3333
    %v4697 = vunpack.c.h.b16 %v3333
    %v4698 = vunpack.c.l.b16 %v3334
    %v4699 = vunpack.c.h.b16 %v3334
    %v4700 = vunpack.c.l.b16 %v3335
    %v4701 = vunpack.c.h.b16 %v3335
    %v4702 = vunpack.c.l.b16 %v3336
    %v4703 = vunpack.c.h.b16 %v3336
    %v4704 = vunpack.c.l.b16 %v3337
    %v4705 = vunpack.c.h.b16 %v3337
    %v4706 = vunpack.c.l.b16 %v3338
    %v4707 = vunpack.c.h.b16 %v3338
    %v4708 = vunpack.c.l.b16 %v3339
    %v4709 = vunpack.c.h.b16 %v3339
    %v4710 = vunpack.c.l.b16 %v3340
    %v4711 = vunpack.c.h.b16 %v3340
    %v4712 = vunpack.c.l.b16 %v3341
    %v4713 = vunpack.c.h.b16 %v3341
    %v4714 = vunpack.c.l.b16 %v3342
    %v4715 = vunpack.c.h.b16 %v3342
    %v4716 = vunpack.c.l.b16 %v3343
    %v4717 = vunpack.c.h.b16 %v3343
    %v4718 = vunpack.c.l.b16 %v3344
    %v4719 = vunpack.c.h.b16 %v3344
    %v4720 = vunpack.c.l.b16 %v3345
    %v4721 = vunpack.c.h.b16 %v3345
    %v4722 = vunpack.c.l.b16 %v3346
    %v4723 = vunpack.c.h.b16 %v3346
    %v4724 = vunpack.c.l.b16 %v3347
    %v4725 = vunpack.c.h.b16 %v3347
    %v4726 = vunpack.c.l.b16 %v3348
    %v4727 = vunpack.c.h.b16 %v3348
    %v4728 = vunpack.c.l.b16 %v3349
    %v4729 = vunpack.c.h.b16 %v3349
    %v4730 = vunpack.c.l.b16 %v3350
    %v4731 = vunpack.c.h.b16 %v3350
    %v4732 = vunpack.c.l.b16 %v3351
    %v4733 = vunpack.c.h.b16 %v3351
    %v4734 = vunpack.c.l.b16 %v3352
    %v4735 = vunpack.c.h.b16 %v3352
    %v4736 = vunpack.c.l.b16 %v3353
    %v4737 = vunpack.c.h.b16 %v3353
    %v4738 = vunpack.c.l.b16 %v3354
    %v4739 = vunpack.c.h.b16 %v3354
    %v4740 = vunpack.c.l.b16 %v3355
    %v4741 = vunpack.c.h.b16 %v3355
    %v4742 = vunpack.c.l.b16 %v3356
    %v4743 = vunpack.c.h.b16 %v3356
    %v4744 = vunpack.c.l.b16 %v3357
    %v4745 = vunpack.c.h.b16 %v3357
    %v4746 = vunpack.c.l.b16 %v3358
    %v4747 = vunpack.c.h.b16 %v3358
    %v4748 = vunpack.c.l.b16 %v3359
    %v4749 = vunpack.c.h.b16 %v3359
    %v4750 = vunpack.c.l.b16 %v3360
    %v4751 = vunpack.c.h.b16 %v3360
    %v4752 = vunpack.c.l.b16 %v3361
    %v4753 = vunpack.c.h.b16 %v3361
    %v4754 = vunpack.c.l.b16 %v3362
    %v4755 = vunpack.c.h.b16 %v3362
    %v4756 = vunpack.c.l.b16 %v3363
    %v4757 = vunpack.c.h.b16 %v3363
    %v4758 = vunpack.c.l.b16 %v3364
    %v4759 = vunpack.c.h.b16 %v3364
    %v4760 = vunpack.c.l.b16 %v3365
    %v4761 = vunpack.c.h.b16 %v3365
    %v4762 = vunpack.c.l.b16 %v3366
    %v4763 = vunpack.c.h.b16 %v3366
    %v4764 = vunpack.c.l.b16 %v3367
    %v4765 = vunpack.c.h.b16 %v3367
    %v4766 = vunpack.c.l.b16 %v3368
    %v4767 = vunpack.c.h.b16 %v3368
    %v4768 = vunpack.c.l.b16 %v3369
    %v4769 = vunpack.c.h.b16 %v3369
    %v4770 = vunpack.c.l.b16 %v3370
    %v4771 = vunpack.c.h.b16 %v3370
    %v4772 = vunpack.c.l.b16 %v3371
    %v4773 = vunpack.c.h.b16 %v3371
    %v4774 = vunpack.c.l.b16 %v3372
    %v4775 = vunpack.c.h.b16 %v3372
    %v4776 = vunpack.c.l.b16 %v3373
    %v4777 = vunpack.c.h.b16 %v3373
    %v4778 = vunpack.c.l.b16 %v3374
    %v4779 = vunpack.c.h.b16 %v3374
    %v4780 = vunpack.c.l.b16 %v3375
    %v4781 = vunpack.c.h.b16 %v3375
    %v4782 = vunpack.c.l.b16 %v3376
    %v4783 = vunpack.c.h.b16 %v3376
    %v4784 = vunpack.c.l.b16 %v3377
    %v4785 = vunpack.c.h.b16 %v3377
    %v4786 = vunpack.c.l.b16 %v3378
    %v4787 = vunpack.c.h.b16 %v3378
    %v4788 = vunpack.c.l.b16 %v3379
    %v4789 = vunpack.c.h.b16 %v3379
    %v4790 = vunpack.c.l.b16 %v3380
    %v4791 = vunpack.c.h.b16 %v3380
    %v4792 = vunpack.c.l.b16 %v3381
    %v4793 = vunpack.c.h.b16 %v3381
    %v4794 = vunpack.c.l.b16 %v3382
    %v4795 = vunpack.c.h.b16 %v3382
    %v4796 = vunpack.c.l.b16 %v3383
    %v4797 = vunpack.c.h.b16 %v3383
    %v4798 = vunpack.c.l.b16 %v3384
    %v4799 = vunpack.c.h.b16 %v3384
    %v4800 = vunpack.c.l.b16 %v3385
    %v4801 = vunpack.c.h.b16 %v3385
    %v4802 = vunpack.c.l.b16 %v3386
    %v4803 = vunpack.c.h.b16 %v3386
    %v4804 = vunpack.c.l.b16 %v3387
    %v4805 = vunpack.c.h.b16 %v3387
    %v4806 = vunpack.c.l.b16 %v3388
    %v4807 = vunpack.c.h.b16 %v3388
    %v4808 = vunpack.c.l.b16 %v3389
    %v4809 = vunpack.c.h.b16 %v3389
    %v4810 = vunpack.c.l.b16 %v3390
    %v4811 = vunpack.c.h.b16 %v3390
    %v4812 = vunpack.c.l.b16 %v3391
    %v4813 = vunpack.c.h.b16 %v3391
    %v4814 = vunpack.c.l.b16 %v3392
    %v4815 = vunpack.c.h.b16 %v3392
    %v4816 = vunpack.c.l.b16 %v3393
    %v4817 = vunpack.c.h.b16 %v3393
    %v4818 = vunpack.c.l.b16 %v3394
    %v4819 = vunpack.c.h.b16 %v3394
    %v4820 = vunpack.c.l.b16 %v3395
    %v4821 = vunpack.c.h.b16 %v3395
    %v4822 = vunpack.c.l.b16 %v3396
    %v4823 = vunpack.c.h.b16 %v3396
    %v4824 = vunpack.c.l.b16 %v3397
    %v4825 = vunpack.c.h.b16 %v3397
    %v4826 = vunpack.c.l.b16 %v3398
    %v4827 = vunpack.c.h.b16 %v3398
    %v4828 = vunpack.c.l.b16 %v3399
    %v4829 = vunpack.c.h.b16 %v3399
    %v4830 = vunpack.c.l.b16 %v3400
    %v4831 = vunpack.c.h.b16 %v3400
    %v4832 = vunpack.c.l.b16 %v3401
    %v4833 = vunpack.c.h.b16 %v3401
    %v4834 = vunpack.c.l.b16 %v3402
    %v4835 = vunpack.c.h.b16 %v3402
    %v4836 = vunpack.c.l.b16 %v3403
    %v4837 = vunpack.c.h.b16 %v3403
    %v4838 = vunpack.c.l.b16 %v3404
    %v4839 = vunpack.c.h.b16 %v3404
    %v4840 = vunpack.c.l.b16 %v3405
    %v4841 = vunpack.c.h.b16 %v3405
    %v4842 = vunpack.c.l.b16 %v3406
    %v4843 = vunpack.c.h.b16 %v3406
    %v4844 = vunpack.c.l.b16 %v3407
    %v4845 = vunpack.c.h.b16 %v3407
    %v4846 = vunpack.c.l.b16 %v3408
    %v4847 = vunpack.c.h.b16 %v3408
    %v4848 = vunpack.c.l.b16 %v3409
    %v4849 = vunpack.c.h.b16 %v3409
    %v4850 = vunpack.c.l.b16 %v3410
    %v4851 = vunpack.c.h.b16 %v3410
    %v4852 = vunpack.c.l.b16 %v3411
    %v4853 = vunpack.c.h.b16 %v3411
    %v4854 = vunpack.c.l.b16 %v3412
    %v4855 = vunpack.c.h.b16 %v3412
    %v4856 = vunpack.c.l.b16 %v3413
    %v4857 = vunpack.c.h.b16 %v3413
    %v4858 = vunpack.c.l.b16 %v3414
    %v4859 = vunpack.c.h.b16 %v3414
    %v4860 = vunpack.c.l.b16 %v3415
    %v4861 = vunpack.c.h.b16 %v3415
    %v4862 = vunpack.c.l.b16 %v3416
    %v4863 = vunpack.c.h.b16 %v3416
    %v4864 = vunpack.c.l.b16 %v3417
    %v4865 = vunpack.c.h.b16 %v3417
    %v4866 = vunpack.c.l.b16 %v3418
    %v4867 = vunpack.c.h.b16 %v3418
    %v4868 = vunpack.c.l.b16 %v3419
    %v4869 = vunpack.c.h.b16 %v3419
    %v4870 = vunpack.c.l.b16 %v3420
    %v4871 = vunpack.c.h.b16 %v3420
    %v4872 = vunpack.c.l.b16 %v3421
    %v4873 = vunpack.c.h.b16 %v3421
    %v4874 = vunpack.c.l.b16 %v3422
    %v4875 = vunpack.c.h.b16 %v3422
    %v4876 = vunpack.c.l.b16 %v3423
    %v4877 = vunpack.c.h.b16 %v3423
    %v4878 = vunpack.c.l.b16 %v3424
    %v4879 = vunpack.c.h.b16 %v3424
    %v4880 = vunpack.c.l.b16 %v3425
    %v4881 = vunpack.c.h.b16 %v3425
    %v4882 = vunpack.c.l.b16 %v3426
    %v4883 = vunpack.c.h.b16 %v3426
    %v4884 = vunpack.c.l.b16 %v3427
    %v4885 = vunpack.c.h.b16 %v3427
    %v4886 = vunpack.c.l.b16 %v3428
    %v4887 = vunpack.c.h.b16 %v3428
    %v4888 = vunpack.c.l.b16 %v3429
    %v4889 = vunpack.c.h.b16 %v3429
    %v4890 = vunpack.c.l.b16 %v3430
    %v4891 = vunpack.c.h.b16 %v3430
    %v4892 = vunpack.c.l.b16 %v3431
    %v4893 = vunpack.c.h.b16 %v3431
    %v4894 = vunpack.c.l.b16 %v3432
    %v4895 = vunpack.c.h.b16 %v3432
    %v4896 = vunpack.c.l.b16 %v3433
    %v4897 = vunpack.c.h.b16 %v3433
    %v4898 = vunpack.c.l.b16 %v3434
    %v4899 = vunpack.c.h.b16 %v3434
    %v4900 = vunpack.c.l.b16 %v3435
    %v4901 = vunpack.c.h.b16 %v3435
    %v4902 = vunpack.c.l.b16 %v3436
    %v4903 = vunpack.c.h.b16 %v3436
    %v4904 = vunpack.c.l.b16 %v3437
    %v4905 = vunpack.c.h.b16 %v3437
    %v4906 = vunpack.c.l.b16 %v3438
    %v4907 = vunpack.c.h.b16 %v3438
    %v4908 = vunpack.c.l.b16 %v3439
    %v4909 = vunpack.c.h.b16 %v3439
    %v4910 = vunpack.c.l.b16 %v3440
    %v4911 = vunpack.c.h.b16 %v3440
    %v4912 = vunpack.c.l.b16 %v3441
    %v4913 = vunpack.c.h.b16 %v3441
    %v4914 = vunpack.c.l.b16 %v3442
    %v4915 = vunpack.c.h.b16 %v3442
    %v4916 = vunpack.c.l.b16 %v3443
    %v4917 = vunpack.c.h.b16 %v3443
    %v4918 = vunpack.c.l.b16 %v3444
    %v4919 = vunpack.c.h.b16 %v3444
    %v4920 = vunpack.c.l.b16 %v3445
    %v4921 = vunpack.c.h.b16 %v3445
    %v4922 = vunpack.c.l.b16 %v3446
    %v4923 = vunpack.c.h.b16 %v3446
    %v4924 = vunpack.c.l.b16 %v3447
    %v4925 = vunpack.c.h.b16 %v3447
    %v4926 = vunpack.c.l.b16 %v3448
    %v4927 = vunpack.c.h.b16 %v3448
    %v4928 = vunpack.c.l.b16 %v3449
    %v4929 = vunpack.c.h.b16 %v3449
    %v4930 = vunpack.c.l.b16 %v3450
    %v4931 = vunpack.c.h.b16 %v3450
    %v4932 = vunpack.c.l.b16 %v3451
    %v4933 = vunpack.c.h.b16 %v3451
    %v4934 = vunpack.c.l.b16 %v3452
    %v4935 = vunpack.c.h.b16 %v3452
    %v4936 = vunpack.c.l.b16 %v3453
    %v4937 = vunpack.c.h.b16 %v3453
    %v4938 = vunpack.c.l.b16 %v3454
    %v4939 = vunpack.c.h.b16 %v3454
    %v4940 = vunpack.c.l.b16 %v3455
    %v4941 = vunpack.c.h.b16 %v3455
    %v4942 = vunpack.c.l.b16 %v3456
    %v4943 = vunpack.c.h.b16 %v3456
    %v4944 = vunpack.c.l.b16 %v3457
    %v4945 = vunpack.c.h.b16 %v3457
    %v4946 = vunpack.c.l.b16 %v3458
    %v4947 = vunpack.c.h.b16 %v3458
    %v4948 = vunpack.c.l.b16 %v3459
    %v4949 = vunpack.c.h.b16 %v3459
    %v4950 = vunpack.c.l.b16 %v3460
    %v4951 = vunpack.c.h.b16 %v3460
    %v4952 = vunpack.c.l.b16 %v3461
    %v4953 = vunpack.c.h.b16 %v3461
    %v4954 = vunpack.c.l.b16 %v3462
    %v4955 = vunpack.c.h.b16 %v3462
    %v4956 = vunpack.c.l.b16 %v3463
    %v4957 = vunpack.c.h.b16 %v3463
    %v4958 = vunpack.c.l.b16 %v3464
    %v4959 = vunpack.c.h.b16 %v3464
    %v4960 = vunpack.c.l.b16 %v3465
    %v4961 = vunpack.c.h.b16 %v3465
    %v4962 = vunpack.c.l.b16 %v3466
    %v4963 = vunpack.c.h.b16 %v3466
    %v4964 = vunpack.c.l.b16 %v3467
    %v4965 = vunpack.c.h.b16 %v3467
    %v4966 = vunpack.c.l.b16 %v3468
    %v4967 = vunpack.c.h.b16 %v3468
    %v4968 = vunpack.c.l.b16 %v3469
    %v4969 = vunpack.c.h.b16 %v3469
    %v4970 = vunpack.c.l.b16 %v3470
    %v4971 = vunpack.c.h.b16 %v3470
    %v4972 = vunpack.c.l.b16 %v3471
    %v4973 = vunpack.c.h.b16 %v3471
    %v4974 = vunpack.c.l.b16 %v3472
    %v4975 = vunpack.c.h.b16 %v3472
    %v4976 = vunpack.c.l.b16 %v3473
    %v4977 = vunpack.c.h.b16 %v3473
    %v4978 = vunpack.c.l.b16 %v3474
    %v4979 = vunpack.c.h.b16 %v3474
    %v4980 = vunpack.c.l.b16 %v3475
    %v4981 = vunpack.c.h.b16 %v3475
    %v4982 = vunpack.c.l.b16 %v3476
    %v4983 = vunpack.c.h.b16 %v3476
    %v4984 = vunpack.c.l.b16 %v3477
    %v4985 = vunpack.c.h.b16 %v3477
    %v4986 = vunpack.c.l.b16 %v3478
    %v4987 = vunpack.c.h.b16 %v3478
    %v4988 = vunpack.c.l.b16 %v3479
    %v4989 = vunpack.c.h.b16 %v3479
    %v4990 = vunpack.c.l.b16 %v3480
    %v4991 = vunpack.c.h.b16 %v3480
    %v4992 = vunpack.c.l.b16 %v3481
    %v4993 = vunpack.c.h.b16 %v3481
    %v4994 = vunpack.c.l.b16 %v3482
    %v4995 = vunpack.c.h.b16 %v3482
    %v4996 = vunpack.c.l.b16 %v3483
    %v4997 = vunpack.c.h.b16 %v3483
    %v4998 = vunpack.c.l.b16 %v3484
    %v4999 = vunpack.c.h.b16 %v3484
    %v5000 = vunpack.c.l.b16 %v3485
    %v5001 = vunpack.c.h.b16 %v3485
    %v5002 = vunpack.c.l.b16 %v3486
    %v5003 = vunpack.c.h.b16 %v3486
    %v5004 = vunpack.c.l.b16 %v3487
    %v5005 = vunpack.c.h.b16 %v3487
    %v5006 = vunpack.c.l.b16 %v3488
    %v5007 = vunpack.c.h.b16 %v3488
    %v5008 = vunpack.c.l.b16 %v3489
    %v5009 = vunpack.c.h.b16 %v3489
    %v5010 = vunpack.c.l.b16 %v3490
    %v5011 = vunpack.c.h.b16 %v3490
    %v5012 = vunpack.c.l.b16 %v3491
    %v5013 = vunpack.c.h.b16 %v3491
    %v5014 = vunpack.c.l.b16 %v3492
    %v5015 = vunpack.c.h.b16 %v3492
    %v5016 = vunpack.c.l.b16 %v3493
    %v5017 = vunpack.c.h.b16 %v3493
    %v5018 = vunpack.c.l.b16 %v3494
    %v5019 = vunpack.c.h.b16 %v3494
    %v5020 = vunpack.c.l.b16 %v3495
    %v5021 = vunpack.c.h.b16 %v3495
    %v5022 = vunpack.c.l.b16 %v3496
    %v5023 = vunpack.c.h.b16 %v3496
    %v5024 = vunpack.c.l.b16 %v3497
    %v5025 = vunpack.c.h.b16 %v3497
    %v5026 = vunpack.c.l.b16 %v3498
    %v5027 = vunpack.c.h.b16 %v3498
    %v5028 = vunpack.c.l.b16 %v3499
    %v5029 = vunpack.c.h.b16 %v3499
    %v5030 = vunpack.c.l.b16 %v3500
    %v5031 = vunpack.c.h.b16 %v3500
    %v5032 = vunpack.c.l.b16 %v3501
    %v5033 = vunpack.c.h.b16 %v3501
    %v5034 = vunpack.c.l.b16 %v3502
    %v5035 = vunpack.c.h.b16 %v3502
    %v5036 = vunpack.c.l.b16 %v3503
    %v5037 = vunpack.c.h.b16 %v3503
    %v5038 = vunpack.c.l.b16 %v3504
    %v5039 = vunpack.c.h.b16 %v3504
    %v5040 = vunpack.c.l.b16 %v3505
    %v5041 = vunpack.c.h.b16 %v3505
    %v5042 = vunpack.c.l.b16 %v3506
    %v5043 = vunpack.c.h.b16 %v3506
    %v5044 = vunpack.c.l.b16 %v3507
    %v5045 = vunpack.c.h.b16 %v3507
    %v5046 = vunpack.c.l.b16 %v3508
    %v5047 = vunpack.c.h.b16 %v3508
    %v5048 = vunpack.c.l.b16 %v3509
    %v5049 = vunpack.c.h.b16 %v3509
    %v5050 = vunpack.c.l.b16 %v3510
    %v5051 = vunpack.c.h.b16 %v3510
    %v5052 = vunpack.c.l.b16 %v3511
    %v5053 = vunpack.c.h.b16 %v3511
    %v5054 = vunpack.c.l.b16 %v3512
    %v5055 = vunpack.c.h.b16 %v3512
    %v5056 = vunpack.c.l.b16 %v3513
    %v5057 = vunpack.c.h.b16 %v3513
    %v5058 = vunpack.c.l.b16 %v3514
    %v5059 = vunpack.c.h.b16 %v3514
    %v5060 = vunpack.c.l.b16 %v3515
    %v5061 = vunpack.c.h.b16 %v3515
    %v5062 = vunpack.c.l.b16 %v3516
    %v5063 = vunpack.c.h.b16 %v3516
    %v5064 = vunpack.c.l.b16 %v3517
    %v5065 = vunpack.c.h.b16 %v3517
    %v5066 = vunpack.c.l.b16 %v3518
    %v5067 = vunpack.c.h.b16 %v3518
    %v5068 = vunpack.c.l.b16 %v3519
    %v5069 = vunpack.c.h.b16 %v3519
    %v5070 = vunpack.c.l.b16 %v3520
    %v5071 = vunpack.c.h.b16 %v3520
    %v5072 = vunpack.c.l.b16 %v3521
    %v5073 = vunpack.c.h.b16 %v3521
    %v5074 = vunpack.c.l.b16 %v3522
    %v5075 = vunpack.c.h.b16 %v3522
    %v5076 = vunpack.c.l.b16 %v3523
    %v5077 = vunpack.c.h.b16 %v3523
    %v5078 = vunpack.c.l.b16 %v3524
    %v5079 = vunpack.c.h.b16 %v3524
    %v5080 = vunpack.c.l.b16 %v3525
    %v5081 = vunpack.c.h.b16 %v3525
    %v5082 = vunpack.c.l.b16 %v3526
    %v5083 = vunpack.c.h.b16 %v3526
    %v5084 = vunpack.c.l.b16 %v3527
    %v5085 = vunpack.c.h.b16 %v3527
    %v5086 = vunpack.c.l.b16 %v3528
    %v5087 = vunpack.c.h.b16 %v3528
    %v5088 = vunpack.c.l.b16 %v3529
    %v5089 = vunpack.c.h.b16 %v3529
    %v5090 = vunpack.c.l.b16 %v3530
    %v5091 = vunpack.c.h.b16 %v3530
    %v5092 = vunpack.c.l.b16 %v3531
    %v5093 = vunpack.c.h.b16 %v3531
    %v5094 = vunpack.c.l.b16 %v3532
    %v5095 = vunpack.c.h.b16 %v3532
    %v5096 = vunpack.c.l.b16 %v3533
    %v5097 = vunpack.c.h.b16 %v3533
    %v5098 = vunpack.c.l.b16 %v3534
    %v5099 = vunpack.c.h.b16 %v3534
    %v5100 = vunpack.c.l.b16 %v3535
    %v5101 = vunpack.c.h.b16 %v3535
    %v5102 = vunpack.c.l.b16 %v3536
    %v5103 = vunpack.c.h.b16 %v3536
    %v5104 = vunpack.c.l.b16 %v3537
    %v5105 = vunpack.c.h.b16 %v3537
    %v5106 = vunpack.c.l.b16 %v3538
    %v5107 = vunpack.c.h.b16 %v3538
    %v5108 = vunpack.c.l.b16 %v3539
    %v5109 = vunpack.c.h.b16 %v3539
    %v5110 = vunpack.c.l.b16 %v3540
    %v5111 = vunpack.c.h.b16 %v3540
    %v5112 = vunpack.c.l.b16 %v3541
    %v5113 = vunpack.c.h.b16 %v3541
    %v5114 = vunpack.c.l.b16 %v3542
    %v5115 = vunpack.c.h.b16 %v3542
    %v5116 = vunpack.c.l.b16 %v3543
    %v5117 = vunpack.c.h.b16 %v3543
    %v5118 = vunpack.c.l.b16 %v3544
    %v5119 = vunpack.c.h.b16 %v3544
    %v5120 = vunpack.c.l.b16 %v3545
    %v5121 = vunpack.c.h.b16 %v3545
    %v5122 = vunpack.c.l.b16 %v3546
    %v5123 = vunpack.c.h.b16 %v3546
    %v5124 = vunpack.c.l.b16 %v3547
    %v5125 = vunpack.c.h.b16 %v3547
    %v5126 = vunpack.c.l.b16 %v3548
    %v5127 = vunpack.c.h.b16 %v3548
    %v5128 = vunpack.c.l.b16 %v3549
    %v5129 = vunpack.c.h.b16 %v3549
    %v5130 = vunpack.c.l.b16 %v3550
    %v5131 = vunpack.c.h.b16 %v3550
    %v5132 = vunpack.c.l.b16 %v3551
    %v5133 = vunpack.c.h.b16 %v3551
    %v5134 = vunpack.c.l.b16 %v3552
    %v5135 = vunpack.c.h.b16 %v3552
    %v5136 = vunpack.c.l.b16 %v3553
    %v5137 = vunpack.c.h.b16 %v3553
    %v5138 = vunpack.c.l.b16 %v3554
    %v5139 = vunpack.c.h.b16 %v3554
    %v5140 = vunpack.c.l.b16 %v3555
    %v5141 = vunpack.c.h.b16 %v3555
    %v5142 = vunpack.c.l.b16 %v3556
    %v5143 = vunpack.c.h.b16 %v3556
    %v5144 = vunpack.c.l.b16 %v3557
    %v5145 = vunpack.c.h.b16 %v3557
    %v5146 = vunpack.c.l.b16 %v3558
    %v5147 = vunpack.c.h.b16 %v3558
    %v5148 = vunpack.c.l.b16 %v3559
    %v5149 = vunpack.c.h.b16 %v3559
    %v5150 = vunpack.c.l.b16 %v3560
    %v5151 = vunpack.c.h.b16 %v3560
    %v5152 = vunpack.c.l.b16 %v3561
    %v5153 = vunpack.c.h.b16 %v3561
    %v5154 = vunpack.c.l.b16 %v3562
    %v5155 = vunpack.c.h.b16 %v3562
    %v5156 = vunpack.c.l.b16 %v3563
    %v5157 = vunpack.c.h.b16 %v3563
    %v5158 = vunpack.c.l.b16 %v3564
    %v5159 = vunpack.c.h.b16 %v3564
    %v5160 = vunpack.c.l.b16 %v3565
    %v5161 = vunpack.c.h.b16 %v3565
    %v5162 = vunpack.c.l.b16 %v3566
    %v5163 = vunpack.c.h.b16 %v3566
    %v5164 = vunpack.c.l.b16 %v3567
    %v5165 = vunpack.c.h.b16 %v3567
    %v5166 = vunpack.c.l.b16 %v3568
    %v5167 = vunpack.c.h.b16 %v3568
    %v5168 = vunpack.c.l.b16 %v3569
    %v5169 = vunpack.c.h.b16 %v3569
    %v5170 = vunpack.c.l.b16 %v3570
    %v5171 = vunpack.c.h.b16 %v3570
    %v5172 = vunpack.c.l.b16 %v3571
    %v5173 = vunpack.c.h.b16 %v3571
    %v5174 = vunpack.c.l.b16 %v3572
    %v5175 = vunpack.c.h.b16 %v3572
    %v5176 = vunpack.c.l.b16 %v3573
    %v5177 = vunpack.c.h.b16 %v3573
    %v5178 = vunpack.c.l.b16 %v3574
    %v5179 = vunpack.c.h.b16 %v3574
    %v5180 = vunpack.c.l.b16 %v3575
    %v5181 = vunpack.c.h.b16 %v3575
    %v5182 = vunpack.c.l.b16 %v3576
    %v5183 = vunpack.c.h.b16 %v3576
    %v5184 = vunpack.c.l.b16 %v3577
    %v5185 = vunpack.c.h.b16 %v3577
    %v5186 = vunpack.c.l.b16 %v3578
    %v5187 = vunpack.c.h.b16 %v3578
    %v5188 = vunpack.c.l.b16 %v3579
    %v5189 = vunpack.c.h.b16 %v3579
    %v5190 = vunpack.c.l.b16 %v3580
    %v5191 = vunpack.c.h.b16 %v3580
    %v5192 = vunpack.c.l.b16 %v3581
    %v5193 = vunpack.c.h.b16 %v3581
    %v5194 = vunpack.c.l.b16 %v3582
    %v5195 = vunpack.c.h.b16 %v3582
    %v5196 = vunpack.c.l.b16 %v3583
    %v5197 = vunpack.c.h.b16 %v3583
    %v5198 = vunpack.c.l.b16 %v3584
    %v5199 = vunpack.c.h.b16 %v3584
    %v5200 = vunpack.c.l.b16 %v3585
    %v5201 = vunpack.c.h.b16 %v3585
    %v5202 = vunpack.c.l.b16 %v3586
    %v5203 = vunpack.c.h.b16 %v3586
    %v5204 = vunpack.c.l.b16 %v3587
    %v5205 = vunpack.c.h.b16 %v3587
    %v5206 = vunpack.c.l.b16 %v3588
    %v5207 = vunpack.c.h.b16 %v3588
    %v5208 = vunpack.c.l.b16 %v3589
    %v5209 = vunpack.c.h.b16 %v3589
    %v5210 = vunpack.c.l.b16 %v3590
    %v5211 = vunpack.c.h.b16 %v3590
    %v5212 = vunpack.c.l.b16 %v3591
    %v5213 = vunpack.c.h.b16 %v3591
    %v5214 = vunpack.c.l.b16 %v3592
    %v5215 = vunpack.c.h.b16 %v3592
    %v5216 = vunpack.c.l.b16 %v3593
    %v5217 = vunpack.c.h.b16 %v3593
    %v5218 = vunpack.c.l.b16 %v3594
    %v5219 = vunpack.c.h.b16 %v3594
    %v5220 = vunpack.c.l.b16 %v3595
    %v5221 = vunpack.c.h.b16 %v3595
    %v5222 = vunpack.c.l.b16 %v3596
    %v5223 = vunpack.c.h.b16 %v3596
    %v5224 = vunpack.c.l.b16 %v3597
    %v5225 = vunpack.c.h.b16 %v3597
    %v5226 = vunpack.c.l.b16 %v3598
    %v5227 = vunpack.c.h.b16 %v3598
    %v5228 = vunpack.c.l.b16 %v3599
    %v5229 = vunpack.c.h.b16 %v3599
    %v5230 = vunpack.c.l.b16 %v3600
    %v5231 = vunpack.c.h.b16 %v3600
    %v5232 = vunpack.c.l.b16 %v3601
    %v5233 = vunpack.c.h.b16 %v3601
    %v5234 = vunpack.c.l.b16 %v3602
    %v5235 = vunpack.c.h.b16 %v3602
    %v5236 = vunpack.c.l.b16 %v3603
    %v5237 = vunpack.c.h.b16 %v3603
    %v5238 = vunpack.c.l.b16 %v3604
    %v5239 = vunpack.c.h.b16 %v3604
    %v5240 = vunpack.c.l.b16 %v3605
    %v5241 = vunpack.c.h.b16 %v3605
    %v5242 = vunpack.c.l.b16 %v3606
    %v5243 = vunpack.c.h.b16 %v3606
    %v5244 = vunpack.c.l.b16 %v3607
    %v5245 = vunpack.c.h.b16 %v3607
    %v5246 = vunpack.c.l.b16 %v3608
    %v5247 = vunpack.c.h.b16 %v3608
    %v5248 = vunpack.c.l.b16 %v3609
    %v5249 = vunpack.c.h.b16 %v3609
    %v5250 = vunpack.c.l.b16 %v3610
    %v5251 = vunpack.c.h.b16 %v3610
    %v5252 = vunpack.c.l.b16 %v3611
    %v5253 = vunpack.c.h.b16 %v3611
    %v5254 = vunpack.c.l.b16 %v3612
    %v5255 = vunpack.c.h.b16 %v3612
    %v5256 = vunpack.c.l.b16 %v3613
    %v5257 = vunpack.c.h.b16 %v3613
    %v5258 = vunpack.c.l.b16 %v3614
    %v5259 = vunpack.c.h.b16 %v3614
    %v5260 = vunpack.c.l.b16 %v3615
    %v5261 = vunpack.c.h.b16 %v3615
    %v5262 = vunpack.c.l.b16 %v3616
    %v5263 = vunpack.c.h.b16 %v3616
    %v5264 = vunpack.c.l.b16 %v3617
    %v5265 = vunpack.c.h.b16 %v3617
    %v5266 = vunpack.c.l.b16 %v3618
    %v5267 = vunpack.c.h.b16 %v3618
    %v5268 = vunpack.c.l.b16 %v3619
    %v5269 = vunpack.c.h.b16 %v3619
    %v5270 = vunpack.c.l.b16 %v3620
    %v5271 = vunpack.c.h.b16 %v3620
    %v5272 = vunpack.c.l.b16 %v3621
    %v5273 = vunpack.c.h.b16 %v3621
    %v5274 = vunpack.c.l.b16 %v3622
    %v5275 = vunpack.c.h.b16 %v3622
    %v5276 = vunpack.c.l.b16 %v3623
    %v5277 = vunpack.c.h.b16 %v3623
    %v5278 = vunpack.c.l.b16 %v3624
    %v5279 = vunpack.c.h.b16 %v3624
    %v5280 = vunpack.c.l.b16 %v3625
    %v5281 = vunpack.c.h.b16 %v3625
    %v5282 = vunpack.c.l.b16 %v3626
    %v5283 = vunpack.c.h.b16 %v3626
    %v5284 = vunpack.c.l.b16 %v3627
    %v5285 = vunpack.c.h.b16 %v3627
    %v5286 = vunpack.c.l.b16 %v3628
    %v5287 = vunpack.c.h.b16 %v3628
    %v5288 = vunpack.c.l.b16 %v3629
    %v5289 = vunpack.c.h.b16 %v3629
    %v5290 = vunpack.c.l.b16 %v3630
    %v5291 = vunpack.c.h.b16 %v3630
    %v5292 = vunpack.c.l.b16 %v3631
    %v5293 = vunpack.c.h.b16 %v3631
    %v5294 = vunpack.c.l.b16 %v3632
    %v5295 = vunpack.c.h.b16 %v3632
    %v5296 = vunpack.c.l.b16 %v3633
    %v5297 = vunpack.c.h.b16 %v3633
    %v5298 = vunpack.c.l.b16 %v3634
    %v5299 = vunpack.c.h.b16 %v3634
    %v5300 = vunpack.c.l.b16 %v3635
    %v5301 = vunpack.c.h.b16 %v3635
    %v5302 = vunpack.c.l.b16 %v3636
    %v5303 = vunpack.c.h.b16 %v3636
    %v5304 = vunpack.c.l.b16 %v3637
    %v5305 = vunpack.c.h.b16 %v3637
    %v5306 = vunpack.c.l.b16 %v3638
    %v5307 = vunpack.c.h.b16 %v3638
    %v5308 = vunpack.c.l.b16 %v3639
    %v5309 = vunpack.c.h.b16 %v3639
    %v5310 = vunpack.c.l.b16 %v3640
    %v5311 = vunpack.c.h.b16 %v3640
    %v5312 = vunpack.c.l.b16 %v3641
    %v5313 = vunpack.c.h.b16 %v3641
    %v5314 = vunpack.c.l.b16 %v3642
    %v5315 = vunpack.c.h.b16 %v3642
    %v5316 = vunpack.c.l.b16 %v3643
    %v5317 = vunpack.c.h.b16 %v3643
    %v5318 = vunpack.c.l.b16 %v3644
    %v5319 = vunpack.c.h.b16 %v3644
    %v5320 = vunpack.c.l.b16 %v3645
    %v5321 = vunpack.c.h.b16 %v3645
    %v5322 = vunpack.c.l.b16 %v3646
    %v5323 = vunpack.c.h.b16 %v3646
    %v5324 = vunpack.c.l.b16 %v3647
    %v5325 = vunpack.c.h.b16 %v3647
    %v5326 = vunpack.c.l.b16 %v3648
    %v5327 = vunpack.c.h.b16 %v3648
    %v5328 = vunpack.c.l.b16 %v3649
    %v5329 = vunpack.c.h.b16 %v3649
    %v5330 = vunpack.c.l.b16 %v3650
    %v5331 = vunpack.c.h.b16 %v3650
    %v5332 = vunpack.c.l.b16 %v3651
    %v5333 = vunpack.c.h.b16 %v3651
    %v5334 = vunpack.c.l.b16 %v3652
    %v5335 = vunpack.c.h.b16 %v3652
    %v5336 = vunpack.c.l.b16 %v3653
    %v5337 = vunpack.c.h.b16 %v3653
    %v5338 = vunpack.c.l.b16 %v3654
    %v5339 = vunpack.c.h.b16 %v3654
    %v5340 = vunpack.c.l.b16 %v3655
    %v5341 = vunpack.c.h.b16 %v3655
    %v5342 = vunpack.c.l.b16 %v3656
    %v5343 = vunpack.c.h.b16 %v3656
    %v5344 = vunpack.c.l.b16 %v3657
    %v5345 = vunpack.c.h.b16 %v3657
    %v5346 = vunpack.c.l.b16 %v3658
    %v5347 = vunpack.c.h.b16 %v3658
    %v5348 = vunpack.c.l.b16 %v3659
    %v5349 = vunpack.c.h.b16 %v3659
    %v5350 = vunpack.c.l.b16 %v3660
    %v5351 = vunpack.c.h.b16 %v3660
    %v5352 = vunpack.c.l.b16 %v3661
    %v5353 = vunpack.c.h.b16 %v3661
    %v5354 = vunpack.c.l.b16 %v3662
    %v5355 = vunpack.c.h.b16 %v3662
    %v5356 = vunpack.c.l.b16 %v3663
    %v5357 = vunpack.c.h.b16 %v3663
    %v5358 = vunpack.c.l.b16 %v3664
    %v5359 = vunpack.c.h.b16 %v3664
    %v5360 = vunpack.c.l.b16 %v3665
    %v5361 = vunpack.c.h.b16 %v3665
    %v5362 = vunpack.c.l.b16 %v3666
    %v5363 = vunpack.c.h.b16 %v3666
    %v5364 = vunpack.c.l.b16 %v3667
    %v5365 = vunpack.c.h.b16 %v3667
    %v5366 = vunpack.c.l.b16 %v3668
    %v5367 = vunpack.c.h.b16 %v3668
    %v5368 = vunpack.c.l.b16 %v3669
    %v5369 = vunpack.c.h.b16 %v3669
    %v5370 = vunpack.c.l.b16 %v3670
    %v5371 = vunpack.c.h.b16 %v3670
    %v5372 = vunpack.c.l.b16 %v3671
    %v5373 = vunpack.c.h.b16 %v3671
    %v5374 = vunpack.c.l.b16 %v3672
    %v5375 = vunpack.c.h.b16 %v3672
    %v5376 = vunpack.c.l.b16 %v3673
    %v5377 = vunpack.c.h.b16 %v3673
    %v5378 = vunpack.c.l.b16 %v3674
    %v5379 = vunpack.c.h.b16 %v3674
    %v5380 = vunpack.c.l.b16 %v3675
    %v5381 = vunpack.c.h.b16 %v3675
    %v5382 = vunpack.c.l.b16 %v3676
    %v5383 = vunpack.c.h.b16 %v3676
    %v5384 = vunpack.c.l.b16 %v3677
    %v5385 = vunpack.c.h.b16 %v3677
    %v5386 = vunpack.c.l.b16 %v3678
    %v5387 = vunpack.c.h.b16 %v3678
    %v5388 = vunpack.c.l.b16 %v3679
    %v5389 = vunpack.c.h.b16 %v3679
    %v5390 = vunpack.c.l.b16 %v3680
    %v5391 = vunpack.c.h.b16 %v3680
    %v5392 = vunpack.c.l.b16 %v3681
    %v5393 = vunpack.c.h.b16 %v3681
    %v5394 = vunpack.c.l.b16 %v3682
    %v5395 = vunpack.c.h.b16 %v3682
    %v5396 = vunpack.c.l.b16 %v3683
    %v5397 = vunpack.c.h.b16 %v3683
    %v5398 = vunpack.c.l.b16 %v3684
    %v5399 = vunpack.c.h.b16 %v3684
    %v5400 = vunpack.c.l.b16 %v3685
    %v5401 = vunpack.c.h.b16 %v3685
    %v5402 = vunpack.c.l.b16 %v3686
    %v5403 = vunpack.c.h.b16 %v3686
    %v5404 = vunpack.c.l.b16 %v3687
    %v5405 = vunpack.c.h.b16 %v3687
    %v5406 = vunpack.c.l.b16 %v3688
    %v5407 = vunpack.c.h.b16 %v3688
    %v5408 = vunpack.c.l.b16 %v3689
    %v5409 = vunpack.c.h.b16 %v3689
    %v5410 = vunpack.c.l.b16 %v3690
    %v5411 = vunpack.c.h.b16 %v3690
    %v5412 = vunpack.c.l.b16 %v3691
    %v5413 = vunpack.c.h.b16 %v3691
    %v5414 = vunpack.c.l.b16 %v3692
    %v5415 = vunpack.c.h.b16 %v3692
    %v5416 = vunpack.c.l.b16 %v3693
    %v5417 = vunpack.c.h.b16 %v3693
    %v5418 = vunpack.c.l.b16 %v3694
    %v5419 = vunpack.c.h.b16 %v3694
    %v5420 = vunpack.c.l.b16 %v3695
    %v5421 = vunpack.c.h.b16 %v3695
    %v5422 = vunpack.c.l.b16 %v3696
    %v5423 = vunpack.c.h.b16 %v3696
    %v5424 = vunpack.c.l.b16 %v3697
    %v5425 = vunpack.c.h.b16 %v3697
    %v5426 = vunpack.c.l.b16 %v3698
    %v5427 = vunpack.c.h.b16 %v3698
    %v5428 = vunpack.c.l.b16 %v3699
    %v5429 = vunpack.c.h.b16 %v3699
    %v5430 = vunpack.c.l.b16 %v3700
    %v5431 = vunpack.c.h.b16 %v3700
    %v5432 = vunpack.c.l.b16 %v3701
    %v5433 = vunpack.c.h.b16 %v3701
    %v5434 = vunpack.c.l.b16 %v3702
    %v5435 = vunpack.c.h.b16 %v3702
    %v5436 = vunpack.c.l.b16 %v3703
    %v5437 = vunpack.c.h.b16 %v3703
    %v5438 = vunpack.c.l.b16 %v3704
    %v5439 = vunpack.c.h.b16 %v3704
    %v5440 = vunpack.c.l.b16 %v3705
    %v5441 = vunpack.c.h.b16 %v3705
    %v5442 = vunpack.c.l.b16 %v3706
    %v5443 = vunpack.c.h.b16 %v3706
    %v5444 = vunpack.c.l.b16 %v3707
    %v5445 = vunpack.c.h.b16 %v3707
    %v5446 = vunpack.c.l.b16 %v3708
    %v5447 = vunpack.c.h.b16 %v3708
    %v5448 = vunpack.c.l.b16 %v3709
    %v5449 = vunpack.c.h.b16 %v3709
    %v5450 = vunpack.c.l.b16 %v3710
    %v5451 = vunpack.c.h.b16 %v3710
    %v5452 = vunpack.c.l.b16 %v3711
    %v5453 = vunpack.c.h.b16 %v3711
    %v5454 = vunpack.c.l.b16 %v3712
    %v5455 = vunpack.c.h.b16 %v3712
    %v5456 = vunpack.c.l.b16 %v3713
    %v5457 = vunpack.c.h.b16 %v3713
    %v5458 = vunpack.c.l.b16 %v3714
    %v5459 = vunpack.c.h.b16 %v3714
    %v5460 = vunpack.c.l.b16 %v3715
    %v5461 = vunpack.c.h.b16 %v3715
    %v5462 = vunpack.c.l.b16 %v3716
    %v5463 = vunpack.c.h.b16 %v3716
    %v5464 = vunpack.c.l.b16 %v3717
    %v5465 = vunpack.c.h.b16 %v3717
    %v5466 = vunpack.c.l.b16 %v3718
    %v5467 = vunpack.c.h.b16 %v3718
    %v5468 = vunpack.c.l.b16 %v3719
    %v5469 = vunpack.c.h.b16 %v3719
    %v5470 = vunpack.c.l.b16 %v3720
    %v5471 = vunpack.c.h.b16 %v3720
    %v5472 = vunpack.c.l.b16 %v3721
    %v5473 = vunpack.c.h.b16 %v3721
    %v5474 = vunpack.c.l.b16 %v3722
    %v5475 = vunpack.c.h.b16 %v3722
    %v5476 = vunpack.c.l.b16 %v3723
    %v5477 = vunpack.c.h.b16 %v3723
    %v5478 = vunpack.c.l.b16 %v3724
    %v5479 = vunpack.c.h.b16 %v3724
    %v5480 = vunpack.c.l.b16 %v3725
    %v5481 = vunpack.c.h.b16 %v3725
    %v5482 = vunpack.c.l.b16 %v3726
    %v5483 = vunpack.c.h.b16 %v3726
    %v5484 = vunpack.c.l.b16 %v3727
    %v5485 = vunpack.c.h.b16 %v3727
    %v5486 = vunpack.c.l.b16 %v3728
    %v5487 = vunpack.c.h.b16 %v3728
    %v5488 = vunpack.c.l.b16 %v3729
    %v5489 = vunpack.c.h.b16 %v3729
    %v5490 = vunpack.c.l.b16 %v3730
    %v5491 = vunpack.c.h.b16 %v3730
    %v5492 = vunpack.c.l.b16 %v3731
    %v5493 = vunpack.c.h.b16 %v3731
    %v5494 = vunpack.c.l.b16 %v3732
    %v5495 = vunpack.c.h.b16 %v3732
    %v5496 = vunpack.c.l.b16 %v3733
    %v5497 = vunpack.c.h.b16 %v3733
    %v5498 = vunpack.c.l.b16 %v3734
    %v5499 = vunpack.c.h.b16 %v3734
    %v5500 = vunpack.c.l.b16 %v3735
    %v5501 = vunpack.c.h.b16 %v3735
    %v5502 = vunpack.c.l.b16 %v3736
    %v5503 = vunpack.c.h.b16 %v3736
    %v5504 = vunpack.c.l.b16 %v3737
    %v5505 = vunpack.c.h.b16 %v3737
    %v5506 = vunpack.c.l.b16 %v3738
    %v5507 = vunpack.c.h.b16 %v3738
    %v5508 = vunpack.c.l.b16 %v3739
    %v5509 = vunpack.c.h.b16 %v3739
    %v5510 = vunpack.c.l.b16 %v3740
    %v5511 = vunpack.c.h.b16 %v3740
    %v5512 = vunpack.c.l.b16 %v3741
    %v5513 = vunpack.c.h.b16 %v3741
    %v5514 = vunpack.c.l.b16 %v3742
    %v5515 = vunpack.c.h.b16 %v3742
    %v5516 = vunpack.c.l.b16 %v3743
    %v5517 = vunpack.c.h.b16 %v3743
    %v5518 = vunpack.c.l.b16 %v3744
    %v5519 = vunpack.c.h.b16 %v3744
    %v5520 = vunpack.c.l.b16 %v3745
    %v5521 = vunpack.c.h.b16 %v3745
    %v5522 = vunpack.c.l.b16 %v3746
    %v5523 = vunpack.c.h.b16 %v3746
    %v5524 = vunpack.c.l.b16 %v3747
    %v5525 = vunpack.c.h.b16 %v3747
    %v5526 = vunpack.c.l.b16 %v3748
    %v5527 = vunpack.c.h.b16 %v3748
    %v5528 = vunpack.c.l.b16 %v3749
    %v5529 = vunpack.c.h.b16 %v3749
    %v5530 = vunpack.c.l.b16 %v3750
    %v5531 = vunpack.c.h.b16 %v3750
    %v5532 = vunpack.c.l.b16 %v3751
    %v5533 = vunpack.c.h.b16 %v3751
    %v5534 = vunpack.c.l.b16 %v3752
    %v5535 = vunpack.c.h.b16 %v3752
    %v5536 = vunpack.c.l.b16 %v3753
    %v5537 = vunpack.c.h.b16 %v3753
    %v5538 = vunpack.c.l.b16 %v3754
    %v5539 = vunpack.c.h.b16 %v3754
    %v5540 = vunpack.c.l.b16 %v3755
    %v5541 = vunpack.c.h.b16 %v3755
    %v5542 = vunpack.c.l.b16 %v3756
    %v5543 = vunpack.c.h.b16 %v3756
    %v5544 = vunpack.c.l.b16 %v3757
    %v5545 = vunpack.c.h.b16 %v3757
    %v5546 = vunpack.c.l.b16 %v3758
    %v5547 = vunpack.c.h.b16 %v3758
    %v5548 = vunpack.c.l.b16 %v3759
    %v5549 = vunpack.c.h.b16 %v3759
    %v5550 = vunpack.c.l.b16 %v3760
    %v5551 = vunpack.c.h.b16 %v3760
    %v5552 = vunpack.c.l.b16 %v3761
    %v5553 = vunpack.c.h.b16 %v3761
    %v5554 = vpack.c.b16 %v4414, %v4402
    %v5555 = vpack.c.b16 %v4415, %v4403
    %v5556 = vpack.c.b16 %v4416, %v4404
    %v5557 = vpack.c.b16 %v4417, %v4405
    %v5558 = vpack.c.b16 %v4418, %v4406
    %v5559 = vpack.c.b16 %v4419, %v4407
    %v5560 = vpack.c.b16 %v4420, %v4408
    %v5561 = vpack.c.b16 %v4421, %v4409
    %v5562 = vpack.c.b16 %v4422, %v4410
    %v5563 = vpack.c.b16 %v4423, %v4411
    %v5564 = vpack.c.b16 %v4424, %v4412
    %v5565 = vpack.c.b16 %v4425, %v4413
    %v5566 = vpack.c.b16 %v4438, %v4426
    %v5567 = vpack.c.b16 %v4439, %v4427
    %v5568 = vpack.c.b16 %v4440, %v4428
    %v5569 = vpack.c.b16 %v4441, %v4429
    %v5570 = vpack.c.b16 %v4442, %v4430
    %v5571 = vpack.c.b16 %v4443, %v4431
    %v5572 = vpack.c.b16 %v4444, %v4432
    %v5573 = vpack.c.b16 %v4445, %v4433
    %v5574 = vpack.c.b16 %v4446, %v4434
    %v5575 = vpack.c.b16 %v4447, %v4435
    %v5576 = vpack.c.b16 %v4448, %v4436
    %v5577 = vpack.c.b16 %v4449, %v4437
    %v5578 = vpack.c.b16 %v4462, %v4450
    %v5579 = vpack.c.b16 %v4463, %v4451
    %v5580 = vpack.c.b16 %v4464, %v4452
    %v5581 = vpack.c.b16 %v4465, %v4453
    %v5582 = vpack.c.b16 %v4466, %v4454
    %v5583 = vpack.c.b16 %v4467, %v4455
    %v5584 = vpack.c.b16 %v4468, %v4456
    %v5585 = vpack.c.b16 %v4469, %v4457
    %v5586 = vpack.c.b16 %v4470, %v4458
    %v5587 = vpack.c.b16 %v4471, %v4459
    %v5588 = vpack.c.b16 %v4472, %v4460
    %v5589 = vpack.c.b16 %v4473, %v4461
    %v5590 = vpack.c.b16 %v4486, %v4474
    %v5591 = vpack.c.b16 %v4487, %v4475
    %v5592 = vpack.c.b16 %v4488, %v4476
    %v5593 = vpack.c.b16 %v4489, %v4477
    %v5594 = vpack.c.b16 %v4490, %v4478
    %v5595 = vpack.c.b16 %v4491, %v4479
    %v5596 = vpack.c.b16 %v4492, %v4480
    %v5597 = vpack.c.b16 %v4493, %v4481
    %v5598 = vpack.c.b16 %v4494, %v4482
    %v5599 = vpack.c.b16 %v4495, %v4483
    %v5600 = vpack.c.b16 %v4496, %v4484
    %v5601 = vpack.c.b16 %v4497, %v4485
    %v5602 = vpack.c.b16 %v4510, %v4498
    %v5603 = vpack.c.b16 %v4511, %v4499
    %v5604 = vpack.c.b16 %v4512, %v4500
    %v5605 = vpack.c.b16 %v4513, %v4501
    %v5606 = vpack.c.b16 %v4514, %v4502
    %v5607 = vpack.c.b16 %v4515, %v4503
    %v5608 = vpack.c.b16 %v4516, %v4504
    %v5609 = vpack.c.b16 %v4517, %v4505
    %v5610 = vpack.c.b16 %v4518, %v4506
    %v5611 = vpack.c.b16 %v4519, %v4507
    %v5612 = vpack.c.b16 %v4520, %v4508
    %v5613 = vpack.c.b16 %v4521, %v4509
    %v5614 = vpack.c.b16 %v4534, %v4522
    %v5615 = vpack.c.b16 %v4535, %v4523
    %v5616 = vpack.c.b16 %v4536, %v4524
    %v5617 = vpack.c.b16 %v4537, %v4525
    %v5618 = vpack.c.b16 %v4538, %v4526
    %v5619 = vpack.c.b16 %v4539, %v4527
    %v5620 = vpack.c.b16 %v4540, %v4528
    %v5621 = vpack.c.b16 %v4541, %v4529
    %v5622 = vpack.c.b16 %v4542, %v4530
    %v5623 = vpack.c.b16 %v4543, %v4531
    %v5624 = vpack.c.b16 %v4544, %v4532
    %v5625 = vpack.c.b16 %v4545, %v4533
    %v5626 = vpack.c.b16 %v4558, %v4546
    %v5627 = vpack.c.b16 %v4559, %v4547
    %v5628 = vpack.c.b16 %v4560, %v4548
    %v5629 = vpack.c.b16 %v4561, %v4549
    %v5630 = vpack.c.b16 %v4562, %v4550
    %v5631 = vpack.c.b16 %v4563, %v4551
    %v5632 = vpack.c.b16 %v4564, %v4552
    %v5633 = vpack.c.b16 %v4565, %v4553
    %v5634 = vpack.c.b16 %v4566, %v4554
    %v5635 = vpack.c.b16 %v4567, %v4555
    %v5636 = vpack.c.b16 %v4568, %v4556
    %v5637 = vpack.c.b16 %v4569, %v4557
    %v5638 = vpack.c.b16 %v4582, %v4570
    %v5639 = vpack.c.b16 %v4583, %v4571
    %v5640 = vpack.c.b16 %v4584, %v4572
    %v5641 = vpack.c.b16 %v4585, %v4573
    %v5642 = vpack.c.b16 %v4586, %v4574
    %v5643 = vpack.c.b16 %v4587, %v4575
    %v5644 = vpack.c.b16 %v4588, %v4576
    %v5645 = vpack.c.b16 %v4589, %v4577
    %v5646 = vpack.c.b16 %v4590, %v4578
    %v5647 = vpack.c.b16 %v4591, %v4579
    %v5648 = vpack.c.b16 %v4592, %v4580
    %v5649 = vpack.c.b16 %v4593, %v4581
    %v5650 = vpack.c.b16 %v4606, %v4594
    %v5651 = vpack.c.b16 %v4607, %v4595
    %v5652 = vpack.c.b16 %v4608, %v4596
    %v5653 = vpack.c.b16 %v4609, %v4597
    %v5654 = vpack.c.b16 %v4610, %v4598
    %v5655 = vpack.c.b16 %v4611, %v4599
    %v5656 = vpack.c.b16 %v4612, %v4600
    %v5657 = vpack.c.b16 %v4613, %v4601
    %v5658 = vpack.c.b16 %v4614, %v4602
    %v5659 = vpack.c.b16 %v4615, %v4603
    %v5660 = vpack.c.b16 %v4616, %v4604
    %v5661 = vpack.c.b16 %v4617, %v4605
    %v5662 = vpack.c.b16 %v4630, %v4618
    %v5663 = vpack.c.b16 %v4631, %v4619
    %v5664 = vpack.c.b16 %v4632, %v4620
    %v5665 = vpack.c.b16 %v4633, %v4621
    %v5666 = vpack.c.b16 %v4634, %v4622
    %v5667 = vpack.c.b16 %v4635, %v4623
    %v5668 = vpack.c.b16 %v4636, %v4624
    %v5669 = vpack.c.b16 %v4637, %v4625
    %v5670 = vpack.c.b16 %v4638, %v4626
    %v5671 = vpack.c.b16 %v4639, %v4627
    %v5672 = vpack.c.b16 %v4640, %v4628
    %v5673 = vpack.c.b16 %v4641, %v4629
    %v5674 = vpack.c.b16 %v4654, %v4642
    %v5675 = vpack.c.b16 %v4655, %v4643
    %v5676 = vpack.c.b16 %v4656, %v4644
    %v5677 = vpack.c.b16 %v4657, %v4645
    %v5678 = vpack.c.b16 %v4658, %v4646
    %v5679 = vpack.c.b16 %v4659, %v4647
    %v5680 = vpack.c.b16 %v4660, %v4648
    %v5681 = vpack.c.b16 %v4661, %v4649
    %v5682 = vpack.c.b16 %v4662, %v4650
    %v5683 = vpack.c.b16 %v4663, %v4651
    %v5684 = vpack.c.b16 %v4664, %v4652
    %v5685 = vpack.c.b16 %v4665, %v4653
    %v5686 = vpack.c.b16 %v4678, %v4666
    %v5687 = vpack.c.b16 %v4679, %v4667
    %v5688 = vpack.c.b16 %v4680, %v4668
    %v5689 = vpack.c.b16 %v4681, %v4669
    %v5690 = vpack.c.b16 %v4682, %v4670
    %v5691 = vpack.c.b16 %v4683, %v4671
    %v5692 = vpack.c.b16 %v4684, %v4672
    %v5693 = vpack.c.b16 %v4685, %v4673
    %v5694 = vpack.c.b16 %v4686, %v4674
    %v5695 = vpack.c.b16 %v4687, %v4675
    %v5696 = vpack.c.b16 %v4688, %v4676
    %v5697 = vpack.c.b16 %v4689, %v4677
    %v5698 = vpack.c.b16 %v4702, %v4690
    %v5699 = vpack.c.b16 %v4703, %v4691
    %v5700 = vpack.c.b16 %v4704, %v4692
    %v5701 = vpack.c.b16 %v4705, %v4693
    %v5702 = vpack.c.b16 %v4706, %v4694
    %v5703 = vpack.c.b16 %v4707, %v4695
    %v5704 = vpack.c.b16 %v4708, %v4696
    %v5705 = vpack.c.b16 %v4709, %v4697
    %v5706 = vpack.c.b16 %v4710, %v4698
    %v5707 = vpack.c.b16 %v4711, %v4699
    %v5708 = vpack.c.b16 %v4712, %v4700
    %v5709 = vpack.c.b16 %v4713, %v4701
    %v5710 = vpack.c.b16 %v4726, %v4714
    %v5711 = vpack.c.b16 %v4727, %v4715
    %v5712 = vpack.c.b16 %v4728, %v4716
    %v5713 = vpack.c.b16 %v4729, %v4717
    %v5714 = vpack.c.b16 %v4730, %v4718
    %v5715 = vpack.c.b16 %v4731, %v4719
    %v5716 = vpack.c.b16 %v4732, %v4720
    %v5717 = vpack.c.b16 %v4733, %v4721
    %v5718 = vpack.c.b16 %v4734, %v4722
    %v5719 = vpack.c.b16 %v4735, %v4723
    %v5720 = vpack.c.b16 %v4736, %v4724
    %v5721 = vpack.c.b16 %v4737, %v4725
    %v5722 = vpack.c.b16 %v4750, %v4738
    %v5723 = vpack.c.b16 %v4751, %v4739
    %v5724 = vpack.c.b16 %v4752, %v4740
    %v5725 = vpack.c.b16 %v4753, %v4741
    %v5726 = vpack.c.b16 %v4754, %v4742
    %v5727 = vpack.c.b16 %v4755, %v4743
    %v5728 = vpack.c.b16 %v4756, %v4744
    %v5729 = vpack.c.b16 %v4757, %v4745
    %v5730 = vpack.c.b16 %v4758, %v4746
    %v5731 = vpack.c.b16 %v4759, %v4747
    %v5732 = vpack.c.b16 %v4760, %v4748
    %v5733 = vpack.c.b16 %v4761, %v4749
    %v5734 = vpack.c.b16 %v4774, %v4762
    %v5735 = vpack.c.b16 %v4775, %v4763
    %v5736 = vpack.c.b16 %v4776, %v4764
    %v5737 = vpack.c.b16 %v4777, %v4765
    %v5738 = vpack.c.b16 %v4778, %v4766
    %v5739 = vpack.c.b16 %v4779, %v4767
    %v5740 = vpack.c.b16 %v4780, %v4768
    %v5741 = vpack.c.b16 %v4781, %v4769
    %v5742 = vpack.c.b16 %v4782, %v4770
    %v5743 = vpack.c.b16 %v4783, %v4771
    %v5744 = vpack.c.b16 %v4784, %v4772
    %v5745 = vpack.c.b16 %v4785, %v4773
    %v5746 = vpack.c.b16 %v4798, %v4786
    %v5747 = vpack.c.b16 %v4799, %v4787
    %v5748 = vpack.c.b16 %v4800, %v4788
    %v5749 = vpack.c.b16 %v4801, %v4789
    %v5750 = vpack.c.b16 %v4802, %v4790
    %v5751 = vpack.c.b16 %v4803, %v4791
    %v5752 = vpack.c.b16 %v4804, %v4792
    %v5753 = vpack.c.b16 %v4805, %v4793
    %v5754 = vpack.c.b16 %v4806, %v4794
    %v5755 = vpack.c.b16 %v4807, %v4795
    %v5756 = vpack.c.b16 %v4808, %v4796
    %v5757 = vpack.c.b16 %v4809, %v4797
    %v5758 = vpack.c.b16 %v4822, %v4810
    %v5759 = vpack.c.b16 %v4823, %v4811
    %v5760 = vpack.c.b16 %v4824, %v4812
    %v5761 = vpack.c.b16 %v4825, %v4813
    %v5762 = vpack.c.b16 %v4826, %v4814
    %v5763 = vpack.c.b16 %v4827, %v4815
    %v5764 = vpack.c.b16 %v4828, %v4816
    %v5765 = vpack.c.b16 %v4829, %v4817
    %v5766 = vpack.c.b16 %v4830, %v4818
    %v5767 = vpack.c.b16 %v4831, %v4819
    %v5768 = vpack.c.b16 %v4832, %v4820
    %v5769 = vpack.c.b16 %v4833, %v4821
    %v5770 = vpack.c.b16 %v4846, %v4834
    %v5771 = vpack.c.b16 %v4847, %v4835
    %v5772 = vpack.c.b16 %v4848, %v4836
    %v5773 = vpack.c.b16 %v4849, %v4837
    %v5774 = vpack.c.b16 %v4850, %v4838
    %v5775 = vpack.c.b16 %v4851, %v4839
    %v5776 = vpack.c.b16 %v4852, %v4840
    %v5777 = vpack.c.b16 %v4853, %v4841
    %v5778 = vpack.c.b16 %v4854, %v4842
    %v5779 = vpack.c.b16 %v4855, %v4843
    %v5780 = vpack.c.b16 %v4856, %v4844
    %v5781 = vpack.c.b16 %v4857, %v4845
    %v5782 = vpack.c.b16 %v4870, %v4858
    %v5783 = vpack.c.b16 %v4871, %v4859
    %v5784 = vpack.c.b16 %v4872, %v4860
    %v5785 = vpack.c.b16 %v4873, %v4861
    %v5786 = vpack.c.b16 %v4874, %v4862
    %v5787 = vpack.c.b16 %v4875, %v4863
    %v5788 = vpack.c.b16 %v4876, %v4864
    %v5789 = vpack.c.b16 %v4877, %v4865
    %v5790 = vpack.c.b16 %v4878, %v4866
    %v5791 = vpack.c.b16 %v4879, %v4867
    %v5792 = vpack.c.b16 %v4880, %v4868
    %v5793 = vpack.c.b16 %v4881, %v4869
    %v5794 = vpack.c.b16 %v4894, %v4882
    %v5795 = vpack.c.b16 %v4895, %v4883
    %v5796 = vpack.c.b16 %v4896, %v4884
    %v5797 = vpack.c.b16 %v4897, %v4885
    %v5798 = vpack.c.b16 %v4898, %v4886
    %v5799 = vpack.c.b16 %v4899, %v4887
    %v5800 = vpack.c.b16 %v4900, %v4888
    %v5801 = vpack.c.b16 %v4901, %v4889
    %v5802 = vpack.c.b16 %v4902, %v4890
    %v5803 = vpack.c.b16 %v4903, %v4891
    %v5804 = vpack.c.b16 %v4904, %v4892
    %v5805 = vpack.c.b16 %v4905, %v4893
    %v5806 = vpack.c.b16 %v4918, %v4906
    %v5807 = vpack.c.b16 %v4919, %v4907
    %v5808 = vpack.c.b16 %v4920, %v4908
    %v5809 = vpack.c.b16 %v4921, %v4909
    %v5810 = vpack.c.b16 %v4922, %v4910
    %v5811 = vpack.c.b16 %v4923, %v4911
    %v5812 = vpack.c.b16 %v4924, %v4912
    %v5813 = vpack.c.b16 %v4925, %v4913
    %v5814 = vpack.c.b16 %v4926, %v4914
    %v5815 = vpack.c.b16 %v4927, %v4915
    %v5816 = vpack.c.b16 %v4928, %v4916
    %v5817 = vpack.c.b16 %v4929, %v4917
    %v5818 = vpack.c.b16 %v4942, %v4930
    %v5819 = vpack.c.b16 %v4943, %v4931
    %v5820 = vpack.c.b16 %v4944, %v4932
    %v5821 = vpack.c.b16 %v4945, %v4933
    %v5822 = vpack.c.b16 %v4946, %v4934
    %v5823 = vpack.c.b16 %v4947, %v4935
    %v5824 = vpack.c.b16 %v4948, %v4936
    %v5825 = vpack.c.b16 %v4949, %v4937
    %v5826 = vpack.c.b16 %v4950, %v4938
    %v5827 = vpack.c.b16 %v4951, %v4939
    %v5828 = vpack.c.b16 %v4952, %v4940
    %v5829 = vpack.c.b16 %v4953, %v4941
    %v5830 = vpack.c.b16 %v4966, %v4954
    %v5831 = vpack.c.b16 %v4967, %v4955
    %v5832 = vpack.c.b16 %v4968, %v4956
    %v5833 = vpack.c.b16 %v4969, %v4957
    %v5834 = vpack.c.b16 %v4970, %v4958
    %v5835 = vpack.c.b16 %v4971, %v4959
    %v5836 = vpack.c.b16 %v4972, %v4960
    %v5837 = vpack.c.b16 %v4973, %v4961
    %v5838 = vpack.c.b16 %v4974, %v4962
    %v5839 = vpack.c.b16 %v4975, %v4963
    %v5840 = vpack.c.b16 %v4976, %v4964
    %v5841 = vpack.c.b16 %v4977, %v4965
    %v5842 = vpack.c.b16 %v4990, %v4978
    %v5843 = vpack.c.b16 %v4991, %v4979
    %v5844 = vpack.c.b16 %v4992, %v4980
    %v5845 = vpack.c.b16 %v4993, %v4981
    %v5846 = vpack.c.b16 %v4994, %v4982
    %v5847 = vpack.c.b16 %v4995, %v4983
    %v5848 = vpack.c.b16 %v4996, %v4984
    %v5849 = vpack.c.b16 %v4997, %v4985
    %v5850 = vpack.c.b16 %v4998, %v4986
    %v5851 = vpack.c.b16 %v4999, %v4987
    %v5852 = vpack.c.b16 %v5000, %v4988
    %v5853 = vpack.c.b16 %v5001, %v4989
    %v5854 = vpack.c.b16 %v5014, %v5002
    %v5855 = vpack.c.b16 %v5015, %v5003
    %v5856 = vpack.c.b16 %v5016, %v5004
    %v5857 = vpack.c.b16 %v5017, %v5005
    %v5858 = vpack.c.b16 %v5018, %v5006
    %v5859 = vpack.c.b16 %v5019, %v5007
    %v5860 = vpack.c.b16 %v5020, %v5008
    %v5861 = vpack.c.b16 %v5021, %v5009
    %v5862 = vpack.c.b16 %v5022, %v5010
    %v5863 = vpack.c.b16 %v5023, %v5011
    %v5864 = vpack.c.b16 %v5024, %v5012
    %v5865 = vpack.c.b16 %v5025, %v5013
    %v5866 = vpack.c.b16 %v5038, %v5026
    %v5867 = vpack.c.b16 %v5039, %v5027
    %v5868 = vpack.c.b16 %v5040, %v5028
    %v5869 = vpack.c.b16 %v5041, %v5029
    %v5870 = vpack.c.b16 %v5042, %v5030
    %v5871 = vpack.c.b16 %v5043, %v5031
    %v5872 = vpack.c.b16 %v5044, %v5032
    %v5873 = vpack.c.b16 %v5045, %v5033
    %v5874 = vpack.c.b16 %v5046, %v5034
    %v5875 = vpack.c.b16 %v5047, %v5035
    %v5876 = vpack.c.b16 %v5048, %v5036
    %v5877 = vpack.c.b16 %v5049, %v5037
    %v5878 = vpack.c.b16 %v5062, %v5050
    %v5879 = vpack.c.b16 %v5063, %v5051
    %v5880 = vpack.c.b16 %v5064, %v5052
    %v5881 = vpack.c.b16 %v5065, %v5053
    %v5882 = vpack.c.b16 %v5066, %v5054
    %v5883 = vpack.c.b16 %v5067, %v5055
    %v5884 = vpack.c.b16 %v5068, %v5056
    %v5885 = vpack.c.b16 %v5069, %v5057
    %v5886 = vpack.c.b16 %v5070, %v5058
    %v5887 = vpack.c.b16 %v5071, %v5059
    %v5888 = vpack.c.b16 %v5072, %v5060
    %v5889 = vpack.c.b16 %v5073, %v5061
    %v5890 = vpack.c.b16 %v5086, %v5074
    %v5891 = vpack.c.b16 %v5087, %v5075
    %v5892 = vpack.c.b16 %v5088, %v5076
    %v5893 = vpack.c.b16 %v5089, %v5077
    %v5894 = vpack.c.b16 %v5090, %v5078
    %v5895 = vpack.c.b16 %v5091, %v5079
    %v5896 = vpack.c.b16 %v5092, %v5080
    %v5897 = vpack.c.b16 %v5093, %v5081
    %v5898 = vpack.c.b16 %v5094, %v5082
    %v5899 = vpack.c.b16 %v5095, %v5083
    %v5900 = vpack.c.b16 %v5096, %v5084
    %v5901 = vpack.c.b16 %v5097, %v5085
    %v5902 = vpack.c.b16 %v5110, %v5098
    %v5903 = vpack.c.b16 %v5111, %v5099
    %v5904 = vpack.c.b16 %v5112, %v5100
    %v5905 = vpack.c.b16 %v5113, %v5101
    %v5906 = vpack.c.b16 %v5114, %v5102
    %v5907 = vpack.c.b16 %v5115, %v5103
    %v5908 = vpack.c.b16 %v5116, %v5104
    %v5909 = vpack.c.b16 %v5117, %v5105
    %v5910 = vpack.c.b16 %v5118, %v5106
    %v5911 = vpack.c.b16 %v5119, %v5107
    %v5912 = vpack.c.b16 %v5120, %v5108
    %v5913 = vpack.c.b16 %v5121, %v5109
    %v5914 = vpack.c.b16 %v5134, %v5122
    %v5915 = vpack.c.b16 %v5135, %v5123
    %v5916 = vpack.c.b16 %v5136, %v5124
    %v5917 = vpack.c.b16 %v5137, %v5125
    %v5918 = vpack.c.b16 %v5138, %v5126
    %v5919 = vpack.c.b16 %v5139, %v5127
    %v5920 = vpack.c.b16 %v5140, %v5128
    %v5921 = vpack.c.b16 %v5141, %v5129
    %v5922 = vpack.c.b16 %v5142, %v5130
    %v5923 = vpack.c.b16 %v5143, %v5131
    %v5924 = vpack.c.b16 %v5144, %v5132
    %v5925 = vpack.c.b16 %v5145, %v5133
    %v5926 = vpack.c.b16 %v5158, %v5146
    %v5927 = vpack.c.b16 %v5159, %v5147
    %v5928 = vpack.c.b16 %v5160, %v5148
    %v5929 = vpack.c.b16 %v5161, %v5149
    %v5930 = vpack.c.b16 %v5162, %v5150
    %v5931 = vpack.c.b16 %v5163, %v5151
    %v5932 = vpack.c.b16 %v5164, %v5152
    %v5933 = vpack.c.b16 %v5165, %v5153
    %v5934 = vpack.c.b16 %v5166, %v5154
    %v5935 = vpack.c.b16 %v5167, %v5155
    %v5936 = vpack.c.b16 %v5168, %v5156
    %v5937 = vpack.c.b16 %v5169, %v5157
    %v5938 = vpack.c.b16 %v5182, %v5170
    %v5939 = vpack.c.b16 %v5183, %v5171
    %v5940 = vpack.c.b16 %v5184, %v5172
    %v5941 = vpack.c.b16 %v5185, %v5173
    %v5942 = vpack.c.b16 %v5186, %v5174
    %v5943 = vpack.c.b16 %v5187, %v5175
    %v5944 = vpack.c.b16 %v5188, %v5176
    %v5945 = vpack.c.b16 %v5189, %v5177
    %v5946 = vpack.c.b16 %v5190, %v5178
    %v5947 = vpack.c.b16 %v5191, %v5179
    %v5948 = vpack.c.b16 %v5192, %v5180
    %v5949 = vpack.c.b16 %v5193, %v5181
    %v5950 = vpack.c.b16 %v5206, %v5194
    %v5951 = vpack.c.b16 %v5207, %v5195
    %v5952 = vpack.c.b16 %v5208, %v5196
    %v5953 = vpack.c.b16 %v5209, %v5197
    %v5954 = vpack.c.b16 %v5210, %v5198
    %v5955 = vpack.c.b16 %v5211, %v5199
    %v5956 = vpack.c.b16 %v5212, %v5200
    %v5957 = vpack.c.b16 %v5213, %v5201
    %v5958 = vpack.c.b16 %v5214, %v5202
    %v5959 = vpack.c.b16 %v5215, %v5203
    %v5960 = vpack.c.b16 %v5216, %v5204
    %v5961 = vpack.c.b16 %v5217, %v5205
    %v5962 = vpack.c.b16 %v5230, %v5218
    %v5963 = vpack.c.b16 %v5231, %v5219
    %v5964 = vpack.c.b16 %v5232, %v5220
    %v5965 = vpack.c.b16 %v5233, %v5221
    %v5966 = vpack.c.b16 %v5234, %v5222
    %v5967 = vpack.c.b16 %v5235, %v5223
    %v5968 = vpack.c.b16 %v5236, %v5224
    %v5969 = vpack.c.b16 %v5237, %v5225
    %v5970 = vpack.c.b16 %v5238, %v5226
    %v5971 = vpack.c.b16 %v5239, %v5227
    %v5972 = vpack.c.b16 %v5240, %v5228
    %v5973 = vpack.c.b16 %v5241, %v5229
    %v5974 = vpack.c.b16 %v5254, %v5242
    %v5975 = vpack.c.b16 %v5255, %v5243
    %v5976 = vpack.c.b16 %v5256, %v5244
    %v5977 = vpack.c.b16 %v5257, %v5245
    %v5978 = vpack.c.b16 %v5258, %v5246
    %v5979 = vpack.c.b16 %v5259, %v5247
    %v5980 = vpack.c.b16 %v5260, %v5248
    %v5981 = vpack.c.b16 %v5261, %v5249
    %v5982 = vpack.c.b16 %v5262, %v5250
    %v5983 = vpack.c.b16 %v5263, %v5251
    %v5984 = vpack.c.b16 %v5264, %v5252
    %v5985 = vpack.c.b16 %v5265, %v5253
    %v5986 = vpack.c.b16 %v5278, %v5266
    %v5987 = vpack.c.b16 %v5279, %v5267
    %v5988 = vpack.c.b16 %v5280, %v5268
    %v5989 = vpack.c.b16 %v5281, %v5269
    %v5990 = vpack.c.b16 %v5282, %v5270
    %v5991 = vpack.c.b16 %v5283, %v5271
    %v5992 = vpack.c.b16 %v5284, %v5272
    %v5993 = vpack.c.b16 %v5285, %v5273
    %v5994 = vpack.c.b16 %v5286, %v5274
    %v5995 = vpack.c.b16 %v5287, %v5275
    %v5996 = vpack.c.b16 %v5288, %v5276
    %v5997 = vpack.c.b16 %v5289, %v5277
    %v5998 = vpack.c.b16 %v5302, %v5290
    %v5999 = vpack.c.b16 %v5303, %v5291
    %v6000 = vpack.c.b16 %v5304, %v5292
    %v6001 = vpack.c.b16 %v5305, %v5293
    %v6002 = vpack.c.b16 %v5306, %v5294
    %v6003 = vpack.c.b16 %v5307, %v5295
    %v6004 = vpack.c.b16 %v5308, %v5296
    %v6005 = vpack.c.b16 %v5309, %v5297
    %v6006 = vpack.c.b16 %v5310, %v5298
    %v6007 = vpack.c.b16 %v5311, %v5299
    %v6008 = vpack.c.b16 %v5312, %v5300
    %v6009 = vpack.c.b16 %v5313, %v5301
    %v6010 = vpack.c.b16 %v5326, %v5314
    %v6011 = vpack.c.b16 %v5327, %v5315
    %v6012 = vpack.c.b16 %v5328, %v5316
    %v6013 = vpack.c.b16 %v5329, %v5317
    %v6014 = vpack.c.b16 %v5330, %v5318
    %v6015 = vpack.c.b16 %v5331, %v5319
    %v6016 = vpack.c.b16 %v5332, %v5320
    %v6017 = vpack.c.b16 %v5333, %v5321
    %v6018 = vpack.c.b16 %v5334, %v5322
    %v6019 = vpack.c.b16 %v5335, %v5323
    %v6020 = vpack.c.b16 %v5336, %v5324
    %v6021 = vpack.c.b16 %v5337, %v5325
    %v6022 = vpack.c.b16 %v5350, %v5338
    %v6023 = vpack.c.b16 %v5351, %v5339
    %v6024 = vpack.c.b16 %v5352, %v5340
    %v6025 = vpack.c.b16 %v5353, %v5341
    %v6026 = vpack.c.b16 %v5354, %v5342
    %v6027 = vpack.c.b16 %v5355, %v5343
    %v6028 = vpack.c.b16 %v5356, %v5344
    %v6029 = vpack.c.b16 %v5357, %v5345
    %v6030 = vpack.c.b16 %v5358, %v5346
    %v6031 = vpack.c.b16 %v5359, %v5347
    %v6032 = vpack.c.b16 %v5360, %v5348
    %v6033 = vpack.c.b16 %v5361, %v5349
    %v6034 = vpack.c.b16 %v5374, %v5362
    %v6035 = vpack.c.b16 %v5375, %v5363
    %v6036 = vpack.c.b16 %v5376, %v5364
    %v6037 = vpack.c.b16 %v5377, %v5365
    %v6038 = vpack.c.b16 %v5378, %v5366
    %v6039 = vpack.c.b16 %v5379, %v5367
    %v6040 = vpack.c.b16 %v5380, %v5368
    %v6041 = vpack.c.b16 %v5381, %v5369
    %v6042 = vpack.c.b16 %v5382, %v5370
    %v6043 = vpack.c.b16 %v5383, %v5371
    %v6044 = vpack.c.b16 %v5384, %v5372
    %v6045 = vpack.c.b16 %v5385, %v5373
    %v6046 = vpack.c.b16 %v5398, %v5386
    %v6047 = vpack.c.b16 %v5399, %v5387
    %v6048 = vpack.c.b16 %v5400, %v5388
    %v6049 = vpack.c.b16 %v5401, %v5389
    %v6050 = vpack.c.b16 %v5402, %v5390
    %v6051 = vpack.c.b16 %v5403, %v5391
    %v6052 = vpack.c.b16 %v5404, %v5392
    %v6053 = vpack.c.b16 %v5405, %v5393
    %v6054 = vpack.c.b16 %v5406, %v5394
    %v6055 = vpack.c.b16 %v5407, %v5395
    %v6056 = vpack.c.b16 %v5408, %v5396
    %v6057 = vpack.c.b16 %v5409, %v5397
    %v6058 = vpack.c.b16 %v5422, %v5410
    %v6059 = vpack.c.b16 %v5423, %v5411
    %v6060 = vpack.c.b16 %v5424, %v5412
    %v6061 = vpack.c.b16 %v5425, %v5413
    %v6062 = vpack.c.b16 %v5426, %v5414
    %v6063 = vpack.c.b16 %v5427, %v5415
    %v6064 = vpack.c.b16 %v5428, %v5416
    %v6065 = vpack.c.b16 %v5429, %v5417
    %v6066 = vpack.c.b16 %v5430, %v5418
    %v6067 = vpack.c.b16 %v5431, %v5419
    %v6068 = vpack.c.b16 %v5432, %v5420
    %v6069 = vpack.c.b16 %v5433, %v5421
    %v6070 = vpack.c.b16 %v5446, %v5434
    %v6071 = vpack.c.b16 %v5447, %v5435
    %v6072 = vpack.c.b16 %v5448, %v5436
    %v6073 = vpack.c.b16 %v5449, %v5437
    %v6074 = vpack.c.b16 %v5450, %v5438
    %v6075 = vpack.c.b16 %v5451, %v5439
    %v6076 = vpack.c.b16 %v5452, %v5440
    %v6077 = vpack.c.b16 %v5453, %v5441
    %v6078 = vpack.c.b16 %v5454, %v5442
    %v6079 = vpack.c.b16 %v5455, %v5443
    %v6080 = vpack.c.b16 %v5456, %v5444
    %v6081 = vpack.c.b16 %v5457, %v5445
    %v6082 = vpack.c.b16 %v5470, %v5458
    %v6083 = vpack.c.b16 %v5471, %v5459
    %v6084 = vpack.c.b16 %v5472, %v5460
    %v6085 = vpack.c.b16 %v5473, %v5461
    %v6086 = vpack.c.b16 %v5474, %v5462
    %v6087 = vpack.c.b16 %v5475, %v5463
    %v6088 = vpack.c.b16 %v5476, %v5464
    %v6089 = vpack.c.b16 %v5477, %v5465
    %v6090 = vpack.c.b16 %v5478, %v5466
    %v6091 = vpack.c.b16 %v5479, %v5467
    %v6092 = vpack.c.b16 %v5480, %v5468
    %v6093 = vpack.c.b16 %v5481, %v5469
    %v6094 = vpack.c.b16 %v5494, %v5482
    %v6095 = vpack.c.b16 %v5495, %v5483
    %v6096 = vpack.c.b16 %v5496, %v5484
    %v6097 = vpack.c.b16 %v5497, %v5485
    %v6098 = vpack.c.b16 %v5498, %v5486
    %v6099 = vpack.c.b16 %v5499, %v5487
    %v6100 = vpack.c.b16 %v5500, %v5488
    %v6101 = vpack.c.b16 %v5501, %v5489
    %v6102 = vpack.c.b16 %v5502, %v5490
    %v6103 = vpack.c.b16 %v5503, %v5491
    %v6104 = vpack.c.b16 %v5504, %v5492
    %v6105 = vpack.c.b16 %v5505, %v5493
    %v6106 = vpack.c.b16 %v5518, %v5506
    %v6107 = vpack.c.b16 %v5519, %v5507
    %v6108 = vpack.c.b16 %v5520, %v5508
    %v6109 = vpack.c.b16 %v5521, %v5509
    %v6110 = vpack.c.b16 %v5522, %v5510
    %v6111 = vpack.c.b16 %v5523, %v5511
    %v6112 = vpack.c.b16 %v5524, %v5512
    %v6113 = vpack.c.b16 %v5525, %v5513
    %v6114 = vpack.c.b16 %v5526, %v5514
    %v6115 = vpack.c.b16 %v5527, %v5515
    %v6116 = vpack.c.b16 %v5528, %v5516
    %v6117 = vpack.c.b16 %v5529, %v5517
    %v6118 = vpack.c.b16 %v5542, %v5530
    %v6119 = vpack.c.b16 %v5543, %v5531
    %v6120 = vpack.c.b16 %v5544, %v5532
    %v6121 = vpack.c.b16 %v5545, %v5533
    %v6122 = vpack.c.b16 %v5546, %v5534
    %v6123 = vpack.c.b16 %v5547, %v5535
    %v6124 = vpack.c.b16 %v5548, %v5536
    %v6125 = vpack.c.b16 %v5549, %v5537
    %v6126 = vpack.c.b16 %v5550, %v5538
    %v6127 = vpack.c.b16 %v5551, %v5539
    %v6128 = vpack.c.b16 %v5552, %v5540
    %v6129 = vpack.c.b16 %v5553, %v5541
    %6706 = vmatprep.subr.bf16.mxu0 %v5639
    %6707 = vmatpush1.bf16.msra.mxu0 %v5638
    %6708 = vmatprep.subr.bf16.mxu0 %v5627
    %6709 = vmatpush1.bf16.msra.mxu0 %v5626
    %6710 = vmatprep.subr.bf16.mxu0 %v5615
    %6711 = vmatpush1.bf16.msra.mxu0 %v5614
    %6712 = vmatprep.subr.bf16.mxu0 %v5603
    %6713 = vmatpush1.bf16.msra.mxu0 %v5602
    %6714 = vmatprep.subr.bf16.mxu0 %v5591
    %6715 = vmatpush1.bf16.msra.mxu0 %v5590
    %6716 = vmatprep.subr.bf16.mxu0 %v5579
    %6717 = vmatpush1.bf16.msra.mxu0 %v5578
    %6718 = vmatprep.subr.bf16.mxu0 %v5567
    %6719 = vmatpush1.bf16.msra.mxu0 %v5566
    %6720 = vmatprep.subr.bf16.mxu0 %v5555
    %6721 = vmatpush1.bf16.msra.mxu0 %v5554
    %6722 = vmatprep.subr.bf16.mxu0 %v5735
    %6723 = vmatpush2.bf16.msra.mxu0 %v5734
    %6724 = vmatprep.subr.bf16.mxu0 %v5723
    %6725 = vmatpush2.bf16.msra.mxu0 %v5722
    %6726 = vmatprep.subr.bf16.mxu0 %v5711
    %6727 = vmatpush2.bf16.msra.mxu0 %v5710
    %6728 = vmatprep.subr.bf16.mxu0 %v5699
    %6729 = vmatpush2.bf16.msra.mxu0 %v5698
    %6730 = vmatprep.subr.bf16.mxu0 %v5687
    %6731 = vmatpush2.bf16.msra.mxu0 %v5686
    %6732 = vmatprep.subr.bf16.mxu0 %v5675
    %6733 = vmatpush2.bf16.msra.mxu0 %v5674
    %6734 = vmatprep.subr.bf16.mxu0 %v5663
    %6735 = vmatpush2.bf16.msra.mxu0 %v5662
    %6736 = vmatprep.subr.bf16.mxu0 %v5651
    %6737 = vmatpush2.bf16.msra.mxu0 %v5650
    %6738 = vmatprep.mubr.bf16.mxu0 %v3181
    %6739 = vmatmul.mubr.bf16.gmra.mxu0 %v3180
    %v6740 = vpop.f32.mrf.mxu0
    %v6741 = vadd.f32 %v3769, %v6740
    %v6742 = vpop.f32.mrf.mxu0
    %v6743 = vadd.f32 %v3773, %v6742
    %v6744 = vpop.f32.mrf.mxu0
    %v6745 = vpop.f32.mrf.mxu0
    %6746 = vdwg.mxu0
    %6747 = vmatprep.subr.bf16.mxu0 %v5831
    %6748 = vmatpush1.bf16.msra.mxu0 %v5830
    %6749 = vmatprep.subr.bf16.mxu0 %v5819
    %6750 = vmatpush1.bf16.msra.mxu0 %v5818
    %6751 = vmatprep.subr.bf16.mxu0 %v5807
    %6752 = vmatpush1.bf16.msra.mxu0 %v5806
    %6753 = vmatprep.subr.bf16.mxu0 %v5795
    %6754 = vmatpush1.bf16.msra.mxu0 %v5794
    %6755 = vmatprep.subr.bf16.mxu0 %v5783
    %6756 = vmatpush1.bf16.msra.mxu0 %v5782
    %6757 = vmatprep.subr.bf16.mxu0 %v5771
    %6758 = vmatpush1.bf16.msra.mxu0 %v5770
    %6759 = vmatprep.subr.bf16.mxu0 %v5759
    %6760 = vmatpush1.bf16.msra.mxu0 %v5758
    %6761 = vmatprep.subr.bf16.mxu0 %v5747
    %6762 = vmatpush1.bf16.msra.mxu0 %v5746
    %6763 = vmatprep.subr.bf16.mxu0 %v5927
    %6764 = vmatpush2.bf16.msra.mxu0 %v5926
    %6765 = vmatprep.subr.bf16.mxu0 %v5915
    %6766 = vmatpush2.bf16.msra.mxu0 %v5914
    %6767 = vmatprep.subr.bf16.mxu0 %v5903
    %6768 = vmatpush2.bf16.msra.mxu0 %v5902
    %6769 = vmatprep.subr.bf16.mxu0 %v5891
    %6770 = vmatpush2.bf16.msra.mxu0 %v5890
    %6771 = vmatprep.subr.bf16.mxu0 %v5879
    %6772 = vmatpush2.bf16.msra.mxu0 %v5878
    %6773 = vmatprep.subr.bf16.mxu0 %v5867
    %6774 = vmatpush2.bf16.msra.mxu0 %v5866
    %6775 = vmatprep.subr.bf16.mxu0 %v5855
    %6776 = vmatpush2.bf16.msra.mxu0 %v5854
    %6777 = vmatprep.subr.bf16.mxu0 %v5843
    %6778 = vmatpush2.bf16.msra.mxu0 %v5842
    %6779 = vmatprep.mubr.bf16.mxu0 %v3183
    %6780 = vmatmul.mubr.bf16.gmra.mxu0 %v3182
    %v6781 = vpop.f32.mrf.mxu0
    %v6782 = vadd.f32 %v6741, %v6781
    %v6783 = vpop.f32.mrf.mxu0
    %v6784 = vadd.f32 %v6743, %v6783
    %v6785 = vpop.f32.mrf.mxu0
    %v6786 = vpop.f32.mrf.mxu0
    %6787 = vdwg.mxu0
    %6788 = vmatprep.subr.bf16.mxu0 %v6023
    %6789 = vmatpush1.bf16.msra.mxu0 %v6022
    %6790 = vmatprep.subr.bf16.mxu0 %v6011
    %6791 = vmatpush1.bf16.msra.mxu0 %v6010
    %6792 = vmatprep.subr.bf16.mxu0 %v5999
    %6793 = vmatpush1.bf16.msra.mxu0 %v5998
    %6794 = vmatprep.subr.bf16.mxu0 %v5987
    %6795 = vmatpush1.bf16.msra.mxu0 %v5986
    %6796 = vmatprep.subr.bf16.mxu0 %v5975
    %6797 = vmatpush1.bf16.msra.mxu0 %v5974
    %6798 = vmatprep.subr.bf16.mxu0 %v5963
    %6799 = vmatpush1.bf16.msra.mxu0 %v5962
    %6800 = vmatprep.subr.bf16.mxu0 %v5951
    %6801 = vmatpush1.bf16.msra.mxu0 %v5950
    %6802 = vmatprep.subr.bf16.mxu0 %v5939
    %6803 = vmatpush1.bf16.msra.mxu0 %v5938
    %6804 = vmatprep.subr.bf16.mxu0 %v6119
    %6805 = vmatpush2.bf16.msra.mxu0 %v6118
    %6806 = vmatprep.subr.bf16.mxu0 %v6107
    %6807 = vmatpush2.bf16.msra.mxu0 %v6106
    %6808 = vmatprep.subr.bf16.mxu0 %v6095
    %6809 = vmatpush2.bf16.msra.mxu0 %v6094
    %6810 = vmatprep.subr.bf16.mxu0 %v6083
    %6811 = vmatpush2.bf16.msra.mxu0 %v6082
    %6812 = vmatprep.subr.bf16.mxu0 %v6071
    %6813 = vmatpush2.bf16.msra.mxu0 %v6070
    %6814 = vmatprep.subr.bf16.mxu0 %v6059
    %6815 = vmatpush2.bf16.msra.mxu0 %v6058
    %6816 = vmatprep.subr.bf16.mxu0 %v6047
    %6817 = vmatpush2.bf16.msra.mxu0 %v6046
    %6818 = vmatprep.subr.bf16.mxu0 %v6035
    %6819 = vmatpush2.bf16.msra.mxu0 %v6034
    %6820 = vmatprep.mubr.bf16.mxu0 %v3185
    %6821 = vmatmul.mubr.bf16.gmra.mxu0 %v3184
    %v6822 = vpop.f32.mrf.mxu0
    %v6823 = vadd.f32 %v6782, %v6822
    %v6824 = vpop.f32.mrf.mxu0
    %v6825 = vadd.f32 %v6784, %v6824
    %v6826 = vpop.f32.mrf.mxu0
    %v6827 = vpop.f32.mrf.mxu0
    %6828 = vdwg.mxu0
    %6829 = vmatprep.subr.bf16.mxu0 %v5641
    %6830 = vmatpush1.bf16.msra.mxu0 %v5640
    %6831 = vmatprep.subr.bf16.mxu0 %v5629
    %6832 = vmatpush1.bf16.msra.mxu0 %v5628
    %6833 = vmatprep.subr.bf16.mxu0 %v5617
    %6834 = vmatpush1.bf16.msra.mxu0 %v5616
    %6835 = vmatprep.subr.bf16.mxu0 %v5605
    %6836 = vmatpush1.bf16.msra.mxu0 %v5604
    %6837 = vmatprep.subr.bf16.mxu0 %v5593
    %6838 = vmatpush1.bf16.msra.mxu0 %v5592
    %6839 = vmatprep.subr.bf16.mxu0 %v5581
    %6840 = vmatpush1.bf16.msra.mxu0 %v5580
    %6841 = vmatprep.subr.bf16.mxu0 %v5569
    %6842 = vmatpush1.bf16.msra.mxu0 %v5568
    %6843 = vmatprep.subr.bf16.mxu0 %v5557
    %6844 = vmatpush1.bf16.msra.mxu0 %v5556
    %6845 = vmatprep.subr.bf16.mxu0 %v5737
    %6846 = vmatpush2.bf16.msra.mxu0 %v5736
    %6847 = vmatprep.subr.bf16.mxu0 %v5725
    %6848 = vmatpush2.bf16.msra.mxu0 %v5724
    %6849 = vmatprep.subr.bf16.mxu0 %v5713
    %6850 = vmatpush2.bf16.msra.mxu0 %v5712
    %6851 = vmatprep.subr.bf16.mxu0 %v5701
    %6852 = vmatpush2.bf16.msra.mxu0 %v5700
    %6853 = vmatprep.subr.bf16.mxu0 %v5689
    %6854 = vmatpush2.bf16.msra.mxu0 %v5688
    %6855 = vmatprep.subr.bf16.mxu0 %v5677
    %6856 = vmatpush2.bf16.msra.mxu0 %v5676
    %6857 = vmatprep.subr.bf16.mxu0 %v5665
    %6858 = vmatpush2.bf16.msra.mxu0 %v5664
    %6859 = vmatprep.subr.bf16.mxu0 %v5653
    %6860 = vmatpush2.bf16.msra.mxu0 %v5652
    %6861 = vmatprep.mubr.bf16.mxu0 %v3181
    %6862 = vmatmul.mubr.bf16.gmra.mxu0 %v3180
    %v6863 = vpop.f32.mrf.mxu0
    %v6864 = vadd.f32 %v3777, %v6863
    %v6865 = vpop.f32.mrf.mxu0
    %v6866 = vadd.f32 %v3781, %v6865
    %v6867 = vpop.f32.mrf.mxu0
    %v6868 = vpop.f32.mrf.mxu0
    %6869 = vdwg.mxu0
    %6870 = vmatprep.subr.bf16.mxu0 %v5833
    %6871 = vmatpush1.bf16.msra.mxu0 %v5832
    %6872 = vmatprep.subr.bf16.mxu0 %v5821
    %6873 = vmatpush1.bf16.msra.mxu0 %v5820
    %6874 = vmatprep.subr.bf16.mxu0 %v5809
    %6875 = vmatpush1.bf16.msra.mxu0 %v5808
    %6876 = vmatprep.subr.bf16.mxu0 %v5797
    %6877 = vmatpush1.bf16.msra.mxu0 %v5796
    %6878 = vmatprep.subr.bf16.mxu0 %v5785
    %6879 = vmatpush1.bf16.msra.mxu0 %v5784
    %6880 = vmatprep.subr.bf16.mxu0 %v5773
    %6881 = vmatpush1.bf16.msra.mxu0 %v5772
    %6882 = vmatprep.subr.bf16.mxu0 %v5761
    %6883 = vmatpush1.bf16.msra.mxu0 %v5760
    %6884 = vmatprep.subr.bf16.mxu0 %v5749
    %6885 = vmatpush1.bf16.msra.mxu0 %v5748
    %6886 = vmatprep.subr.bf16.mxu0 %v5929
    %6887 = vmatpush2.bf16.msra.mxu0 %v5928
    %6888 = vmatprep.subr.bf16.mxu0 %v5917
    %6889 = vmatpush2.bf16.msra.mxu0 %v5916
    %6890 = vmatprep.subr.bf16.mxu0 %v5905
    %6891 = vmatpush2.bf16.msra.mxu0 %v5904
    %6892 = vmatprep.subr.bf16.mxu0 %v5893
    %6893 = vmatpush2.bf16.msra.mxu0 %v5892
    %6894 = vmatprep.subr.bf16.mxu0 %v5881
    %6895 = vmatpush2.bf16.msra.mxu0 %v5880
    %6896 = vmatprep.subr.bf16.mxu0 %v5869
    %6897 = vmatpush2.bf16.msra.mxu0 %v5868
    %6898 = vmatprep.subr.bf16.mxu0 %v5857
    %6899 = vmatpush2.bf16.msra.mxu0 %v5856
    %6900 = vmatprep.subr.bf16.mxu0 %v5845
    %6901 = vmatpush2.bf16.msra.mxu0 %v5844
    %6902 = vmatprep.mubr.bf16.mxu0 %v3183
    %6903 = vmatmul.mubr.bf16.gmra.mxu0 %v3182
    %v6904 = vpop.f32.mrf.mxu0
    %v6905 = vadd.f32 %v6864, %v6904
    %v6906 = vpop.f32.mrf.mxu0
    %v6907 = vadd.f32 %v6866, %v6906
    %v6908 = vpop.f32.mrf.mxu0
    %v6909 = vpop.f32.mrf.mxu0
    %6910 = vdwg.mxu0
    %6911 = vmatprep.subr.bf16.mxu0 %v6025
    %6912 = vmatpush1.bf16.msra.mxu0 %v6024
    %6913 = vmatprep.subr.bf16.mxu0 %v6013
    %6914 = vmatpush1.bf16.msra.mxu0 %v6012
    %6915 = vmatprep.subr.bf16.mxu0 %v6001
    %6916 = vmatpush1.bf16.msra.mxu0 %v6000
    %6917 = vmatprep.subr.bf16.mxu0 %v5989
    %6918 = vmatpush1.bf16.msra.mxu0 %v5988
    %6919 = vmatprep.subr.bf16.mxu0 %v5977
    %6920 = vmatpush1.bf16.msra.mxu0 %v5976
    %6921 = vmatprep.subr.bf16.mxu0 %v5965
    %6922 = vmatpush1.bf16.msra.mxu0 %v5964
    %6923 = vmatprep.subr.bf16.mxu0 %v5953
    %6924 = vmatpush1.bf16.msra.mxu0 %v5952
    %6925 = vmatprep.subr.bf16.mxu0 %v5941
    %6926 = vmatpush1.bf16.msra.mxu0 %v5940
    %6927 = vmatprep.subr.bf16.mxu0 %v6121
    %6928 = vmatpush2.bf16.msra.mxu0 %v6120
    %6929 = vmatprep.subr.bf16.mxu0 %v6109
    %6930 = vmatpush2.bf16.msra.mxu0 %v6108
    %6931 = vmatprep.subr.bf16.mxu0 %v6097
    %6932 = vmatpush2.bf16.msra.mxu0 %v6096
    %6933 = vmatprep.subr.bf16.mxu0 %v6085
    %6934 = vmatpush2.bf16.msra.mxu0 %v6084
    %6935 = vmatprep.subr.bf16.mxu0 %v6073
    %6936 = vmatpush2.bf16.msra.mxu0 %v6072
    %6937 = vmatprep.subr.bf16.mxu0 %v6061
    %6938 = vmatpush2.bf16.msra.mxu0 %v6060
    %6939 = vmatprep.subr.bf16.mxu0 %v6049
    %6940 = vmatpush2.bf16.msra.mxu0 %v6048
    %6941 = vmatprep.subr.bf16.mxu0 %v6037
    %6942 = vmatpush2.bf16.msra.mxu0 %v6036
    %6943 = vmatprep.mubr.bf16.mxu0 %v3185
    %6944 = vmatmul.mubr.bf16.gmra.mxu0 %v3184
    %v6945 = vpop.f32.mrf.mxu0
    %v6946 = vadd.f32 %v6905, %v6945
    %v6947 = vpop.f32.mrf.mxu0
    %v6948 = vadd.f32 %v6907, %v6947
    %v6949 = vpop.f32.mrf.mxu0
    %v6950 = vpop.f32.mrf.mxu0
    %6951 = vdwg.mxu0
    %6952 = vmatprep.subr.bf16.mxu0 %v5643
    %6953 = vmatpush1.bf16.msra.mxu0 %v5642
    %6954 = vmatprep.subr.bf16.mxu0 %v5631
    %6955 = vmatpush1.bf16.msra.mxu0 %v5630
    %6956 = vmatprep.subr.bf16.mxu0 %v5619
    %6957 = vmatpush1.bf16.msra.mxu0 %v5618
    %6958 = vmatprep.subr.bf16.mxu0 %v5607
    %6959 = vmatpush1.bf16.msra.mxu0 %v5606
    %6960 = vmatprep.subr.bf16.mxu0 %v5595
    %6961 = vmatpush1.bf16.msra.mxu0 %v5594
    %6962 = vmatprep.subr.bf16.mxu0 %v5583
    %6963 = vmatpush1.bf16.msra.mxu0 %v5582
    %6964 = vmatprep.subr.bf16.mxu0 %v5571
    %6965 = vmatpush1.bf16.msra.mxu0 %v5570
    %6966 = vmatprep.subr.bf16.mxu0 %v5559
    %6967 = vmatpush1.bf16.msra.mxu0 %v5558
    %6968 = vmatprep.subr.bf16.mxu0 %v5739
    %6969 = vmatpush2.bf16.msra.mxu0 %v5738
    %6970 = vmatprep.subr.bf16.mxu0 %v5727
    %6971 = vmatpush2.bf16.msra.mxu0 %v5726
    %6972 = vmatprep.subr.bf16.mxu0 %v5715
    %6973 = vmatpush2.bf16.msra.mxu0 %v5714
    %6974 = vmatprep.subr.bf16.mxu0 %v5703
    %6975 = vmatpush2.bf16.msra.mxu0 %v5702
    %6976 = vmatprep.subr.bf16.mxu0 %v5691
    %6977 = vmatpush2.bf16.msra.mxu0 %v5690
    %6978 = vmatprep.subr.bf16.mxu0 %v5679
    %6979 = vmatpush2.bf16.msra.mxu0 %v5678
    %6980 = vmatprep.subr.bf16.mxu0 %v5667
    %6981 = vmatpush2.bf16.msra.mxu0 %v5666
    %6982 = vmatprep.subr.bf16.mxu0 %v5655
    %6983 = vmatpush2.bf16.msra.mxu0 %v5654
    %6984 = vmatprep.mubr.bf16.mxu0 %v3181
    %6985 = vmatmul.mubr.bf16.gmra.mxu0 %v3180
    %v6986 = vpop.f32.mrf.mxu0
    %v6987 = vadd.f32 %v3785, %v6986
    %v6988 = vpop.f32.mrf.mxu0
    %v6989 = vadd.f32 %v3789, %v6988
    %v6990 = vpop.f32.mrf.mxu0
    %v6991 = vpop.f32.mrf.mxu0
    %6992 = vdwg.mxu0
    %6993 = vmatprep.subr.bf16.mxu0 %v5835
    %6994 = vmatpush1.bf16.msra.mxu0 %v5834
    %6995 = vmatprep.subr.bf16.mxu0 %v5823
    %6996 = vmatpush1.bf16.msra.mxu0 %v5822
    %6997 = vmatprep.subr.bf16.mxu0 %v5811
    %6998 = vmatpush1.bf16.msra.mxu0 %v5810
    %6999 = vmatprep.subr.bf16.mxu0 %v5799
    %7000 = vmatpush1.bf16.msra.mxu0 %v5798
    %7001 = vmatprep.subr.bf16.mxu0 %v5787
    %7002 = vmatpush1.bf16.msra.mxu0 %v5786
    %7003 = vmatprep.subr.bf16.mxu0 %v5775
    %7004 = vmatpush1.bf16.msra.mxu0 %v5774
    %7005 = vmatprep.subr.bf16.mxu0 %v5763
    %7006 = vmatpush1.bf16.msra.mxu0 %v5762
    %7007 = vmatprep.subr.bf16.mxu0 %v5751
    %7008 = vmatpush1.bf16.msra.mxu0 %v5750
    %7009 = vmatprep.subr.bf16.mxu0 %v5931
    %7010 = vmatpush2.bf16.msra.mxu0 %v5930
    %7011 = vmatprep.subr.bf16.mxu0 %v5919
    %7012 = vmatpush2.bf16.msra.mxu0 %v5918
    %7013 = vmatprep.subr.bf16.mxu0 %v5907
    %7014 = vmatpush2.bf16.msra.mxu0 %v5906
    %7015 = vmatprep.subr.bf16.mxu0 %v5895
    %7016 = vmatpush2.bf16.msra.mxu0 %v5894
    %7017 = vmatprep.subr.bf16.mxu0 %v5883
    %7018 = vmatpush2.bf16.msra.mxu0 %v5882
    %7019 = vmatprep.subr.bf16.mxu0 %v5871
    %7020 = vmatpush2.bf16.msra.mxu0 %v5870
    %7021 = vmatprep.subr.bf16.mxu0 %v5859
    %7022 = vmatpush2.bf16.msra.mxu0 %v5858
    %7023 = vmatprep.subr.bf16.mxu0 %v5847
    %7024 = vmatpush2.bf16.msra.mxu0 %v5846
    %7025 = vmatprep.mubr.bf16.mxu0 %v3183
    %7026 = vmatmul.mubr.bf16.gmra.mxu0 %v3182
    %v7027 = vpop.f32.mrf.mxu0
    %v7028 = vadd.f32 %v6987, %v7027
    %v7029 = vpop.f32.mrf.mxu0
    %v7030 = vadd.f32 %v6989, %v7029
    %v7031 = vpop.f32.mrf.mxu0
    %v7032 = vpop.f32.mrf.mxu0
    %7033 = vdwg.mxu0
    %7034 = vmatprep.subr.bf16.mxu0 %v6027
    %7035 = vmatpush1.bf16.msra.mxu0 %v6026
    %7036 = vmatprep.subr.bf16.mxu0 %v6015
    %7037 = vmatpush1.bf16.msra.mxu0 %v6014
    %7038 = vmatprep.subr.bf16.mxu0 %v6003
    %7039 = vmatpush1.bf16.msra.mxu0 %v6002
    %7040 = vmatprep.subr.bf16.mxu0 %v5991
    %7041 = vmatpush1.bf16.msra.mxu0 %v5990
    %7042 = vmatprep.subr.bf16.mxu0 %v5979
    %7043 = vmatpush1.bf16.msra.mxu0 %v5978
    %7044 = vmatprep.subr.bf16.mxu0 %v5967
    %7045 = vmatpush1.bf16.msra.mxu0 %v5966
    %7046 = vmatprep.subr.bf16.mxu0 %v5955
    %7047 = vmatpush1.bf16.msra.mxu0 %v5954
    %7048 = vmatprep.subr.bf16.mxu0 %v5943
    %7049 = vmatpush1.bf16.msra.mxu0 %v5942
    %7050 = vmatprep.subr.bf16.mxu0 %v6123
    %7051 = vmatpush2.bf16.msra.mxu0 %v6122
    %7052 = vmatprep.subr.bf16.mxu0 %v6111
    %7053 = vmatpush2.bf16.msra.mxu0 %v6110
    %7054 = vmatprep.subr.bf16.mxu0 %v6099
    %7055 = vmatpush2.bf16.msra.mxu0 %v6098
    %7056 = vmatprep.subr.bf16.mxu0 %v6087
    %7057 = vmatpush2.bf16.msra.mxu0 %v6086
    %7058 = vmatprep.subr.bf16.mxu0 %v6075
    %7059 = vmatpush2.bf16.msra.mxu0 %v6074
    %7060 = vmatprep.subr.bf16.mxu0 %v6063
    %7061 = vmatpush2.bf16.msra.mxu0 %v6062
    %7062 = vmatprep.subr.bf16.mxu0 %v6051
    %7063 = vmatpush2.bf16.msra.mxu0 %v6050
    %7064 = vmatprep.subr.bf16.mxu0 %v6039
    %7065 = vmatpush2.bf16.msra.mxu0 %v6038
    %7066 = vmatprep.mubr.bf16.mxu0 %v3185
    %7067 = vmatmul.mubr.bf16.gmra.mxu0 %v3184
    %v7068 = vpop.f32.mrf.mxu0
    %v7069 = vadd.f32 %v7028, %v7068
    %v7070 = vpop.f32.mrf.mxu0
    %v7071 = vadd.f32 %v7030, %v7070
    %v7072 = vpop.f32.mrf.mxu0
    %v7073 = vpop.f32.mrf.mxu0
    %7074 = vdwg.mxu0
    %7075 = vmatprep.subr.bf16.mxu0 %v5645
    %7076 = vmatpush1.bf16.msra.mxu0 %v5644
    %7077 = vmatprep.subr.bf16.mxu0 %v5633
    %7078 = vmatpush1.bf16.msra.mxu0 %v5632
    %7079 = vmatprep.subr.bf16.mxu0 %v5621
    %7080 = vmatpush1.bf16.msra.mxu0 %v5620
    %7081 = vmatprep.subr.bf16.mxu0 %v5609
    %7082 = vmatpush1.bf16.msra.mxu0 %v5608
    %7083 = vmatprep.subr.bf16.mxu0 %v5597
    %7084 = vmatpush1.bf16.msra.mxu0 %v5596
    %7085 = vmatprep.subr.bf16.mxu0 %v5585
    %7086 = vmatpush1.bf16.msra.mxu0 %v5584
    %7087 = vmatprep.subr.bf16.mxu0 %v5573
    %7088 = vmatpush1.bf16.msra.mxu0 %v5572
    %7089 = vmatprep.subr.bf16.mxu0 %v5561
    %7090 = vmatpush1.bf16.msra.mxu0 %v5560
    %7091 = vmatprep.subr.bf16.mxu0 %v5741
    %7092 = vmatpush2.bf16.msra.mxu0 %v5740
    %7093 = vmatprep.subr.bf16.mxu0 %v5729
    %7094 = vmatpush2.bf16.msra.mxu0 %v5728
    %7095 = vmatprep.subr.bf16.mxu0 %v5717
    %7096 = vmatpush2.bf16.msra.mxu0 %v5716
    %7097 = vmatprep.subr.bf16.mxu0 %v5705
    %7098 = vmatpush2.bf16.msra.mxu0 %v5704
    %7099 = vmatprep.subr.bf16.mxu0 %v5693
    %7100 = vmatpush2.bf16.msra.mxu0 %v5692
    %7101 = vmatprep.subr.bf16.mxu0 %v5681
    %7102 = vmatpush2.bf16.msra.mxu0 %v5680
    %7103 = vmatprep.subr.bf16.mxu0 %v5669
    %7104 = vmatpush2.bf16.msra.mxu0 %v5668
    %7105 = vmatprep.subr.bf16.mxu0 %v5657
    %7106 = vmatpush2.bf16.msra.mxu0 %v5656
    %7107 = vmatprep.mubr.bf16.mxu0 %v3181
    %7108 = vmatmul.mubr.bf16.gmra.mxu0 %v3180
    %v7109 = vpop.f32.mrf.mxu0
    %v7110 = vadd.f32 %v3793, %v7109
    %v7111 = vpop.f32.mrf.mxu0
    %v7112 = vadd.f32 %v3797, %v7111
    %v7113 = vpop.f32.mrf.mxu0
    %v7114 = vpop.f32.mrf.mxu0
    %7115 = vdwg.mxu0
    %7116 = vmatprep.subr.bf16.mxu0 %v5837
    %7117 = vmatpush1.bf16.msra.mxu0 %v5836
    %7118 = vmatprep.subr.bf16.mxu0 %v5825
    %7119 = vmatpush1.bf16.msra.mxu0 %v5824
    %7120 = vmatprep.subr.bf16.mxu0 %v5813
    %7121 = vmatpush1.bf16.msra.mxu0 %v5812
    %7122 = vmatprep.subr.bf16.mxu0 %v5801
    %7123 = vmatpush1.bf16.msra.mxu0 %v5800
    %7124 = vmatprep.subr.bf16.mxu0 %v5789
    %7125 = vmatpush1.bf16.msra.mxu0 %v5788
    %7126 = vmatprep.subr.bf16.mxu0 %v5777
    %7127 = vmatpush1.bf16.msra.mxu0 %v5776
    %7128 = vmatprep.subr.bf16.mxu0 %v5765
    %7129 = vmatpush1.bf16.msra.mxu0 %v5764
    %7130 = vmatprep.subr.bf16.mxu0 %v5753
    %7131 = vmatpush1.bf16.msra.mxu0 %v5752
    %7132 = vmatprep.subr.bf16.mxu0 %v5933
    %7133 = vmatpush2.bf16.msra.mxu0 %v5932
    %7134 = vmatprep.subr.bf16.mxu0 %v5921
    %7135 = vmatpush2.bf16.msra.mxu0 %v5920
    %7136 = vmatprep.subr.bf16.mxu0 %v5909
    %7137 = vmatpush2.bf16.msra.mxu0 %v5908
    %7138 = vmatprep.subr.bf16.mxu0 %v5897
    %7139 = vmatpush2.bf16.msra.mxu0 %v5896
    %7140 = vmatprep.subr.bf16.mxu0 %v5885
    %7141 = vmatpush2.bf16.msra.mxu0 %v5884
    %7142 = vmatprep.subr.bf16.mxu0 %v5873
    %7143 = vmatpush2.bf16.msra.mxu0 %v5872
    %7144 = vmatprep.subr.bf16.mxu0 %v5861
    %7145 = vmatpush2.bf16.msra.mxu0 %v5860
    %7146 = vmatprep.subr.bf16.mxu0 %v5849
    %7147 = vmatpush2.bf16.msra.mxu0 %v5848
    %7148 = vmatprep.mubr.bf16.mxu0 %v3183
    %7149 = vmatmul.mubr.bf16.gmra.mxu0 %v3182
    %v7150 = vpop.f32.mrf.mxu0
    %v7151 = vadd.f32 %v7110, %v7150
    %v7152 = vpop.f32.mrf.mxu0
    %v7153 = vadd.f32 %v7112, %v7152
    %v7154 = vpop.f32.mrf.mxu0
    %v7155 = vpop.f32.mrf.mxu0
    %7156 = vdwg.mxu0
    %7157 = vmatprep.subr.bf16.mxu0 %v6029
    %7158 = vmatpush1.bf16.msra.mxu0 %v6028
    %7159 = vmatprep.subr.bf16.mxu0 %v6017
    %7160 = vmatpush1.bf16.msra.mxu0 %v6016
    %7161 = vmatprep.subr.bf16.mxu0 %v6005
    %7162 = vmatpush1.bf16.msra.mxu0 %v6004
    %7163 = vmatprep.subr.bf16.mxu0 %v5993
    %7164 = vmatpush1.bf16.msra.mxu0 %v5992
    %7165 = vmatprep.subr.bf16.mxu0 %v5981
    %7166 = vmatpush1.bf16.msra.mxu0 %v5980
    %7167 = vmatprep.subr.bf16.mxu0 %v5969
    %7168 = vmatpush1.bf16.msra.mxu0 %v5968
    %7169 = vmatprep.subr.bf16.mxu0 %v5957
    %7170 = vmatpush1.bf16.msra.mxu0 %v5956
    %7171 = vmatprep.subr.bf16.mxu0 %v5945
    %7172 = vmatpush1.bf16.msra.mxu0 %v5944
    %7173 = vmatprep.subr.bf16.mxu0 %v6125
    %7174 = vmatpush2.bf16.msra.mxu0 %v6124
    %7175 = vmatprep.subr.bf16.mxu0 %v6113
    %7176 = vmatpush2.bf16.msra.mxu0 %v6112
    %7177 = vmatprep.subr.bf16.mxu0 %v6101
    %7178 = vmatpush2.bf16.msra.mxu0 %v6100
    %7179 = vmatprep.subr.bf16.mxu0 %v6089
    %7180 = vmatpush2.bf16.msra.mxu0 %v6088
    %7181 = vmatprep.subr.bf16.mxu0 %v6077
    %7182 = vmatpush2.bf16.msra.mxu0 %v6076
    %7183 = vmatprep.subr.bf16.mxu0 %v6065
    %7184 = vmatpush2.bf16.msra.mxu0 %v6064
    %7185 = vmatprep.subr.bf16.mxu0 %v6053
    %7186 = vmatpush2.bf16.msra.mxu0 %v6052
    %7187 = vmatprep.subr.bf16.mxu0 %v6041
    %7188 = vmatpush2.bf16.msra.mxu0 %v6040
    %7189 = vmatprep.mubr.bf16.mxu0 %v3185
    %7190 = vmatmul.mubr.bf16.gmra.mxu0 %v3184
    %v7191 = vpop.f32.mrf.mxu0
    %v7192 = vadd.f32 %v7151, %v7191
    %v7193 = vpop.f32.mrf.mxu0
    %v7194 = vadd.f32 %v7153, %v7193
    %v7195 = vpop.f32.mrf.mxu0
    %v7196 = vpop.f32.mrf.mxu0
    %7197 = vdwg.mxu0
    %7198 = vmatprep.subr.bf16.mxu0 %v5647
    %7199 = vmatpush1.bf16.msra.mxu0 %v5646
    %7200 = vmatprep.subr.bf16.mxu0 %v5635
    %7201 = vmatpush1.bf16.msra.mxu0 %v5634
    %7202 = vmatprep.subr.bf16.mxu0 %v5623
    %7203 = vmatpush1.bf16.msra.mxu0 %v5622
    %7204 = vmatprep.subr.bf16.mxu0 %v5611
    %7205 = vmatpush1.bf16.msra.mxu0 %v5610
    %7206 = vmatprep.subr.bf16.mxu0 %v5599
    %7207 = vmatpush1.bf16.msra.mxu0 %v5598
    %7208 = vmatprep.subr.bf16.mxu0 %v5587
    %7209 = vmatpush1.bf16.msra.mxu0 %v5586
    %7210 = vmatprep.subr.bf16.mxu0 %v5575
    %7211 = vmatpush1.bf16.msra.mxu0 %v5574
    %7212 = vmatprep.subr.bf16.mxu0 %v5563
    %7213 = vmatpush1.bf16.msra.mxu0 %v5562
    %7214 = vmatprep.subr.bf16.mxu0 %v5743
    %7215 = vmatpush2.bf16.msra.mxu0 %v5742
    %7216 = vmatprep.subr.bf16.mxu0 %v5731
    %7217 = vmatpush2.bf16.msra.mxu0 %v5730
    %7218 = vmatprep.subr.bf16.mxu0 %v5719
    %7219 = vmatpush2.bf16.msra.mxu0 %v5718
    %7220 = vmatprep.subr.bf16.mxu0 %v5707
    %7221 = vmatpush2.bf16.msra.mxu0 %v5706
    %7222 = vmatprep.subr.bf16.mxu0 %v5695
    %7223 = vmatpush2.bf16.msra.mxu0 %v5694
    %7224 = vmatprep.subr.bf16.mxu0 %v5683
    %7225 = vmatpush2.bf16.msra.mxu0 %v5682
    %7226 = vmatprep.subr.bf16.mxu0 %v5671
    %7227 = vmatpush2.bf16.msra.mxu0 %v5670
    %7228 = vmatprep.subr.bf16.mxu0 %v5659
    %7229 = vmatpush2.bf16.msra.mxu0 %v5658
    %7230 = vmatprep.mubr.bf16.mxu0 %v3181
    %7231 = vmatmul.mubr.bf16.gmra.mxu0 %v3180
    %v7232 = vpop.f32.mrf.mxu0
    %v7233 = vadd.f32 %v3801, %v7232
    %v7234 = vpop.f32.mrf.mxu0
    %v7235 = vadd.f32 %v3805, %v7234
    %v7236 = vpop.f32.mrf.mxu0
    %v7237 = vpop.f32.mrf.mxu0
    %7238 = vdwg.mxu0
    %7239 = vmatprep.subr.bf16.mxu0 %v5839
    %7240 = vmatpush1.bf16.msra.mxu0 %v5838
    %7241 = vmatprep.subr.bf16.mxu0 %v5827
    %7242 = vmatpush1.bf16.msra.mxu0 %v5826
    %7243 = vmatprep.subr.bf16.mxu0 %v5815
    %7244 = vmatpush1.bf16.msra.mxu0 %v5814
    %7245 = vmatprep.subr.bf16.mxu0 %v5803
    %7246 = vmatpush1.bf16.msra.mxu0 %v5802
    %7247 = vmatprep.subr.bf16.mxu0 %v5791
    %7248 = vmatpush1.bf16.msra.mxu0 %v5790
    %7249 = vmatprep.subr.bf16.mxu0 %v5779
    %7250 = vmatpush1.bf16.msra.mxu0 %v5778
    %7251 = vmatprep.subr.bf16.mxu0 %v5767
    %7252 = vmatpush1.bf16.msra.mxu0 %v5766
    %7253 = vmatprep.subr.bf16.mxu0 %v5755
    %7254 = vmatpush1.bf16.msra.mxu0 %v5754
    %7255 = vmatprep.subr.bf16.mxu0 %v5935
    %7256 = vmatpush2.bf16.msra.mxu0 %v5934
    %7257 = vmatprep.subr.bf16.mxu0 %v5923
    %7258 = vmatpush2.bf16.msra.mxu0 %v5922
    %7259 = vmatprep.subr.bf16.mxu0 %v5911
    %7260 = vmatpush2.bf16.msra.mxu0 %v5910
    %7261 = vmatprep.subr.bf16.mxu0 %v5899
    %7262 = vmatpush2.bf16.msra.mxu0 %v5898
    %7263 = vmatprep.subr.bf16.mxu0 %v5887
    %7264 = vmatpush2.bf16.msra.mxu0 %v5886
    %7265 = vmatprep.subr.bf16.mxu0 %v5875
    %7266 = vmatpush2.bf16.msra.mxu0 %v5874
    %7267 = vmatprep.subr.bf16.mxu0 %v5863
    %7268 = vmatpush2.bf16.msra.mxu0 %v5862
    %7269 = vmatprep.subr.bf16.mxu0 %v5851
    %7270 = vmatpush2.bf16.msra.mxu0 %v5850
    %7271 = vmatprep.mubr.bf16.mxu0 %v3183
    %7272 = vmatmul.mubr.bf16.gmra.mxu0 %v3182
    %v7273 = vpop.f32.mrf.mxu0
    %v7274 = vadd.f32 %v7233, %v7273
    %v7275 = vpop.f32.mrf.mxu0
    %v7276 = vadd.f32 %v7235, %v7275
    %v7277 = vpop.f32.mrf.mxu0
    %v7278 = vpop.f32.mrf.mxu0
    %7279 = vdwg.mxu0
    %7280 = vmatprep.subr.bf16.mxu0 %v6031
    %7281 = vmatpush1.bf16.msra.mxu0 %v6030
    %7282 = vmatprep.subr.bf16.mxu0 %v6019
    %7283 = vmatpush1.bf16.msra.mxu0 %v6018
    %7284 = vmatprep.subr.bf16.mxu0 %v6007
    %7285 = vmatpush1.bf16.msra.mxu0 %v6006
    %7286 = vmatprep.subr.bf16.mxu0 %v5995
    %7287 = vmatpush1.bf16.msra.mxu0 %v5994
    %7288 = vmatprep.subr.bf16.mxu0 %v5983
    %7289 = vmatpush1.bf16.msra.mxu0 %v5982
    %7290 = vmatprep.subr.bf16.mxu0 %v5971
    %7291 = vmatpush1.bf16.msra.mxu0 %v5970
    %7292 = vmatprep.subr.bf16.mxu0 %v5959
    %7293 = vmatpush1.bf16.msra.mxu0 %v5958
    %7294 = vmatprep.subr.bf16.mxu0 %v5947
    %7295 = vmatpush1.bf16.msra.mxu0 %v5946
    %7296 = vmatprep.subr.bf16.mxu0 %v6127
    %7297 = vmatpush2.bf16.msra.mxu0 %v6126
    %7298 = vmatprep.subr.bf16.mxu0 %v6115
    %7299 = vmatpush2.bf16.msra.mxu0 %v6114
    %7300 = vmatprep.subr.bf16.mxu0 %v6103
    %7301 = vmatpush2.bf16.msra.mxu0 %v6102
    %7302 = vmatprep.subr.bf16.mxu0 %v6091
    %7303 = vmatpush2.bf16.msra.mxu0 %v6090
    %7304 = vmatprep.subr.bf16.mxu0 %v6079
    %7305 = vmatpush2.bf16.msra.mxu0 %v6078
    %7306 = vmatprep.subr.bf16.mxu0 %v6067
    %7307 = vmatpush2.bf16.msra.mxu0 %v6066
    %7308 = vmatprep.subr.bf16.mxu0 %v6055
    %7309 = vmatpush2.bf16.msra.mxu0 %v6054
    %7310 = vmatprep.subr.bf16.mxu0 %v6043
    %7311 = vmatpush2.bf16.msra.mxu0 %v6042
    %7312 = vmatprep.mubr.bf16.mxu0 %v3185
    %7313 = vmatmul.mubr.bf16.gmra.mxu0 %v3184
    %v7314 = vpop.f32.mrf.mxu0
    %v7315 = vadd.f32 %v7274, %v7314
    %v7316 = vpop.f32.mrf.mxu0
    %v7317 = vadd.f32 %v7276, %v7316
    %v7318 = vpop.f32.mrf.mxu0
    %v7319 = vpop.f32.mrf.mxu0
    %7320 = vdwg.mxu0
    %7321 = vmatprep.subr.bf16.mxu0 %v5649
    %7322 = vmatpush1.bf16.msra.mxu0 %v5648
    %7323 = vmatprep.subr.bf16.mxu0 %v5637
    %7324 = vmatpush1.bf16.msra.mxu0 %v5636
    %7325 = vmatprep.subr.bf16.mxu0 %v5625
    %7326 = vmatpush1.bf16.msra.mxu0 %v5624
    %7327 = vmatprep.subr.bf16.mxu0 %v5613
    %7328 = vmatpush1.bf16.msra.mxu0 %v5612
    %7329 = vmatprep.subr.bf16.mxu0 %v5601
    %7330 = vmatpush1.bf16.msra.mxu0 %v5600
    %7331 = vmatprep.subr.bf16.mxu0 %v5589
    %7332 = vmatpush1.bf16.msra.mxu0 %v5588
    %7333 = vmatprep.subr.bf16.mxu0 %v5577
    %7334 = vmatpush1.bf16.msra.mxu0 %v5576
    %7335 = vmatprep.subr.bf16.mxu0 %v5565
    %7336 = vmatpush1.bf16.msra.mxu0 %v5564
    %7337 = vmatprep.subr.bf16.mxu0 %v5745
    %7338 = vmatpush2.bf16.msra.mxu0 %v5744
    %7339 = vmatprep.subr.bf16.mxu0 %v5733
    %7340 = vmatpush2.bf16.msra.mxu0 %v5732
    %7341 = vmatprep.subr.bf16.mxu0 %v5721
    %7342 = vmatpush2.bf16.msra.mxu0 %v5720
    %7343 = vmatprep.subr.bf16.mxu0 %v5709
    %7344 = vmatpush2.bf16.msra.mxu0 %v5708
    %7345 = vmatprep.subr.bf16.mxu0 %v5697
    %7346 = vmatpush2.bf16.msra.mxu0 %v5696
    %7347 = vmatprep.subr.bf16.mxu0 %v5685
    %7348 = vmatpush2.bf16.msra.mxu0 %v5684
    %7349 = vmatprep.subr.bf16.mxu0 %v5673
    %7350 = vmatpush2.bf16.msra.mxu0 %v5672
    %7351 = vmatprep.subr.bf16.mxu0 %v5661
    %7352 = vmatpush2.bf16.msra.mxu0 %v5660
    %7353 = vmatprep.mubr.bf16.mxu0 %v3181
    %7354 = vmatmul.mubr.bf16.gmra.mxu0 %v3180
    %v7355 = vpop.f32.mrf.mxu0
    %v7356 = vadd.f32 %v3809, %v7355
    %v7357 = vpop.f32.mrf.mxu0
    %v7358 = vadd.f32 %v3813, %v7357
    %v7359 = vpop.f32.mrf.mxu0
    %v7360 = vpop.f32.mrf.mxu0
    %7361 = vdwg.mxu0
    %7362 = vmatprep.subr.bf16.mxu0 %v5841
    %7363 = vmatpush1.bf16.msra.mxu0 %v5840
    %7364 = vmatprep.subr.bf16.mxu0 %v5829
    %7365 = vmatpush1.bf16.msra.mxu0 %v5828
    %7366 = vmatprep.subr.bf16.mxu0 %v5817
    %7367 = vmatpush1.bf16.msra.mxu0 %v5816
    %7368 = vmatprep.subr.bf16.mxu0 %v5805
    %7369 = vmatpush1.bf16.msra.mxu0 %v5804
    %7370 = vmatprep.subr.bf16.mxu0 %v5793
    %7371 = vmatpush1.bf16.msra.mxu0 %v5792
    %7372 = vmatprep.subr.bf16.mxu0 %v5781
    %7373 = vmatpush1.bf16.msra.mxu0 %v5780
    %7374 = vmatprep.subr.bf16.mxu0 %v5769
    %7375 = vmatpush1.bf16.msra.mxu0 %v5768
    %7376 = vmatprep.subr.bf16.mxu0 %v5757
    %7377 = vmatpush1.bf16.msra.mxu0 %v5756
    %7378 = vmatprep.subr.bf16.mxu0 %v5937
    %7379 = vmatpush2.bf16.msra.mxu0 %v5936
    %7380 = vmatprep.subr.bf16.mxu0 %v5925
    %7381 = vmatpush2.bf16.msra.mxu0 %v5924
    %7382 = vmatprep.subr.bf16.mxu0 %v5913
    %7383 = vmatpush2.bf16.msra.mxu0 %v5912
    %7384 = vmatprep.subr.bf16.mxu0 %v5901
    %7385 = vmatpush2.bf16.msra.mxu0 %v5900
    %7386 = vmatprep.subr.bf16.mxu0 %v5889
    %7387 = vmatpush2.bf16.msra.mxu0 %v5888
    %7388 = vmatprep.subr.bf16.mxu0 %v5877
    %7389 = vmatpush2.bf16.msra.mxu0 %v5876
    %7390 = vmatprep.subr.bf16.mxu0 %v5865
    %7391 = vmatpush2.bf16.msra.mxu0 %v5864
    %7392 = vmatprep.subr.bf16.mxu0 %v5853
    %7393 = vmatpush2.bf16.msra.mxu0 %v5852
    %7394 = vmatprep.mubr.bf16.mxu0 %v3183
    %7395 = vmatmul.mubr.bf16.gmra.mxu0 %v3182
    %v7396 = vpop.f32.mrf.mxu0
    %v7397 = vadd.f32 %v7356, %v7396
    %v7398 = vpop.f32.mrf.mxu0
    %v7399 = vadd.f32 %v7358, %v7398
    %v7400 = vpop.f32.mrf.mxu0
    %v7401 = vpop.f32.mrf.mxu0
    %7402 = vdwg.mxu0
    %7403 = vmatprep.subr.bf16.mxu0 %v6033
    %7404 = vmatpush1.bf16.msra.mxu0 %v6032
    %7405 = vmatprep.subr.bf16.mxu0 %v6021
    %7406 = vmatpush1.bf16.msra.mxu0 %v6020
    %7407 = vmatprep.subr.bf16.mxu0 %v6009
    %7408 = vmatpush1.bf16.msra.mxu0 %v6008
    %7409 = vmatprep.subr.bf16.mxu0 %v5997
    %7410 = vmatpush1.bf16.msra.mxu0 %v5996
    %7411 = vmatprep.subr.bf16.mxu0 %v5985
    %7412 = vmatpush1.bf16.msra.mxu0 %v5984
    %7413 = vmatprep.subr.bf16.mxu0 %v5973
    %7414 = vmatpush1.bf16.msra.mxu0 %v5972
    %7415 = vmatprep.subr.bf16.mxu0 %v5961
    %7416 = vmatpush1.bf16.msra.mxu0 %v5960
    %7417 = vmatprep.subr.bf16.mxu0 %v5949
    %7418 = vmatpush1.bf16.msra.mxu0 %v5948
    %7419 = vmatprep.subr.bf16.mxu0 %v6129
    %7420 = vmatpush2.bf16.msra.mxu0 %v6128
    %7421 = vmatprep.subr.bf16.mxu0 %v6117
    %7422 = vmatpush2.bf16.msra.mxu0 %v6116
    %7423 = vmatprep.subr.bf16.mxu0 %v6105
    %7424 = vmatpush2.bf16.msra.mxu0 %v6104
    %7425 = vmatprep.subr.bf16.mxu0 %v6093
    %7426 = vmatpush2.bf16.msra.mxu0 %v6092
    %7427 = vmatprep.subr.bf16.mxu0 %v6081
    %7428 = vmatpush2.bf16.msra.mxu0 %v6080
    %7429 = vmatprep.subr.bf16.mxu0 %v6069
    %7430 = vmatpush2.bf16.msra.mxu0 %v6068
    %7431 = vmatprep.subr.bf16.mxu0 %v6057
    %7432 = vmatpush2.bf16.msra.mxu0 %v6056
    %7433 = vmatprep.subr.bf16.mxu0 %v6045
    %7434 = vmatpush2.bf16.msra.mxu0 %v6044
    %7435 = vmatprep.mubr.bf16.mxu0 %v3185
    %7436 = vmatmul.mubr.bf16.gmra.mxu0 %v3184
    %v7437 = vpop.f32.mrf.mxu0
    %v7438 = vadd.f32 %v7397, %v7437
    %v7439 = vpop.f32.mrf.mxu0
    %v7440 = vadd.f32 %v7399, %v7439
    %v7441 = vpop.f32.mrf.mxu0
    %v7442 = vpop.f32.mrf.mxu0
    %7443 = vdwg.mxu0
    %v7444 = vld [vmem:[%s7] sm:$0xff]
    %v7445 = vld [vmem:[%s7 + $0x8] sm:$0xf]
    %v7448 = vlaneseq
    %v7449 = vshrl.u32 %v7448, 7
    %v7450 = vsub.s32 0, %v7449
    %v7451 = vrot.slane %v7444, %v7450
    %v7452 = vlaneseq
    %v7453 = vshrl.u32 %v7452, 7
    %v7454 = vsub.s32 1, %v7453
    %v7455 = vrot.slane %v7444, %v7454
    %v7456 = vlaneseq
    %v7457 = vshrl.u32 %v7456, 7
    %v7458 = vsub.s32 2, %v7457
    %v7459 = vrot.slane %v7444, %v7458
    %v7460 = vlaneseq
    %v7461 = vshrl.u32 %v7460, 7
    %v7462 = vsub.s32 3, %v7461
    %v7463 = vrot.slane %v7444, %v7462
    %v7464 = vlaneseq
    %v7465 = vshrl.u32 %v7464, 7
    %v7466 = vsub.s32 4, %v7465
    %v7467 = vrot.slane %v7444, %v7466
    %v7468 = vlaneseq
    %v7469 = vshrl.u32 %v7468, 7
    %v7470 = vsub.s32 5, %v7469
    %v7471 = vrot.slane %v7444, %v7470
    %v7472 = vlaneseq
    %v7473 = vshrl.u32 %v7472, 7
    %v7474 = vsub.s32 6, %v7473
    %v7475 = vrot.slane %v7444, %v7474
    %v7476 = vlaneseq
    %v7477 = vshrl.u32 %v7476, 7
    %v7478 = vsub.s32 7, %v7477
    %v7479 = vrot.slane %v7444, %v7478
    %v7480 = vlaneseq
    %v7481 = vshrl.u32 %v7480, 7
    %v7482 = vsub.s32 0, %v7481
    %v7483 = vrot.slane %v7445, %v7482
    %v7484 = vlaneseq
    %v7485 = vshrl.u32 %v7484, 7
    %v7486 = vsub.s32 1, %v7485
    %v7487 = vrot.slane %v7445, %v7486
    %v7488 = vlaneseq
    %v7489 = vshrl.u32 %v7488, 7
    %v7490 = vsub.s32 2, %v7489
    %v7491 = vrot.slane %v7445, %v7490
    %v7492 = vlaneseq
    %v7493 = vshrl.u32 %v7492, 7
    %v7494 = vsub.s32 3, %v7493
    %v7495 = vrot.slane %v7445, %v7494
    %v7508 = vmul.f32 %v6823, %v7451
    %v7509 = vmul.f32 %v6825, %v7455
    %v7510 = vmul.f32 %v6946, %v7459
    %v7511 = vmul.f32 %v6948, %v7463
    %v7512 = vmul.f32 %v7069, %v7467
    %v7513 = vmul.f32 %v7071, %v7471
    %v7514 = vmul.f32 %v7192, %v7475
    %v7515 = vmul.f32 %v7194, %v7479
    %v7516 = vmul.f32 %v7315, %v7483
    %v7517 = vmul.f32 %v7317, %v7487
    %v7518 = vmul.f32 %v7438, %v7491
    %v7519 = vmul.f32 %v7440, %v7495
    %v7520 = vld [vmem:[%s8] sm:$0xff]
    %v7521 = vld [vmem:[%s8 + $0x8] sm:$0xf]
    %v7524 = vlaneseq
    %v7525 = vshrl.u32 %v7524, 7
    %v7526 = vsub.s32 0, %v7525
    %v7527 = vrot.slane %v7520, %v7526
    %v7528 = vlaneseq
    %v7529 = vshrl.u32 %v7528, 7
    %v7530 = vsub.s32 1, %v7529
    %v7531 = vrot.slane %v7520, %v7530
    %v7532 = vlaneseq
    %v7533 = vshrl.u32 %v7532, 7
    %v7534 = vsub.s32 2, %v7533
    %v7535 = vrot.slane %v7520, %v7534
    %v7536 = vlaneseq
    %v7537 = vshrl.u32 %v7536, 7
    %v7538 = vsub.s32 3, %v7537
    %v7539 = vrot.slane %v7520, %v7538
    %v7540 = vlaneseq
    %v7541 = vshrl.u32 %v7540, 7
    %v7542 = vsub.s32 4, %v7541
    %v7543 = vrot.slane %v7520, %v7542
    %v7544 = vlaneseq
    %v7545 = vshrl.u32 %v7544, 7
    %v7546 = vsub.s32 5, %v7545
    %v7547 = vrot.slane %v7520, %v7546
    %v7548 = vlaneseq
    %v7549 = vshrl.u32 %v7548, 7
    %v7550 = vsub.s32 6, %v7549
    %v7551 = vrot.slane %v7520, %v7550
    %v7552 = vlaneseq
    %v7553 = vshrl.u32 %v7552, 7
    %v7554 = vsub.s32 7, %v7553
    %v7555 = vrot.slane %v7520, %v7554
    %v7556 = vlaneseq
    %v7557 = vshrl.u32 %v7556, 7
    %v7558 = vsub.s32 0, %v7557
    %v7559 = vrot.slane %v7521, %v7558
    %v7560 = vlaneseq
    %v7561 = vshrl.u32 %v7560, 7
    %v7562 = vsub.s32 1, %v7561
    %v7563 = vrot.slane %v7521, %v7562
    %v7564 = vlaneseq
    %v7565 = vshrl.u32 %v7564, 7
    %v7566 = vsub.s32 2, %v7565
    %v7567 = vrot.slane %v7521, %v7566
    %v7568 = vlaneseq
    %v7569 = vshrl.u32 %v7568, 7
    %v7570 = vsub.s32 3, %v7569
    %v7571 = vrot.slane %v7521, %v7570
    %v7584 = vadd.f32 %v7508, %v7527
    %v7585 = vadd.f32 %v7509, %v7531
    %v7586 = vadd.f32 %v7510, %v7535
    %v7587 = vadd.f32 %v7511, %v7539
    %v7588 = vadd.f32 %v7512, %v7543
    %v7589 = vadd.f32 %v7513, %v7547
    %v7590 = vadd.f32 %v7514, %v7551
    %v7591 = vadd.f32 %v7515, %v7555
    %v7592 = vadd.f32 %v7516, %v7559
    %v7593 = vadd.f32 %v7517, %v7563
    %v7594 = vadd.f32 %v7518, %v7567
    %v7595 = vadd.f32 %v7519, %v7571
    %v7596 = vmax.f32 %v7584, 0.0
    %v7597 = vmax.f32 %v7585, 0.0
    %v7598 = vmax.f32 %v7586, 0.0
    %v7599 = vmax.f32 %v7587, 0.0
    %v7600 = vmax.f32 %v7588, 0.0
    %v7601 = vmax.f32 %v7589, 0.0
    %v7602 = vmax.f32 %v7590, 0.0
    %v7603 = vmax.f32 %v7591, 0.0
    %v7604 = vmax.f32 %v7592, 0.0
    %v7605 = vmax.f32 %v7593, 0.0
    %v7606 = vmax.f32 %v7594, 0.0
    %v7607 = vmax.f32 %v7595, 0.0
    %v7608 = vpack.c.bf16 %v7596, %v7596
    %v7609 = vpack.c.bf16 %v7597, %v7597
    %v7610 = vpack.c.bf16 %v7598, %v7598
    %v7611 = vpack.c.bf16 %v7599, %v7599
    %v7612 = vpack.c.bf16 %v7600, %v7600
    %v7613 = vpack.c.bf16 %v7601, %v7601
    %v7614 = vpack.c.bf16 %v7602, %v7602
    %v7615 = vpack.c.bf16 %v7603, %v7603
    %v7616 = vpack.c.bf16 %v7604, %v7604
    %v7617 = vpack.c.bf16 %v7605, %v7605
    %v7618 = vpack.c.bf16 %v7606, %v7606
    %v7619 = vpack.c.bf16 %v7607, %v7607
    %v7620 = vld [vmem:[%s9] sm:$0xf]
    %v7621 = vld [vmem:[%s9 + $0x4] sm:$0xf]
    %v7622 = vld [vmem:[%s9 + $0x8] sm:$0xf]
    %v7623 = vld [vmem:[%s9 + $0xc] sm:$0xf]
    %v7624 = vld [vmem:[%s9 + $0x10] sm:$0xf]
    %v7625 = vld [vmem:[%s9 + $0x14] sm:$0xf]
    %v7626 = vld [vmem:[%s9 + $0x18] sm:$0xf]
    %v7627 = vld [vmem:[%s9 + $0x1c] sm:$0xf]
    %v7628 = vld [vmem:[%s9 + $0x20] sm:$0xf]
    %v7629 = vld [vmem:[%s9 + $0x24] sm:$0xf]
    %v7630 = vld [vmem:[%s9 + $0x28] sm:$0xf]
    %v7631 = vld [vmem:[%s9 + $0x2c] sm:$0xf]
    %v7632 = vld [vmem:[%s9 + $0x30] sm:$0xf]
    %v7633 = vld [vmem:[%s9 + $0x34] sm:$0xf]
    %v7634 = vld [vmem:[%s9 + $0x38] sm:$0xf]
    %v7635 = vld [vmem:[%s9 + $0x3c] sm:$0xf]
    %v7636 = vld [vmem:[%s9 + $0x40] sm:$0xf]
    %v7637 = vld [vmem:[%s9 + $0x44] sm:$0xf]
    %v7638 = vld [vmem:[%s9 + $0x48] sm:$0xf]
    %v7639 = vld [vmem:[%s9 + $0x4c] sm:$0xf]
    %v7640 = vld [vmem:[%s9 + $0x50] sm:$0xf]
    %v7641 = vld [vmem:[%s9 + $0x54] sm:$0xf]
    %v7642 = vld [vmem:[%s9 + $0x58] sm:$0xf]
    %v7643 = vld [vmem:[%s9 + $0x5c] sm:$0xf]
    %v7644 = vld [vmem:[%s9 + $0x60] sm:$0xf]
    %v7645 = vld [vmem:[%s9 + $0x64] sm:$0xf]
    %v7646 = vld [vmem:[%s9 + $0x68] sm:$0xf]
    %v7647 = vld [vmem:[%s9 + $0x6c] sm:$0xf]
    %v7648 = vld [vmem:[%s9 + $0x70] sm:$0xf]
    %v7649 = vld [vmem:[%s9 + $0x74] sm:$0xf]
    %v7650 = vld [vmem:[%s9 + $0x78] sm:$0xf]
    %v7651 = vld [vmem:[%s9 + $0x7c] sm:$0xf]
    %v7652 = vld [vmem:[%s9 + $0x80] sm:$0xf]
    %v7653 = vld [vmem:[%s9 + $0x84] sm:$0xf]
    %v7654 = vld [vmem:[%s9 + $0x88] sm:$0xf]
    %v7655 = vld [vmem:[%s9 + $0x8c] sm:$0xf]
    %v7656 = vld [vmem:[%s9 + $0x90] sm:$0xf]
    %v7657 = vld [vmem:[%s9 + $0x94] sm:$0xf]
    %v7658 = vld [vmem:[%s9 + $0x98] sm:$0xf]
    %v7659 = vld [vmem:[%s9 + $0x9c] sm:$0xf]
    %v7660 = vld [vmem:[%s9 + $0xa0] sm:$0xf]
    %v7661 = vld [vmem:[%s9 + $0xa4] sm:$0xf]
    %v7662 = vld [vmem:[%s9 + $0xa8] sm:$0xf]
    %v7663 = vld [vmem:[%s9 + $0xac] sm:$0xf]
    %v7664 = vld [vmem:[%s9 + $0xb0] sm:$0xf]
    %v7665 = vld [vmem:[%s9 + $0xb4] sm:$0xf]
    %v7666 = vld [vmem:[%s9 + $0xb8] sm:$0xf]
    %v7667 = vld [vmem:[%s9 + $0xbc] sm:$0xf]
    %v7668 = vld [vmem:[%s9 + $0xc0] sm:$0xf]
    %v7669 = vld [vmem:[%s9 + $0xc4] sm:$0xf]
    %v7670 = vld [vmem:[%s9 + $0xc8] sm:$0xf]
    %v7671 = vld [vmem:[%s9 + $0xcc] sm:$0xf]
    %v7672 = vld [vmem:[%s9 + $0xd0] sm:$0xf]
    %v7673 = vld [vmem:[%s9 + $0xd4] sm:$0xf]
    %v7674 = vld [vmem:[%s9 + $0xd8] sm:$0xf]
    %v7675 = vld [vmem:[%s9 + $0xdc] sm:$0xf]
    %v7676 = vld [vmem:[%s9 + $0xe0] sm:$0xf]
    %v7677 = vld [vmem:[%s9 + $0xe4] sm:$0xf]
    %v7678 = vld [vmem:[%s9 + $0xe8] sm:$0xf]
    %v7679 = vld [vmem:[%s9 + $0xec] sm:$0xf]
    %v7680 = vld [vmem:[%s9 + $0xf0] sm:$0xf]
    %v7681 = vld [vmem:[%s9 + $0xf4] sm:$0xf]
    %v7682 = vld [vmem:[%s9 + $0xf8] sm:$0xf]
    %v7683 = vld [vmem:[%s9 + $0xfc] sm:$0xf]
    %v7684 = vld [vmem:[%s9 + $0x100] sm:$0xf]
    %v7685 = vld [vmem:[%s9 + $0x104] sm:$0xf]
    %v7686 = vld [vmem:[%s9 + $0x108] sm:$0xf]
    %v7687 = vld [vmem:[%s9 + $0x10c] sm:$0xf]
    %v7688 = vld [vmem:[%s9 + $0x110] sm:$0xf]
    %v7689 = vld [vmem:[%s9 + $0x114] sm:$0xf]
    %v7690 = vld [vmem:[%s9 + $0x118] sm:$0xf]
    %v7691 = vld [vmem:[%s9 + $0x11c] sm:$0xf]
    %v7692 = vld [vmem:[%s9 + $0x120] sm:$0xf]
    %v7693 = vld [vmem:[%s9 + $0x124] sm:$0xf]
    %v7694 = vld [vmem:[%s9 + $0x128] sm:$0xf]
    %v7695 = vld [vmem:[%s9 + $0x12c] sm:$0xf]
    %v7696 = vld [vmem:[%s9 + $0x130] sm:$0xf]
    %v7697 = vld [vmem:[%s9 + $0x134] sm:$0xf]
    %v7698 = vld [vmem:[%s9 + $0x138] sm:$0xf]
    %v7699 = vld [vmem:[%s9 + $0x13c] sm:$0xf]
    %v7700 = vld [vmem:[%s9 + $0x140] sm:$0xf]
    %v7701 = vld [vmem:[%s9 + $0x144] sm:$0xf]
    %v7702 = vld [vmem:[%s9 + $0x148] sm:$0xf]
    %v7703 = vld [vmem:[%s9 + $0x14c] sm:$0xf]
    %v7704 = vld [vmem:[%s9 + $0x150] sm:$0xf]
    %v7705 = vld [vmem:[%s9 + $0x154] sm:$0xf]
    %v7706 = vld [vmem:[%s9 + $0x158] sm:$0xf]
    %v7707 = vld [vmem:[%s9 + $0x15c] sm:$0xf]
    %v7708 = vld [vmem:[%s9 + $0x160] sm:$0xf]
    %v7709 = vld [vmem:[%s9 + $0x164] sm:$0xf]
    %v7710 = vld [vmem:[%s9 + $0x168] sm:$0xf]
    %v7711 = vld [vmem:[%s9 + $0x16c] sm:$0xf]
    %v7712 = vld [vmem:[%s9 + $0x170] sm:$0xf]
    %v7713 = vld [vmem:[%s9 + $0x174] sm:$0xf]
    %v7714 = vld [vmem:[%s9 + $0x178] sm:$0xf]
    %v7715 = vld [vmem:[%s9 + $0x17c] sm:$0xf]
    %v7716 = vld [vmem:[%s9 + $0x180] sm:$0xf]
    %v7717 = vld [vmem:[%s9 + $0x184] sm:$0xf]
    %v7718 = vld [vmem:[%s9 + $0x188] sm:$0xf]
    %v7719 = vld [vmem:[%s9 + $0x18c] sm:$0xf]
    %v7720 = vld [vmem:[%s9 + $0x190] sm:$0xf]
    %v7721 = vld [vmem:[%s9 + $0x194] sm:$0xf]
    %v7722 = vld [vmem:[%s9 + $0x198] sm:$0xf]
    %v7723 = vld [vmem:[%s9 + $0x19c] sm:$0xf]
    %v7724 = vld [vmem:[%s9 + $0x1a0] sm:$0xf]
    %v7725 = vld [vmem:[%s9 + $0x1a4] sm:$0xf]
    %v7726 = vld [vmem:[%s9 + $0x1a8] sm:$0xf]
    %v7727 = vld [vmem:[%s9 + $0x1ac] sm:$0xf]
    %v7728 = vld [vmem:[%s9 + $0x1b0] sm:$0xf]
    %v7729 = vld [vmem:[%s9 + $0x1b4] sm:$0xf]
    %v7730 = vld [vmem:[%s9 + $0x1b8] sm:$0xf]
    %v7731 = vld [vmem:[%s9 + $0x1bc] sm:$0xf]
    %v7732 = vld [vmem:[%s9 + $0x1c0] sm:$0xf]
    %v7733 = vld [vmem:[%s9 + $0x1c4] sm:$0xf]
    %v7734 = vld [vmem:[%s9 + $0x1c8] sm:$0xf]
    %v7735 = vld [vmem:[%s9 + $0x1cc] sm:$0xf]
    %v7736 = vld [vmem:[%s9 + $0x1d0] sm:$0xf]
    %v7737 = vld [vmem:[%s9 + $0x1d4] sm:$0xf]
    %v7738 = vld [vmem:[%s9 + $0x1d8] sm:$0xf]
    %v7739 = vld [vmem:[%s9 + $0x1dc] sm:$0xf]
    %v7740 = vld [vmem:[%s9 + $0x1e0] sm:$0xf]
    %v7741 = vld [vmem:[%s9 + $0x1e4] sm:$0xf]
    %v7742 = vld [vmem:[%s9 + $0x1e8] sm:$0xf]
    %v7743 = vld [vmem:[%s9 + $0x1ec] sm:$0xf]
    %v7744 = vld [vmem:[%s9 + $0x1f0] sm:$0xf]
    %v7745 = vld [vmem:[%s9 + $0x1f4] sm:$0xf]
    %v7746 = vld [vmem:[%s9 + $0x1f8] sm:$0xf]
    %v7747 = vld [vmem:[%s9 + $0x1fc] sm:$0xf]
    %v7748 = vld [vmem:[%s9 + $0x200] sm:$0xf]
    %v7749 = vld [vmem:[%s9 + $0x204] sm:$0xf]
    %v7750 = vld [vmem:[%s9 + $0x208] sm:$0xf]
    %v7751 = vld [vmem:[%s9 + $0x20c] sm:$0xf]
    %v7752 = vld [vmem:[%s9 + $0x210] sm:$0xf]
    %v7753 = vld [vmem:[%s9 + $0x214] sm:$0xf]
    %v7754 = vld [vmem:[%s9 + $0x218] sm:$0xf]
    %v7755 = vld [vmem:[%s9 + $0x21c] sm:$0xf]
    %v7756 = vld [vmem:[%s9 + $0x220] sm:$0xf]
    %v7757 = vld [vmem:[%s9 + $0x224] sm:$0xf]
    %v7758 = vld [vmem:[%s9 + $0x228] sm:$0xf]
    %v7759 = vld [vmem:[%s9 + $0x22c] sm:$0xf]
    %v7760 = vld [vmem:[%s9 + $0x230] sm:$0xf]
    %v7761 = vld [vmem:[%s9 + $0x234] sm:$0xf]
    %v7762 = vld [vmem:[%s9 + $0x238] sm:$0xf]
    %v7763 = vld [vmem:[%s9 + $0x23c] sm:$0xf]
    %v7764 = vld [vmem:[%s9 + $0x240] sm:$0xf]
    %v7765 = vld [vmem:[%s9 + $0x244] sm:$0xf]
    %v7766 = vld [vmem:[%s9 + $0x248] sm:$0xf]
    %v7767 = vld [vmem:[%s9 + $0x24c] sm:$0xf]
    %v7768 = vld [vmem:[%s9 + $0x250] sm:$0xf]
    %v7769 = vld [vmem:[%s9 + $0x254] sm:$0xf]
    %v7770 = vld [vmem:[%s9 + $0x258] sm:$0xf]
    %v7771 = vld [vmem:[%s9 + $0x25c] sm:$0xf]
    %v7772 = vld [vmem:[%s9 + $0x260] sm:$0xf]
    %v7773 = vld [vmem:[%s9 + $0x264] sm:$0xf]
    %v7774 = vld [vmem:[%s9 + $0x268] sm:$0xf]
    %v7775 = vld [vmem:[%s9 + $0x26c] sm:$0xf]
    %v7776 = vld [vmem:[%s9 + $0x270] sm:$0xf]
    %v7777 = vld [vmem:[%s9 + $0x274] sm:$0xf]
    %v7778 = vld [vmem:[%s9 + $0x278] sm:$0xf]
    %v7779 = vld [vmem:[%s9 + $0x27c] sm:$0xf]
    %v7780 = vld [vmem:[%s9 + $0x280] sm:$0xf]
    %v7781 = vld [vmem:[%s9 + $0x284] sm:$0xf]
    %v7782 = vld [vmem:[%s9 + $0x288] sm:$0xf]
    %v7783 = vld [vmem:[%s9 + $0x28c] sm:$0xf]
    %v7784 = vld [vmem:[%s9 + $0x290] sm:$0xf]
    %v7785 = vld [vmem:[%s9 + $0x294] sm:$0xf]
    %v7786 = vld [vmem:[%s9 + $0x298] sm:$0xf]
    %v7787 = vld [vmem:[%s9 + $0x29c] sm:$0xf]
    %v7788 = vld [vmem:[%s9 + $0x2a0] sm:$0xf]
    %v7789 = vld [vmem:[%s9 + $0x2a4] sm:$0xf]
    %v7790 = vld [vmem:[%s9 + $0x2a8] sm:$0xf]
    %v7791 = vld [vmem:[%s9 + $0x2ac] sm:$0xf]
    %v7792 = vld [vmem:[%s9 + $0x2b0] sm:$0xf]
    %v7793 = vld [vmem:[%s9 + $0x2b4] sm:$0xf]
    %v7794 = vld [vmem:[%s9 + $0x2b8] sm:$0xf]
    %v7795 = vld [vmem:[%s9 + $0x2bc] sm:$0xf]
    %v7796 = vld [vmem:[%s9 + $0x2c0] sm:$0xf]
    %v7797 = vld [vmem:[%s9 + $0x2c4] sm:$0xf]
    %v7798 = vld [vmem:[%s9 + $0x2c8] sm:$0xf]
    %v7799 = vld [vmem:[%s9 + $0x2cc] sm:$0xf]
    %v7800 = vld [vmem:[%s9 + $0x2d0] sm:$0xf]
    %v7801 = vld [vmem:[%s9 + $0x2d4] sm:$0xf]
    %v7802 = vld [vmem:[%s9 + $0x2d8] sm:$0xf]
    %v7803 = vld [vmem:[%s9 + $0x2dc] sm:$0xf]
    %v7804 = vld [vmem:[%s9 + $0x2e0] sm:$0xf]
    %v7805 = vld [vmem:[%s9 + $0x2e4] sm:$0xf]
    %v7806 = vld [vmem:[%s9 + $0x2e8] sm:$0xf]
    %v7807 = vld [vmem:[%s9 + $0x2ec] sm:$0xf]
    %v7808 = vld [vmem:[%s9 + $0x2f0] sm:$0xf]
    %v7809 = vld [vmem:[%s9 + $0x2f4] sm:$0xf]
    %v7810 = vld [vmem:[%s9 + $0x2f8] sm:$0xf]
    %v7811 = vld [vmem:[%s9 + $0x2fc] sm:$0xf]
    %v7812 = vld [vmem:[%s10] sm:$0x1]
    %v7814 = vlaneseq
    %v7815 = vshrl.u32 %v7814, 7
    %v7816 = vsub.s32 0, %v7815
    %v7817 = vrot.slane %v7812, %v7816
    %v8011 = vunpack.c.l.b16 %v7620
    %v8012 = vunpack.c.l.b16 %v7621
    %v8013 = vunpack.c.l.b16 %v7622
    %v8014 = vunpack.c.l.b16 %v7623
    %v8015 = vunpack.c.l.b16 %v7624
    %v8016 = vunpack.c.l.b16 %v7625
    %v8017 = vunpack.c.l.b16 %v7626
    %v8018 = vunpack.c.l.b16 %v7627
    %v8019 = vunpack.c.l.b16 %v7628
    %v8020 = vunpack.c.l.b16 %v7629
    %v8021 = vunpack.c.l.b16 %v7630
    %v8022 = vunpack.c.l.b16 %v7631
    %v8023 = vunpack.c.l.b16 %v7632
    %v8024 = vunpack.c.l.b16 %v7633
    %v8025 = vunpack.c.l.b16 %v7634
    %v8026 = vunpack.c.l.b16 %v7635
    %v8027 = vunpack.c.l.b16 %v7636
    %v8028 = vunpack.c.l.b16 %v7637
    %v8029 = vunpack.c.l.b16 %v7638
    %v8030 = vunpack.c.l.b16 %v7639
    %v8031 = vunpack.c.l.b16 %v7640
    %v8032 = vunpack.c.l.b16 %v7641
    %v8033 = vunpack.c.l.b16 %v7642
    %v8034 = vunpack.c.l.b16 %v7643
    %v8035 = vunpack.c.l.b16 %v7644
    %v8036 = vunpack.c.l.b16 %v7645
    %v8037 = vunpack.c.l.b16 %v7646
    %v8038 = vunpack.c.l.b16 %v7647
    %v8039 = vunpack.c.l.b16 %v7648
    %v8040 = vunpack.c.l.b16 %v7649
    %v8041 = vunpack.c.l.b16 %v7650
    %v8042 = vunpack.c.l.b16 %v7651
    %v8043 = vunpack.c.l.b16 %v7652
    %v8044 = vunpack.c.l.b16 %v7653
    %v8045 = vunpack.c.l.b16 %v7654
    %v8046 = vunpack.c.l.b16 %v7655
    %v8047 = vunpack.c.l.b16 %v7656
    %v8048 = vunpack.c.l.b16 %v7657
    %v8049 = vunpack.c.l.b16 %v7658
    %v8050 = vunpack.c.l.b16 %v7659
    %v8051 = vunpack.c.l.b16 %v7660
    %v8052 = vunpack.c.l.b16 %v7661
    %v8053 = vunpack.c.l.b16 %v7662
    %v8054 = vunpack.c.l.b16 %v7663
    %v8055 = vunpack.c.l.b16 %v7664
    %v8056 = vunpack.c.l.b16 %v7665
    %v8057 = vunpack.c.l.b16 %v7666
    %v8058 = vunpack.c.l.b16 %v7667
    %v8059 = vunpack.c.l.b16 %v7668
    %v8060 = vunpack.c.l.b16 %v7669
    %v8061 = vunpack.c.l.b16 %v7670
    %v8062 = vunpack.c.l.b16 %v7671
    %v8063 = vunpack.c.l.b16 %v7672
    %v8064 = vunpack.c.l.b16 %v7673
    %v8065 = vunpack.c.l.b16 %v7674
    %v8066 = vunpack.c.l.b16 %v7675
    %v8067 = vunpack.c.l.b16 %v7676
    %v8068 = vunpack.c.l.b16 %v7677
    %v8069 = vunpack.c.l.b16 %v7678
    %v8070 = vunpack.c.l.b16 %v7679
    %v8071 = vunpack.c.l.b16 %v7680
    %v8072 = vunpack.c.l.b16 %v7681
    %v8073 = vunpack.c.l.b16 %v7682
    %v8074 = vunpack.c.l.b16 %v7683
    %v8075 = vunpack.c.l.b16 %v7684
    %v8076 = vunpack.c.l.b16 %v7685
    %v8077 = vunpack.c.l.b16 %v7686
    %v8078 = vunpack.c.l.b16 %v7687
    %v8079 = vunpack.c.l.b16 %v7688
    %v8080 = vunpack.c.l.b16 %v7689
    %v8081 = vunpack.c.l.b16 %v7690
    %v8082 = vunpack.c.l.b16 %v7691
    %v8083 = vunpack.c.l.b16 %v7692
    %v8084 = vunpack.c.l.b16 %v7693
    %v8085 = vunpack.c.l.b16 %v7694
    %v8086 = vunpack.c.l.b16 %v7695
    %v8087 = vunpack.c.l.b16 %v7696
    %v8088 = vunpack.c.l.b16 %v7697
    %v8089 = vunpack.c.l.b16 %v7698
    %v8090 = vunpack.c.l.b16 %v7699
    %v8091 = vunpack.c.l.b16 %v7700
    %v8092 = vunpack.c.l.b16 %v7701
    %v8093 = vunpack.c.l.b16 %v7702
    %v8094 = vunpack.c.l.b16 %v7703
    %v8095 = vunpack.c.l.b16 %v7704
    %v8096 = vunpack.c.l.b16 %v7705
    %v8097 = vunpack.c.l.b16 %v7706
    %v8098 = vunpack.c.l.b16 %v7707
    %v8099 = vunpack.c.l.b16 %v7708
    %v8100 = vunpack.c.l.b16 %v7709
    %v8101 = vunpack.c.l.b16 %v7710
    %v8102 = vunpack.c.l.b16 %v7711
    %v8103 = vunpack.c.l.b16 %v7712
    %v8104 = vunpack.c.l.b16 %v7713
    %v8105 = vunpack.c.l.b16 %v7714
    %v8106 = vunpack.c.l.b16 %v7715
    %v8107 = vunpack.c.l.b16 %v7716
    %v8108 = vunpack.c.l.b16 %v7717
    %v8109 = vunpack.c.l.b16 %v7718
    %v8110 = vunpack.c.l.b16 %v7719
    %v8111 = vunpack.c.l.b16 %v7720
    %v8112 = vunpack.c.l.b16 %v7721
    %v8113 = vunpack.c.l.b16 %v7722
    %v8114 = vunpack.c.l.b16 %v7723
    %v8115 = vunpack.c.l.b16 %v7724
    %v8116 = vunpack.c.l.b16 %v7725
    %v8117 = vunpack.c.l.b16 %v7726
    %v8118 = vunpack.c.l.b16 %v7727
    %v8119 = vunpack.c.l.b16 %v7728
    %v8120 = vunpack.c.l.b16 %v7729
    %v8121 = vunpack.c.l.b16 %v7730
    %v8122 = vunpack.c.l.b16 %v7731
    %v8123 = vunpack.c.l.b16 %v7732
    %v8124 = vunpack.c.l.b16 %v7733
    %v8125 = vunpack.c.l.b16 %v7734
    %v8126 = vunpack.c.l.b16 %v7735
    %v8127 = vunpack.c.l.b16 %v7736
    %v8128 = vunpack.c.l.b16 %v7737
    %v8129 = vunpack.c.l.b16 %v7738
    %v8130 = vunpack.c.l.b16 %v7739
    %v8131 = vunpack.c.l.b16 %v7740
    %v8132 = vunpack.c.l.b16 %v7741
    %v8133 = vunpack.c.l.b16 %v7742
    %v8134 = vunpack.c.l.b16 %v7743
    %v8135 = vunpack.c.l.b16 %v7744
    %v8136 = vunpack.c.l.b16 %v7745
    %v8137 = vunpack.c.l.b16 %v7746
    %v8138 = vunpack.c.l.b16 %v7747
    %v8139 = vunpack.c.l.b16 %v7748
    %v8140 = vunpack.c.l.b16 %v7749
    %v8141 = vunpack.c.l.b16 %v7750
    %v8142 = vunpack.c.l.b16 %v7751
    %v8143 = vunpack.c.l.b16 %v7752
    %v8144 = vunpack.c.l.b16 %v7753
    %v8145 = vunpack.c.l.b16 %v7754
    %v8146 = vunpack.c.l.b16 %v7755
    %v8147 = vunpack.c.l.b16 %v7756
    %v8148 = vunpack.c.l.b16 %v7757
    %v8149 = vunpack.c.l.b16 %v7758
    %v8150 = vunpack.c.l.b16 %v7759
    %v8151 = vunpack.c.l.b16 %v7760
    %v8152 = vunpack.c.l.b16 %v7761
    %v8153 = vunpack.c.l.b16 %v7762
    %v8154 = vunpack.c.l.b16 %v7763
    %v8155 = vunpack.c.l.b16 %v7764
    %v8156 = vunpack.c.l.b16 %v7765
    %v8157 = vunpack.c.l.b16 %v7766
    %v8158 = vunpack.c.l.b16 %v7767
    %v8159 = vunpack.c.l.b16 %v7768
    %v8160 = vunpack.c.l.b16 %v7769
    %v8161 = vunpack.c.l.b16 %v7770
    %v8162 = vunpack.c.l.b16 %v7771
    %v8163 = vunpack.c.l.b16 %v7772
    %v8164 = vunpack.c.l.b16 %v7773
    %v8165 = vunpack.c.l.b16 %v7774
    %v8166 = vunpack.c.l.b16 %v7775
    %v8167 = vunpack.c.l.b16 %v7776
    %v8168 = vunpack.c.l.b16 %v7777
    %v8169 = vunpack.c.l.b16 %v7778
    %v8170 = vunpack.c.l.b16 %v7779
    %v8171 = vunpack.c.l.b16 %v7780
    %v8172 = vunpack.c.l.b16 %v7781
    %v8173 = vunpack.c.l.b16 %v7782
    %v8174 = vunpack.c.l.b16 %v7783
    %v8175 = vunpack.c.l.b16 %v7784
    %v8176 = vunpack.c.l.b16 %v7785
    %v8177 = vunpack.c.l.b16 %v7786
    %v8178 = vunpack.c.l.b16 %v7787
    %v8179 = vunpack.c.l.b16 %v7788
    %v8180 = vunpack.c.l.b16 %v7789
    %v8181 = vunpack.c.l.b16 %v7790
    %v8182 = vunpack.c.l.b16 %v7791
    %v8183 = vunpack.c.l.b16 %v7792
    %v8184 = vunpack.c.l.b16 %v7793
    %v8185 = vunpack.c.l.b16 %v7794
    %v8186 = vunpack.c.l.b16 %v7795
    %v8187 = vunpack.c.l.b16 %v7796
    %v8188 = vunpack.c.l.b16 %v7797
    %v8189 = vunpack.c.l.b16 %v7798
    %v8190 = vunpack.c.l.b16 %v7799
    %v8191 = vunpack.c.l.b16 %v7800
    %v8192 = vunpack.c.l.b16 %v7801
    %v8193 = vunpack.c.l.b16 %v7802
    %v8194 = vunpack.c.l.b16 %v7803
    %v8195 = vunpack.c.l.b16 %v7804
    %v8196 = vunpack.c.l.b16 %v7805
    %v8197 = vunpack.c.l.b16 %v7806
    %v8198 = vunpack.c.l.b16 %v7807
    %v8199 = vunpack.c.l.b16 %v7808
    %v8200 = vunpack.c.l.b16 %v7809
    %v8201 = vunpack.c.l.b16 %v7810
    %v8202 = vunpack.c.l.b16 %v7811
    %v8203 = vpack.c.b16 %v8012, %v8011
    %v8204 = vpack.c.b16 %v8014, %v8013
    %v8205 = vpack.c.b16 %v8016, %v8015
    %v8206 = vpack.c.b16 %v8018, %v8017
    %v8207 = vpack.c.b16 %v8020, %v8019
    %v8208 = vpack.c.b16 %v8022, %v8021
    %v8209 = vpack.c.b16 %v8024, %v8023
    %v8210 = vpack.c.b16 %v8026, %v8025
    %v8211 = vpack.c.b16 %v8028, %v8027
    %v8212 = vpack.c.b16 %v8030, %v8029
    %v8213 = vpack.c.b16 %v8032, %v8031
    %v8214 = vpack.c.b16 %v8034, %v8033
    %v8215 = vpack.c.b16 %v8036, %v8035
    %v8216 = vpack.c.b16 %v8038, %v8037
    %v8217 = vpack.c.b16 %v8040, %v8039
    %v8218 = vpack.c.b16 %v8042, %v8041
    %v8219 = vpack.c.b16 %v8044, %v8043
    %v8220 = vpack.c.b16 %v8046, %v8045
    %v8221 = vpack.c.b16 %v8048, %v8047
    %v8222 = vpack.c.b16 %v8050, %v8049
    %v8223 = vpack.c.b16 %v8052, %v8051
    %v8224 = vpack.c.b16 %v8054, %v8053
    %v8225 = vpack.c.b16 %v8056, %v8055
    %v8226 = vpack.c.b16 %v8058, %v8057
    %v8227 = vpack.c.b16 %v8060, %v8059
    %v8228 = vpack.c.b16 %v8062, %v8061
    %v8229 = vpack.c.b16 %v8064, %v8063
    %v8230 = vpack.c.b16 %v8066, %v8065
    %v8231 = vpack.c.b16 %v8068, %v8067
    %v8232 = vpack.c.b16 %v8070, %v8069
    %v8233 = vpack.c.b16 %v8072, %v8071
    %v8234 = vpack.c.b16 %v8074, %v8073
    %v8235 = vpack.c.b16 %v8076, %v8075
    %v8236 = vpack.c.b16 %v8078, %v8077
    %v8237 = vpack.c.b16 %v8080, %v8079
    %v8238 = vpack.c.b16 %v8082, %v8081
    %v8239 = vpack.c.b16 %v8084, %v8083
    %v8240 = vpack.c.b16 %v8086, %v8085
    %v8241 = vpack.c.b16 %v8088, %v8087
    %v8242 = vpack.c.b16 %v8090, %v8089
    %v8243 = vpack.c.b16 %v8092, %v8091
    %v8244 = vpack.c.b16 %v8094, %v8093
    %v8245 = vpack.c.b16 %v8096, %v8095
    %v8246 = vpack.c.b16 %v8098, %v8097
    %v8247 = vpack.c.b16 %v8100, %v8099
    %v8248 = vpack.c.b16 %v8102, %v8101
    %v8249 = vpack.c.b16 %v8104, %v8103
    %v8250 = vpack.c.b16 %v8106, %v8105
    %v8251 = vpack.c.b16 %v8108, %v8107
    %v8252 = vpack.c.b16 %v8110, %v8109
    %v8253 = vpack.c.b16 %v8112, %v8111
    %v8254 = vpack.c.b16 %v8114, %v8113
    %v8255 = vpack.c.b16 %v8116, %v8115
    %v8256 = vpack.c.b16 %v8118, %v8117
    %v8257 = vpack.c.b16 %v8120, %v8119
    %v8258 = vpack.c.b16 %v8122, %v8121
    %v8259 = vpack.c.b16 %v8124, %v8123
    %v8260 = vpack.c.b16 %v8126, %v8125
    %v8261 = vpack.c.b16 %v8128, %v8127
    %v8262 = vpack.c.b16 %v8130, %v8129
    %v8263 = vpack.c.b16 %v8132, %v8131
    %v8264 = vpack.c.b16 %v8134, %v8133
    %v8265 = vpack.c.b16 %v8136, %v8135
    %v8266 = vpack.c.b16 %v8138, %v8137
    %v8267 = vpack.c.b16 %v8140, %v8139
    %v8268 = vpack.c.b16 %v8142, %v8141
    %v8269 = vpack.c.b16 %v8144, %v8143
    %v8270 = vpack.c.b16 %v8146, %v8145
    %v8271 = vpack.c.b16 %v8148, %v8147
    %v8272 = vpack.c.b16 %v8150, %v8149
    %v8273 = vpack.c.b16 %v8152, %v8151
    %v8274 = vpack.c.b16 %v8154, %v8153
    %v8275 = vpack.c.b16 %v8156, %v8155
    %v8276 = vpack.c.b16 %v8158, %v8157
    %v8277 = vpack.c.b16 %v8160, %v8159
    %v8278 = vpack.c.b16 %v8162, %v8161
    %v8279 = vpack.c.b16 %v8164, %v8163
    %v8280 = vpack.c.b16 %v8166, %v8165
    %v8281 = vpack.c.b16 %v8168, %v8167
    %v8282 = vpack.c.b16 %v8170, %v8169
    %v8283 = vpack.c.b16 %v8172, %v8171
    %v8284 = vpack.c.b16 %v8174, %v8173
    %v8285 = vpack.c.b16 %v8176, %v8175
    %v8286 = vpack.c.b16 %v8178, %v8177
    %v8287 = vpack.c.b16 %v8180, %v8179
    %v8288 = vpack.c.b16 %v8182, %v8181
    %v8289 = vpack.c.b16 %v8184, %v8183
    %v8290 = vpack.c.b16 %v8186, %v8185
    %v8291 = vpack.c.b16 %v8188, %v8187
    %v8292 = vpack.c.b16 %v8190, %v8189
    %v8293 = vpack.c.b16 %v8192, %v8191
    %v8294 = vpack.c.b16 %v8194, %v8193
    %v8295 = vpack.c.b16 %v8196, %v8195
    %v8296 = vpack.c.b16 %v8198, %v8197
    %v8297 = vpack.c.b16 %v8200, %v8199
    %v8298 = vpack.c.b16 %v8202, %v8201
    %8395 = vmatprep.subr.bf16.mxu0 0
    %8396 = vmatpush1.bf16.msra.mxu0 %v8210
    %8397 = vmatprep.subr.bf16.mxu0 0
    %8398 = vmatpush1.bf16.msra.mxu0 %v8209
    %8399 = vmatprep.subr.bf16.mxu0 0
    %8400 = vmatpush1.bf16.msra.mxu0 %v8208
    %8401 = vmatprep.subr.bf16.mxu0 0
    %8402 = vmatpush1.bf16.msra.mxu0 %v8207
    %8403 = vmatprep.subr.bf16.mxu0 0
    %8404 = vmatpush1.bf16.msra.mxu0 %v8206
    %8405 = vmatprep.subr.bf16.mxu0 0
    %8406 = vmatpush1.bf16.msra.mxu0 %v8205
    %8407 = vmatprep.subr.bf16.mxu0 0
    %8408 = vmatpush1.bf16.msra.mxu0 %v8204
    %8409 = vmatprep.subr.bf16.mxu0 0
    %8410 = vmatpush1.bf16.msra.mxu0 %v8203
    %8411 = vmatprep.subr.bf16.mxu0 0
    %8412 = vmatpush2.bf16.msra.mxu0 %v8218
    %8413 = vmatprep.subr.bf16.mxu0 0
    %8414 = vmatpush2.bf16.msra.mxu0 %v8217
    %8415 = vmatprep.subr.bf16.mxu0 0
    %8416 = vmatpush2.bf16.msra.mxu0 %v8216
    %8417 = vmatprep.subr.bf16.mxu0 0
    %8418 = vmatpush2.bf16.msra.mxu0 %v8215
    %8419 = vmatprep.subr.bf16.mxu0 0
    %8420 = vmatpush2.bf16.msra.mxu0 %v8214
    %8421 = vmatprep.subr.bf16.mxu0 0
    %8422 = vmatpush2.bf16.msra.mxu0 %v8213
    %8423 = vmatprep.subr.bf16.mxu0 0
    %8424 = vmatpush2.bf16.msra.mxu0 %v8212
    %8425 = vmatprep.subr.bf16.mxu0 0
    %8426 = vmatpush2.bf16.msra.mxu0 %v8211
    %8427 = vmatprep.mubr.bf16.mxu0 %v7609
    %8428 = vmatmul.mubr.bf16.gmra.mxu0 %v7608
    %v8429 = vpop.f32.mrf.mxu0
    %v8430 = vadd.f32 %v7817, %v8429
    %v8431 = vpop.f32.mrf.mxu0
    %v8432 = vpop.f32.mrf.mxu0
    %v8433 = vpop.f32.mrf.mxu0
    %8434 = vdwg.mxu0
    %8435 = vmatprep.subr.bf16.mxu0 0
    %8436 = vmatpush1.bf16.msra.mxu0 %v8226
    %8437 = vmatprep.subr.bf16.mxu0 0
    %8438 = vmatpush1.bf16.msra.mxu0 %v8225
    %8439 = vmatprep.subr.bf16.mxu0 0
    %8440 = vmatpush1.bf16.msra.mxu0 %v8224
    %8441 = vmatprep.subr.bf16.mxu0 0
    %8442 = vmatpush1.bf16.msra.mxu0 %v8223
    %8443 = vmatprep.subr.bf16.mxu0 0
    %8444 = vmatpush1.bf16.msra.mxu0 %v8222
    %8445 = vmatprep.subr.bf16.mxu0 0
    %8446 = vmatpush1.bf16.msra.mxu0 %v8221
    %8447 = vmatprep.subr.bf16.mxu0 0
    %8448 = vmatpush1.bf16.msra.mxu0 %v8220
    %8449 = vmatprep.subr.bf16.mxu0 0
    %8450 = vmatpush1.bf16.msra.mxu0 %v8219
    %8451 = vmatprep.subr.bf16.mxu0 0
    %8452 = vmatpush2.bf16.msra.mxu0 %v8234
    %8453 = vmatprep.subr.bf16.mxu0 0
    %8454 = vmatpush2.bf16.msra.mxu0 %v8233
    %8455 = vmatprep.subr.bf16.mxu0 0
    %8456 = vmatpush2.bf16.msra.mxu0 %v8232
    %8457 = vmatprep.subr.bf16.mxu0 0
    %8458 = vmatpush2.bf16.msra.mxu0 %v8231
    %8459 = vmatprep.subr.bf16.mxu0 0
    %8460 = vmatpush2.bf16.msra.mxu0 %v8230
    %8461 = vmatprep.subr.bf16.mxu0 0
    %8462 = vmatpush2.bf16.msra.mxu0 %v8229
    %8463 = vmatprep.subr.bf16.mxu0 0
    %8464 = vmatpush2.bf16.msra.mxu0 %v8228
    %8465 = vmatprep.subr.bf16.mxu0 0
    %8466 = vmatpush2.bf16.msra.mxu0 %v8227
    %8467 = vmatprep.mubr.bf16.mxu0 %v7611
    %8468 = vmatmul.mubr.bf16.gmra.mxu0 %v7610
    %v8469 = vpop.f32.mrf.mxu0
    %v8470 = vadd.f32 %v8430, %v8469
    %v8471 = vpop.f32.mrf.mxu0
    %v8472 = vpop.f32.mrf.mxu0
    %v8473 = vpop.f32.mrf.mxu0
    %8474 = vdwg.mxu0
    %8475 = vmatprep.subr.bf16.mxu0 0
    %8476 = vmatpush1.bf16.msra.mxu0 %v8242
    %8477 = vmatprep.subr.bf16.mxu0 0
    %8478 = vmatpush1.bf16.msra.mxu0 %v8241
    %8479 = vmatprep.subr.bf16.mxu0 0
    %8480 = vmatpush1.bf16.msra.mxu0 %v8240
    %8481 = vmatprep.subr.bf16.mxu0 0
    %8482 = vmatpush1.bf16.msra.mxu0 %v8239
    %8483 = vmatprep.subr.bf16.mxu0 0
    %8484 = vmatpush1.bf16.msra.mxu0 %v8238
    %8485 = vmatprep.subr.bf16.mxu0 0
    %8486 = vmatpush1.bf16.msra.mxu0 %v8237
    %8487 = vmatprep.subr.bf16.mxu0 0
    %8488 = vmatpush1.bf16.msra.mxu0 %v8236
    %8489 = vmatprep.subr.bf16.mxu0 0
    %8490 = vmatpush1.bf16.msra.mxu0 %v8235
    %8491 = vmatprep.subr.bf16.mxu0 0
    %8492 = vmatpush2.bf16.msra.mxu0 %v8250
    %8493 = vmatprep.subr.bf16.mxu0 0
    %8494 = vmatpush2.bf16.msra.mxu0 %v8249
    %8495 = vmatprep.subr.bf16.mxu0 0
    %8496 = vmatpush2.bf16.msra.mxu0 %v8248
    %8497 = vmatprep.subr.bf16.mxu0 0
    %8498 = vmatpush2.bf16.msra.mxu0 %v8247
    %8499 = vmatprep.subr.bf16.mxu0 0
    %8500 = vmatpush2.bf16.msra.mxu0 %v8246
    %8501 = vmatprep.subr.bf16.mxu0 0
    %8502 = vmatpush2.bf16.msra.mxu0 %v8245
    %8503 = vmatprep.subr.bf16.mxu0 0
    %8504 = vmatpush2.bf16.msra.mxu0 %v8244
    %8505 = vmatprep.subr.bf16.mxu0 0
    %8506 = vmatpush2.bf16.msra.mxu0 %v8243
    %8507 = vmatprep.mubr.bf16.mxu0 %v7613
    %8508 = vmatmul.mubr.bf16.gmra.mxu0 %v7612
    %v8509 = vpop.f32.mrf.mxu0
    %v8510 = vadd.f32 %v8470, %v8509
    %v8511 = vpop.f32.mrf.mxu0
    %v8512 = vpop.f32.mrf.mxu0
    %v8513 = vpop.f32.mrf.mxu0
    %8514 = vdwg.mxu0
    %8515 = vmatprep.subr.bf16.mxu0 0
    %8516 = vmatpush1.bf16.msra.mxu0 %v8258
    %8517 = vmatprep.subr.bf16.mxu0 0
    %8518 = vmatpush1.bf16.msra.mxu0 %v8257
    %8519 = vmatprep.subr.bf16.mxu0 0
    %8520 = vmatpush1.bf16.msra.mxu0 %v8256
    %8521 = vmatprep.subr.bf16.mxu0 0
    %8522 = vmatpush1.bf16.msra.mxu0 %v8255
    %8523 = vmatprep.subr.bf16.mxu0 0
    %8524 = vmatpush1.bf16.msra.mxu0 %v8254
    %8525 = vmatprep.subr.bf16.mxu0 0
    %8526 = vmatpush1.bf16.msra.mxu0 %v8253
    %8527 = vmatprep.subr.bf16.mxu0 0
    %8528 = vmatpush1.bf16.msra.mxu0 %v8252
    %8529 = vmatprep.subr.bf16.mxu0 0
    %8530 = vmatpush1.bf16.msra.mxu0 %v8251
    %8531 = vmatprep.subr.bf16.mxu0 0
    %8532 = vmatpush2.bf16.msra.mxu0 %v8266
    %8533 = vmatprep.subr.bf16.mxu0 0
    %8534 = vmatpush2.bf16.msra.mxu0 %v8265
    %8535 = vmatprep.subr.bf16.mxu0 0
    %8536 = vmatpush2.bf16.msra.mxu0 %v8264
    %8537 = vmatprep.subr.bf16.mxu0 0
    %8538 = vmatpush2.bf16.msra.mxu0 %v8263
    %8539 = vmatprep.subr.bf16.mxu0 0
    %8540 = vmatpush2.bf16.msra.mxu0 %v8262
    %8541 = vmatprep.subr.bf16.mxu0 0
    %8542 = vmatpush2.bf16.msra.mxu0 %v8261
    %8543 = vmatprep.subr.bf16.mxu0 0
    %8544 = vmatpush2.bf16.msra.mxu0 %v8260
    %8545 = vmatprep.subr.bf16.mxu0 0
    %8546 = vmatpush2.bf16.msra.mxu0 %v8259
    %8547 = vmatprep.mubr.bf16.mxu0 %v7615
    %8548 = vmatmul.mubr.bf16.gmra.mxu0 %v7614
    %v8549 = vpop.f32.mrf.mxu0
    %v8550 = vadd.f32 %v8510, %v8549
    %v8551 = vpop.f32.mrf.mxu0
    %v8552 = vpop.f32.mrf.mxu0
    %v8553 = vpop.f32.mrf.mxu0
    %8554 = vdwg.mxu0
    %8555 = vmatprep.subr.bf16.mxu0 0
    %8556 = vmatpush1.bf16.msra.mxu0 %v8274
    %8557 = vmatprep.subr.bf16.mxu0 0
    %8558 = vmatpush1.bf16.msra.mxu0 %v8273
    %8559 = vmatprep.subr.bf16.mxu0 0
    %8560 = vmatpush1.bf16.msra.mxu0 %v8272
    %8561 = vmatprep.subr.bf16.mxu0 0
    %8562 = vmatpush1.bf16.msra.mxu0 %v8271
    %8563 = vmatprep.subr.bf16.mxu0 0
    %8564 = vmatpush1.bf16.msra.mxu0 %v8270
    %8565 = vmatprep.subr.bf16.mxu0 0
    %8566 = vmatpush1.bf16.msra.mxu0 %v8269
    %8567 = vmatprep.subr.bf16.mxu0 0
    %8568 = vmatpush1.bf16.msra.mxu0 %v8268
    %8569 = vmatprep.subr.bf16.mxu0 0
    %8570 = vmatpush1.bf16.msra.mxu0 %v8267
    %8571 = vmatprep.subr.bf16.mxu0 0
    %8572 = vmatpush2.bf16.msra.mxu0 %v8282
    %8573 = vmatprep.subr.bf16.mxu0 0
    %8574 = vmatpush2.bf16.msra.mxu0 %v8281
    %8575 = vmatprep.subr.bf16.mxu0 0
    %8576 = vmatpush2.bf16.msra.mxu0 %v8280
    %8577 = vmatprep.subr.bf16.mxu0 0
    %8578 = vmatpush2.bf16.msra.mxu0 %v8279
    %8579 = vmatprep.subr.bf16.mxu0 0
    %8580 = vmatpush2.bf16.msra.mxu0 %v8278
    %8581 = vmatprep.subr.bf16.mxu0 0
    %8582 = vmatpush2.bf16.msra.mxu0 %v8277
    %8583 = vmatprep.subr.bf16.mxu0 0
    %8584 = vmatpush2.bf16.msra.mxu0 %v8276
    %8585 = vmatprep.subr.bf16.mxu0 0
    %8586 = vmatpush2.bf16.msra.mxu0 %v8275
    %8587 = vmatprep.mubr.bf16.mxu0 %v7617
    %8588 = vmatmul.mubr.bf16.gmra.mxu0 %v7616
    %v8589 = vpop.f32.mrf.mxu0
    %v8590 = vadd.f32 %v8550, %v8589
    %v8591 = vpop.f32.mrf.mxu0
    %v8592 = vpop.f32.mrf.mxu0
    %v8593 = vpop.f32.mrf.mxu0
    %8594 = vdwg.mxu0
    %8595 = vmatprep.subr.bf16.mxu0 0
    %8596 = vmatpush1.bf16.msra.mxu0 %v8290
    %8597 = vmatprep.subr.bf16.mxu0 0
    %8598 = vmatpush1.bf16.msra.mxu0 %v8289
    %8599 = vmatprep.subr.bf16.mxu0 0
    %8600 = vmatpush1.bf16.msra.mxu0 %v8288
    %8601 = vmatprep.subr.bf16.mxu0 0
    %8602 = vmatpush1.bf16.msra.mxu0 %v8287
    %8603 = vmatprep.subr.bf16.mxu0 0
    %8604 = vmatpush1.bf16.msra.mxu0 %v8286
    %8605 = vmatprep.subr.bf16.mxu0 0
    %8606 = vmatpush1.bf16.msra.mxu0 %v8285
    %8607 = vmatprep.subr.bf16.mxu0 0
    %8608 = vmatpush1.bf16.msra.mxu0 %v8284
    %8609 = vmatprep.subr.bf16.mxu0 0
    %8610 = vmatpush1.bf16.msra.mxu0 %v8283
    %8611 = vmatprep.subr.bf16.mxu0 0
    %8612 = vmatpush2.bf16.msra.mxu0 %v8298
    %8613 = vmatprep.subr.bf16.mxu0 0
    %8614 = vmatpush2.bf16.msra.mxu0 %v8297
    %8615 = vmatprep.subr.bf16.mxu0 0
    %8616 = vmatpush2.bf16.msra.mxu0 %v8296
    %8617 = vmatprep.subr.bf16.mxu0 0
    %8618 = vmatpush2.bf16.msra.mxu0 %v8295
    %8619 = vmatprep.subr.bf16.mxu0 0
    %8620 = vmatpush2.bf16.msra.mxu0 %v8294
    %8621 = vmatprep.subr.bf16.mxu0 0
    %8622 = vmatpush2.bf16.msra.mxu0 %v8293
    %8623 = vmatprep.subr.bf16.mxu0 0
    %8624 = vmatpush2.bf16.msra.mxu0 %v8292
    %8625 = vmatprep.subr.bf16.mxu0 0
    %8626 = vmatpush2.bf16.msra.mxu0 %v8291
    %8627 = vmatprep.mubr.bf16.mxu0 %v7619
    %8628 = vmatmul.mubr.bf16.gmra.mxu0 %v7618
    %v8629 = vpop.f32.mrf.mxu0
    %v8630 = vadd.f32 %v8590, %v8629
    %v8631 = vpop.f32.mrf.mxu0
    %v8632 = vpop.f32.mrf.mxu0
    %v8633 = vpop.f32.mrf.mxu0
    %8634 = vdwg.mxu0
    %v8635 = vld [vmem:[%s1] sm:$0xff]
    %v8636 = vld [vmem:[%s1 + $0x8] sm:$0xf]
    %v8639 = vcombine.high %v8635, %v8635
    %v8641 = vunpack.c.l.s4 1983009808
    %v8642 = vunpack.c.0.s8 %v8641
    %v8643 = vlaneseq
    %v8644 = vshrl.u32 %v8643, 7
    %v8645 = vsub.s32 %v8642, %v8644
    %v8646 = vrot.slane %v8635, %v8645
    %v8648 = vunpack.c.l.s4 1983009808
    %v8649 = vunpack.c.0.s8 %v8648
    %v8650 = vlaneseq
    %v8651 = vshrl.u32 %v8650, 7
    %v8652 = vsub.s32 %v8649, %v8651
    %v8653 = vrot.slane %v8639, %v8652
    %v8654 = vcombine.high %v8646, %v8646
    %v8655 = vcombine.high %v8653, %v8653
    %v8657 = vunpack.c.l.s4 1983009808
    %v8658 = vunpack.c.0.s8 %v8657
    %v8659 = vlaneseq
    %v8660 = vshrl.u32 %v8659, 7
    %v8661 = vsub.s32 %v8658, %v8660
    %v8662 = vrot.slane %v8636, %v8661
    %v8663 = vcombine.high %v8662, %v8662
    %v8670 = vpack.c.bf16 %v8646, %v8646
    %v8671 = vpack.c.bf16 %v8654, %v8654
    %v8672 = vpack.c.bf16 %v8653, %v8653
    %v8673 = vpack.c.bf16 %v8655, %v8655
    %v8674 = vpack.c.bf16 %v8662, %v8662
    %v8675 = vpack.c.bf16 %v8663, %v8663
    %v8676 = vld [vmem:[#allocation2] sm:$0xff]
    %v8677 = vld [vmem:[#allocation2 + $0x8] sm:$0xff]
    %v8678 = vld [vmem:[#allocation2 + $0x10] sm:$0xff]
    %v8679 = vld [vmem:[#allocation2 + $0x18] sm:$0xff]
    %v8680 = vld [vmem:[#allocation2 + $0x20] sm:$0xff]
    %v8681 = vld [vmem:[#allocation2 + $0x28] sm:$0xff]
    %v8682 = vld [vmem:[#allocation2 + $0x30] sm:$0xff]
    %v8683 = vld [vmem:[#allocation2 + $0x38] sm:$0xff]
    %v8684 = vld [vmem:[#allocation2 + $0x40] sm:$0xff]
    %v8685 = vld [vmem:[#allocation2 + $0x48] sm:$0xff]
    %v8686 = vld [vmem:[#allocation2 + $0x50] sm:$0xff]
    %v8687 = vld [vmem:[#allocation2 + $0x58] sm:$0xff]
    %v8688 = vld [vmem:[#allocation2 + $0x60] sm:$0xff]
    %v8689 = vld [vmem:[#allocation2 + $0x68] sm:$0xff]
    %v8690 = vld [vmem:[#allocation2 + $0x70] sm:$0xff]
    %v8691 = vld [vmem:[#allocation2 + $0x78] sm:$0xff]
    %v8692 = vld [vmem:[#allocation2 + $0x80] sm:$0xff]
    %v8693 = vld [vmem:[#allocation2 + $0x88] sm:$0xff]
    %v8694 = vld [vmem:[#allocation2 + $0x90] sm:$0xff]
    %v8695 = vld [vmem:[#allocation2 + $0x98] sm:$0xff]
    %v8696 = vld [vmem:[#allocation2 + $0xa0] sm:$0xff]
    %v8697 = vld [vmem:[#allocation2 + $0xa8] sm:$0xff]
    %v8698 = vld [vmem:[#allocation2 + $0xb0] sm:$0xff]
    %v8699 = vld [vmem:[#allocation2 + $0xb8] sm:$0xff]
    %v8700 = vld [vmem:[#allocation2 + $0xc0] sm:$0xff]
    %v8701 = vld [vmem:[#allocation2 + $0xc8] sm:$0xff]
    %v8702 = vld [vmem:[#allocation2 + $0xd0] sm:$0xff]
    %v8703 = vld [vmem:[#allocation2 + $0xd8] sm:$0xff]
    %v8704 = vld [vmem:[#allocation2 + $0xe0] sm:$0xff]
    %v8705 = vld [vmem:[#allocation2 + $0xe8] sm:$0xff]
    %v8706 = vld [vmem:[#allocation2 + $0xf0] sm:$0xff]
    %v8707 = vld [vmem:[#allocation2 + $0xf8] sm:$0xff]
    %v8708 = vld [vmem:[#allocation2 + $0x100] sm:$0xff]
    %v8709 = vld [vmem:[#allocation2 + $0x108] sm:$0xff]
    %v8710 = vld [vmem:[#allocation2 + $0x110] sm:$0xff]
    %v8711 = vld [vmem:[#allocation2 + $0x118] sm:$0xff]
    %v8712 = vld [vmem:[#allocation2 + $0x120] sm:$0xff]
    %v8713 = vld [vmem:[#allocation2 + $0x128] sm:$0xff]
    %v8714 = vld [vmem:[#allocation2 + $0x130] sm:$0xff]
    %v8715 = vld [vmem:[#allocation2 + $0x138] sm:$0xff]
    %v8716 = vld [vmem:[#allocation2 + $0x140] sm:$0xff]
    %v8717 = vld [vmem:[#allocation2 + $0x148] sm:$0xff]
    %v8718 = vld [vmem:[#allocation2 + $0x150] sm:$0xff]
    %v8719 = vld [vmem:[#allocation2 + $0x158] sm:$0xff]
    %v8720 = vld [vmem:[#allocation2 + $0x160] sm:$0xff]
    %v8721 = vld [vmem:[#allocation2 + $0x168] sm:$0xff]
    %v8722 = vld [vmem:[#allocation2 + $0x170] sm:$0xff]
    %v8723 = vld [vmem:[#allocation2 + $0x178] sm:$0xff]
    %v8724 = vld [vmem:[#allocation2 + $0x180] sm:$0xff]
    %v8725 = vld [vmem:[#allocation2 + $0x188] sm:$0xff]
    %v8726 = vld [vmem:[#allocation2 + $0x190] sm:$0xff]
    %v8727 = vld [vmem:[#allocation2 + $0x198] sm:$0xff]
    %v8728 = vld [vmem:[#allocation2 + $0x1a0] sm:$0xff]
    %v8729 = vld [vmem:[#allocation2 + $0x1a8] sm:$0xff]
    %v8730 = vld [vmem:[#allocation2 + $0x1b0] sm:$0xff]
    %v8731 = vld [vmem:[#allocation2 + $0x1b8] sm:$0xff]
    %v8732 = vld [vmem:[#allocation2 + $0x1c0] sm:$0xff]
    %v8733 = vld [vmem:[#allocation2 + $0x1c8] sm:$0xff]
    %v8734 = vld [vmem:[#allocation2 + $0x1d0] sm:$0xff]
    %v8735 = vld [vmem:[#allocation2 + $0x1d8] sm:$0xff]
    %v8736 = vld [vmem:[#allocation2 + $0x1e0] sm:$0xff]
    %v8737 = vld [vmem:[#allocation2 + $0x1e8] sm:$0xff]
    %v8738 = vld [vmem:[#allocation2 + $0x1f0] sm:$0xff]
    %v8739 = vld [vmem:[#allocation2 + $0x1f8] sm:$0xff]
    %v8740 = vld [vmem:[#allocation2 + $0x200] sm:$0xff]
    %v8741 = vld [vmem:[#allocation2 + $0x208] sm:$0xff]
    %v8742 = vld [vmem:[#allocation2 + $0x210] sm:$0xff]
    %v8743 = vld [vmem:[#allocation2 + $0x218] sm:$0xff]
    %v8744 = vld [vmem:[#allocation2 + $0x220] sm:$0xff]
    %v8745 = vld [vmem:[#allocation2 + $0x228] sm:$0xff]
    %v8746 = vld [vmem:[#allocation2 + $0x230] sm:$0xff]
    %v8747 = vld [vmem:[#allocation2 + $0x238] sm:$0xff]
    %v8748 = vld [vmem:[#allocation2 + $0x240] sm:$0xff]
    %v8749 = vld [vmem:[#allocation2 + $0x248] sm:$0xff]
    %v8750 = vld [vmem:[#allocation2 + $0x250] sm:$0xff]
    %v8751 = vld [vmem:[#allocation2 + $0x258] sm:$0xff]
    %v8752 = vld [vmem:[#allocation2 + $0x260] sm:$0xff]
    %v8753 = vld [vmem:[#allocation2 + $0x268] sm:$0xff]
    %v8754 = vld [vmem:[#allocation2 + $0x270] sm:$0xff]
    %v8755 = vld [vmem:[#allocation2 + $0x278] sm:$0xff]
    %v8756 = vld [vmem:[#allocation2 + $0x280] sm:$0xff]
    %v8757 = vld [vmem:[#allocation2 + $0x288] sm:$0xff]
    %v8758 = vld [vmem:[#allocation2 + $0x290] sm:$0xff]
    %v8759 = vld [vmem:[#allocation2 + $0x298] sm:$0xff]
    %v8760 = vld [vmem:[#allocation2 + $0x2a0] sm:$0xff]
    %v8761 = vld [vmem:[#allocation2 + $0x2a8] sm:$0xff]
    %v8762 = vld [vmem:[#allocation2 + $0x2b0] sm:$0xff]
    %v8763 = vld [vmem:[#allocation2 + $0x2b8] sm:$0xff]
    %v8764 = vld [vmem:[#allocation2 + $0x2c0] sm:$0xff]
    %v8765 = vld [vmem:[#allocation2 + $0x2c8] sm:$0xff]
    %v8766 = vld [vmem:[#allocation2 + $0x2d0] sm:$0xff]
    %v8767 = vld [vmem:[#allocation2 + $0x2d8] sm:$0xff]
    %v8768 = vld [vmem:[#allocation2 + $0x2e0] sm:$0xff]
    %v8769 = vld [vmem:[#allocation2 + $0x2e8] sm:$0xff]
    %v8770 = vld [vmem:[#allocation2 + $0x2f0] sm:$0xff]
    %v8771 = vld [vmem:[#allocation2 + $0x2f8] sm:$0xff]
    %v8772 = vld [vmem:[#allocation2 + $0x300] sm:$0xff]
    %v8773 = vld [vmem:[#allocation2 + $0x308] sm:$0xff]
    %v8774 = vld [vmem:[#allocation2 + $0x310] sm:$0xff]
    %v8775 = vld [vmem:[#allocation2 + $0x318] sm:$0xff]
    %v8776 = vld [vmem:[#allocation2 + $0x320] sm:$0xff]
    %v8777 = vld [vmem:[#allocation2 + $0x328] sm:$0xff]
    %v8778 = vld [vmem:[#allocation2 + $0x330] sm:$0xff]
    %v8779 = vld [vmem:[#allocation2 + $0x338] sm:$0xff]
    %v8780 = vld [vmem:[#allocation2 + $0x340] sm:$0xff]
    %v8781 = vld [vmem:[#allocation2 + $0x348] sm:$0xff]
    %v8782 = vld [vmem:[#allocation2 + $0x350] sm:$0xff]
    %v8783 = vld [vmem:[#allocation2 + $0x358] sm:$0xff]
    %v8784 = vld [vmem:[#allocation2 + $0x360] sm:$0xff]
    %v8785 = vld [vmem:[#allocation2 + $0x368] sm:$0xff]
    %v8786 = vld [vmem:[#allocation2 + $0x370] sm:$0xff]
    %v8787 = vld [vmem:[#allocation2 + $0x378] sm:$0xff]
    %v8788 = vld [vmem:[#allocation2 + $0x380] sm:$0xff]
    %v8789 = vld [vmem:[#allocation2 + $0x388] sm:$0xff]
    %v8790 = vld [vmem:[#allocation2 + $0x390] sm:$0xff]
    %v8791 = vld [vmem:[#allocation2 + $0x398] sm:$0xff]
    %v8792 = vld [vmem:[#allocation2 + $0x3a0] sm:$0xff]
    %v8793 = vld [vmem:[#allocation2 + $0x3a8] sm:$0xff]
    %v8794 = vld [vmem:[#allocation2 + $0x3b0] sm:$0xff]
    %v8795 = vld [vmem:[#allocation2 + $0x3b8] sm:$0xff]
    %v8796 = vld [vmem:[#allocation2 + $0x3c0] sm:$0xff]
    %v8797 = vld [vmem:[#allocation2 + $0x3c8] sm:$0xff]
    %v8798 = vld [vmem:[#allocation2 + $0x3d0] sm:$0xff]
    %v8799 = vld [vmem:[#allocation2 + $0x3d8] sm:$0xff]
    %v8800 = vld [vmem:[#allocation2 + $0x3e0] sm:$0xff]
    %v8801 = vld [vmem:[#allocation2 + $0x3e8] sm:$0xff]
    %v8802 = vld [vmem:[#allocation2 + $0x3f0] sm:$0xff]
    %v8803 = vld [vmem:[#allocation2 + $0x3f8] sm:$0xff]
    %v8804 = vld [vmem:[#allocation2 + $0x400] sm:$0xff]
    %v8805 = vld [vmem:[#allocation2 + $0x408] sm:$0xff]
    %v8806 = vld [vmem:[#allocation2 + $0x410] sm:$0xff]
    %v8807 = vld [vmem:[#allocation2 + $0x418] sm:$0xff]
    %v8808 = vld [vmem:[#allocation2 + $0x420] sm:$0xff]
    %v8809 = vld [vmem:[#allocation2 + $0x428] sm:$0xff]
    %v8810 = vld [vmem:[#allocation2 + $0x430] sm:$0xff]
    %v8811 = vld [vmem:[#allocation2 + $0x438] sm:$0xff]
    %v8812 = vld [vmem:[#allocation2 + $0x440] sm:$0xff]
    %v8813 = vld [vmem:[#allocation2 + $0x448] sm:$0xff]
    %v8814 = vld [vmem:[#allocation2 + $0x450] sm:$0xff]
    %v8815 = vld [vmem:[#allocation2 + $0x458] sm:$0xff]
    %v8816 = vld [vmem:[#allocation2 + $0x460] sm:$0xff]
    %v8817 = vld [vmem:[#allocation2 + $0x468] sm:$0xff]
    %v8818 = vld [vmem:[#allocation2 + $0x470] sm:$0xff]
    %v8819 = vld [vmem:[#allocation2 + $0x478] sm:$0xff]
    %v8820 = vld [vmem:[#allocation2 + $0x480] sm:$0xff]
    %v8821 = vld [vmem:[#allocation2 + $0x488] sm:$0xff]
    %v8822 = vld [vmem:[#allocation2 + $0x490] sm:$0xff]
    %v8823 = vld [vmem:[#allocation2 + $0x498] sm:$0xff]
    %v8824 = vld [vmem:[#allocation2 + $0x4a0] sm:$0xff]
    %v8825 = vld [vmem:[#allocation2 + $0x4a8] sm:$0xff]
    %v8826 = vld [vmem:[#allocation2 + $0x4b0] sm:$0xff]
    %v8827 = vld [vmem:[#allocation2 + $0x4b8] sm:$0xff]
    %v8828 = vld [vmem:[#allocation2 + $0x4c0] sm:$0xff]
    %v8829 = vld [vmem:[#allocation2 + $0x4c8] sm:$0xff]
    %v8830 = vld [vmem:[#allocation2 + $0x4d0] sm:$0xff]
    %v8831 = vld [vmem:[#allocation2 + $0x4d8] sm:$0xff]
    %v8832 = vld [vmem:[#allocation2 + $0x4e0] sm:$0xff]
    %v8833 = vld [vmem:[#allocation2 + $0x4e8] sm:$0xff]
    %v8834 = vld [vmem:[#allocation2 + $0x4f0] sm:$0xff]
    %v8835 = vld [vmem:[#allocation2 + $0x4f8] sm:$0xff]
    %v8836 = vld [vmem:[#allocation2 + $0x500] sm:$0xff]
    %v8837 = vld [vmem:[#allocation2 + $0x508] sm:$0xff]
    %v8838 = vld [vmem:[#allocation2 + $0x510] sm:$0xff]
    %v8839 = vld [vmem:[#allocation2 + $0x518] sm:$0xff]
    %v8840 = vld [vmem:[#allocation2 + $0x520] sm:$0xff]
    %v8841 = vld [vmem:[#allocation2 + $0x528] sm:$0xff]
    %v8842 = vld [vmem:[#allocation2 + $0x530] sm:$0xff]
    %v8843 = vld [vmem:[#allocation2 + $0x538] sm:$0xff]
    %v8844 = vld [vmem:[#allocation2 + $0x540] sm:$0xff]
    %v8845 = vld [vmem:[#allocation2 + $0x548] sm:$0xff]
    %v8846 = vld [vmem:[#allocation2 + $0x550] sm:$0xff]
    %v8847 = vld [vmem:[#allocation2 + $0x558] sm:$0xff]
    %v8848 = vld [vmem:[#allocation2 + $0x560] sm:$0xff]
    %v8849 = vld [vmem:[#allocation2 + $0x568] sm:$0xff]
    %v8850 = vld [vmem:[#allocation2 + $0x570] sm:$0xff]
    %v8851 = vld [vmem:[#allocation2 + $0x578] sm:$0xff]
    %v8852 = vld [vmem:[#allocation2 + $0x580] sm:$0xff]
    %v8853 = vld [vmem:[#allocation2 + $0x588] sm:$0xff]
    %v8854 = vld [vmem:[#allocation2 + $0x590] sm:$0xff]
    %v8855 = vld [vmem:[#allocation2 + $0x598] sm:$0xff]
    %v8856 = vld [vmem:[#allocation2 + $0x5a0] sm:$0xff]
    %v8857 = vld [vmem:[#allocation2 + $0x5a8] sm:$0xff]
    %v8858 = vld [vmem:[#allocation2 + $0x5b0] sm:$0xff]
    %v8859 = vld [vmem:[#allocation2 + $0x5b8] sm:$0xff]
    %v8860 = vld [vmem:[#allocation2 + $0x5c0] sm:$0xff]
    %v8861 = vld [vmem:[#allocation2 + $0x5c8] sm:$0xff]
    %v8862 = vld [vmem:[#allocation2 + $0x5d0] sm:$0xff]
    %v8863 = vld [vmem:[#allocation2 + $0x5d8] sm:$0xff]
    %v8864 = vld [vmem:[#allocation2 + $0x5e0] sm:$0xff]
    %v8865 = vld [vmem:[#allocation2 + $0x5e8] sm:$0xff]
    %v8866 = vld [vmem:[#allocation2 + $0x5f0] sm:$0xff]
    %v8867 = vld [vmem:[#allocation2 + $0x5f8] sm:$0xff]
    %v8868 = vld [vmem:[#allocation2 + $0x600] sm:$0xff]
    %v8869 = vld [vmem:[#allocation2 + $0x608] sm:$0xff]
    %v8870 = vld [vmem:[#allocation2 + $0x610] sm:$0xff]
    %v8871 = vld [vmem:[#allocation2 + $0x618] sm:$0xff]
    %v8872 = vld [vmem:[#allocation2 + $0x620] sm:$0xff]
    %v8873 = vld [vmem:[#allocation2 + $0x628] sm:$0xff]
    %v8874 = vld [vmem:[#allocation2 + $0x630] sm:$0xff]
    %v8875 = vld [vmem:[#allocation2 + $0x638] sm:$0xff]
    %v8876 = vld [vmem:[#allocation2 + $0x640] sm:$0xff]
    %v8877 = vld [vmem:[#allocation2 + $0x648] sm:$0xff]
    %v8878 = vld [vmem:[#allocation2 + $0x650] sm:$0xff]
    %v8879 = vld [vmem:[#allocation2 + $0x658] sm:$0xff]
    %v8880 = vld [vmem:[#allocation2 + $0x660] sm:$0xff]
    %v8881 = vld [vmem:[#allocation2 + $0x668] sm:$0xff]
    %v8882 = vld [vmem:[#allocation2 + $0x670] sm:$0xff]
    %v8883 = vld [vmem:[#allocation2 + $0x678] sm:$0xff]
    %v8884 = vld [vmem:[#allocation2 + $0x680] sm:$0xff]
    %v8885 = vld [vmem:[#allocation2 + $0x688] sm:$0xff]
    %v8886 = vld [vmem:[#allocation2 + $0x690] sm:$0xff]
    %v8887 = vld [vmem:[#allocation2 + $0x698] sm:$0xff]
    %v8888 = vld [vmem:[#allocation2 + $0x6a0] sm:$0xff]
    %v8889 = vld [vmem:[#allocation2 + $0x6a8] sm:$0xff]
    %v8890 = vld [vmem:[#allocation2 + $0x6b0] sm:$0xff]
    %v8891 = vld [vmem:[#allocation2 + $0x6b8] sm:$0xff]
    %v8892 = vld [vmem:[#allocation2 + $0x6c0] sm:$0xff]
    %v8893 = vld [vmem:[#allocation2 + $0x6c8] sm:$0xff]
    %v8894 = vld [vmem:[#allocation2 + $0x6d0] sm:$0xff]
    %v8895 = vld [vmem:[#allocation2 + $0x6d8] sm:$0xff]
    %v8896 = vld [vmem:[#allocation2 + $0x6e0] sm:$0xff]
    %v8897 = vld [vmem:[#allocation2 + $0x6e8] sm:$0xff]
    %v8898 = vld [vmem:[#allocation2 + $0x6f0] sm:$0xff]
    %v8899 = vld [vmem:[#allocation2 + $0x6f8] sm:$0xff]
    %v8900 = vld [vmem:[#allocation2 + $0x700] sm:$0xff]
    %v8901 = vld [vmem:[#allocation2 + $0x708] sm:$0xff]
    %v8902 = vld [vmem:[#allocation2 + $0x710] sm:$0xff]
    %v8903 = vld [vmem:[#allocation2 + $0x718] sm:$0xff]
    %v8904 = vld [vmem:[#allocation2 + $0x720] sm:$0xff]
    %v8905 = vld [vmem:[#allocation2 + $0x728] sm:$0xff]
    %v8906 = vld [vmem:[#allocation2 + $0x730] sm:$0xff]
    %v8907 = vld [vmem:[#allocation2 + $0x738] sm:$0xff]
    %v8908 = vld [vmem:[#allocation2 + $0x740] sm:$0xff]
    %v8909 = vld [vmem:[#allocation2 + $0x748] sm:$0xff]
    %v8910 = vld [vmem:[#allocation2 + $0x750] sm:$0xff]
    %v8911 = vld [vmem:[#allocation2 + $0x758] sm:$0xff]
    %v8912 = vld [vmem:[#allocation2 + $0x760] sm:$0xff]
    %v8913 = vld [vmem:[#allocation2 + $0x768] sm:$0xff]
    %v8914 = vld [vmem:[#allocation2 + $0x770] sm:$0xff]
    %v8915 = vld [vmem:[#allocation2 + $0x778] sm:$0xff]
    %v8916 = vld [vmem:[#allocation2 + $0x780] sm:$0xff]
    %v8917 = vld [vmem:[#allocation2 + $0x788] sm:$0xff]
    %v8918 = vld [vmem:[#allocation2 + $0x790] sm:$0xff]
    %v8919 = vld [vmem:[#allocation2 + $0x798] sm:$0xff]
    %v8920 = vld [vmem:[#allocation2 + $0x7a0] sm:$0xff]
    %v8921 = vld [vmem:[#allocation2 + $0x7a8] sm:$0xff]
    %v8922 = vld [vmem:[#allocation2 + $0x7b0] sm:$0xff]
    %v8923 = vld [vmem:[#allocation2 + $0x7b8] sm:$0xff]
    %v8924 = vld [vmem:[#allocation2 + $0x7c0] sm:$0xff]
    %v8925 = vld [vmem:[#allocation2 + $0x7c8] sm:$0xff]
    %v8926 = vld [vmem:[#allocation2 + $0x7d0] sm:$0xff]
    %v8927 = vld [vmem:[#allocation2 + $0x7d8] sm:$0xff]
    %v8928 = vld [vmem:[#allocation2 + $0x7e0] sm:$0xff]
    %v8929 = vld [vmem:[#allocation2 + $0x7e8] sm:$0xff]
    %v8930 = vld [vmem:[#allocation2 + $0x7f0] sm:$0xff]
    %v8931 = vld [vmem:[#allocation2 + $0x7f8] sm:$0xff]
    %v8932 = vld [vmem:[#allocation2 + $0x800] sm:$0xff]
    %v8933 = vld [vmem:[#allocation2 + $0x808] sm:$0xff]
    %v8934 = vld [vmem:[#allocation2 + $0x810] sm:$0xff]
    %v8935 = vld [vmem:[#allocation2 + $0x818] sm:$0xff]
    %v8936 = vld [vmem:[#allocation2 + $0x820] sm:$0xff]
    %v8937 = vld [vmem:[#allocation2 + $0x828] sm:$0xff]
    %v8938 = vld [vmem:[#allocation2 + $0x830] sm:$0xff]
    %v8939 = vld [vmem:[#allocation2 + $0x838] sm:$0xff]
    %v8940 = vld [vmem:[#allocation2 + $0x840] sm:$0xff]
    %v8941 = vld [vmem:[#allocation2 + $0x848] sm:$0xff]
    %v8942 = vld [vmem:[#allocation2 + $0x850] sm:$0xff]
    %v8943 = vld [vmem:[#allocation2 + $0x858] sm:$0xff]
    %v8944 = vld [vmem:[#allocation2 + $0x860] sm:$0xff]
    %v8945 = vld [vmem:[#allocation2 + $0x868] sm:$0xff]
    %v8946 = vld [vmem:[#allocation2 + $0x870] sm:$0xff]
    %v8947 = vld [vmem:[#allocation2 + $0x878] sm:$0xff]
    %v8948 = vld [vmem:[#allocation2 + $0x880] sm:$0xff]
    %v8949 = vld [vmem:[#allocation2 + $0x888] sm:$0xff]
    %v8950 = vld [vmem:[#allocation2 + $0x890] sm:$0xff]
    %v8951 = vld [vmem:[#allocation2 + $0x898] sm:$0xff]
    %v8952 = vld [vmem:[#allocation2 + $0x8a0] sm:$0xff]
    %v8953 = vld [vmem:[#allocation2 + $0x8a8] sm:$0xff]
    %v8954 = vld [vmem:[#allocation2 + $0x8b0] sm:$0xff]
    %v8955 = vld [vmem:[#allocation2 + $0x8b8] sm:$0xff]
    %v8956 = vld [vmem:[#allocation2 + $0x8c0] sm:$0xff]
    %v8957 = vld [vmem:[#allocation2 + $0x8c8] sm:$0xff]
    %v8958 = vld [vmem:[#allocation2 + $0x8d0] sm:$0xff]
    %v8959 = vld [vmem:[#allocation2 + $0x8d8] sm:$0xff]
    %v8960 = vld [vmem:[#allocation2 + $0x8e0] sm:$0xff]
    %v8961 = vld [vmem:[#allocation2 + $0x8e8] sm:$0xff]
    %v8962 = vld [vmem:[#allocation2 + $0x8f0] sm:$0xff]
    %v8963 = vld [vmem:[#allocation2 + $0x8f8] sm:$0xff]
    %v8964 = vld [vmem:[#allocation2 + $0x900] sm:$0xff]
    %v8965 = vld [vmem:[#allocation2 + $0x908] sm:$0xff]
    %v8966 = vld [vmem:[#allocation2 + $0x910] sm:$0xff]
    %v8967 = vld [vmem:[#allocation2 + $0x918] sm:$0xff]
    %v8968 = vld [vmem:[#allocation2 + $0x920] sm:$0xff]
    %v8969 = vld [vmem:[#allocation2 + $0x928] sm:$0xff]
    %v8970 = vld [vmem:[#allocation2 + $0x930] sm:$0xff]
    %v8971 = vld [vmem:[#allocation2 + $0x938] sm:$0xff]
    %v8972 = vld [vmem:[#allocation2 + $0x940] sm:$0xff]
    %v8973 = vld [vmem:[#allocation2 + $0x948] sm:$0xff]
    %v8974 = vld [vmem:[#allocation2 + $0x950] sm:$0xff]
    %v8975 = vld [vmem:[#allocation2 + $0x958] sm:$0xff]
    %v8976 = vld [vmem:[#allocation2 + $0x960] sm:$0xff]
    %v8977 = vld [vmem:[#allocation2 + $0x968] sm:$0xff]
    %v8978 = vld [vmem:[#allocation2 + $0x970] sm:$0xff]
    %v8979 = vld [vmem:[#allocation2 + $0x978] sm:$0xff]
    %v8980 = vld [vmem:[#allocation2 + $0x980] sm:$0xff]
    %v8981 = vld [vmem:[#allocation2 + $0x988] sm:$0xff]
    %v8982 = vld [vmem:[#allocation2 + $0x990] sm:$0xff]
    %v8983 = vld [vmem:[#allocation2 + $0x998] sm:$0xff]
    %v8984 = vld [vmem:[#allocation2 + $0x9a0] sm:$0xff]
    %v8985 = vld [vmem:[#allocation2 + $0x9a8] sm:$0xff]
    %v8986 = vld [vmem:[#allocation2 + $0x9b0] sm:$0xff]
    %v8987 = vld [vmem:[#allocation2 + $0x9b8] sm:$0xff]
    %v8988 = vld [vmem:[#allocation2 + $0x9c0] sm:$0xff]
    %v8989 = vld [vmem:[#allocation2 + $0x9c8] sm:$0xff]
    %v8990 = vld [vmem:[#allocation2 + $0x9d0] sm:$0xff]
    %v8991 = vld [vmem:[#allocation2 + $0x9d8] sm:$0xff]
    %v8992 = vld [vmem:[#allocation2 + $0x9e0] sm:$0xff]
    %v8993 = vld [vmem:[#allocation2 + $0x9e8] sm:$0xff]
    %v8994 = vld [vmem:[#allocation2 + $0x9f0] sm:$0xff]
    %v8995 = vld [vmem:[#allocation2 + $0x9f8] sm:$0xff]
    %v8996 = vld [vmem:[#allocation2 + $0xa00] sm:$0xff]
    %v8997 = vld [vmem:[#allocation2 + $0xa08] sm:$0xff]
    %v8998 = vld [vmem:[#allocation2 + $0xa10] sm:$0xff]
    %v8999 = vld [vmem:[#allocation2 + $0xa18] sm:$0xff]
    %v9000 = vld [vmem:[#allocation2 + $0xa20] sm:$0xff]
    %v9001 = vld [vmem:[#allocation2 + $0xa28] sm:$0xff]
    %v9002 = vld [vmem:[#allocation2 + $0xa30] sm:$0xff]
    %v9003 = vld [vmem:[#allocation2 + $0xa38] sm:$0xff]
    %v9004 = vld [vmem:[#allocation2 + $0xa40] sm:$0xff]
    %v9005 = vld [vmem:[#allocation2 + $0xa48] sm:$0xff]
    %v9006 = vld [vmem:[#allocation2 + $0xa50] sm:$0xff]
    %v9007 = vld [vmem:[#allocation2 + $0xa58] sm:$0xff]
    %v9008 = vld [vmem:[#allocation2 + $0xa60] sm:$0xff]
    %v9009 = vld [vmem:[#allocation2 + $0xa68] sm:$0xff]
    %v9010 = vld [vmem:[#allocation2 + $0xa70] sm:$0xff]
    %v9011 = vld [vmem:[#allocation2 + $0xa78] sm:$0xff]
    %v9012 = vld [vmem:[#allocation2 + $0xa80] sm:$0xff]
    %v9013 = vld [vmem:[#allocation2 + $0xa88] sm:$0xff]
    %v9014 = vld [vmem:[#allocation2 + $0xa90] sm:$0xff]
    %v9015 = vld [vmem:[#allocation2 + $0xa98] sm:$0xff]
    %v9016 = vld [vmem:[#allocation2 + $0xaa0] sm:$0xff]
    %v9017 = vld [vmem:[#allocation2 + $0xaa8] sm:$0xff]
    %v9018 = vld [vmem:[#allocation2 + $0xab0] sm:$0xff]
    %v9019 = vld [vmem:[#allocation2 + $0xab8] sm:$0xff]
    %v9020 = vld [vmem:[#allocation2 + $0xac0] sm:$0xff]
    %v9021 = vld [vmem:[#allocation2 + $0xac8] sm:$0xff]
    %v9022 = vld [vmem:[#allocation2 + $0xad0] sm:$0xff]
    %v9023 = vld [vmem:[#allocation2 + $0xad8] sm:$0xff]
    %v9024 = vld [vmem:[#allocation2 + $0xae0] sm:$0xff]
    %v9025 = vld [vmem:[#allocation2 + $0xae8] sm:$0xff]
    %v9026 = vld [vmem:[#allocation2 + $0xaf0] sm:$0xff]
    %v9027 = vld [vmem:[#allocation2 + $0xaf8] sm:$0xff]
    %v9028 = vld [vmem:[#allocation2 + $0xb00] sm:$0xff]
    %v9029 = vld [vmem:[#allocation2 + $0xb08] sm:$0xff]
    %v9030 = vld [vmem:[#allocation2 + $0xb10] sm:$0xff]
    %v9031 = vld [vmem:[#allocation2 + $0xb18] sm:$0xff]
    %v9032 = vld [vmem:[#allocation2 + $0xb20] sm:$0xff]
    %v9033 = vld [vmem:[#allocation2 + $0xb28] sm:$0xff]
    %v9034 = vld [vmem:[#allocation2 + $0xb30] sm:$0xff]
    %v9035 = vld [vmem:[#allocation2 + $0xb38] sm:$0xff]
    %v9036 = vld [vmem:[#allocation2 + $0xb40] sm:$0xff]
    %v9037 = vld [vmem:[#allocation2 + $0xb48] sm:$0xff]
    %v9038 = vld [vmem:[#allocation2 + $0xb50] sm:$0xff]
    %v9039 = vld [vmem:[#allocation2 + $0xb58] sm:$0xff]
    %v9040 = vld [vmem:[#allocation2 + $0xb60] sm:$0xff]
    %v9041 = vld [vmem:[#allocation2 + $0xb68] sm:$0xff]
    %v9042 = vld [vmem:[#allocation2 + $0xb70] sm:$0xff]
    %v9043 = vld [vmem:[#allocation2 + $0xb78] sm:$0xff]
    %v9044 = vld [vmem:[#allocation2 + $0xb80] sm:$0xff]
    %v9045 = vld [vmem:[#allocation2 + $0xb88] sm:$0xff]
    %v9046 = vld [vmem:[#allocation2 + $0xb90] sm:$0xff]
    %v9047 = vld [vmem:[#allocation2 + $0xb98] sm:$0xff]
    %v9048 = vld [vmem:[#allocation2 + $0xba0] sm:$0xff]
    %v9049 = vld [vmem:[#allocation2 + $0xba8] sm:$0xff]
    %v9050 = vld [vmem:[#allocation2 + $0xbb0] sm:$0xff]
    %v9051 = vld [vmem:[#allocation2 + $0xbb8] sm:$0xff]
    %v9052 = vld [vmem:[#allocation2 + $0xbc0] sm:$0xff]
    %v9053 = vld [vmem:[#allocation2 + $0xbc8] sm:$0xff]
    %v9054 = vld [vmem:[#allocation2 + $0xbd0] sm:$0xff]
    %v9055 = vld [vmem:[#allocation2 + $0xbd8] sm:$0xff]
    %v9056 = vld [vmem:[#allocation2 + $0xbe0] sm:$0xff]
    %v9057 = vld [vmem:[#allocation2 + $0xbe8] sm:$0xff]
    %v9058 = vld [vmem:[#allocation2 + $0xbf0] sm:$0xff]
    %v9059 = vld [vmem:[#allocation2 + $0xbf8] sm:$0xff]
    %v9060 = vld [vmem:[#allocation2 + $0xc00] sm:$0xff]
    %v9061 = vld [vmem:[#allocation2 + $0xc08] sm:$0xff]
    %v9062 = vld [vmem:[#allocation2 + $0xc10] sm:$0xff]
    %v9063 = vld [vmem:[#allocation2 + $0xc18] sm:$0xff]
    %v9064 = vld [vmem:[#allocation2 + $0xc20] sm:$0xff]
    %v9065 = vld [vmem:[#allocation2 + $0xc28] sm:$0xff]
    %v9066 = vld [vmem:[#allocation2 + $0xc30] sm:$0xff]
    %v9067 = vld [vmem:[#allocation2 + $0xc38] sm:$0xff]
    %v9068 = vld [vmem:[#allocation2 + $0xc40] sm:$0xff]
    %v9069 = vld [vmem:[#allocation2 + $0xc48] sm:$0xff]
    %v9070 = vld [vmem:[#allocation2 + $0xc50] sm:$0xff]
    %v9071 = vld [vmem:[#allocation2 + $0xc58] sm:$0xff]
    %v9072 = vld [vmem:[#allocation2 + $0xc60] sm:$0xff]
    %v9073 = vld [vmem:[#allocation2 + $0xc68] sm:$0xff]
    %v9074 = vld [vmem:[#allocation2 + $0xc70] sm:$0xff]
    %v9075 = vld [vmem:[#allocation2 + $0xc78] sm:$0xff]
    %v9076 = vld [vmem:[#allocation2 + $0xc80] sm:$0xff]
    %v9077 = vld [vmem:[#allocation2 + $0xc88] sm:$0xff]
    %v9078 = vld [vmem:[#allocation2 + $0xc90] sm:$0xff]
    %v9079 = vld [vmem:[#allocation2 + $0xc98] sm:$0xff]
    %v9080 = vld [vmem:[#allocation2 + $0xca0] sm:$0xff]
    %v9081 = vld [vmem:[#allocation2 + $0xca8] sm:$0xff]
    %v9082 = vld [vmem:[#allocation2 + $0xcb0] sm:$0xff]
    %v9083 = vld [vmem:[#allocation2 + $0xcb8] sm:$0xff]
    %v9084 = vld [vmem:[#allocation2 + $0xcc0] sm:$0xff]
    %v9085 = vld [vmem:[#allocation2 + $0xcc8] sm:$0xff]
    %v9086 = vld [vmem:[#allocation2 + $0xcd0] sm:$0xff]
    %v9087 = vld [vmem:[#allocation2 + $0xcd8] sm:$0xff]
    %v9088 = vld [vmem:[#allocation2 + $0xce0] sm:$0xff]
    %v9089 = vld [vmem:[#allocation2 + $0xce8] sm:$0xff]
    %v9090 = vld [vmem:[#allocation2 + $0xcf0] sm:$0xff]
    %v9091 = vld [vmem:[#allocation2 + $0xcf8] sm:$0xff]
    %v9092 = vld [vmem:[#allocation2 + $0xd00] sm:$0xff]
    %v9093 = vld [vmem:[#allocation2 + $0xd08] sm:$0xff]
    %v9094 = vld [vmem:[#allocation2 + $0xd10] sm:$0xff]
    %v9095 = vld [vmem:[#allocation2 + $0xd18] sm:$0xff]
    %v9096 = vld [vmem:[#allocation2 + $0xd20] sm:$0xff]
    %v9097 = vld [vmem:[#allocation2 + $0xd28] sm:$0xff]
    %v9098 = vld [vmem:[#allocation2 + $0xd30] sm:$0xff]
    %v9099 = vld [vmem:[#allocation2 + $0xd38] sm:$0xff]
    %v9100 = vld [vmem:[#allocation2 + $0xd40] sm:$0xff]
    %v9101 = vld [vmem:[#allocation2 + $0xd48] sm:$0xff]
    %v9102 = vld [vmem:[#allocation2 + $0xd50] sm:$0xff]
    %v9103 = vld [vmem:[#allocation2 + $0xd58] sm:$0xff]
    %v9104 = vld [vmem:[#allocation2 + $0xd60] sm:$0xff]
    %v9105 = vld [vmem:[#allocation2 + $0xd68] sm:$0xff]
    %v9106 = vld [vmem:[#allocation2 + $0xd70] sm:$0xff]
    %v9107 = vld [vmem:[#allocation2 + $0xd78] sm:$0xff]
    %v9108 = vld [vmem:[#allocation2 + $0xd80] sm:$0xff]
    %v9109 = vld [vmem:[#allocation2 + $0xd88] sm:$0xff]
    %v9110 = vld [vmem:[#allocation2 + $0xd90] sm:$0xff]
    %v9111 = vld [vmem:[#allocation2 + $0xd98] sm:$0xff]
    %v9112 = vld [vmem:[#allocation2 + $0xda0] sm:$0xff]
    %v9113 = vld [vmem:[#allocation2 + $0xda8] sm:$0xff]
    %v9114 = vld [vmem:[#allocation2 + $0xdb0] sm:$0xff]
    %v9115 = vld [vmem:[#allocation2 + $0xdb8] sm:$0xff]
    %v9116 = vld [vmem:[#allocation2 + $0xdc0] sm:$0xff]
    %v9117 = vld [vmem:[#allocation2 + $0xdc8] sm:$0xff]
    %v9118 = vld [vmem:[#allocation2 + $0xdd0] sm:$0xff]
    %v9119 = vld [vmem:[#allocation2 + $0xdd8] sm:$0xff]
    %v9120 = vld [vmem:[#allocation2 + $0xde0] sm:$0xff]
    %v9121 = vld [vmem:[#allocation2 + $0xde8] sm:$0xff]
    %v9122 = vld [vmem:[#allocation2 + $0xdf0] sm:$0xff]
    %v9123 = vld [vmem:[#allocation2 + $0xdf8] sm:$0xff]
    %v9124 = vld [vmem:[#allocation2 + $0xe00] sm:$0xff]
    %v9125 = vld [vmem:[#allocation2 + $0xe08] sm:$0xff]
    %v9126 = vld [vmem:[#allocation2 + $0xe10] sm:$0xff]
    %v9127 = vld [vmem:[#allocation2 + $0xe18] sm:$0xff]
    %v9128 = vld [vmem:[#allocation2 + $0xe20] sm:$0xff]
    %v9129 = vld [vmem:[#allocation2 + $0xe28] sm:$0xff]
    %v9130 = vld [vmem:[#allocation2 + $0xe30] sm:$0xff]
    %v9131 = vld [vmem:[#allocation2 + $0xe38] sm:$0xff]
    %v9132 = vld [vmem:[#allocation2 + $0xe40] sm:$0xff]
    %v9133 = vld [vmem:[#allocation2 + $0xe48] sm:$0xff]
    %v9134 = vld [vmem:[#allocation2 + $0xe50] sm:$0xff]
    %v9135 = vld [vmem:[#allocation2 + $0xe58] sm:$0xff]
    %v9136 = vld [vmem:[#allocation2 + $0xe60] sm:$0xff]
    %v9137 = vld [vmem:[#allocation2 + $0xe68] sm:$0xff]
    %v9138 = vld [vmem:[#allocation2 + $0xe70] sm:$0xff]
    %v9139 = vld [vmem:[#allocation2 + $0xe78] sm:$0xff]
    %v9140 = vld [vmem:[#allocation2 + $0xe80] sm:$0xff]
    %v9141 = vld [vmem:[#allocation2 + $0xe88] sm:$0xff]
    %v9142 = vld [vmem:[#allocation2 + $0xe90] sm:$0xff]
    %v9143 = vld [vmem:[#allocation2 + $0xe98] sm:$0xff]
    %v9144 = vld [vmem:[#allocation2 + $0xea0] sm:$0xff]
    %v9145 = vld [vmem:[#allocation2 + $0xea8] sm:$0xff]
    %v9146 = vld [vmem:[#allocation2 + $0xeb0] sm:$0xff]
    %v9147 = vld [vmem:[#allocation2 + $0xeb8] sm:$0xff]
    %v9148 = vld [vmem:[#allocation2 + $0xec0] sm:$0xff]
    %v9149 = vld [vmem:[#allocation2 + $0xec8] sm:$0xff]
    %v9150 = vld [vmem:[#allocation2 + $0xed0] sm:$0xff]
    %v9151 = vld [vmem:[#allocation2 + $0xed8] sm:$0xff]
    %v9152 = vld [vmem:[#allocation2 + $0xee0] sm:$0xff]
    %v9153 = vld [vmem:[#allocation2 + $0xee8] sm:$0xff]
    %v9154 = vld [vmem:[#allocation2 + $0xef0] sm:$0xff]
    %v9155 = vld [vmem:[#allocation2 + $0xef8] sm:$0xff]
    %v9156 = vld [vmem:[#allocation2 + $0xf00] sm:$0xff]
    %v9157 = vld [vmem:[#allocation2 + $0xf08] sm:$0xff]
    %v9158 = vld [vmem:[#allocation2 + $0xf10] sm:$0xff]
    %v9159 = vld [vmem:[#allocation2 + $0xf18] sm:$0xff]
    %v9160 = vld [vmem:[#allocation2 + $0xf20] sm:$0xff]
    %v9161 = vld [vmem:[#allocation2 + $0xf28] sm:$0xff]
    %v9162 = vld [vmem:[#allocation2 + $0xf30] sm:$0xff]
    %v9163 = vld [vmem:[#allocation2 + $0xf38] sm:$0xff]
    %v9164 = vld [vmem:[#allocation2 + $0xf40] sm:$0xff]
    %v9165 = vld [vmem:[#allocation2 + $0xf48] sm:$0xff]
    %v9166 = vld [vmem:[#allocation2 + $0xf50] sm:$0xff]
    %v9167 = vld [vmem:[#allocation2 + $0xf58] sm:$0xff]
    %v9168 = vld [vmem:[#allocation2 + $0xf60] sm:$0xff]
    %v9169 = vld [vmem:[#allocation2 + $0xf68] sm:$0xff]
    %v9170 = vld [vmem:[#allocation2 + $0xf70] sm:$0xff]
    %v9171 = vld [vmem:[#allocation2 + $0xf78] sm:$0xff]
    %v9172 = vld [vmem:[#allocation2 + $0xf80] sm:$0xff]
    %v9173 = vld [vmem:[#allocation2 + $0xf88] sm:$0xff]
    %v9174 = vld [vmem:[#allocation2 + $0xf90] sm:$0xff]
    %v9175 = vld [vmem:[#allocation2 + $0xf98] sm:$0xff]
    %v9176 = vld [vmem:[#allocation2 + $0xfa0] sm:$0xff]
    %v9177 = vld [vmem:[#allocation2 + $0xfa8] sm:$0xff]
    %v9178 = vld [vmem:[#allocation2 + $0xfb0] sm:$0xff]
    %v9179 = vld [vmem:[#allocation2 + $0xfb8] sm:$0xff]
    %v9180 = vld [vmem:[#allocation2 + $0xfc0] sm:$0xff]
    %v9181 = vld [vmem:[#allocation2 + $0xfc8] sm:$0xff]
    %v9182 = vld [vmem:[#allocation2 + $0xfd0] sm:$0xff]
    %v9183 = vld [vmem:[#allocation2 + $0xfd8] sm:$0xff]
    %v9184 = vld [vmem:[#allocation2 + $0xfe0] sm:$0xff]
    %v9185 = vld [vmem:[#allocation2 + $0xfe8] sm:$0xff]
    %v9186 = vld [vmem:[#allocation2 + $0xff0] sm:$0xff]
    %v9187 = vld [vmem:[#allocation2 + $0xff8] sm:$0xff]
    %v9188 = vld [vmem:[#allocation2 + $0x1000] sm:$0xff]
    %v9189 = vld [vmem:[#allocation2 + $0x1008] sm:$0xff]
    %v9190 = vld [vmem:[#allocation2 + $0x1010] sm:$0xff]
    %v9191 = vld [vmem:[#allocation2 + $0x1018] sm:$0xff]
    %v9192 = vld [vmem:[#allocation2 + $0x1020] sm:$0xff]
    %v9193 = vld [vmem:[#allocation2 + $0x1028] sm:$0xff]
    %v9194 = vld [vmem:[#allocation2 + $0x1030] sm:$0xff]
    %v9195 = vld [vmem:[#allocation2 + $0x1038] sm:$0xff]
    %v9196 = vld [vmem:[#allocation2 + $0x1040] sm:$0xff]
    %v9197 = vld [vmem:[#allocation2 + $0x1048] sm:$0xff]
    %v9198 = vld [vmem:[#allocation2 + $0x1050] sm:$0xff]
    %v9199 = vld [vmem:[#allocation2 + $0x1058] sm:$0xff]
    %v9200 = vld [vmem:[#allocation2 + $0x1060] sm:$0xff]
    %v9201 = vld [vmem:[#allocation2 + $0x1068] sm:$0xff]
    %v9202 = vld [vmem:[#allocation2 + $0x1070] sm:$0xff]
    %v9203 = vld [vmem:[#allocation2 + $0x1078] sm:$0xff]
    %v9204 = vld [vmem:[#allocation2 + $0x1080] sm:$0xff]
    %v9205 = vld [vmem:[#allocation2 + $0x1088] sm:$0xff]
    %v9206 = vld [vmem:[#allocation2 + $0x1090] sm:$0xff]
    %v9207 = vld [vmem:[#allocation2 + $0x1098] sm:$0xff]
    %v9208 = vld [vmem:[#allocation2 + $0x10a0] sm:$0xff]
    %v9209 = vld [vmem:[#allocation2 + $0x10a8] sm:$0xff]
    %v9210 = vld [vmem:[#allocation2 + $0x10b0] sm:$0xff]
    %v9211 = vld [vmem:[#allocation2 + $0x10b8] sm:$0xff]
    %v9212 = vld [vmem:[#allocation2 + $0x10c0] sm:$0xff]
    %v9213 = vld [vmem:[#allocation2 + $0x10c8] sm:$0xff]
    %v9214 = vld [vmem:[#allocation2 + $0x10d0] sm:$0xff]
    %v9215 = vld [vmem:[#allocation2 + $0x10d8] sm:$0xff]
    %v9216 = vld [vmem:[#allocation2 + $0x10e0] sm:$0xff]
    %v9217 = vld [vmem:[#allocation2 + $0x10e8] sm:$0xff]
    %v9218 = vld [vmem:[#allocation2 + $0x10f0] sm:$0xff]
    %v9219 = vld [vmem:[#allocation2 + $0x10f8] sm:$0xff]
    %v9220 = vld [vmem:[#allocation2 + $0x1100] sm:$0xff]
    %v9221 = vld [vmem:[#allocation2 + $0x1108] sm:$0xff]
    %v9222 = vld [vmem:[#allocation2 + $0x1110] sm:$0xff]
    %v9223 = vld [vmem:[#allocation2 + $0x1118] sm:$0xff]
    %v9224 = vld [vmem:[#allocation2 + $0x1120] sm:$0xff]
    %v9225 = vld [vmem:[#allocation2 + $0x1128] sm:$0xff]
    %v9226 = vld [vmem:[#allocation2 + $0x1130] sm:$0xff]
    %v9227 = vld [vmem:[#allocation2 + $0x1138] sm:$0xff]
    %v9228 = vld [vmem:[#allocation2 + $0x1140] sm:$0xff]
    %v9229 = vld [vmem:[#allocation2 + $0x1148] sm:$0xff]
    %v9230 = vld [vmem:[#allocation2 + $0x1150] sm:$0xff]
    %v9231 = vld [vmem:[#allocation2 + $0x1158] sm:$0xff]
    %v9232 = vld [vmem:[#allocation2 + $0x1160] sm:$0xff]
    %v9233 = vld [vmem:[#allocation2 + $0x1168] sm:$0xff]
    %v9234 = vld [vmem:[#allocation2 + $0x1170] sm:$0xff]
    %v9235 = vld [vmem:[#allocation2 + $0x1178] sm:$0xff]
    %v9236 = vld [vmem:[#allocation2 + $0x1180] sm:$0xff]
    %v9237 = vld [vmem:[#allocation2 + $0x1188] sm:$0xff]
    %v9238 = vld [vmem:[#allocation2 + $0x1190] sm:$0xff]
    %v9239 = vld [vmem:[#allocation2 + $0x1198] sm:$0xff]
    %v9240 = vld [vmem:[#allocation2 + $0x11a0] sm:$0xff]
    %v9241 = vld [vmem:[#allocation2 + $0x11a8] sm:$0xff]
    %v9242 = vld [vmem:[#allocation2 + $0x11b0] sm:$0xff]
    %v9243 = vld [vmem:[#allocation2 + $0x11b8] sm:$0xff]
    %v9244 = vld [vmem:[#allocation2 + $0x11c0] sm:$0xff]
    %v9245 = vld [vmem:[#allocation2 + $0x11c8] sm:$0xff]
    %v9246 = vld [vmem:[#allocation2 + $0x11d0] sm:$0xff]
    %v9247 = vld [vmem:[#allocation2 + $0x11d8] sm:$0xff]
    %v9248 = vld [vmem:[#allocation2 + $0x11e0] sm:$0xff]
    %v9249 = vld [vmem:[#allocation2 + $0x11e8] sm:$0xff]
    %v9250 = vld [vmem:[#allocation2 + $0x11f0] sm:$0xff]
    %v9251 = vld [vmem:[#allocation2 + $0x11f8] sm:$0xff]
    %v9252 = vld [vmem:[%s12] sm:$0xff]
    %v9253 = vld [vmem:[%s12 + $0x8] sm:$0xf]
    %v9256 = vlaneseq
    %v9257 = vshrl.u32 %v9256, 7
    %v9258 = vsub.s32 0, %v9257
    %v9259 = vrot.slane %v9252, %v9258
    %v9260 = vlaneseq
    %v9261 = vshrl.u32 %v9260, 7
    %v9262 = vsub.s32 1, %v9261
    %v9263 = vrot.slane %v9252, %v9262
    %v9264 = vlaneseq
    %v9265 = vshrl.u32 %v9264, 7
    %v9266 = vsub.s32 2, %v9265
    %v9267 = vrot.slane %v9252, %v9266
    %v9268 = vlaneseq
    %v9269 = vshrl.u32 %v9268, 7
    %v9270 = vsub.s32 3, %v9269
    %v9271 = vrot.slane %v9252, %v9270
    %v9272 = vlaneseq
    %v9273 = vshrl.u32 %v9272, 7
    %v9274 = vsub.s32 4, %v9273
    %v9275 = vrot.slane %v9252, %v9274
    %v9276 = vlaneseq
    %v9277 = vshrl.u32 %v9276, 7
    %v9278 = vsub.s32 5, %v9277
    %v9279 = vrot.slane %v9252, %v9278
    %v9280 = vlaneseq
    %v9281 = vshrl.u32 %v9280, 7
    %v9282 = vsub.s32 6, %v9281
    %v9283 = vrot.slane %v9252, %v9282
    %v9284 = vlaneseq
    %v9285 = vshrl.u32 %v9284, 7
    %v9286 = vsub.s32 7, %v9285
    %v9287 = vrot.slane %v9252, %v9286
    %v9288 = vlaneseq
    %v9289 = vshrl.u32 %v9288, 7
    %v9290 = vsub.s32 0, %v9289
    %v9291 = vrot.slane %v9253, %v9290
    %v9292 = vlaneseq
    %v9293 = vshrl.u32 %v9292, 7
    %v9294 = vsub.s32 1, %v9293
    %v9295 = vrot.slane %v9253, %v9294
    %v9296 = vlaneseq
    %v9297 = vshrl.u32 %v9296, 7
    %v9298 = vsub.s32 2, %v9297
    %v9299 = vrot.slane %v9253, %v9298
    %v9300 = vlaneseq
    %v9301 = vshrl.u32 %v9300, 7
    %v9302 = vsub.s32 3, %v9301
    %v9303 = vrot.slane %v9253, %v9302
    %v9892 = vunpack.c.l.b16 %v8676
    %v9893 = vunpack.c.h.b16 %v8676
    %v9894 = vunpack.c.l.b16 %v8677
    %v9895 = vunpack.c.h.b16 %v8677
    %v9896 = vunpack.c.l.b16 %v8678
    %v9897 = vunpack.c.h.b16 %v8678
    %v9898 = vunpack.c.l.b16 %v8679
    %v9899 = vunpack.c.h.b16 %v8679
    %v9900 = vunpack.c.l.b16 %v8680
    %v9901 = vunpack.c.h.b16 %v8680
    %v9902 = vunpack.c.l.b16 %v8681
    %v9903 = vunpack.c.h.b16 %v8681
    %v9904 = vunpack.c.l.b16 %v8682
    %v9905 = vunpack.c.h.b16 %v8682
    %v9906 = vunpack.c.l.b16 %v8683
    %v9907 = vunpack.c.h.b16 %v8683
    %v9908 = vunpack.c.l.b16 %v8684
    %v9909 = vunpack.c.h.b16 %v8684
    %v9910 = vunpack.c.l.b16 %v8685
    %v9911 = vunpack.c.h.b16 %v8685
    %v9912 = vunpack.c.l.b16 %v8686
    %v9913 = vunpack.c.h.b16 %v8686
    %v9914 = vunpack.c.l.b16 %v8687
    %v9915 = vunpack.c.h.b16 %v8687
    %v9916 = vunpack.c.l.b16 %v8688
    %v9917 = vunpack.c.h.b16 %v8688
    %v9918 = vunpack.c.l.b16 %v8689
    %v9919 = vunpack.c.h.b16 %v8689
    %v9920 = vunpack.c.l.b16 %v8690
    %v9921 = vunpack.c.h.b16 %v8690
    %v9922 = vunpack.c.l.b16 %v8691
    %v9923 = vunpack.c.h.b16 %v8691
    %v9924 = vunpack.c.l.b16 %v8692
    %v9925 = vunpack.c.h.b16 %v8692
    %v9926 = vunpack.c.l.b16 %v8693
    %v9927 = vunpack.c.h.b16 %v8693
    %v9928 = vunpack.c.l.b16 %v8694
    %v9929 = vunpack.c.h.b16 %v8694
    %v9930 = vunpack.c.l.b16 %v8695
    %v9931 = vunpack.c.h.b16 %v8695
    %v9932 = vunpack.c.l.b16 %v8696
    %v9933 = vunpack.c.h.b16 %v8696
    %v9934 = vunpack.c.l.b16 %v8697
    %v9935 = vunpack.c.h.b16 %v8697
    %v9936 = vunpack.c.l.b16 %v8698
    %v9937 = vunpack.c.h.b16 %v8698
    %v9938 = vunpack.c.l.b16 %v8699
    %v9939 = vunpack.c.h.b16 %v8699
    %v9940 = vunpack.c.l.b16 %v8700
    %v9941 = vunpack.c.h.b16 %v8700
    %v9942 = vunpack.c.l.b16 %v8701
    %v9943 = vunpack.c.h.b16 %v8701
    %v9944 = vunpack.c.l.b16 %v8702
    %v9945 = vunpack.c.h.b16 %v8702
    %v9946 = vunpack.c.l.b16 %v8703
    %v9947 = vunpack.c.h.b16 %v8703
    %v9948 = vunpack.c.l.b16 %v8704
    %v9949 = vunpack.c.h.b16 %v8704
    %v9950 = vunpack.c.l.b16 %v8705
    %v9951 = vunpack.c.h.b16 %v8705
    %v9952 = vunpack.c.l.b16 %v8706
    %v9953 = vunpack.c.h.b16 %v8706
    %v9954 = vunpack.c.l.b16 %v8707
    %v9955 = vunpack.c.h.b16 %v8707
    %v9956 = vunpack.c.l.b16 %v8708
    %v9957 = vunpack.c.h.b16 %v8708
    %v9958 = vunpack.c.l.b16 %v8709
    %v9959 = vunpack.c.h.b16 %v8709
    %v9960 = vunpack.c.l.b16 %v8710
    %v9961 = vunpack.c.h.b16 %v8710
    %v9962 = vunpack.c.l.b16 %v8711
    %v9963 = vunpack.c.h.b16 %v8711
    %v9964 = vunpack.c.l.b16 %v8712
    %v9965 = vunpack.c.h.b16 %v8712
    %v9966 = vunpack.c.l.b16 %v8713
    %v9967 = vunpack.c.h.b16 %v8713
    %v9968 = vunpack.c.l.b16 %v8714
    %v9969 = vunpack.c.h.b16 %v8714
    %v9970 = vunpack.c.l.b16 %v8715
    %v9971 = vunpack.c.h.b16 %v8715
    %v9972 = vunpack.c.l.b16 %v8716
    %v9973 = vunpack.c.h.b16 %v8716
    %v9974 = vunpack.c.l.b16 %v8717
    %v9975 = vunpack.c.h.b16 %v8717
    %v9976 = vunpack.c.l.b16 %v8718
    %v9977 = vunpack.c.h.b16 %v8718
    %v9978 = vunpack.c.l.b16 %v8719
    %v9979 = vunpack.c.h.b16 %v8719
    %v9980 = vunpack.c.l.b16 %v8720
    %v9981 = vunpack.c.h.b16 %v8720
    %v9982 = vunpack.c.l.b16 %v8721
    %v9983 = vunpack.c.h.b16 %v8721
    %v9984 = vunpack.c.l.b16 %v8722
    %v9985 = vunpack.c.h.b16 %v8722
    %v9986 = vunpack.c.l.b16 %v8723
    %v9987 = vunpack.c.h.b16 %v8723
    %v9988 = vunpack.c.l.b16 %v8724
    %v9989 = vunpack.c.h.b16 %v8724
    %v9990 = vunpack.c.l.b16 %v8725
    %v9991 = vunpack.c.h.b16 %v8725
    %v9992 = vunpack.c.l.b16 %v8726
    %v9993 = vunpack.c.h.b16 %v8726
    %v9994 = vunpack.c.l.b16 %v8727
    %v9995 = vunpack.c.h.b16 %v8727
    %v9996 = vunpack.c.l.b16 %v8728
    %v9997 = vunpack.c.h.b16 %v8728
    %v9998 = vunpack.c.l.b16 %v8729
    %v9999 = vunpack.c.h.b16 %v8729
    %v10000 = vunpack.c.l.b16 %v8730
    %v10001 = vunpack.c.h.b16 %v8730
    %v10002 = vunpack.c.l.b16 %v8731
    %v10003 = vunpack.c.h.b16 %v8731
    %v10004 = vunpack.c.l.b16 %v8732
    %v10005 = vunpack.c.h.b16 %v8732
    %v10006 = vunpack.c.l.b16 %v8733
    %v10007 = vunpack.c.h.b16 %v8733
    %v10008 = vunpack.c.l.b16 %v8734
    %v10009 = vunpack.c.h.b16 %v8734
    %v10010 = vunpack.c.l.b16 %v8735
    %v10011 = vunpack.c.h.b16 %v8735
    %v10012 = vunpack.c.l.b16 %v8736
    %v10013 = vunpack.c.h.b16 %v8736
    %v10014 = vunpack.c.l.b16 %v8737
    %v10015 = vunpack.c.h.b16 %v8737
    %v10016 = vunpack.c.l.b16 %v8738
    %v10017 = vunpack.c.h.b16 %v8738
    %v10018 = vunpack.c.l.b16 %v8739
    %v10019 = vunpack.c.h.b16 %v8739
    %v10020 = vunpack.c.l.b16 %v8740
    %v10021 = vunpack.c.h.b16 %v8740
    %v10022 = vunpack.c.l.b16 %v8741
    %v10023 = vunpack.c.h.b16 %v8741
    %v10024 = vunpack.c.l.b16 %v8742
    %v10025 = vunpack.c.h.b16 %v8742
    %v10026 = vunpack.c.l.b16 %v8743
    %v10027 = vunpack.c.h.b16 %v8743
    %v10028 = vunpack.c.l.b16 %v8744
    %v10029 = vunpack.c.h.b16 %v8744
    %v10030 = vunpack.c.l.b16 %v8745
    %v10031 = vunpack.c.h.b16 %v8745
    %v10032 = vunpack.c.l.b16 %v8746
    %v10033 = vunpack.c.h.b16 %v8746
    %v10034 = vunpack.c.l.b16 %v8747
    %v10035 = vunpack.c.h.b16 %v8747
    %v10036 = vunpack.c.l.b16 %v8748
    %v10037 = vunpack.c.h.b16 %v8748
    %v10038 = vunpack.c.l.b16 %v8749
    %v10039 = vunpack.c.h.b16 %v8749
    %v10040 = vunpack.c.l.b16 %v8750
    %v10041 = vunpack.c.h.b16 %v8750
    %v10042 = vunpack.c.l.b16 %v8751
    %v10043 = vunpack.c.h.b16 %v8751
    %v10044 = vunpack.c.l.b16 %v8752
    %v10045 = vunpack.c.h.b16 %v8752
    %v10046 = vunpack.c.l.b16 %v8753
    %v10047 = vunpack.c.h.b16 %v8753
    %v10048 = vunpack.c.l.b16 %v8754
    %v10049 = vunpack.c.h.b16 %v8754
    %v10050 = vunpack.c.l.b16 %v8755
    %v10051 = vunpack.c.h.b16 %v8755
    %v10052 = vunpack.c.l.b16 %v8756
    %v10053 = vunpack.c.h.b16 %v8756
    %v10054 = vunpack.c.l.b16 %v8757
    %v10055 = vunpack.c.h.b16 %v8757
    %v10056 = vunpack.c.l.b16 %v8758
    %v10057 = vunpack.c.h.b16 %v8758
    %v10058 = vunpack.c.l.b16 %v8759
    %v10059 = vunpack.c.h.b16 %v8759
    %v10060 = vunpack.c.l.b16 %v8760
    %v10061 = vunpack.c.h.b16 %v8760
    %v10062 = vunpack.c.l.b16 %v8761
    %v10063 = vunpack.c.h.b16 %v8761
    %v10064 = vunpack.c.l.b16 %v8762
    %v10065 = vunpack.c.h.b16 %v8762
    %v10066 = vunpack.c.l.b16 %v8763
    %v10067 = vunpack.c.h.b16 %v8763
    %v10068 = vunpack.c.l.b16 %v8764
    %v10069 = vunpack.c.h.b16 %v8764
    %v10070 = vunpack.c.l.b16 %v8765
    %v10071 = vunpack.c.h.b16 %v8765
    %v10072 = vunpack.c.l.b16 %v8766
    %v10073 = vunpack.c.h.b16 %v8766
    %v10074 = vunpack.c.l.b16 %v8767
    %v10075 = vunpack.c.h.b16 %v8767
    %v10076 = vunpack.c.l.b16 %v8768
    %v10077 = vunpack.c.h.b16 %v8768
    %v10078 = vunpack.c.l.b16 %v8769
    %v10079 = vunpack.c.h.b16 %v8769
    %v10080 = vunpack.c.l.b16 %v8770
    %v10081 = vunpack.c.h.b16 %v8770
    %v10082 = vunpack.c.l.b16 %v8771
    %v10083 = vunpack.c.h.b16 %v8771
    %v10084 = vunpack.c.l.b16 %v8772
    %v10085 = vunpack.c.h.b16 %v8772
    %v10086 = vunpack.c.l.b16 %v8773
    %v10087 = vunpack.c.h.b16 %v8773
    %v10088 = vunpack.c.l.b16 %v8774
    %v10089 = vunpack.c.h.b16 %v8774
    %v10090 = vunpack.c.l.b16 %v8775
    %v10091 = vunpack.c.h.b16 %v8775
    %v10092 = vunpack.c.l.b16 %v8776
    %v10093 = vunpack.c.h.b16 %v8776
    %v10094 = vunpack.c.l.b16 %v8777
    %v10095 = vunpack.c.h.b16 %v8777
    %v10096 = vunpack.c.l.b16 %v8778
    %v10097 = vunpack.c.h.b16 %v8778
    %v10098 = vunpack.c.l.b16 %v8779
    %v10099 = vunpack.c.h.b16 %v8779
    %v10100 = vunpack.c.l.b16 %v8780
    %v10101 = vunpack.c.h.b16 %v8780
    %v10102 = vunpack.c.l.b16 %v8781
    %v10103 = vunpack.c.h.b16 %v8781
    %v10104 = vunpack.c.l.b16 %v8782
    %v10105 = vunpack.c.h.b16 %v8782
    %v10106 = vunpack.c.l.b16 %v8783
    %v10107 = vunpack.c.h.b16 %v8783
    %v10108 = vunpack.c.l.b16 %v8784
    %v10109 = vunpack.c.h.b16 %v8784
    %v10110 = vunpack.c.l.b16 %v8785
    %v10111 = vunpack.c.h.b16 %v8785
    %v10112 = vunpack.c.l.b16 %v8786
    %v10113 = vunpack.c.h.b16 %v8786
    %v10114 = vunpack.c.l.b16 %v8787
    %v10115 = vunpack.c.h.b16 %v8787
    %v10116 = vunpack.c.l.b16 %v8788
    %v10117 = vunpack.c.h.b16 %v8788
    %v10118 = vunpack.c.l.b16 %v8789
    %v10119 = vunpack.c.h.b16 %v8789
    %v10120 = vunpack.c.l.b16 %v8790
    %v10121 = vunpack.c.h.b16 %v8790
    %v10122 = vunpack.c.l.b16 %v8791
    %v10123 = vunpack.c.h.b16 %v8791
    %v10124 = vunpack.c.l.b16 %v8792
    %v10125 = vunpack.c.h.b16 %v8792
    %v10126 = vunpack.c.l.b16 %v8793
    %v10127 = vunpack.c.h.b16 %v8793
    %v10128 = vunpack.c.l.b16 %v8794
    %v10129 = vunpack.c.h.b16 %v8794
    %v10130 = vunpack.c.l.b16 %v8795
    %v10131 = vunpack.c.h.b16 %v8795
    %v10132 = vunpack.c.l.b16 %v8796
    %v10133 = vunpack.c.h.b16 %v8796
    %v10134 = vunpack.c.l.b16 %v8797
    %v10135 = vunpack.c.h.b16 %v8797
    %v10136 = vunpack.c.l.b16 %v8798
    %v10137 = vunpack.c.h.b16 %v8798
    %v10138 = vunpack.c.l.b16 %v8799
    %v10139 = vunpack.c.h.b16 %v8799
    %v10140 = vunpack.c.l.b16 %v8800
    %v10141 = vunpack.c.h.b16 %v8800
    %v10142 = vunpack.c.l.b16 %v8801
    %v10143 = vunpack.c.h.b16 %v8801
    %v10144 = vunpack.c.l.b16 %v8802
    %v10145 = vunpack.c.h.b16 %v8802
    %v10146 = vunpack.c.l.b16 %v8803
    %v10147 = vunpack.c.h.b16 %v8803
    %v10148 = vunpack.c.l.b16 %v8804
    %v10149 = vunpack.c.h.b16 %v8804
    %v10150 = vunpack.c.l.b16 %v8805
    %v10151 = vunpack.c.h.b16 %v8805
    %v10152 = vunpack.c.l.b16 %v8806
    %v10153 = vunpack.c.h.b16 %v8806
    %v10154 = vunpack.c.l.b16 %v8807
    %v10155 = vunpack.c.h.b16 %v8807
    %v10156 = vunpack.c.l.b16 %v8808
    %v10157 = vunpack.c.h.b16 %v8808
    %v10158 = vunpack.c.l.b16 %v8809
    %v10159 = vunpack.c.h.b16 %v8809
    %v10160 = vunpack.c.l.b16 %v8810
    %v10161 = vunpack.c.h.b16 %v8810
    %v10162 = vunpack.c.l.b16 %v8811
    %v10163 = vunpack.c.h.b16 %v8811
    %v10164 = vunpack.c.l.b16 %v8812
    %v10165 = vunpack.c.h.b16 %v8812
    %v10166 = vunpack.c.l.b16 %v8813
    %v10167 = vunpack.c.h.b16 %v8813
    %v10168 = vunpack.c.l.b16 %v8814
    %v10169 = vunpack.c.h.b16 %v8814
    %v10170 = vunpack.c.l.b16 %v8815
    %v10171 = vunpack.c.h.b16 %v8815
    %v10172 = vunpack.c.l.b16 %v8816
    %v10173 = vunpack.c.h.b16 %v8816
    %v10174 = vunpack.c.l.b16 %v8817
    %v10175 = vunpack.c.h.b16 %v8817
    %v10176 = vunpack.c.l.b16 %v8818
    %v10177 = vunpack.c.h.b16 %v8818
    %v10178 = vunpack.c.l.b16 %v8819
    %v10179 = vunpack.c.h.b16 %v8819
    %v10180 = vunpack.c.l.b16 %v8820
    %v10181 = vunpack.c.h.b16 %v8820
    %v10182 = vunpack.c.l.b16 %v8821
    %v10183 = vunpack.c.h.b16 %v8821
    %v10184 = vunpack.c.l.b16 %v8822
    %v10185 = vunpack.c.h.b16 %v8822
    %v10186 = vunpack.c.l.b16 %v8823
    %v10187 = vunpack.c.h.b16 %v8823
    %v10188 = vunpack.c.l.b16 %v8824
    %v10189 = vunpack.c.h.b16 %v8824
    %v10190 = vunpack.c.l.b16 %v8825
    %v10191 = vunpack.c.h.b16 %v8825
    %v10192 = vunpack.c.l.b16 %v8826
    %v10193 = vunpack.c.h.b16 %v8826
    %v10194 = vunpack.c.l.b16 %v8827
    %v10195 = vunpack.c.h.b16 %v8827
    %v10196 = vunpack.c.l.b16 %v8828
    %v10197 = vunpack.c.h.b16 %v8828
    %v10198 = vunpack.c.l.b16 %v8829
    %v10199 = vunpack.c.h.b16 %v8829
    %v10200 = vunpack.c.l.b16 %v8830
    %v10201 = vunpack.c.h.b16 %v8830
    %v10202 = vunpack.c.l.b16 %v8831
    %v10203 = vunpack.c.h.b16 %v8831
    %v10204 = vunpack.c.l.b16 %v8832
    %v10205 = vunpack.c.h.b16 %v8832
    %v10206 = vunpack.c.l.b16 %v8833
    %v10207 = vunpack.c.h.b16 %v8833
    %v10208 = vunpack.c.l.b16 %v8834
    %v10209 = vunpack.c.h.b16 %v8834
    %v10210 = vunpack.c.l.b16 %v8835
    %v10211 = vunpack.c.h.b16 %v8835
    %v10212 = vunpack.c.l.b16 %v8836
    %v10213 = vunpack.c.h.b16 %v8836
    %v10214 = vunpack.c.l.b16 %v8837
    %v10215 = vunpack.c.h.b16 %v8837
    %v10216 = vunpack.c.l.b16 %v8838
    %v10217 = vunpack.c.h.b16 %v8838
    %v10218 = vunpack.c.l.b16 %v8839
    %v10219 = vunpack.c.h.b16 %v8839
    %v10220 = vunpack.c.l.b16 %v8840
    %v10221 = vunpack.c.h.b16 %v8840
    %v10222 = vunpack.c.l.b16 %v8841
    %v10223 = vunpack.c.h.b16 %v8841
    %v10224 = vunpack.c.l.b16 %v8842
    %v10225 = vunpack.c.h.b16 %v8842
    %v10226 = vunpack.c.l.b16 %v8843
    %v10227 = vunpack.c.h.b16 %v8843
    %v10228 = vunpack.c.l.b16 %v8844
    %v10229 = vunpack.c.h.b16 %v8844
    %v10230 = vunpack.c.l.b16 %v8845
    %v10231 = vunpack.c.h.b16 %v8845
    %v10232 = vunpack.c.l.b16 %v8846
    %v10233 = vunpack.c.h.b16 %v8846
    %v10234 = vunpack.c.l.b16 %v8847
    %v10235 = vunpack.c.h.b16 %v8847
    %v10236 = vunpack.c.l.b16 %v8848
    %v10237 = vunpack.c.h.b16 %v8848
    %v10238 = vunpack.c.l.b16 %v8849
    %v10239 = vunpack.c.h.b16 %v8849
    %v10240 = vunpack.c.l.b16 %v8850
    %v10241 = vunpack.c.h.b16 %v8850
    %v10242 = vunpack.c.l.b16 %v8851
    %v10243 = vunpack.c.h.b16 %v8851
    %v10244 = vunpack.c.l.b16 %v8852
    %v10245 = vunpack.c.h.b16 %v8852
    %v10246 = vunpack.c.l.b16 %v8853
    %v10247 = vunpack.c.h.b16 %v8853
    %v10248 = vunpack.c.l.b16 %v8854
    %v10249 = vunpack.c.h.b16 %v8854
    %v10250 = vunpack.c.l.b16 %v8855
    %v10251 = vunpack.c.h.b16 %v8855
    %v10252 = vunpack.c.l.b16 %v8856
    %v10253 = vunpack.c.h.b16 %v8856
    %v10254 = vunpack.c.l.b16 %v8857
    %v10255 = vunpack.c.h.b16 %v8857
    %v10256 = vunpack.c.l.b16 %v8858
    %v10257 = vunpack.c.h.b16 %v8858
    %v10258 = vunpack.c.l.b16 %v8859
    %v10259 = vunpack.c.h.b16 %v8859
    %v10260 = vunpack.c.l.b16 %v8860
    %v10261 = vunpack.c.h.b16 %v8860
    %v10262 = vunpack.c.l.b16 %v8861
    %v10263 = vunpack.c.h.b16 %v8861
    %v10264 = vunpack.c.l.b16 %v8862
    %v10265 = vunpack.c.h.b16 %v8862
    %v10266 = vunpack.c.l.b16 %v8863
    %v10267 = vunpack.c.h.b16 %v8863
    %v10268 = vunpack.c.l.b16 %v8864
    %v10269 = vunpack.c.h.b16 %v8864
    %v10270 = vunpack.c.l.b16 %v8865
    %v10271 = vunpack.c.h.b16 %v8865
    %v10272 = vunpack.c.l.b16 %v8866
    %v10273 = vunpack.c.h.b16 %v8866
    %v10274 = vunpack.c.l.b16 %v8867
    %v10275 = vunpack.c.h.b16 %v8867
    %v10276 = vunpack.c.l.b16 %v8868
    %v10277 = vunpack.c.h.b16 %v8868
    %v10278 = vunpack.c.l.b16 %v8869
    %v10279 = vunpack.c.h.b16 %v8869
    %v10280 = vunpack.c.l.b16 %v8870
    %v10281 = vunpack.c.h.b16 %v8870
    %v10282 = vunpack.c.l.b16 %v8871
    %v10283 = vunpack.c.h.b16 %v8871
    %v10284 = vunpack.c.l.b16 %v8872
    %v10285 = vunpack.c.h.b16 %v8872
    %v10286 = vunpack.c.l.b16 %v8873
    %v10287 = vunpack.c.h.b16 %v8873
    %v10288 = vunpack.c.l.b16 %v8874
    %v10289 = vunpack.c.h.b16 %v8874
    %v10290 = vunpack.c.l.b16 %v8875
    %v10291 = vunpack.c.h.b16 %v8875
    %v10292 = vunpack.c.l.b16 %v8876
    %v10293 = vunpack.c.h.b16 %v8876
    %v10294 = vunpack.c.l.b16 %v8877
    %v10295 = vunpack.c.h.b16 %v8877
    %v10296 = vunpack.c.l.b16 %v8878
    %v10297 = vunpack.c.h.b16 %v8878
    %v10298 = vunpack.c.l.b16 %v8879
    %v10299 = vunpack.c.h.b16 %v8879
    %v10300 = vunpack.c.l.b16 %v8880
    %v10301 = vunpack.c.h.b16 %v8880
    %v10302 = vunpack.c.l.b16 %v8881
    %v10303 = vunpack.c.h.b16 %v8881
    %v10304 = vunpack.c.l.b16 %v8882
    %v10305 = vunpack.c.h.b16 %v8882
    %v10306 = vunpack.c.l.b16 %v8883
    %v10307 = vunpack.c.h.b16 %v8883
    %v10308 = vunpack.c.l.b16 %v8884
    %v10309 = vunpack.c.h.b16 %v8884
    %v10310 = vunpack.c.l.b16 %v8885
    %v10311 = vunpack.c.h.b16 %v8885
    %v10312 = vunpack.c.l.b16 %v8886
    %v10313 = vunpack.c.h.b16 %v8886
    %v10314 = vunpack.c.l.b16 %v8887
    %v10315 = vunpack.c.h.b16 %v8887
    %v10316 = vunpack.c.l.b16 %v8888
    %v10317 = vunpack.c.h.b16 %v8888
    %v10318 = vunpack.c.l.b16 %v8889
    %v10319 = vunpack.c.h.b16 %v8889
    %v10320 = vunpack.c.l.b16 %v8890
    %v10321 = vunpack.c.h.b16 %v8890
    %v10322 = vunpack.c.l.b16 %v8891
    %v10323 = vunpack.c.h.b16 %v8891
    %v10324 = vunpack.c.l.b16 %v8892
    %v10325 = vunpack.c.h.b16 %v8892
    %v10326 = vunpack.c.l.b16 %v8893
    %v10327 = vunpack.c.h.b16 %v8893
    %v10328 = vunpack.c.l.b16 %v8894
    %v10329 = vunpack.c.h.b16 %v8894
    %v10330 = vunpack.c.l.b16 %v8895
    %v10331 = vunpack.c.h.b16 %v8895
    %v10332 = vunpack.c.l.b16 %v8896
    %v10333 = vunpack.c.h.b16 %v8896
    %v10334 = vunpack.c.l.b16 %v8897
    %v10335 = vunpack.c.h.b16 %v8897
    %v10336 = vunpack.c.l.b16 %v8898
    %v10337 = vunpack.c.h.b16 %v8898
    %v10338 = vunpack.c.l.b16 %v8899
    %v10339 = vunpack.c.h.b16 %v8899
    %v10340 = vunpack.c.l.b16 %v8900
    %v10341 = vunpack.c.h.b16 %v8900
    %v10342 = vunpack.c.l.b16 %v8901
    %v10343 = vunpack.c.h.b16 %v8901
    %v10344 = vunpack.c.l.b16 %v8902
    %v10345 = vunpack.c.h.b16 %v8902
    %v10346 = vunpack.c.l.b16 %v8903
    %v10347 = vunpack.c.h.b16 %v8903
    %v10348 = vunpack.c.l.b16 %v8904
    %v10349 = vunpack.c.h.b16 %v8904
    %v10350 = vunpack.c.l.b16 %v8905
    %v10351 = vunpack.c.h.b16 %v8905
    %v10352 = vunpack.c.l.b16 %v8906
    %v10353 = vunpack.c.h.b16 %v8906
    %v10354 = vunpack.c.l.b16 %v8907
    %v10355 = vunpack.c.h.b16 %v8907
    %v10356 = vunpack.c.l.b16 %v8908
    %v10357 = vunpack.c.h.b16 %v8908
    %v10358 = vunpack.c.l.b16 %v8909
    %v10359 = vunpack.c.h.b16 %v8909
    %v10360 = vunpack.c.l.b16 %v8910
    %v10361 = vunpack.c.h.b16 %v8910
    %v10362 = vunpack.c.l.b16 %v8911
    %v10363 = vunpack.c.h.b16 %v8911
    %v10364 = vunpack.c.l.b16 %v8912
    %v10365 = vunpack.c.h.b16 %v8912
    %v10366 = vunpack.c.l.b16 %v8913
    %v10367 = vunpack.c.h.b16 %v8913
    %v10368 = vunpack.c.l.b16 %v8914
    %v10369 = vunpack.c.h.b16 %v8914
    %v10370 = vunpack.c.l.b16 %v8915
    %v10371 = vunpack.c.h.b16 %v8915
    %v10372 = vunpack.c.l.b16 %v8916
    %v10373 = vunpack.c.h.b16 %v8916
    %v10374 = vunpack.c.l.b16 %v8917
    %v10375 = vunpack.c.h.b16 %v8917
    %v10376 = vunpack.c.l.b16 %v8918
    %v10377 = vunpack.c.h.b16 %v8918
    %v10378 = vunpack.c.l.b16 %v8919
    %v10379 = vunpack.c.h.b16 %v8919
    %v10380 = vunpack.c.l.b16 %v8920
    %v10381 = vunpack.c.h.b16 %v8920
    %v10382 = vunpack.c.l.b16 %v8921
    %v10383 = vunpack.c.h.b16 %v8921
    %v10384 = vunpack.c.l.b16 %v8922
    %v10385 = vunpack.c.h.b16 %v8922
    %v10386 = vunpack.c.l.b16 %v8923
    %v10387 = vunpack.c.h.b16 %v8923
    %v10388 = vunpack.c.l.b16 %v8924
    %v10389 = vunpack.c.h.b16 %v8924
    %v10390 = vunpack.c.l.b16 %v8925
    %v10391 = vunpack.c.h.b16 %v8925
    %v10392 = vunpack.c.l.b16 %v8926
    %v10393 = vunpack.c.h.b16 %v8926
    %v10394 = vunpack.c.l.b16 %v8927
    %v10395 = vunpack.c.h.b16 %v8927
    %v10396 = vunpack.c.l.b16 %v8928
    %v10397 = vunpack.c.h.b16 %v8928
    %v10398 = vunpack.c.l.b16 %v8929
    %v10399 = vunpack.c.h.b16 %v8929
    %v10400 = vunpack.c.l.b16 %v8930
    %v10401 = vunpack.c.h.b16 %v8930
    %v10402 = vunpack.c.l.b16 %v8931
    %v10403 = vunpack.c.h.b16 %v8931
    %v10404 = vunpack.c.l.b16 %v8932
    %v10405 = vunpack.c.h.b16 %v8932
    %v10406 = vunpack.c.l.b16 %v8933
    %v10407 = vunpack.c.h.b16 %v8933
    %v10408 = vunpack.c.l.b16 %v8934
    %v10409 = vunpack.c.h.b16 %v8934
    %v10410 = vunpack.c.l.b16 %v8935
    %v10411 = vunpack.c.h.b16 %v8935
    %v10412 = vunpack.c.l.b16 %v8936
    %v10413 = vunpack.c.h.b16 %v8936
    %v10414 = vunpack.c.l.b16 %v8937
    %v10415 = vunpack.c.h.b16 %v8937
    %v10416 = vunpack.c.l.b16 %v8938
    %v10417 = vunpack.c.h.b16 %v8938
    %v10418 = vunpack.c.l.b16 %v8939
    %v10419 = vunpack.c.h.b16 %v8939
    %v10420 = vunpack.c.l.b16 %v8940
    %v10421 = vunpack.c.h.b16 %v8940
    %v10422 = vunpack.c.l.b16 %v8941
    %v10423 = vunpack.c.h.b16 %v8941
    %v10424 = vunpack.c.l.b16 %v8942
    %v10425 = vunpack.c.h.b16 %v8942
    %v10426 = vunpack.c.l.b16 %v8943
    %v10427 = vunpack.c.h.b16 %v8943
    %v10428 = vunpack.c.l.b16 %v8944
    %v10429 = vunpack.c.h.b16 %v8944
    %v10430 = vunpack.c.l.b16 %v8945
    %v10431 = vunpack.c.h.b16 %v8945
    %v10432 = vunpack.c.l.b16 %v8946
    %v10433 = vunpack.c.h.b16 %v8946
    %v10434 = vunpack.c.l.b16 %v8947
    %v10435 = vunpack.c.h.b16 %v8947
    %v10436 = vunpack.c.l.b16 %v8948
    %v10437 = vunpack.c.h.b16 %v8948
    %v10438 = vunpack.c.l.b16 %v8949
    %v10439 = vunpack.c.h.b16 %v8949
    %v10440 = vunpack.c.l.b16 %v8950
    %v10441 = vunpack.c.h.b16 %v8950
    %v10442 = vunpack.c.l.b16 %v8951
    %v10443 = vunpack.c.h.b16 %v8951
    %v10444 = vunpack.c.l.b16 %v8952
    %v10445 = vunpack.c.h.b16 %v8952
    %v10446 = vunpack.c.l.b16 %v8953
    %v10447 = vunpack.c.h.b16 %v8953
    %v10448 = vunpack.c.l.b16 %v8954
    %v10449 = vunpack.c.h.b16 %v8954
    %v10450 = vunpack.c.l.b16 %v8955
    %v10451 = vunpack.c.h.b16 %v8955
    %v10452 = vunpack.c.l.b16 %v8956
    %v10453 = vunpack.c.h.b16 %v8956
    %v10454 = vunpack.c.l.b16 %v8957
    %v10455 = vunpack.c.h.b16 %v8957
    %v10456 = vunpack.c.l.b16 %v8958
    %v10457 = vunpack.c.h.b16 %v8958
    %v10458 = vunpack.c.l.b16 %v8959
    %v10459 = vunpack.c.h.b16 %v8959
    %v10460 = vunpack.c.l.b16 %v8960
    %v10461 = vunpack.c.h.b16 %v8960
    %v10462 = vunpack.c.l.b16 %v8961
    %v10463 = vunpack.c.h.b16 %v8961
    %v10464 = vunpack.c.l.b16 %v8962
    %v10465 = vunpack.c.h.b16 %v8962
    %v10466 = vunpack.c.l.b16 %v8963
    %v10467 = vunpack.c.h.b16 %v8963
    %v10468 = vunpack.c.l.b16 %v8964
    %v10469 = vunpack.c.h.b16 %v8964
    %v10470 = vunpack.c.l.b16 %v8965
    %v10471 = vunpack.c.h.b16 %v8965
    %v10472 = vunpack.c.l.b16 %v8966
    %v10473 = vunpack.c.h.b16 %v8966
    %v10474 = vunpack.c.l.b16 %v8967
    %v10475 = vunpack.c.h.b16 %v8967
    %v10476 = vunpack.c.l.b16 %v8968
    %v10477 = vunpack.c.h.b16 %v8968
    %v10478 = vunpack.c.l.b16 %v8969
    %v10479 = vunpack.c.h.b16 %v8969
    %v10480 = vunpack.c.l.b16 %v8970
    %v10481 = vunpack.c.h.b16 %v8970
    %v10482 = vunpack.c.l.b16 %v8971
    %v10483 = vunpack.c.h.b16 %v8971
    %v10484 = vunpack.c.l.b16 %v8972
    %v10485 = vunpack.c.h.b16 %v8972
    %v10486 = vunpack.c.l.b16 %v8973
    %v10487 = vunpack.c.h.b16 %v8973
    %v10488 = vunpack.c.l.b16 %v8974
    %v10489 = vunpack.c.h.b16 %v8974
    %v10490 = vunpack.c.l.b16 %v8975
    %v10491 = vunpack.c.h.b16 %v8975
    %v10492 = vunpack.c.l.b16 %v8976
    %v10493 = vunpack.c.h.b16 %v8976
    %v10494 = vunpack.c.l.b16 %v8977
    %v10495 = vunpack.c.h.b16 %v8977
    %v10496 = vunpack.c.l.b16 %v8978
    %v10497 = vunpack.c.h.b16 %v8978
    %v10498 = vunpack.c.l.b16 %v8979
    %v10499 = vunpack.c.h.b16 %v8979
    %v10500 = vunpack.c.l.b16 %v8980
    %v10501 = vunpack.c.h.b16 %v8980
    %v10502 = vunpack.c.l.b16 %v8981
    %v10503 = vunpack.c.h.b16 %v8981
    %v10504 = vunpack.c.l.b16 %v8982
    %v10505 = vunpack.c.h.b16 %v8982
    %v10506 = vunpack.c.l.b16 %v8983
    %v10507 = vunpack.c.h.b16 %v8983
    %v10508 = vunpack.c.l.b16 %v8984
    %v10509 = vunpack.c.h.b16 %v8984
    %v10510 = vunpack.c.l.b16 %v8985
    %v10511 = vunpack.c.h.b16 %v8985
    %v10512 = vunpack.c.l.b16 %v8986
    %v10513 = vunpack.c.h.b16 %v8986
    %v10514 = vunpack.c.l.b16 %v8987
    %v10515 = vunpack.c.h.b16 %v8987
    %v10516 = vunpack.c.l.b16 %v8988
    %v10517 = vunpack.c.h.b16 %v8988
    %v10518 = vunpack.c.l.b16 %v8989
    %v10519 = vunpack.c.h.b16 %v8989
    %v10520 = vunpack.c.l.b16 %v8990
    %v10521 = vunpack.c.h.b16 %v8990
    %v10522 = vunpack.c.l.b16 %v8991
    %v10523 = vunpack.c.h.b16 %v8991
    %v10524 = vunpack.c.l.b16 %v8992
    %v10525 = vunpack.c.h.b16 %v8992
    %v10526 = vunpack.c.l.b16 %v8993
    %v10527 = vunpack.c.h.b16 %v8993
    %v10528 = vunpack.c.l.b16 %v8994
    %v10529 = vunpack.c.h.b16 %v8994
    %v10530 = vunpack.c.l.b16 %v8995
    %v10531 = vunpack.c.h.b16 %v8995
    %v10532 = vunpack.c.l.b16 %v8996
    %v10533 = vunpack.c.h.b16 %v8996
    %v10534 = vunpack.c.l.b16 %v8997
    %v10535 = vunpack.c.h.b16 %v8997
    %v10536 = vunpack.c.l.b16 %v8998
    %v10537 = vunpack.c.h.b16 %v8998
    %v10538 = vunpack.c.l.b16 %v8999
    %v10539 = vunpack.c.h.b16 %v8999
    %v10540 = vunpack.c.l.b16 %v9000
    %v10541 = vunpack.c.h.b16 %v9000
    %v10542 = vunpack.c.l.b16 %v9001
    %v10543 = vunpack.c.h.b16 %v9001
    %v10544 = vunpack.c.l.b16 %v9002
    %v10545 = vunpack.c.h.b16 %v9002
    %v10546 = vunpack.c.l.b16 %v9003
    %v10547 = vunpack.c.h.b16 %v9003
    %v10548 = vunpack.c.l.b16 %v9004
    %v10549 = vunpack.c.h.b16 %v9004
    %v10550 = vunpack.c.l.b16 %v9005
    %v10551 = vunpack.c.h.b16 %v9005
    %v10552 = vunpack.c.l.b16 %v9006
    %v10553 = vunpack.c.h.b16 %v9006
    %v10554 = vunpack.c.l.b16 %v9007
    %v10555 = vunpack.c.h.b16 %v9007
    %v10556 = vunpack.c.l.b16 %v9008
    %v10557 = vunpack.c.h.b16 %v9008
    %v10558 = vunpack.c.l.b16 %v9009
    %v10559 = vunpack.c.h.b16 %v9009
    %v10560 = vunpack.c.l.b16 %v9010
    %v10561 = vunpack.c.h.b16 %v9010
    %v10562 = vunpack.c.l.b16 %v9011
    %v10563 = vunpack.c.h.b16 %v9011
    %v10564 = vunpack.c.l.b16 %v9012
    %v10565 = vunpack.c.h.b16 %v9012
    %v10566 = vunpack.c.l.b16 %v9013
    %v10567 = vunpack.c.h.b16 %v9013
    %v10568 = vunpack.c.l.b16 %v9014
    %v10569 = vunpack.c.h.b16 %v9014
    %v10570 = vunpack.c.l.b16 %v9015
    %v10571 = vunpack.c.h.b16 %v9015
    %v10572 = vunpack.c.l.b16 %v9016
    %v10573 = vunpack.c.h.b16 %v9016
    %v10574 = vunpack.c.l.b16 %v9017
    %v10575 = vunpack.c.h.b16 %v9017
    %v10576 = vunpack.c.l.b16 %v9018
    %v10577 = vunpack.c.h.b16 %v9018
    %v10578 = vunpack.c.l.b16 %v9019
    %v10579 = vunpack.c.h.b16 %v9019
    %v10580 = vunpack.c.l.b16 %v9020
    %v10581 = vunpack.c.h.b16 %v9020
    %v10582 = vunpack.c.l.b16 %v9021
    %v10583 = vunpack.c.h.b16 %v9021
    %v10584 = vunpack.c.l.b16 %v9022
    %v10585 = vunpack.c.h.b16 %v9022
    %v10586 = vunpack.c.l.b16 %v9023
    %v10587 = vunpack.c.h.b16 %v9023
    %v10588 = vunpack.c.l.b16 %v9024
    %v10589 = vunpack.c.h.b16 %v9024
    %v10590 = vunpack.c.l.b16 %v9025
    %v10591 = vunpack.c.h.b16 %v9025
    %v10592 = vunpack.c.l.b16 %v9026
    %v10593 = vunpack.c.h.b16 %v9026
    %v10594 = vunpack.c.l.b16 %v9027
    %v10595 = vunpack.c.h.b16 %v9027
    %v10596 = vunpack.c.l.b16 %v9028
    %v10597 = vunpack.c.h.b16 %v9028
    %v10598 = vunpack.c.l.b16 %v9029
    %v10599 = vunpack.c.h.b16 %v9029
    %v10600 = vunpack.c.l.b16 %v9030
    %v10601 = vunpack.c.h.b16 %v9030
    %v10602 = vunpack.c.l.b16 %v9031
    %v10603 = vunpack.c.h.b16 %v9031
    %v10604 = vunpack.c.l.b16 %v9032
    %v10605 = vunpack.c.h.b16 %v9032
    %v10606 = vunpack.c.l.b16 %v9033
    %v10607 = vunpack.c.h.b16 %v9033
    %v10608 = vunpack.c.l.b16 %v9034
    %v10609 = vunpack.c.h.b16 %v9034
    %v10610 = vunpack.c.l.b16 %v9035
    %v10611 = vunpack.c.h.b16 %v9035
    %v10612 = vunpack.c.l.b16 %v9036
    %v10613 = vunpack.c.h.b16 %v9036
    %v10614 = vunpack.c.l.b16 %v9037
    %v10615 = vunpack.c.h.b16 %v9037
    %v10616 = vunpack.c.l.b16 %v9038
    %v10617 = vunpack.c.h.b16 %v9038
    %v10618 = vunpack.c.l.b16 %v9039
    %v10619 = vunpack.c.h.b16 %v9039
    %v10620 = vunpack.c.l.b16 %v9040
    %v10621 = vunpack.c.h.b16 %v9040
    %v10622 = vunpack.c.l.b16 %v9041
    %v10623 = vunpack.c.h.b16 %v9041
    %v10624 = vunpack.c.l.b16 %v9042
    %v10625 = vunpack.c.h.b16 %v9042
    %v10626 = vunpack.c.l.b16 %v9043
    %v10627 = vunpack.c.h.b16 %v9043
    %v10628 = vunpack.c.l.b16 %v9044
    %v10629 = vunpack.c.h.b16 %v9044
    %v10630 = vunpack.c.l.b16 %v9045
    %v10631 = vunpack.c.h.b16 %v9045
    %v10632 = vunpack.c.l.b16 %v9046
    %v10633 = vunpack.c.h.b16 %v9046
    %v10634 = vunpack.c.l.b16 %v9047
    %v10635 = vunpack.c.h.b16 %v9047
    %v10636 = vunpack.c.l.b16 %v9048
    %v10637 = vunpack.c.h.b16 %v9048
    %v10638 = vunpack.c.l.b16 %v9049
    %v10639 = vunpack.c.h.b16 %v9049
    %v10640 = vunpack.c.l.b16 %v9050
    %v10641 = vunpack.c.h.b16 %v9050
    %v10642 = vunpack.c.l.b16 %v9051
    %v10643 = vunpack.c.h.b16 %v9051
    %v10644 = vunpack.c.l.b16 %v9052
    %v10645 = vunpack.c.h.b16 %v9052
    %v10646 = vunpack.c.l.b16 %v9053
    %v10647 = vunpack.c.h.b16 %v9053
    %v10648 = vunpack.c.l.b16 %v9054
    %v10649 = vunpack.c.h.b16 %v9054
    %v10650 = vunpack.c.l.b16 %v9055
    %v10651 = vunpack.c.h.b16 %v9055
    %v10652 = vunpack.c.l.b16 %v9056
    %v10653 = vunpack.c.h.b16 %v9056
    %v10654 = vunpack.c.l.b16 %v9057
    %v10655 = vunpack.c.h.b16 %v9057
    %v10656 = vunpack.c.l.b16 %v9058
    %v10657 = vunpack.c.h.b16 %v9058
    %v10658 = vunpack.c.l.b16 %v9059
    %v10659 = vunpack.c.h.b16 %v9059
    %v10660 = vunpack.c.l.b16 %v9060
    %v10661 = vunpack.c.h.b16 %v9060
    %v10662 = vunpack.c.l.b16 %v9061
    %v10663 = vunpack.c.h.b16 %v9061
    %v10664 = vunpack.c.l.b16 %v9062
    %v10665 = vunpack.c.h.b16 %v9062
    %v10666 = vunpack.c.l.b16 %v9063
    %v10667 = vunpack.c.h.b16 %v9063
    %v10668 = vunpack.c.l.b16 %v9064
    %v10669 = vunpack.c.h.b16 %v9064
    %v10670 = vunpack.c.l.b16 %v9065
    %v10671 = vunpack.c.h.b16 %v9065
    %v10672 = vunpack.c.l.b16 %v9066
    %v10673 = vunpack.c.h.b16 %v9066
    %v10674 = vunpack.c.l.b16 %v9067
    %v10675 = vunpack.c.h.b16 %v9067
    %v10676 = vunpack.c.l.b16 %v9068
    %v10677 = vunpack.c.h.b16 %v9068
    %v10678 = vunpack.c.l.b16 %v9069
    %v10679 = vunpack.c.h.b16 %v9069
    %v10680 = vunpack.c.l.b16 %v9070
    %v10681 = vunpack.c.h.b16 %v9070
    %v10682 = vunpack.c.l.b16 %v9071
    %v10683 = vunpack.c.h.b16 %v9071
    %v10684 = vunpack.c.l.b16 %v9072
    %v10685 = vunpack.c.h.b16 %v9072
    %v10686 = vunpack.c.l.b16 %v9073
    %v10687 = vunpack.c.h.b16 %v9073
    %v10688 = vunpack.c.l.b16 %v9074
    %v10689 = vunpack.c.h.b16 %v9074
    %v10690 = vunpack.c.l.b16 %v9075
    %v10691 = vunpack.c.h.b16 %v9075
    %v10692 = vunpack.c.l.b16 %v9076
    %v10693 = vunpack.c.h.b16 %v9076
    %v10694 = vunpack.c.l.b16 %v9077
    %v10695 = vunpack.c.h.b16 %v9077
    %v10696 = vunpack.c.l.b16 %v9078
    %v10697 = vunpack.c.h.b16 %v9078
    %v10698 = vunpack.c.l.b16 %v9079
    %v10699 = vunpack.c.h.b16 %v9079
    %v10700 = vunpack.c.l.b16 %v9080
    %v10701 = vunpack.c.h.b16 %v9080
    %v10702 = vunpack.c.l.b16 %v9081
    %v10703 = vunpack.c.h.b16 %v9081
    %v10704 = vunpack.c.l.b16 %v9082
    %v10705 = vunpack.c.h.b16 %v9082
    %v10706 = vunpack.c.l.b16 %v9083
    %v10707 = vunpack.c.h.b16 %v9083
    %v10708 = vunpack.c.l.b16 %v9084
    %v10709 = vunpack.c.h.b16 %v9084
    %v10710 = vunpack.c.l.b16 %v9085
    %v10711 = vunpack.c.h.b16 %v9085
    %v10712 = vunpack.c.l.b16 %v9086
    %v10713 = vunpack.c.h.b16 %v9086
    %v10714 = vunpack.c.l.b16 %v9087
    %v10715 = vunpack.c.h.b16 %v9087
    %v10716 = vunpack.c.l.b16 %v9088
    %v10717 = vunpack.c.h.b16 %v9088
    %v10718 = vunpack.c.l.b16 %v9089
    %v10719 = vunpack.c.h.b16 %v9089
    %v10720 = vunpack.c.l.b16 %v9090
    %v10721 = vunpack.c.h.b16 %v9090
    %v10722 = vunpack.c.l.b16 %v9091
    %v10723 = vunpack.c.h.b16 %v9091
    %v10724 = vunpack.c.l.b16 %v9092
    %v10725 = vunpack.c.h.b16 %v9092
    %v10726 = vunpack.c.l.b16 %v9093
    %v10727 = vunpack.c.h.b16 %v9093
    %v10728 = vunpack.c.l.b16 %v9094
    %v10729 = vunpack.c.h.b16 %v9094
    %v10730 = vunpack.c.l.b16 %v9095
    %v10731 = vunpack.c.h.b16 %v9095
    %v10732 = vunpack.c.l.b16 %v9096
    %v10733 = vunpack.c.h.b16 %v9096
    %v10734 = vunpack.c.l.b16 %v9097
    %v10735 = vunpack.c.h.b16 %v9097
    %v10736 = vunpack.c.l.b16 %v9098
    %v10737 = vunpack.c.h.b16 %v9098
    %v10738 = vunpack.c.l.b16 %v9099
    %v10739 = vunpack.c.h.b16 %v9099
    %v10740 = vunpack.c.l.b16 %v9100
    %v10741 = vunpack.c.h.b16 %v9100
    %v10742 = vunpack.c.l.b16 %v9101
    %v10743 = vunpack.c.h.b16 %v9101
    %v10744 = vunpack.c.l.b16 %v9102
    %v10745 = vunpack.c.h.b16 %v9102
    %v10746 = vunpack.c.l.b16 %v9103
    %v10747 = vunpack.c.h.b16 %v9103
    %v10748 = vunpack.c.l.b16 %v9104
    %v10749 = vunpack.c.h.b16 %v9104
    %v10750 = vunpack.c.l.b16 %v9105
    %v10751 = vunpack.c.h.b16 %v9105
    %v10752 = vunpack.c.l.b16 %v9106
    %v10753 = vunpack.c.h.b16 %v9106
    %v10754 = vunpack.c.l.b16 %v9107
    %v10755 = vunpack.c.h.b16 %v9107
    %v10756 = vunpack.c.l.b16 %v9108
    %v10757 = vunpack.c.h.b16 %v9108
    %v10758 = vunpack.c.l.b16 %v9109
    %v10759 = vunpack.c.h.b16 %v9109
    %v10760 = vunpack.c.l.b16 %v9110
    %v10761 = vunpack.c.h.b16 %v9110
    %v10762 = vunpack.c.l.b16 %v9111
    %v10763 = vunpack.c.h.b16 %v9111
    %v10764 = vunpack.c.l.b16 %v9112
    %v10765 = vunpack.c.h.b16 %v9112
    %v10766 = vunpack.c.l.b16 %v9113
    %v10767 = vunpack.c.h.b16 %v9113
    %v10768 = vunpack.c.l.b16 %v9114
    %v10769 = vunpack.c.h.b16 %v9114
    %v10770 = vunpack.c.l.b16 %v9115
    %v10771 = vunpack.c.h.b16 %v9115
    %v10772 = vunpack.c.l.b16 %v9116
    %v10773 = vunpack.c.h.b16 %v9116
    %v10774 = vunpack.c.l.b16 %v9117
    %v10775 = vunpack.c.h.b16 %v9117
    %v10776 = vunpack.c.l.b16 %v9118
    %v10777 = vunpack.c.h.b16 %v9118
    %v10778 = vunpack.c.l.b16 %v9119
    %v10779 = vunpack.c.h.b16 %v9119
    %v10780 = vunpack.c.l.b16 %v9120
    %v10781 = vunpack.c.h.b16 %v9120
    %v10782 = vunpack.c.l.b16 %v9121
    %v10783 = vunpack.c.h.b16 %v9121
    %v10784 = vunpack.c.l.b16 %v9122
    %v10785 = vunpack.c.h.b16 %v9122
    %v10786 = vunpack.c.l.b16 %v9123
    %v10787 = vunpack.c.h.b16 %v9123
    %v10788 = vunpack.c.l.b16 %v9124
    %v10789 = vunpack.c.h.b16 %v9124
    %v10790 = vunpack.c.l.b16 %v9125
    %v10791 = vunpack.c.h.b16 %v9125
    %v10792 = vunpack.c.l.b16 %v9126
    %v10793 = vunpack.c.h.b16 %v9126
    %v10794 = vunpack.c.l.b16 %v9127
    %v10795 = vunpack.c.h.b16 %v9127
    %v10796 = vunpack.c.l.b16 %v9128
    %v10797 = vunpack.c.h.b16 %v9128
    %v10798 = vunpack.c.l.b16 %v9129
    %v10799 = vunpack.c.h.b16 %v9129
    %v10800 = vunpack.c.l.b16 %v9130
    %v10801 = vunpack.c.h.b16 %v9130
    %v10802 = vunpack.c.l.b16 %v9131
    %v10803 = vunpack.c.h.b16 %v9131
    %v10804 = vunpack.c.l.b16 %v9132
    %v10805 = vunpack.c.h.b16 %v9132
    %v10806 = vunpack.c.l.b16 %v9133
    %v10807 = vunpack.c.h.b16 %v9133
    %v10808 = vunpack.c.l.b16 %v9134
    %v10809 = vunpack.c.h.b16 %v9134
    %v10810 = vunpack.c.l.b16 %v9135
    %v10811 = vunpack.c.h.b16 %v9135
    %v10812 = vunpack.c.l.b16 %v9136
    %v10813 = vunpack.c.h.b16 %v9136
    %v10814 = vunpack.c.l.b16 %v9137
    %v10815 = vunpack.c.h.b16 %v9137
    %v10816 = vunpack.c.l.b16 %v9138
    %v10817 = vunpack.c.h.b16 %v9138
    %v10818 = vunpack.c.l.b16 %v9139
    %v10819 = vunpack.c.h.b16 %v9139
    %v10820 = vunpack.c.l.b16 %v9140
    %v10821 = vunpack.c.h.b16 %v9140
    %v10822 = vunpack.c.l.b16 %v9141
    %v10823 = vunpack.c.h.b16 %v9141
    %v10824 = vunpack.c.l.b16 %v9142
    %v10825 = vunpack.c.h.b16 %v9142
    %v10826 = vunpack.c.l.b16 %v9143
    %v10827 = vunpack.c.h.b16 %v9143
    %v10828 = vunpack.c.l.b16 %v9144
    %v10829 = vunpack.c.h.b16 %v9144
    %v10830 = vunpack.c.l.b16 %v9145
    %v10831 = vunpack.c.h.b16 %v9145
    %v10832 = vunpack.c.l.b16 %v9146
    %v10833 = vunpack.c.h.b16 %v9146
    %v10834 = vunpack.c.l.b16 %v9147
    %v10835 = vunpack.c.h.b16 %v9147
    %v10836 = vunpack.c.l.b16 %v9148
    %v10837 = vunpack.c.h.b16 %v9148
    %v10838 = vunpack.c.l.b16 %v9149
    %v10839 = vunpack.c.h.b16 %v9149
    %v10840 = vunpack.c.l.b16 %v9150
    %v10841 = vunpack.c.h.b16 %v9150
    %v10842 = vunpack.c.l.b16 %v9151
    %v10843 = vunpack.c.h.b16 %v9151
    %v10844 = vunpack.c.l.b16 %v9152
    %v10845 = vunpack.c.h.b16 %v9152
    %v10846 = vunpack.c.l.b16 %v9153
    %v10847 = vunpack.c.h.b16 %v9153
    %v10848 = vunpack.c.l.b16 %v9154
    %v10849 = vunpack.c.h.b16 %v9154
    %v10850 = vunpack.c.l.b16 %v9155
    %v10851 = vunpack.c.h.b16 %v9155
    %v10852 = vunpack.c.l.b16 %v9156
    %v10853 = vunpack.c.h.b16 %v9156
    %v10854 = vunpack.c.l.b16 %v9157
    %v10855 = vunpack.c.h.b16 %v9157
    %v10856 = vunpack.c.l.b16 %v9158
    %v10857 = vunpack.c.h.b16 %v9158
    %v10858 = vunpack.c.l.b16 %v9159
    %v10859 = vunpack.c.h.b16 %v9159
    %v10860 = vunpack.c.l.b16 %v9160
    %v10861 = vunpack.c.h.b16 %v9160
    %v10862 = vunpack.c.l.b16 %v9161
    %v10863 = vunpack.c.h.b16 %v9161
    %v10864 = vunpack.c.l.b16 %v9162
    %v10865 = vunpack.c.h.b16 %v9162
    %v10866 = vunpack.c.l.b16 %v9163
    %v10867 = vunpack.c.h.b16 %v9163
    %v10868 = vunpack.c.l.b16 %v9164
    %v10869 = vunpack.c.h.b16 %v9164
    %v10870 = vunpack.c.l.b16 %v9165
    %v10871 = vunpack.c.h.b16 %v9165
    %v10872 = vunpack.c.l.b16 %v9166
    %v10873 = vunpack.c.h.b16 %v9166
    %v10874 = vunpack.c.l.b16 %v9167
    %v10875 = vunpack.c.h.b16 %v9167
    %v10876 = vunpack.c.l.b16 %v9168
    %v10877 = vunpack.c.h.b16 %v9168
    %v10878 = vunpack.c.l.b16 %v9169
    %v10879 = vunpack.c.h.b16 %v9169
    %v10880 = vunpack.c.l.b16 %v9170
    %v10881 = vunpack.c.h.b16 %v9170
    %v10882 = vunpack.c.l.b16 %v9171
    %v10883 = vunpack.c.h.b16 %v9171
    %v10884 = vunpack.c.l.b16 %v9172
    %v10885 = vunpack.c.h.b16 %v9172
    %v10886 = vunpack.c.l.b16 %v9173
    %v10887 = vunpack.c.h.b16 %v9173
    %v10888 = vunpack.c.l.b16 %v9174
    %v10889 = vunpack.c.h.b16 %v9174
    %v10890 = vunpack.c.l.b16 %v9175
    %v10891 = vunpack.c.h.b16 %v9175
    %v10892 = vunpack.c.l.b16 %v9176
    %v10893 = vunpack.c.h.b16 %v9176
    %v10894 = vunpack.c.l.b16 %v9177
    %v10895 = vunpack.c.h.b16 %v9177
    %v10896 = vunpack.c.l.b16 %v9178
    %v10897 = vunpack.c.h.b16 %v9178
    %v10898 = vunpack.c.l.b16 %v9179
    %v10899 = vunpack.c.h.b16 %v9179
    %v10900 = vunpack.c.l.b16 %v9180
    %v10901 = vunpack.c.h.b16 %v9180
    %v10902 = vunpack.c.l.b16 %v9181
    %v10903 = vunpack.c.h.b16 %v9181
    %v10904 = vunpack.c.l.b16 %v9182
    %v10905 = vunpack.c.h.b16 %v9182
    %v10906 = vunpack.c.l.b16 %v9183
    %v10907 = vunpack.c.h.b16 %v9183
    %v10908 = vunpack.c.l.b16 %v9184
    %v10909 = vunpack.c.h.b16 %v9184
    %v10910 = vunpack.c.l.b16 %v9185
    %v10911 = vunpack.c.h.b16 %v9185
    %v10912 = vunpack.c.l.b16 %v9186
    %v10913 = vunpack.c.h.b16 %v9186
    %v10914 = vunpack.c.l.b16 %v9187
    %v10915 = vunpack.c.h.b16 %v9187
    %v10916 = vunpack.c.l.b16 %v9188
    %v10917 = vunpack.c.h.b16 %v9188
    %v10918 = vunpack.c.l.b16 %v9189
    %v10919 = vunpack.c.h.b16 %v9189
    %v10920 = vunpack.c.l.b16 %v9190
    %v10921 = vunpack.c.h.b16 %v9190
    %v10922 = vunpack.c.l.b16 %v9191
    %v10923 = vunpack.c.h.b16 %v9191
    %v10924 = vunpack.c.l.b16 %v9192
    %v10925 = vunpack.c.h.b16 %v9192
    %v10926 = vunpack.c.l.b16 %v9193
    %v10927 = vunpack.c.h.b16 %v9193
    %v10928 = vunpack.c.l.b16 %v9194
    %v10929 = vunpack.c.h.b16 %v9194
    %v10930 = vunpack.c.l.b16 %v9195
    %v10931 = vunpack.c.h.b16 %v9195
    %v10932 = vunpack.c.l.b16 %v9196
    %v10933 = vunpack.c.h.b16 %v9196
    %v10934 = vunpack.c.l.b16 %v9197
    %v10935 = vunpack.c.h.b16 %v9197
    %v10936 = vunpack.c.l.b16 %v9198
    %v10937 = vunpack.c.h.b16 %v9198
    %v10938 = vunpack.c.l.b16 %v9199
    %v10939 = vunpack.c.h.b16 %v9199
    %v10940 = vunpack.c.l.b16 %v9200
    %v10941 = vunpack.c.h.b16 %v9200
    %v10942 = vunpack.c.l.b16 %v9201
    %v10943 = vunpack.c.h.b16 %v9201
    %v10944 = vunpack.c.l.b16 %v9202
    %v10945 = vunpack.c.h.b16 %v9202
    %v10946 = vunpack.c.l.b16 %v9203
    %v10947 = vunpack.c.h.b16 %v9203
    %v10948 = vunpack.c.l.b16 %v9204
    %v10949 = vunpack.c.h.b16 %v9204
    %v10950 = vunpack.c.l.b16 %v9205
    %v10951 = vunpack.c.h.b16 %v9205
    %v10952 = vunpack.c.l.b16 %v9206
    %v10953 = vunpack.c.h.b16 %v9206
    %v10954 = vunpack.c.l.b16 %v9207
    %v10955 = vunpack.c.h.b16 %v9207
    %v10956 = vunpack.c.l.b16 %v9208
    %v10957 = vunpack.c.h.b16 %v9208
    %v10958 = vunpack.c.l.b16 %v9209
    %v10959 = vunpack.c.h.b16 %v9209
    %v10960 = vunpack.c.l.b16 %v9210
    %v10961 = vunpack.c.h.b16 %v9210
    %v10962 = vunpack.c.l.b16 %v9211
    %v10963 = vunpack.c.h.b16 %v9211
    %v10964 = vunpack.c.l.b16 %v9212
    %v10965 = vunpack.c.h.b16 %v9212
    %v10966 = vunpack.c.l.b16 %v9213
    %v10967 = vunpack.c.h.b16 %v9213
    %v10968 = vunpack.c.l.b16 %v9214
    %v10969 = vunpack.c.h.b16 %v9214
    %v10970 = vunpack.c.l.b16 %v9215
    %v10971 = vunpack.c.h.b16 %v9215
    %v10972 = vunpack.c.l.b16 %v9216
    %v10973 = vunpack.c.h.b16 %v9216
    %v10974 = vunpack.c.l.b16 %v9217
    %v10975 = vunpack.c.h.b16 %v9217
    %v10976 = vunpack.c.l.b16 %v9218
    %v10977 = vunpack.c.h.b16 %v9218
    %v10978 = vunpack.c.l.b16 %v9219
    %v10979 = vunpack.c.h.b16 %v9219
    %v10980 = vunpack.c.l.b16 %v9220
    %v10981 = vunpack.c.h.b16 %v9220
    %v10982 = vunpack.c.l.b16 %v9221
    %v10983 = vunpack.c.h.b16 %v9221
    %v10984 = vunpack.c.l.b16 %v9222
    %v10985 = vunpack.c.h.b16 %v9222
    %v10986 = vunpack.c.l.b16 %v9223
    %v10987 = vunpack.c.h.b16 %v9223
    %v10988 = vunpack.c.l.b16 %v9224
    %v10989 = vunpack.c.h.b16 %v9224
    %v10990 = vunpack.c.l.b16 %v9225
    %v10991 = vunpack.c.h.b16 %v9225
    %v10992 = vunpack.c.l.b16 %v9226
    %v10993 = vunpack.c.h.b16 %v9226
    %v10994 = vunpack.c.l.b16 %v9227
    %v10995 = vunpack.c.h.b16 %v9227
    %v10996 = vunpack.c.l.b16 %v9228
    %v10997 = vunpack.c.h.b16 %v9228
    %v10998 = vunpack.c.l.b16 %v9229
    %v10999 = vunpack.c.h.b16 %v9229
    %v11000 = vunpack.c.l.b16 %v9230
    %v11001 = vunpack.c.h.b16 %v9230
    %v11002 = vunpack.c.l.b16 %v9231
    %v11003 = vunpack.c.h.b16 %v9231
    %v11004 = vunpack.c.l.b16 %v9232
    %v11005 = vunpack.c.h.b16 %v9232
    %v11006 = vunpack.c.l.b16 %v9233
    %v11007 = vunpack.c.h.b16 %v9233
    %v11008 = vunpack.c.l.b16 %v9234
    %v11009 = vunpack.c.h.b16 %v9234
    %v11010 = vunpack.c.l.b16 %v9235
    %v11011 = vunpack.c.h.b16 %v9235
    %v11012 = vunpack.c.l.b16 %v9236
    %v11013 = vunpack.c.h.b16 %v9236
    %v11014 = vunpack.c.l.b16 %v9237
    %v11015 = vunpack.c.h.b16 %v9237
    %v11016 = vunpack.c.l.b16 %v9238
    %v11017 = vunpack.c.h.b16 %v9238
    %v11018 = vunpack.c.l.b16 %v9239
    %v11019 = vunpack.c.h.b16 %v9239
    %v11020 = vunpack.c.l.b16 %v9240
    %v11021 = vunpack.c.h.b16 %v9240
    %v11022 = vunpack.c.l.b16 %v9241
    %v11023 = vunpack.c.h.b16 %v9241
    %v11024 = vunpack.c.l.b16 %v9242
    %v11025 = vunpack.c.h.b16 %v9242
    %v11026 = vunpack.c.l.b16 %v9243
    %v11027 = vunpack.c.h.b16 %v9243
    %v11028 = vunpack.c.l.b16 %v9244
    %v11029 = vunpack.c.h.b16 %v9244
    %v11030 = vunpack.c.l.b16 %v9245
    %v11031 = vunpack.c.h.b16 %v9245
    %v11032 = vunpack.c.l.b16 %v9246
    %v11033 = vunpack.c.h.b16 %v9246
    %v11034 = vunpack.c.l.b16 %v9247
    %v11035 = vunpack.c.h.b16 %v9247
    %v11036 = vunpack.c.l.b16 %v9248
    %v11037 = vunpack.c.h.b16 %v9248
    %v11038 = vunpack.c.l.b16 %v9249
    %v11039 = vunpack.c.h.b16 %v9249
    %v11040 = vunpack.c.l.b16 %v9250
    %v11041 = vunpack.c.h.b16 %v9250
    %v11042 = vunpack.c.l.b16 %v9251
    %v11043 = vunpack.c.h.b16 %v9251
    %v11044 = vpack.c.b16 %v9904, %v9892
    %v11045 = vpack.c.b16 %v9905, %v9893
    %v11046 = vpack.c.b16 %v9906, %v9894
    %v11047 = vpack.c.b16 %v9907, %v9895
    %v11048 = vpack.c.b16 %v9908, %v9896
    %v11049 = vpack.c.b16 %v9909, %v9897
    %v11050 = vpack.c.b16 %v9910, %v9898
    %v11051 = vpack.c.b16 %v9911, %v9899
    %v11052 = vpack.c.b16 %v9912, %v9900
    %v11053 = vpack.c.b16 %v9913, %v9901
    %v11054 = vpack.c.b16 %v9914, %v9902
    %v11055 = vpack.c.b16 %v9915, %v9903
    %v11056 = vpack.c.b16 %v9928, %v9916
    %v11057 = vpack.c.b16 %v9929, %v9917
    %v11058 = vpack.c.b16 %v9930, %v9918
    %v11059 = vpack.c.b16 %v9931, %v9919
    %v11060 = vpack.c.b16 %v9932, %v9920
    %v11061 = vpack.c.b16 %v9933, %v9921
    %v11062 = vpack.c.b16 %v9934, %v9922
    %v11063 = vpack.c.b16 %v9935, %v9923
    %v11064 = vpack.c.b16 %v9936, %v9924
    %v11065 = vpack.c.b16 %v9937, %v9925
    %v11066 = vpack.c.b16 %v9938, %v9926
    %v11067 = vpack.c.b16 %v9939, %v9927
    %v11068 = vpack.c.b16 %v9952, %v9940
    %v11069 = vpack.c.b16 %v9953, %v9941
    %v11070 = vpack.c.b16 %v9954, %v9942
    %v11071 = vpack.c.b16 %v9955, %v9943
    %v11072 = vpack.c.b16 %v9956, %v9944
    %v11073 = vpack.c.b16 %v9957, %v9945
    %v11074 = vpack.c.b16 %v9958, %v9946
    %v11075 = vpack.c.b16 %v9959, %v9947
    %v11076 = vpack.c.b16 %v9960, %v9948
    %v11077 = vpack.c.b16 %v9961, %v9949
    %v11078 = vpack.c.b16 %v9962, %v9950
    %v11079 = vpack.c.b16 %v9963, %v9951
    %v11080 = vpack.c.b16 %v9976, %v9964
    %v11081 = vpack.c.b16 %v9977, %v9965
    %v11082 = vpack.c.b16 %v9978, %v9966
    %v11083 = vpack.c.b16 %v9979, %v9967
    %v11084 = vpack.c.b16 %v9980, %v9968
    %v11085 = vpack.c.b16 %v9981, %v9969
    %v11086 = vpack.c.b16 %v9982, %v9970
    %v11087 = vpack.c.b16 %v9983, %v9971
    %v11088 = vpack.c.b16 %v9984, %v9972
    %v11089 = vpack.c.b16 %v9985, %v9973
    %v11090 = vpack.c.b16 %v9986, %v9974
    %v11091 = vpack.c.b16 %v9987, %v9975
    %v11092 = vpack.c.b16 %v10000, %v9988
    %v11093 = vpack.c.b16 %v10001, %v9989
    %v11094 = vpack.c.b16 %v10002, %v9990
    %v11095 = vpack.c.b16 %v10003, %v9991
    %v11096 = vpack.c.b16 %v10004, %v9992
    %v11097 = vpack.c.b16 %v10005, %v9993
    %v11098 = vpack.c.b16 %v10006, %v9994
    %v11099 = vpack.c.b16 %v10007, %v9995
    %v11100 = vpack.c.b16 %v10008, %v9996
    %v11101 = vpack.c.b16 %v10009, %v9997
    %v11102 = vpack.c.b16 %v10010, %v9998
    %v11103 = vpack.c.b16 %v10011, %v9999
    %v11104 = vpack.c.b16 %v10024, %v10012
    %v11105 = vpack.c.b16 %v10025, %v10013
    %v11106 = vpack.c.b16 %v10026, %v10014
    %v11107 = vpack.c.b16 %v10027, %v10015
    %v11108 = vpack.c.b16 %v10028, %v10016
    %v11109 = vpack.c.b16 %v10029, %v10017
    %v11110 = vpack.c.b16 %v10030, %v10018
    %v11111 = vpack.c.b16 %v10031, %v10019
    %v11112 = vpack.c.b16 %v10032, %v10020
    %v11113 = vpack.c.b16 %v10033, %v10021
    %v11114 = vpack.c.b16 %v10034, %v10022
    %v11115 = vpack.c.b16 %v10035, %v10023
    %v11116 = vpack.c.b16 %v10048, %v10036
    %v11117 = vpack.c.b16 %v10049, %v10037
    %v11118 = vpack.c.b16 %v10050, %v10038
    %v11119 = vpack.c.b16 %v10051, %v10039
    %v11120 = vpack.c.b16 %v10052, %v10040
    %v11121 = vpack.c.b16 %v10053, %v10041
    %v11122 = vpack.c.b16 %v10054, %v10042
    %v11123 = vpack.c.b16 %v10055, %v10043
    %v11124 = vpack.c.b16 %v10056, %v10044
    %v11125 = vpack.c.b16 %v10057, %v10045
    %v11126 = vpack.c.b16 %v10058, %v10046
    %v11127 = vpack.c.b16 %v10059, %v10047
    %v11128 = vpack.c.b16 %v10072, %v10060
    %v11129 = vpack.c.b16 %v10073, %v10061
    %v11130 = vpack.c.b16 %v10074, %v10062
    %v11131 = vpack.c.b16 %v10075, %v10063
    %v11132 = vpack.c.b16 %v10076, %v10064
    %v11133 = vpack.c.b16 %v10077, %v10065
    %v11134 = vpack.c.b16 %v10078, %v10066
    %v11135 = vpack.c.b16 %v10079, %v10067
    %v11136 = vpack.c.b16 %v10080, %v10068
    %v11137 = vpack.c.b16 %v10081, %v10069
    %v11138 = vpack.c.b16 %v10082, %v10070
    %v11139 = vpack.c.b16 %v10083, %v10071
    %v11140 = vpack.c.b16 %v10096, %v10084
    %v11141 = vpack.c.b16 %v10097, %v10085
    %v11142 = vpack.c.b16 %v10098, %v10086
    %v11143 = vpack.c.b16 %v10099, %v10087
    %v11144 = vpack.c.b16 %v10100, %v10088
    %v11145 = vpack.c.b16 %v10101, %v10089
    %v11146 = vpack.c.b16 %v10102, %v10090
    %v11147 = vpack.c.b16 %v10103, %v10091
    %v11148 = vpack.c.b16 %v10104, %v10092
    %v11149 = vpack.c.b16 %v10105, %v10093
    %v11150 = vpack.c.b16 %v10106, %v10094
    %v11151 = vpack.c.b16 %v10107, %v10095
    %v11152 = vpack.c.b16 %v10120, %v10108
    %v11153 = vpack.c.b16 %v10121, %v10109
    %v11154 = vpack.c.b16 %v10122, %v10110
    %v11155 = vpack.c.b16 %v10123, %v10111
    %v11156 = vpack.c.b16 %v10124, %v10112
    %v11157 = vpack.c.b16 %v10125, %v10113
    %v11158 = vpack.c.b16 %v10126, %v10114
    %v11159 = vpack.c.b16 %v10127, %v10115
    %v11160 = vpack.c.b16 %v10128, %v10116
    %v11161 = vpack.c.b16 %v10129, %v10117
    %v11162 = vpack.c.b16 %v10130, %v10118
    %v11163 = vpack.c.b16 %v10131, %v10119
    %v11164 = vpack.c.b16 %v10144, %v10132
    %v11165 = vpack.c.b16 %v10145, %v10133
    %v11166 = vpack.c.b16 %v10146, %v10134
    %v11167 = vpack.c.b16 %v10147, %v10135
    %v11168 = vpack.c.b16 %v10148, %v10136
    %v11169 = vpack.c.b16 %v10149, %v10137
    %v11170 = vpack.c.b16 %v10150, %v10138
    %v11171 = vpack.c.b16 %v10151, %v10139
    %v11172 = vpack.c.b16 %v10152, %v10140
    %v11173 = vpack.c.b16 %v10153, %v10141
    %v11174 = vpack.c.b16 %v10154, %v10142
    %v11175 = vpack.c.b16 %v10155, %v10143
    %v11176 = vpack.c.b16 %v10168, %v10156
    %v11177 = vpack.c.b16 %v10169, %v10157
    %v11178 = vpack.c.b16 %v10170, %v10158
    %v11179 = vpack.c.b16 %v10171, %v10159
    %v11180 = vpack.c.b16 %v10172, %v10160
    %v11181 = vpack.c.b16 %v10173, %v10161
    %v11182 = vpack.c.b16 %v10174, %v10162
    %v11183 = vpack.c.b16 %v10175, %v10163
    %v11184 = vpack.c.b16 %v10176, %v10164
    %v11185 = vpack.c.b16 %v10177, %v10165
    %v11186 = vpack.c.b16 %v10178, %v10166
    %v11187 = vpack.c.b16 %v10179, %v10167
    %v11188 = vpack.c.b16 %v10192, %v10180
    %v11189 = vpack.c.b16 %v10193, %v10181
    %v11190 = vpack.c.b16 %v10194, %v10182
    %v11191 = vpack.c.b16 %v10195, %v10183
    %v11192 = vpack.c.b16 %v10196, %v10184
    %v11193 = vpack.c.b16 %v10197, %v10185
    %v11194 = vpack.c.b16 %v10198, %v10186
    %v11195 = vpack.c.b16 %v10199, %v10187
    %v11196 = vpack.c.b16 %v10200, %v10188
    %v11197 = vpack.c.b16 %v10201, %v10189
    %v11198 = vpack.c.b16 %v10202, %v10190
    %v11199 = vpack.c.b16 %v10203, %v10191
    %v11200 = vpack.c.b16 %v10216, %v10204
    %v11201 = vpack.c.b16 %v10217, %v10205
    %v11202 = vpack.c.b16 %v10218, %v10206
    %v11203 = vpack.c.b16 %v10219, %v10207
    %v11204 = vpack.c.b16 %v10220, %v10208
    %v11205 = vpack.c.b16 %v10221, %v10209
    %v11206 = vpack.c.b16 %v10222, %v10210
    %v11207 = vpack.c.b16 %v10223, %v10211
    %v11208 = vpack.c.b16 %v10224, %v10212
    %v11209 = vpack.c.b16 %v10225, %v10213
    %v11210 = vpack.c.b16 %v10226, %v10214
    %v11211 = vpack.c.b16 %v10227, %v10215
    %v11212 = vpack.c.b16 %v10240, %v10228
    %v11213 = vpack.c.b16 %v10241, %v10229
    %v11214 = vpack.c.b16 %v10242, %v10230
    %v11215 = vpack.c.b16 %v10243, %v10231
    %v11216 = vpack.c.b16 %v10244, %v10232
    %v11217 = vpack.c.b16 %v10245, %v10233
    %v11218 = vpack.c.b16 %v10246, %v10234
    %v11219 = vpack.c.b16 %v10247, %v10235
    %v11220 = vpack.c.b16 %v10248, %v10236
    %v11221 = vpack.c.b16 %v10249, %v10237
    %v11222 = vpack.c.b16 %v10250, %v10238
    %v11223 = vpack.c.b16 %v10251, %v10239
    %v11224 = vpack.c.b16 %v10264, %v10252
    %v11225 = vpack.c.b16 %v10265, %v10253
    %v11226 = vpack.c.b16 %v10266, %v10254
    %v11227 = vpack.c.b16 %v10267, %v10255
    %v11228 = vpack.c.b16 %v10268, %v10256
    %v11229 = vpack.c.b16 %v10269, %v10257
    %v11230 = vpack.c.b16 %v10270, %v10258
    %v11231 = vpack.c.b16 %v10271, %v10259
    %v11232 = vpack.c.b16 %v10272, %v10260
    %v11233 = vpack.c.b16 %v10273, %v10261
    %v11234 = vpack.c.b16 %v10274, %v10262
    %v11235 = vpack.c.b16 %v10275, %v10263
    %v11236 = vpack.c.b16 %v10288, %v10276
    %v11237 = vpack.c.b16 %v10289, %v10277
    %v11238 = vpack.c.b16 %v10290, %v10278
    %v11239 = vpack.c.b16 %v10291, %v10279
    %v11240 = vpack.c.b16 %v10292, %v10280
    %v11241 = vpack.c.b16 %v10293, %v10281
    %v11242 = vpack.c.b16 %v10294, %v10282
    %v11243 = vpack.c.b16 %v10295, %v10283
    %v11244 = vpack.c.b16 %v10296, %v10284
    %v11245 = vpack.c.b16 %v10297, %v10285
    %v11246 = vpack.c.b16 %v10298, %v10286
    %v11247 = vpack.c.b16 %v10299, %v10287
    %v11248 = vpack.c.b16 %v10312, %v10300
    %v11249 = vpack.c.b16 %v10313, %v10301
    %v11250 = vpack.c.b16 %v10314, %v10302
    %v11251 = vpack.c.b16 %v10315, %v10303
    %v11252 = vpack.c.b16 %v10316, %v10304
    %v11253 = vpack.c.b16 %v10317, %v10305
    %v11254 = vpack.c.b16 %v10318, %v10306
    %v11255 = vpack.c.b16 %v10319, %v10307
    %v11256 = vpack.c.b16 %v10320, %v10308
    %v11257 = vpack.c.b16 %v10321, %v10309
    %v11258 = vpack.c.b16 %v10322, %v10310
    %v11259 = vpack.c.b16 %v10323, %v10311
    %v11260 = vpack.c.b16 %v10336, %v10324
    %v11261 = vpack.c.b16 %v10337, %v10325
    %v11262 = vpack.c.b16 %v10338, %v10326
    %v11263 = vpack.c.b16 %v10339, %v10327
    %v11264 = vpack.c.b16 %v10340, %v10328
    %v11265 = vpack.c.b16 %v10341, %v10329
    %v11266 = vpack.c.b16 %v10342, %v10330
    %v11267 = vpack.c.b16 %v10343, %v10331
    %v11268 = vpack.c.b16 %v10344, %v10332
    %v11269 = vpack.c.b16 %v10345, %v10333
    %v11270 = vpack.c.b16 %v10346, %v10334
    %v11271 = vpack.c.b16 %v10347, %v10335
    %v11272 = vpack.c.b16 %v10360, %v10348
    %v11273 = vpack.c.b16 %v10361, %v10349
    %v11274 = vpack.c.b16 %v10362, %v10350
    %v11275 = vpack.c.b16 %v10363, %v10351
    %v11276 = vpack.c.b16 %v10364, %v10352
    %v11277 = vpack.c.b16 %v10365, %v10353
    %v11278 = vpack.c.b16 %v10366, %v10354
    %v11279 = vpack.c.b16 %v10367, %v10355
    %v11280 = vpack.c.b16 %v10368, %v10356
    %v11281 = vpack.c.b16 %v10369, %v10357
    %v11282 = vpack.c.b16 %v10370, %v10358
    %v11283 = vpack.c.b16 %v10371, %v10359
    %v11284 = vpack.c.b16 %v10384, %v10372
    %v11285 = vpack.c.b16 %v10385, %v10373
    %v11286 = vpack.c.b16 %v10386, %v10374
    %v11287 = vpack.c.b16 %v10387, %v10375
    %v11288 = vpack.c.b16 %v10388, %v10376
    %v11289 = vpack.c.b16 %v10389, %v10377
    %v11290 = vpack.c.b16 %v10390, %v10378
    %v11291 = vpack.c.b16 %v10391, %v10379
    %v11292 = vpack.c.b16 %v10392, %v10380
    %v11293 = vpack.c.b16 %v10393, %v10381
    %v11294 = vpack.c.b16 %v10394, %v10382
    %v11295 = vpack.c.b16 %v10395, %v10383
    %v11296 = vpack.c.b16 %v10408, %v10396
    %v11297 = vpack.c.b16 %v10409, %v10397
    %v11298 = vpack.c.b16 %v10410, %v10398
    %v11299 = vpack.c.b16 %v10411, %v10399
    %v11300 = vpack.c.b16 %v10412, %v10400
    %v11301 = vpack.c.b16 %v10413, %v10401
    %v11302 = vpack.c.b16 %v10414, %v10402
    %v11303 = vpack.c.b16 %v10415, %v10403
    %v11304 = vpack.c.b16 %v10416, %v10404
    %v11305 = vpack.c.b16 %v10417, %v10405
    %v11306 = vpack.c.b16 %v10418, %v10406
    %v11307 = vpack.c.b16 %v10419, %v10407
    %v11308 = vpack.c.b16 %v10432, %v10420
    %v11309 = vpack.c.b16 %v10433, %v10421
    %v11310 = vpack.c.b16 %v10434, %v10422
    %v11311 = vpack.c.b16 %v10435, %v10423
    %v11312 = vpack.c.b16 %v10436, %v10424
    %v11313 = vpack.c.b16 %v10437, %v10425
    %v11314 = vpack.c.b16 %v10438, %v10426
    %v11315 = vpack.c.b16 %v10439, %v10427
    %v11316 = vpack.c.b16 %v10440, %v10428
    %v11317 = vpack.c.b16 %v10441, %v10429
    %v11318 = vpack.c.b16 %v10442, %v10430
    %v11319 = vpack.c.b16 %v10443, %v10431
    %v11320 = vpack.c.b16 %v10456, %v10444
    %v11321 = vpack.c.b16 %v10457, %v10445
    %v11322 = vpack.c.b16 %v10458, %v10446
    %v11323 = vpack.c.b16 %v10459, %v10447
    %v11324 = vpack.c.b16 %v10460, %v10448
    %v11325 = vpack.c.b16 %v10461, %v10449
    %v11326 = vpack.c.b16 %v10462, %v10450
    %v11327 = vpack.c.b16 %v10463, %v10451
    %v11328 = vpack.c.b16 %v10464, %v10452
    %v11329 = vpack.c.b16 %v10465, %v10453
    %v11330 = vpack.c.b16 %v10466, %v10454
    %v11331 = vpack.c.b16 %v10467, %v10455
    %v11332 = vpack.c.b16 %v10480, %v10468
    %v11333 = vpack.c.b16 %v10481, %v10469
    %v11334 = vpack.c.b16 %v10482, %v10470
    %v11335 = vpack.c.b16 %v10483, %v10471
    %v11336 = vpack.c.b16 %v10484, %v10472
    %v11337 = vpack.c.b16 %v10485, %v10473
    %v11338 = vpack.c.b16 %v10486, %v10474
    %v11339 = vpack.c.b16 %v10487, %v10475
    %v11340 = vpack.c.b16 %v10488, %v10476
    %v11341 = vpack.c.b16 %v10489, %v10477
    %v11342 = vpack.c.b16 %v10490, %v10478
    %v11343 = vpack.c.b16 %v10491, %v10479
    %v11344 = vpack.c.b16 %v10504, %v10492
    %v11345 = vpack.c.b16 %v10505, %v10493
    %v11346 = vpack.c.b16 %v10506, %v10494
    %v11347 = vpack.c.b16 %v10507, %v10495
    %v11348 = vpack.c.b16 %v10508, %v10496
    %v11349 = vpack.c.b16 %v10509, %v10497
    %v11350 = vpack.c.b16 %v10510, %v10498
    %v11351 = vpack.c.b16 %v10511, %v10499
    %v11352 = vpack.c.b16 %v10512, %v10500
    %v11353 = vpack.c.b16 %v10513, %v10501
    %v11354 = vpack.c.b16 %v10514, %v10502
    %v11355 = vpack.c.b16 %v10515, %v10503
    %v11356 = vpack.c.b16 %v10528, %v10516
    %v11357 = vpack.c.b16 %v10529, %v10517
    %v11358 = vpack.c.b16 %v10530, %v10518
    %v11359 = vpack.c.b16 %v10531, %v10519
    %v11360 = vpack.c.b16 %v10532, %v10520
    %v11361 = vpack.c.b16 %v10533, %v10521
    %v11362 = vpack.c.b16 %v10534, %v10522
    %v11363 = vpack.c.b16 %v10535, %v10523
    %v11364 = vpack.c.b16 %v10536, %v10524
    %v11365 = vpack.c.b16 %v10537, %v10525
    %v11366 = vpack.c.b16 %v10538, %v10526
    %v11367 = vpack.c.b16 %v10539, %v10527
    %v11368 = vpack.c.b16 %v10552, %v10540
    %v11369 = vpack.c.b16 %v10553, %v10541
    %v11370 = vpack.c.b16 %v10554, %v10542
    %v11371 = vpack.c.b16 %v10555, %v10543
    %v11372 = vpack.c.b16 %v10556, %v10544
    %v11373 = vpack.c.b16 %v10557, %v10545
    %v11374 = vpack.c.b16 %v10558, %v10546
    %v11375 = vpack.c.b16 %v10559, %v10547
    %v11376 = vpack.c.b16 %v10560, %v10548
    %v11377 = vpack.c.b16 %v10561, %v10549
    %v11378 = vpack.c.b16 %v10562, %v10550
    %v11379 = vpack.c.b16 %v10563, %v10551
    %v11380 = vpack.c.b16 %v10576, %v10564
    %v11381 = vpack.c.b16 %v10577, %v10565
    %v11382 = vpack.c.b16 %v10578, %v10566
    %v11383 = vpack.c.b16 %v10579, %v10567
    %v11384 = vpack.c.b16 %v10580, %v10568
    %v11385 = vpack.c.b16 %v10581, %v10569
    %v11386 = vpack.c.b16 %v10582, %v10570
    %v11387 = vpack.c.b16 %v10583, %v10571
    %v11388 = vpack.c.b16 %v10584, %v10572
    %v11389 = vpack.c.b16 %v10585, %v10573
    %v11390 = vpack.c.b16 %v10586, %v10574
    %v11391 = vpack.c.b16 %v10587, %v10575
    %v11392 = vpack.c.b16 %v10600, %v10588
    %v11393 = vpack.c.b16 %v10601, %v10589
    %v11394 = vpack.c.b16 %v10602, %v10590
    %v11395 = vpack.c.b16 %v10603, %v10591
    %v11396 = vpack.c.b16 %v10604, %v10592
    %v11397 = vpack.c.b16 %v10605, %v10593
    %v11398 = vpack.c.b16 %v10606, %v10594
    %v11399 = vpack.c.b16 %v10607, %v10595
    %v11400 = vpack.c.b16 %v10608, %v10596
    %v11401 = vpack.c.b16 %v10609, %v10597
    %v11402 = vpack.c.b16 %v10610, %v10598
    %v11403 = vpack.c.b16 %v10611, %v10599
    %v11404 = vpack.c.b16 %v10624, %v10612
    %v11405 = vpack.c.b16 %v10625, %v10613
    %v11406 = vpack.c.b16 %v10626, %v10614
    %v11407 = vpack.c.b16 %v10627, %v10615
    %v11408 = vpack.c.b16 %v10628, %v10616
    %v11409 = vpack.c.b16 %v10629, %v10617
    %v11410 = vpack.c.b16 %v10630, %v10618
    %v11411 = vpack.c.b16 %v10631, %v10619
    %v11412 = vpack.c.b16 %v10632, %v10620
    %v11413 = vpack.c.b16 %v10633, %v10621
    %v11414 = vpack.c.b16 %v10634, %v10622
    %v11415 = vpack.c.b16 %v10635, %v10623
    %v11416 = vpack.c.b16 %v10648, %v10636
    %v11417 = vpack.c.b16 %v10649, %v10637
    %v11418 = vpack.c.b16 %v10650, %v10638
    %v11419 = vpack.c.b16 %v10651, %v10639
    %v11420 = vpack.c.b16 %v10652, %v10640
    %v11421 = vpack.c.b16 %v10653, %v10641
    %v11422 = vpack.c.b16 %v10654, %v10642
    %v11423 = vpack.c.b16 %v10655, %v10643
    %v11424 = vpack.c.b16 %v10656, %v10644
    %v11425 = vpack.c.b16 %v10657, %v10645
    %v11426 = vpack.c.b16 %v10658, %v10646
    %v11427 = vpack.c.b16 %v10659, %v10647
    %v11428 = vpack.c.b16 %v10672, %v10660
    %v11429 = vpack.c.b16 %v10673, %v10661
    %v11430 = vpack.c.b16 %v10674, %v10662
    %v11431 = vpack.c.b16 %v10675, %v10663
    %v11432 = vpack.c.b16 %v10676, %v10664
    %v11433 = vpack.c.b16 %v10677, %v10665
    %v11434 = vpack.c.b16 %v10678, %v10666
    %v11435 = vpack.c.b16 %v10679, %v10667
    %v11436 = vpack.c.b16 %v10680, %v10668
    %v11437 = vpack.c.b16 %v10681, %v10669
    %v11438 = vpack.c.b16 %v10682, %v10670
    %v11439 = vpack.c.b16 %v10683, %v10671
    %v11440 = vpack.c.b16 %v10696, %v10684
    %v11441 = vpack.c.b16 %v10697, %v10685
    %v11442 = vpack.c.b16 %v10698, %v10686
    %v11443 = vpack.c.b16 %v10699, %v10687
    %v11444 = vpack.c.b16 %v10700, %v10688
    %v11445 = vpack.c.b16 %v10701, %v10689
    %v11446 = vpack.c.b16 %v10702, %v10690
    %v11447 = vpack.c.b16 %v10703, %v10691
    %v11448 = vpack.c.b16 %v10704, %v10692
    %v11449 = vpack.c.b16 %v10705, %v10693
    %v11450 = vpack.c.b16 %v10706, %v10694
    %v11451 = vpack.c.b16 %v10707, %v10695
    %v11452 = vpack.c.b16 %v10720, %v10708
    %v11453 = vpack.c.b16 %v10721, %v10709
    %v11454 = vpack.c.b16 %v10722, %v10710
    %v11455 = vpack.c.b16 %v10723, %v10711
    %v11456 = vpack.c.b16 %v10724, %v10712
    %v11457 = vpack.c.b16 %v10725, %v10713
    %v11458 = vpack.c.b16 %v10726, %v10714
    %v11459 = vpack.c.b16 %v10727, %v10715
    %v11460 = vpack.c.b16 %v10728, %v10716
    %v11461 = vpack.c.b16 %v10729, %v10717
    %v11462 = vpack.c.b16 %v10730, %v10718
    %v11463 = vpack.c.b16 %v10731, %v10719
    %v11464 = vpack.c.b16 %v10744, %v10732
    %v11465 = vpack.c.b16 %v10745, %v10733
    %v11466 = vpack.c.b16 %v10746, %v10734
    %v11467 = vpack.c.b16 %v10747, %v10735
    %v11468 = vpack.c.b16 %v10748, %v10736
    %v11469 = vpack.c.b16 %v10749, %v10737
    %v11470 = vpack.c.b16 %v10750, %v10738
    %v11471 = vpack.c.b16 %v10751, %v10739
    %v11472 = vpack.c.b16 %v10752, %v10740
    %v11473 = vpack.c.b16 %v10753, %v10741
    %v11474 = vpack.c.b16 %v10754, %v10742
    %v11475 = vpack.c.b16 %v10755, %v10743
    %v11476 = vpack.c.b16 %v10768, %v10756
    %v11477 = vpack.c.b16 %v10769, %v10757
    %v11478 = vpack.c.b16 %v10770, %v10758
    %v11479 = vpack.c.b16 %v10771, %v10759
    %v11480 = vpack.c.b16 %v10772, %v10760
    %v11481 = vpack.c.b16 %v10773, %v10761
    %v11482 = vpack.c.b16 %v10774, %v10762
    %v11483 = vpack.c.b16 %v10775, %v10763
    %v11484 = vpack.c.b16 %v10776, %v10764
    %v11485 = vpack.c.b16 %v10777, %v10765
    %v11486 = vpack.c.b16 %v10778, %v10766
    %v11487 = vpack.c.b16 %v10779, %v10767
    %v11488 = vpack.c.b16 %v10792, %v10780
    %v11489 = vpack.c.b16 %v10793, %v10781
    %v11490 = vpack.c.b16 %v10794, %v10782
    %v11491 = vpack.c.b16 %v10795, %v10783
    %v11492 = vpack.c.b16 %v10796, %v10784
    %v11493 = vpack.c.b16 %v10797, %v10785
    %v11494 = vpack.c.b16 %v10798, %v10786
    %v11495 = vpack.c.b16 %v10799, %v10787
    %v11496 = vpack.c.b16 %v10800, %v10788
    %v11497 = vpack.c.b16 %v10801, %v10789
    %v11498 = vpack.c.b16 %v10802, %v10790
    %v11499 = vpack.c.b16 %v10803, %v10791
    %v11500 = vpack.c.b16 %v10816, %v10804
    %v11501 = vpack.c.b16 %v10817, %v10805
    %v11502 = vpack.c.b16 %v10818, %v10806
    %v11503 = vpack.c.b16 %v10819, %v10807
    %v11504 = vpack.c.b16 %v10820, %v10808
    %v11505 = vpack.c.b16 %v10821, %v10809
    %v11506 = vpack.c.b16 %v10822, %v10810
    %v11507 = vpack.c.b16 %v10823, %v10811
    %v11508 = vpack.c.b16 %v10824, %v10812
    %v11509 = vpack.c.b16 %v10825, %v10813
    %v11510 = vpack.c.b16 %v10826, %v10814
    %v11511 = vpack.c.b16 %v10827, %v10815
    %v11512 = vpack.c.b16 %v10840, %v10828
    %v11513 = vpack.c.b16 %v10841, %v10829
    %v11514 = vpack.c.b16 %v10842, %v10830
    %v11515 = vpack.c.b16 %v10843, %v10831
    %v11516 = vpack.c.b16 %v10844, %v10832
    %v11517 = vpack.c.b16 %v10845, %v10833
    %v11518 = vpack.c.b16 %v10846, %v10834
    %v11519 = vpack.c.b16 %v10847, %v10835
    %v11520 = vpack.c.b16 %v10848, %v10836
    %v11521 = vpack.c.b16 %v10849, %v10837
    %v11522 = vpack.c.b16 %v10850, %v10838
    %v11523 = vpack.c.b16 %v10851, %v10839
    %v11524 = vpack.c.b16 %v10864, %v10852
    %v11525 = vpack.c.b16 %v10865, %v10853
    %v11526 = vpack.c.b16 %v10866, %v10854
    %v11527 = vpack.c.b16 %v10867, %v10855
    %v11528 = vpack.c.b16 %v10868, %v10856
    %v11529 = vpack.c.b16 %v10869, %v10857
    %v11530 = vpack.c.b16 %v10870, %v10858
    %v11531 = vpack.c.b16 %v10871, %v10859
    %v11532 = vpack.c.b16 %v10872, %v10860
    %v11533 = vpack.c.b16 %v10873, %v10861
    %v11534 = vpack.c.b16 %v10874, %v10862
    %v11535 = vpack.c.b16 %v10875, %v10863
    %v11536 = vpack.c.b16 %v10888, %v10876
    %v11537 = vpack.c.b16 %v10889, %v10877
    %v11538 = vpack.c.b16 %v10890, %v10878
    %v11539 = vpack.c.b16 %v10891, %v10879
    %v11540 = vpack.c.b16 %v10892, %v10880
    %v11541 = vpack.c.b16 %v10893, %v10881
    %v11542 = vpack.c.b16 %v10894, %v10882
    %v11543 = vpack.c.b16 %v10895, %v10883
    %v11544 = vpack.c.b16 %v10896, %v10884
    %v11545 = vpack.c.b16 %v10897, %v10885
    %v11546 = vpack.c.b16 %v10898, %v10886
    %v11547 = vpack.c.b16 %v10899, %v10887
    %v11548 = vpack.c.b16 %v10912, %v10900
    %v11549 = vpack.c.b16 %v10913, %v10901
    %v11550 = vpack.c.b16 %v10914, %v10902
    %v11551 = vpack.c.b16 %v10915, %v10903
    %v11552 = vpack.c.b16 %v10916, %v10904
    %v11553 = vpack.c.b16 %v10917, %v10905
    %v11554 = vpack.c.b16 %v10918, %v10906
    %v11555 = vpack.c.b16 %v10919, %v10907
    %v11556 = vpack.c.b16 %v10920, %v10908
    %v11557 = vpack.c.b16 %v10921, %v10909
    %v11558 = vpack.c.b16 %v10922, %v10910
    %v11559 = vpack.c.b16 %v10923, %v10911
    %v11560 = vpack.c.b16 %v10936, %v10924
    %v11561 = vpack.c.b16 %v10937, %v10925
    %v11562 = vpack.c.b16 %v10938, %v10926
    %v11563 = vpack.c.b16 %v10939, %v10927
    %v11564 = vpack.c.b16 %v10940, %v10928
    %v11565 = vpack.c.b16 %v10941, %v10929
    %v11566 = vpack.c.b16 %v10942, %v10930
    %v11567 = vpack.c.b16 %v10943, %v10931
    %v11568 = vpack.c.b16 %v10944, %v10932
    %v11569 = vpack.c.b16 %v10945, %v10933
    %v11570 = vpack.c.b16 %v10946, %v10934
    %v11571 = vpack.c.b16 %v10947, %v10935
    %v11572 = vpack.c.b16 %v10960, %v10948
    %v11573 = vpack.c.b16 %v10961, %v10949
    %v11574 = vpack.c.b16 %v10962, %v10950
    %v11575 = vpack.c.b16 %v10963, %v10951
    %v11576 = vpack.c.b16 %v10964, %v10952
    %v11577 = vpack.c.b16 %v10965, %v10953
    %v11578 = vpack.c.b16 %v10966, %v10954
    %v11579 = vpack.c.b16 %v10967, %v10955
    %v11580 = vpack.c.b16 %v10968, %v10956
    %v11581 = vpack.c.b16 %v10969, %v10957
    %v11582 = vpack.c.b16 %v10970, %v10958
    %v11583 = vpack.c.b16 %v10971, %v10959
    %v11584 = vpack.c.b16 %v10984, %v10972
    %v11585 = vpack.c.b16 %v10985, %v10973
    %v11586 = vpack.c.b16 %v10986, %v10974
    %v11587 = vpack.c.b16 %v10987, %v10975
    %v11588 = vpack.c.b16 %v10988, %v10976
    %v11589 = vpack.c.b16 %v10989, %v10977
    %v11590 = vpack.c.b16 %v10990, %v10978
    %v11591 = vpack.c.b16 %v10991, %v10979
    %v11592 = vpack.c.b16 %v10992, %v10980
    %v11593 = vpack.c.b16 %v10993, %v10981
    %v11594 = vpack.c.b16 %v10994, %v10982
    %v11595 = vpack.c.b16 %v10995, %v10983
    %v11596 = vpack.c.b16 %v11008, %v10996
    %v11597 = vpack.c.b16 %v11009, %v10997
    %v11598 = vpack.c.b16 %v11010, %v10998
    %v11599 = vpack.c.b16 %v11011, %v10999
    %v11600 = vpack.c.b16 %v11012, %v11000
    %v11601 = vpack.c.b16 %v11013, %v11001
    %v11602 = vpack.c.b16 %v11014, %v11002
    %v11603 = vpack.c.b16 %v11015, %v11003
    %v11604 = vpack.c.b16 %v11016, %v11004
    %v11605 = vpack.c.b16 %v11017, %v11005
    %v11606 = vpack.c.b16 %v11018, %v11006
    %v11607 = vpack.c.b16 %v11019, %v11007
    %v11608 = vpack.c.b16 %v11032, %v11020
    %v11609 = vpack.c.b16 %v11033, %v11021
    %v11610 = vpack.c.b16 %v11034, %v11022
    %v11611 = vpack.c.b16 %v11035, %v11023
    %v11612 = vpack.c.b16 %v11036, %v11024
    %v11613 = vpack.c.b16 %v11037, %v11025
    %v11614 = vpack.c.b16 %v11038, %v11026
    %v11615 = vpack.c.b16 %v11039, %v11027
    %v11616 = vpack.c.b16 %v11040, %v11028
    %v11617 = vpack.c.b16 %v11041, %v11029
    %v11618 = vpack.c.b16 %v11042, %v11030
    %v11619 = vpack.c.b16 %v11043, %v11031
    %12196 = vmatprep.subr.bf16.mxu0 %v11129
    %12197 = vmatpush1.bf16.msra.mxu0 %v11128
    %12198 = vmatprep.subr.bf16.mxu0 %v11117
    %12199 = vmatpush1.bf16.msra.mxu0 %v11116
    %12200 = vmatprep.subr.bf16.mxu0 %v11105
    %12201 = vmatpush1.bf16.msra.mxu0 %v11104
    %12202 = vmatprep.subr.bf16.mxu0 %v11093
    %12203 = vmatpush1.bf16.msra.mxu0 %v11092
    %12204 = vmatprep.subr.bf16.mxu0 %v11081
    %12205 = vmatpush1.bf16.msra.mxu0 %v11080
    %12206 = vmatprep.subr.bf16.mxu0 %v11069
    %12207 = vmatpush1.bf16.msra.mxu0 %v11068
    %12208 = vmatprep.subr.bf16.mxu0 %v11057
    %12209 = vmatpush1.bf16.msra.mxu0 %v11056
    %12210 = vmatprep.subr.bf16.mxu0 %v11045
    %12211 = vmatpush1.bf16.msra.mxu0 %v11044
    %12212 = vmatprep.subr.bf16.mxu0 %v11225
    %12213 = vmatpush2.bf16.msra.mxu0 %v11224
    %12214 = vmatprep.subr.bf16.mxu0 %v11213
    %12215 = vmatpush2.bf16.msra.mxu0 %v11212
    %12216 = vmatprep.subr.bf16.mxu0 %v11201
    %12217 = vmatpush2.bf16.msra.mxu0 %v11200
    %12218 = vmatprep.subr.bf16.mxu0 %v11189
    %12219 = vmatpush2.bf16.msra.mxu0 %v11188
    %12220 = vmatprep.subr.bf16.mxu0 %v11177
    %12221 = vmatpush2.bf16.msra.mxu0 %v11176
    %12222 = vmatprep.subr.bf16.mxu0 %v11165
    %12223 = vmatpush2.bf16.msra.mxu0 %v11164
    %12224 = vmatprep.subr.bf16.mxu0 %v11153
    %12225 = vmatpush2.bf16.msra.mxu0 %v11152
    %12226 = vmatprep.subr.bf16.mxu0 %v11141
    %12227 = vmatpush2.bf16.msra.mxu0 %v11140
    %12228 = vmatprep.mubr.bf16.mxu0 %v8671
    %12229 = vmatmul.mubr.bf16.gmra.mxu0 %v8670
    %v12230 = vpop.f32.mrf.mxu0
    %v12231 = vadd.f32 %v9259, %v12230
    %v12232 = vpop.f32.mrf.mxu0
    %v12233 = vadd.f32 %v9263, %v12232
    %v12234 = vpop.f32.mrf.mxu0
    %v12235 = vpop.f32.mrf.mxu0
    %12236 = vdwg.mxu0
    %12237 = vmatprep.subr.bf16.mxu0 %v11321
    %12238 = vmatpush1.bf16.msra.mxu0 %v11320
    %12239 = vmatprep.subr.bf16.mxu0 %v11309
    %12240 = vmatpush1.bf16.msra.mxu0 %v11308
    %12241 = vmatprep.subr.bf16.mxu0 %v11297
    %12242 = vmatpush1.bf16.msra.mxu0 %v11296
    %12243 = vmatprep.subr.bf16.mxu0 %v11285
    %12244 = vmatpush1.bf16.msra.mxu0 %v11284
    %12245 = vmatprep.subr.bf16.mxu0 %v11273
    %12246 = vmatpush1.bf16.msra.mxu0 %v11272
    %12247 = vmatprep.subr.bf16.mxu0 %v11261
    %12248 = vmatpush1.bf16.msra.mxu0 %v11260
    %12249 = vmatprep.subr.bf16.mxu0 %v11249
    %12250 = vmatpush1.bf16.msra.mxu0 %v11248
    %12251 = vmatprep.subr.bf16.mxu0 %v11237
    %12252 = vmatpush1.bf16.msra.mxu0 %v11236
    %12253 = vmatprep.subr.bf16.mxu0 %v11417
    %12254 = vmatpush2.bf16.msra.mxu0 %v11416
    %12255 = vmatprep.subr.bf16.mxu0 %v11405
    %12256 = vmatpush2.bf16.msra.mxu0 %v11404
    %12257 = vmatprep.subr.bf16.mxu0 %v11393
    %12258 = vmatpush2.bf16.msra.mxu0 %v11392
    %12259 = vmatprep.subr.bf16.mxu0 %v11381
    %12260 = vmatpush2.bf16.msra.mxu0 %v11380
    %12261 = vmatprep.subr.bf16.mxu0 %v11369
    %12262 = vmatpush2.bf16.msra.mxu0 %v11368
    %12263 = vmatprep.subr.bf16.mxu0 %v11357
    %12264 = vmatpush2.bf16.msra.mxu0 %v11356
    %12265 = vmatprep.subr.bf16.mxu0 %v11345
    %12266 = vmatpush2.bf16.msra.mxu0 %v11344
    %12267 = vmatprep.subr.bf16.mxu0 %v11333
    %12268 = vmatpush2.bf16.msra.mxu0 %v11332
    %12269 = vmatprep.mubr.bf16.mxu0 %v8673
    %12270 = vmatmul.mubr.bf16.gmra.mxu0 %v8672
    %v12271 = vpop.f32.mrf.mxu0
    %v12272 = vadd.f32 %v12231, %v12271
    %v12273 = vpop.f32.mrf.mxu0
    %v12274 = vadd.f32 %v12233, %v12273
    %v12275 = vpop.f32.mrf.mxu0
    %v12276 = vpop.f32.mrf.mxu0
    %12277 = vdwg.mxu0
    %12278 = vmatprep.subr.bf16.mxu0 %v11513
    %12279 = vmatpush1.bf16.msra.mxu0 %v11512
    %12280 = vmatprep.subr.bf16.mxu0 %v11501
    %12281 = vmatpush1.bf16.msra.mxu0 %v11500
    %12282 = vmatprep.subr.bf16.mxu0 %v11489
    %12283 = vmatpush1.bf16.msra.mxu0 %v11488
    %12284 = vmatprep.subr.bf16.mxu0 %v11477
    %12285 = vmatpush1.bf16.msra.mxu0 %v11476
    %12286 = vmatprep.subr.bf16.mxu0 %v11465
    %12287 = vmatpush1.bf16.msra.mxu0 %v11464
    %12288 = vmatprep.subr.bf16.mxu0 %v11453
    %12289 = vmatpush1.bf16.msra.mxu0 %v11452
    %12290 = vmatprep.subr.bf16.mxu0 %v11441
    %12291 = vmatpush1.bf16.msra.mxu0 %v11440
    %12292 = vmatprep.subr.bf16.mxu0 %v11429
    %12293 = vmatpush1.bf16.msra.mxu0 %v11428
    %12294 = vmatprep.subr.bf16.mxu0 %v11609
    %12295 = vmatpush2.bf16.msra.mxu0 %v11608
    %12296 = vmatprep.subr.bf16.mxu0 %v11597
    %12297 = vmatpush2.bf16.msra.mxu0 %v11596
    %12298 = vmatprep.subr.bf16.mxu0 %v11585
    %12299 = vmatpush2.bf16.msra.mxu0 %v11584
    %12300 = vmatprep.subr.bf16.mxu0 %v11573
    %12301 = vmatpush2.bf16.msra.mxu0 %v11572
    %12302 = vmatprep.subr.bf16.mxu0 %v11561
    %12303 = vmatpush2.bf16.msra.mxu0 %v11560
    %12304 = vmatprep.subr.bf16.mxu0 %v11549
    %12305 = vmatpush2.bf16.msra.mxu0 %v11548
    %12306 = vmatprep.subr.bf16.mxu0 %v11537
    %12307 = vmatpush2.bf16.msra.mxu0 %v11536
    %12308 = vmatprep.subr.bf16.mxu0 %v11525
    %12309 = vmatpush2.bf16.msra.mxu0 %v11524
    %12310 = vmatprep.mubr.bf16.mxu0 %v8675
    %12311 = vmatmul.mubr.bf16.gmra.mxu0 %v8674
    %v12312 = vpop.f32.mrf.mxu0
    %v12313 = vadd.f32 %v12272, %v12312
    %v12314 = vpop.f32.mrf.mxu0
    %v12315 = vadd.f32 %v12274, %v12314
    %v12316 = vpop.f32.mrf.mxu0
    %v12317 = vpop.f32.mrf.mxu0
    %12318 = vdwg.mxu0
    %12319 = vmatprep.subr.bf16.mxu0 %v11131
    %12320 = vmatpush1.bf16.msra.mxu0 %v11130
    %12321 = vmatprep.subr.bf16.mxu0 %v11119
    %12322 = vmatpush1.bf16.msra.mxu0 %v11118
    %12323 = vmatprep.subr.bf16.mxu0 %v11107
    %12324 = vmatpush1.bf16.msra.mxu0 %v11106
    %12325 = vmatprep.subr.bf16.mxu0 %v11095
    %12326 = vmatpush1.bf16.msra.mxu0 %v11094
    %12327 = vmatprep.subr.bf16.mxu0 %v11083
    %12328 = vmatpush1.bf16.msra.mxu0 %v11082
    %12329 = vmatprep.subr.bf16.mxu0 %v11071
    %12330 = vmatpush1.bf16.msra.mxu0 %v11070
    %12331 = vmatprep.subr.bf16.mxu0 %v11059
    %12332 = vmatpush1.bf16.msra.mxu0 %v11058
    %12333 = vmatprep.subr.bf16.mxu0 %v11047
    %12334 = vmatpush1.bf16.msra.mxu0 %v11046
    %12335 = vmatprep.subr.bf16.mxu0 %v11227
    %12336 = vmatpush2.bf16.msra.mxu0 %v11226
    %12337 = vmatprep.subr.bf16.mxu0 %v11215
    %12338 = vmatpush2.bf16.msra.mxu0 %v11214
    %12339 = vmatprep.subr.bf16.mxu0 %v11203
    %12340 = vmatpush2.bf16.msra.mxu0 %v11202
    %12341 = vmatprep.subr.bf16.mxu0 %v11191
    %12342 = vmatpush2.bf16.msra.mxu0 %v11190
    %12343 = vmatprep.subr.bf16.mxu0 %v11179
    %12344 = vmatpush2.bf16.msra.mxu0 %v11178
    %12345 = vmatprep.subr.bf16.mxu0 %v11167
    %12346 = vmatpush2.bf16.msra.mxu0 %v11166
    %12347 = vmatprep.subr.bf16.mxu0 %v11155
    %12348 = vmatpush2.bf16.msra.mxu0 %v11154
    %12349 = vmatprep.subr.bf16.mxu0 %v11143
    %12350 = vmatpush2.bf16.msra.mxu0 %v11142
    %12351 = vmatprep.mubr.bf16.mxu0 %v8671
    %12352 = vmatmul.mubr.bf16.gmra.mxu0 %v8670
    %v12353 = vpop.f32.mrf.mxu0
    %v12354 = vadd.f32 %v9267, %v12353
    %v12355 = vpop.f32.mrf.mxu0
    %v12356 = vadd.f32 %v9271, %v12355
    %v12357 = vpop.f32.mrf.mxu0
    %v12358 = vpop.f32.mrf.mxu0
    %12359 = vdwg.mxu0
    %12360 = vmatprep.subr.bf16.mxu0 %v11323
    %12361 = vmatpush1.bf16.msra.mxu0 %v11322
    %12362 = vmatprep.subr.bf16.mxu0 %v11311
    %12363 = vmatpush1.bf16.msra.mxu0 %v11310
    %12364 = vmatprep.subr.bf16.mxu0 %v11299
    %12365 = vmatpush1.bf16.msra.mxu0 %v11298
    %12366 = vmatprep.subr.bf16.mxu0 %v11287
    %12367 = vmatpush1.bf16.msra.mxu0 %v11286
    %12368 = vmatprep.subr.bf16.mxu0 %v11275
    %12369 = vmatpush1.bf16.msra.mxu0 %v11274
    %12370 = vmatprep.subr.bf16.mxu0 %v11263
    %12371 = vmatpush1.bf16.msra.mxu0 %v11262
    %12372 = vmatprep.subr.bf16.mxu0 %v11251
    %12373 = vmatpush1.bf16.msra.mxu0 %v11250
    %12374 = vmatprep.subr.bf16.mxu0 %v11239
    %12375 = vmatpush1.bf16.msra.mxu0 %v11238
    %12376 = vmatprep.subr.bf16.mxu0 %v11419
    %12377 = vmatpush2.bf16.msra.mxu0 %v11418
    %12378 = vmatprep.subr.bf16.mxu0 %v11407
    %12379 = vmatpush2.bf16.msra.mxu0 %v11406
    %12380 = vmatprep.subr.bf16.mxu0 %v11395
    %12381 = vmatpush2.bf16.msra.mxu0 %v11394
    %12382 = vmatprep.subr.bf16.mxu0 %v11383
    %12383 = vmatpush2.bf16.msra.mxu0 %v11382
    %12384 = vmatprep.subr.bf16.mxu0 %v11371
    %12385 = vmatpush2.bf16.msra.mxu0 %v11370
    %12386 = vmatprep.subr.bf16.mxu0 %v11359
    %12387 = vmatpush2.bf16.msra.mxu0 %v11358
    %12388 = vmatprep.subr.bf16.mxu0 %v11347
    %12389 = vmatpush2.bf16.msra.mxu0 %v11346
    %12390 = vmatprep.subr.bf16.mxu0 %v11335
    %12391 = vmatpush2.bf16.msra.mxu0 %v11334
    %12392 = vmatprep.mubr.bf16.mxu0 %v8673
    %12393 = vmatmul.mubr.bf16.gmra.mxu0 %v8672
    %v12394 = vpop.f32.mrf.mxu0
    %v12395 = vadd.f32 %v12354, %v12394
    %v12396 = vpop.f32.mrf.mxu0
    %v12397 = vadd.f32 %v12356, %v12396
    %v12398 = vpop.f32.mrf.mxu0
    %v12399 = vpop.f32.mrf.mxu0
    %12400 = vdwg.mxu0
    %12401 = vmatprep.subr.bf16.mxu0 %v11515
    %12402 = vmatpush1.bf16.msra.mxu0 %v11514
    %12403 = vmatprep.subr.bf16.mxu0 %v11503
    %12404 = vmatpush1.bf16.msra.mxu0 %v11502
    %12405 = vmatprep.subr.bf16.mxu0 %v11491
    %12406 = vmatpush1.bf16.msra.mxu0 %v11490
    %12407 = vmatprep.subr.bf16.mxu0 %v11479
    %12408 = vmatpush1.bf16.msra.mxu0 %v11478
    %12409 = vmatprep.subr.bf16.mxu0 %v11467
    %12410 = vmatpush1.bf16.msra.mxu0 %v11466
    %12411 = vmatprep.subr.bf16.mxu0 %v11455
    %12412 = vmatpush1.bf16.msra.mxu0 %v11454
    %12413 = vmatprep.subr.bf16.mxu0 %v11443
    %12414 = vmatpush1.bf16.msra.mxu0 %v11442
    %12415 = vmatprep.subr.bf16.mxu0 %v11431
    %12416 = vmatpush1.bf16.msra.mxu0 %v11430
    %12417 = vmatprep.subr.bf16.mxu0 %v11611
    %12418 = vmatpush2.bf16.msra.mxu0 %v11610
    %12419 = vmatprep.subr.bf16.mxu0 %v11599
    %12420 = vmatpush2.bf16.msra.mxu0 %v11598
    %12421 = vmatprep.subr.bf16.mxu0 %v11587
    %12422 = vmatpush2.bf16.msra.mxu0 %v11586
    %12423 = vmatprep.subr.bf16.mxu0 %v11575
    %12424 = vmatpush2.bf16.msra.mxu0 %v11574
    %12425 = vmatprep.subr.bf16.mxu0 %v11563
    %12426 = vmatpush2.bf16.msra.mxu0 %v11562
    %12427 = vmatprep.subr.bf16.mxu0 %v11551
    %12428 = vmatpush2.bf16.msra.mxu0 %v11550
    %12429 = vmatprep.subr.bf16.mxu0 %v11539
    %12430 = vmatpush2.bf16.msra.mxu0 %v11538
    %12431 = vmatprep.subr.bf16.mxu0 %v11527
    %12432 = vmatpush2.bf16.msra.mxu0 %v11526
    %12433 = vmatprep.mubr.bf16.mxu0 %v8675
    %12434 = vmatmul.mubr.bf16.gmra.mxu0 %v8674
    %v12435 = vpop.f32.mrf.mxu0
    %v12436 = vadd.f32 %v12395, %v12435
    %v12437 = vpop.f32.mrf.mxu0
    %v12438 = vadd.f32 %v12397, %v12437
    %v12439 = vpop.f32.mrf.mxu0
    %v12440 = vpop.f32.mrf.mxu0
    %12441 = vdwg.mxu0
    %12442 = vmatprep.subr.bf16.mxu0 %v11133
    %12443 = vmatpush1.bf16.msra.mxu0 %v11132
    %12444 = vmatprep.subr.bf16.mxu0 %v11121
    %12445 = vmatpush1.bf16.msra.mxu0 %v11120
    %12446 = vmatprep.subr.bf16.mxu0 %v11109
    %12447 = vmatpush1.bf16.msra.mxu0 %v11108
    %12448 = vmatprep.subr.bf16.mxu0 %v11097
    %12449 = vmatpush1.bf16.msra.mxu0 %v11096
    %12450 = vmatprep.subr.bf16.mxu0 %v11085
    %12451 = vmatpush1.bf16.msra.mxu0 %v11084
    %12452 = vmatprep.subr.bf16.mxu0 %v11073
    %12453 = vmatpush1.bf16.msra.mxu0 %v11072
    %12454 = vmatprep.subr.bf16.mxu0 %v11061
    %12455 = vmatpush1.bf16.msra.mxu0 %v11060
    %12456 = vmatprep.subr.bf16.mxu0 %v11049
    %12457 = vmatpush1.bf16.msra.mxu0 %v11048
    %12458 = vmatprep.subr.bf16.mxu0 %v11229
    %12459 = vmatpush2.bf16.msra.mxu0 %v11228
    %12460 = vmatprep.subr.bf16.mxu0 %v11217
    %12461 = vmatpush2.bf16.msra.mxu0 %v11216
    %12462 = vmatprep.subr.bf16.mxu0 %v11205
    %12463 = vmatpush2.bf16.msra.mxu0 %v11204
    %12464 = vmatprep.subr.bf16.mxu0 %v11193
    %12465 = vmatpush2.bf16.msra.mxu0 %v11192
    %12466 = vmatprep.subr.bf16.mxu0 %v11181
    %12467 = vmatpush2.bf16.msra.mxu0 %v11180
    %12468 = vmatprep.subr.bf16.mxu0 %v11169
    %12469 = vmatpush2.bf16.msra.mxu0 %v11168
    %12470 = vmatprep.subr.bf16.mxu0 %v11157
    %12471 = vmatpush2.bf16.msra.mxu0 %v11156
    %12472 = vmatprep.subr.bf16.mxu0 %v11145
    %12473 = vmatpush2.bf16.msra.mxu0 %v11144
    %12474 = vmatprep.mubr.bf16.mxu0 %v8671
    %12475 = vmatmul.mubr.bf16.gmra.mxu0 %v8670
    %v12476 = vpop.f32.mrf.mxu0
    %v12477 = vadd.f32 %v9275, %v12476
    %v12478 = vpop.f32.mrf.mxu0
    %v12479 = vadd.f32 %v9279, %v12478
    %v12480 = vpop.f32.mrf.mxu0
    %v12481 = vpop.f32.mrf.mxu0
    %12482 = vdwg.mxu0
    %12483 = vmatprep.subr.bf16.mxu0 %v11325
    %12484 = vmatpush1.bf16.msra.mxu0 %v11324
    %12485 = vmatprep.subr.bf16.mxu0 %v11313
    %12486 = vmatpush1.bf16.msra.mxu0 %v11312
    %12487 = vmatprep.subr.bf16.mxu0 %v11301
    %12488 = vmatpush1.bf16.msra.mxu0 %v11300
    %12489 = vmatprep.subr.bf16.mxu0 %v11289
    %12490 = vmatpush1.bf16.msra.mxu0 %v11288
    %12491 = vmatprep.subr.bf16.mxu0 %v11277
    %12492 = vmatpush1.bf16.msra.mxu0 %v11276
    %12493 = vmatprep.subr.bf16.mxu0 %v11265
    %12494 = vmatpush1.bf16.msra.mxu0 %v11264
    %12495 = vmatprep.subr.bf16.mxu0 %v11253
    %12496 = vmatpush1.bf16.msra.mxu0 %v11252
    %12497 = vmatprep.subr.bf16.mxu0 %v11241
    %12498 = vmatpush1.bf16.msra.mxu0 %v11240
    %12499 = vmatprep.subr.bf16.mxu0 %v11421
    %12500 = vmatpush2.bf16.msra.mxu0 %v11420
    %12501 = vmatprep.subr.bf16.mxu0 %v11409
    %12502 = vmatpush2.bf16.msra.mxu0 %v11408
    %12503 = vmatprep.subr.bf16.mxu0 %v11397
    %12504 = vmatpush2.bf16.msra.mxu0 %v11396
    %12505 = vmatprep.subr.bf16.mxu0 %v11385
    %12506 = vmatpush2.bf16.msra.mxu0 %v11384
    %12507 = vmatprep.subr.bf16.mxu0 %v11373
    %12508 = vmatpush2.bf16.msra.mxu0 %v11372
    %12509 = vmatprep.subr.bf16.mxu0 %v11361
    %12510 = vmatpush2.bf16.msra.mxu0 %v11360
    %12511 = vmatprep.subr.bf16.mxu0 %v11349
    %12512 = vmatpush2.bf16.msra.mxu0 %v11348
    %12513 = vmatprep.subr.bf16.mxu0 %v11337
    %12514 = vmatpush2.bf16.msra.mxu0 %v11336
    %12515 = vmatprep.mubr.bf16.mxu0 %v8673
    %12516 = vmatmul.mubr.bf16.gmra.mxu0 %v8672
    %v12517 = vpop.f32.mrf.mxu0
    %v12518 = vadd.f32 %v12477, %v12517
    %v12519 = vpop.f32.mrf.mxu0
    %v12520 = vadd.f32 %v12479, %v12519
    %v12521 = vpop.f32.mrf.mxu0
    %v12522 = vpop.f32.mrf.mxu0
    %12523 = vdwg.mxu0
    %12524 = vmatprep.subr.bf16.mxu0 %v11517
    %12525 = vmatpush1.bf16.msra.mxu0 %v11516
    %12526 = vmatprep.subr.bf16.mxu0 %v11505
    %12527 = vmatpush1.bf16.msra.mxu0 %v11504
    %12528 = vmatprep.subr.bf16.mxu0 %v11493
    %12529 = vmatpush1.bf16.msra.mxu0 %v11492
    %12530 = vmatprep.subr.bf16.mxu0 %v11481
    %12531 = vmatpush1.bf16.msra.mxu0 %v11480
    %12532 = vmatprep.subr.bf16.mxu0 %v11469
    %12533 = vmatpush1.bf16.msra.mxu0 %v11468
    %12534 = vmatprep.subr.bf16.mxu0 %v11457
    %12535 = vmatpush1.bf16.msra.mxu0 %v11456
    %12536 = vmatprep.subr.bf16.mxu0 %v11445
    %12537 = vmatpush1.bf16.msra.mxu0 %v11444
    %12538 = vmatprep.subr.bf16.mxu0 %v11433
    %12539 = vmatpush1.bf16.msra.mxu0 %v11432
    %12540 = vmatprep.subr.bf16.mxu0 %v11613
    %12541 = vmatpush2.bf16.msra.mxu0 %v11612
    %12542 = vmatprep.subr.bf16.mxu0 %v11601
    %12543 = vmatpush2.bf16.msra.mxu0 %v11600
    %12544 = vmatprep.subr.bf16.mxu0 %v11589
    %12545 = vmatpush2.bf16.msra.mxu0 %v11588
    %12546 = vmatprep.subr.bf16.mxu0 %v11577
    %12547 = vmatpush2.bf16.msra.mxu0 %v11576
    %12548 = vmatprep.subr.bf16.mxu0 %v11565
    %12549 = vmatpush2.bf16.msra.mxu0 %v11564
    %12550 = vmatprep.subr.bf16.mxu0 %v11553
    %12551 = vmatpush2.bf16.msra.mxu0 %v11552
    %12552 = vmatprep.subr.bf16.mxu0 %v11541
    %12553 = vmatpush2.bf16.msra.mxu0 %v11540
    %12554 = vmatprep.subr.bf16.mxu0 %v11529
    %12555 = vmatpush2.bf16.msra.mxu0 %v11528
    %12556 = vmatprep.mubr.bf16.mxu0 %v8675
    %12557 = vmatmul.mubr.bf16.gmra.mxu0 %v8674
    %v12558 = vpop.f32.mrf.mxu0
    %v12559 = vadd.f32 %v12518, %v12558
    %v12560 = vpop.f32.mrf.mxu0
    %v12561 = vadd.f32 %v12520, %v12560
    %v12562 = vpop.f32.mrf.mxu0
    %v12563 = vpop.f32.mrf.mxu0
    %12564 = vdwg.mxu0
    %12565 = vmatprep.subr.bf16.mxu0 %v11135
    %12566 = vmatpush1.bf16.msra.mxu0 %v11134
    %12567 = vmatprep.subr.bf16.mxu0 %v11123
    %12568 = vmatpush1.bf16.msra.mxu0 %v11122
    %12569 = vmatprep.subr.bf16.mxu0 %v11111
    %12570 = vmatpush1.bf16.msra.mxu0 %v11110
    %12571 = vmatprep.subr.bf16.mxu0 %v11099
    %12572 = vmatpush1.bf16.msra.mxu0 %v11098
    %12573 = vmatprep.subr.bf16.mxu0 %v11087
    %12574 = vmatpush1.bf16.msra.mxu0 %v11086
    %12575 = vmatprep.subr.bf16.mxu0 %v11075
    %12576 = vmatpush1.bf16.msra.mxu0 %v11074
    %12577 = vmatprep.subr.bf16.mxu0 %v11063
    %12578 = vmatpush1.bf16.msra.mxu0 %v11062
    %12579 = vmatprep.subr.bf16.mxu0 %v11051
    %12580 = vmatpush1.bf16.msra.mxu0 %v11050
    %12581 = vmatprep.subr.bf16.mxu0 %v11231
    %12582 = vmatpush2.bf16.msra.mxu0 %v11230
    %12583 = vmatprep.subr.bf16.mxu0 %v11219
    %12584 = vmatpush2.bf16.msra.mxu0 %v11218
    %12585 = vmatprep.subr.bf16.mxu0 %v11207
    %12586 = vmatpush2.bf16.msra.mxu0 %v11206
    %12587 = vmatprep.subr.bf16.mxu0 %v11195
    %12588 = vmatpush2.bf16.msra.mxu0 %v11194
    %12589 = vmatprep.subr.bf16.mxu0 %v11183
    %12590 = vmatpush2.bf16.msra.mxu0 %v11182
    %12591 = vmatprep.subr.bf16.mxu0 %v11171
    %12592 = vmatpush2.bf16.msra.mxu0 %v11170
    %12593 = vmatprep.subr.bf16.mxu0 %v11159
    %12594 = vmatpush2.bf16.msra.mxu0 %v11158
    %12595 = vmatprep.subr.bf16.mxu0 %v11147
    %12596 = vmatpush2.bf16.msra.mxu0 %v11146
    %12597 = vmatprep.mubr.bf16.mxu0 %v8671
    %12598 = vmatmul.mubr.bf16.gmra.mxu0 %v8670
    %v12599 = vpop.f32.mrf.mxu0
    %v12600 = vadd.f32 %v9283, %v12599
    %v12601 = vpop.f32.mrf.mxu0
    %v12602 = vadd.f32 %v9287, %v12601
    %v12603 = vpop.f32.mrf.mxu0
    %v12604 = vpop.f32.mrf.mxu0
    %12605 = vdwg.mxu0
    %12606 = vmatprep.subr.bf16.mxu0 %v11327
    %12607 = vmatpush1.bf16.msra.mxu0 %v11326
    %12608 = vmatprep.subr.bf16.mxu0 %v11315
    %12609 = vmatpush1.bf16.msra.mxu0 %v11314
    %12610 = vmatprep.subr.bf16.mxu0 %v11303
    %12611 = vmatpush1.bf16.msra.mxu0 %v11302
    %12612 = vmatprep.subr.bf16.mxu0 %v11291
    %12613 = vmatpush1.bf16.msra.mxu0 %v11290
    %12614 = vmatprep.subr.bf16.mxu0 %v11279
    %12615 = vmatpush1.bf16.msra.mxu0 %v11278
    %12616 = vmatprep.subr.bf16.mxu0 %v11267
    %12617 = vmatpush1.bf16.msra.mxu0 %v11266
    %12618 = vmatprep.subr.bf16.mxu0 %v11255
    %12619 = vmatpush1.bf16.msra.mxu0 %v11254
    %12620 = vmatprep.subr.bf16.mxu0 %v11243
    %12621 = vmatpush1.bf16.msra.mxu0 %v11242
    %12622 = vmatprep.subr.bf16.mxu0 %v11423
    %12623 = vmatpush2.bf16.msra.mxu0 %v11422
    %12624 = vmatprep.subr.bf16.mxu0 %v11411
    %12625 = vmatpush2.bf16.msra.mxu0 %v11410
    %12626 = vmatprep.subr.bf16.mxu0 %v11399
    %12627 = vmatpush2.bf16.msra.mxu0 %v11398
    %12628 = vmatprep.subr.bf16.mxu0 %v11387
    %12629 = vmatpush2.bf16.msra.mxu0 %v11386
    %12630 = vmatprep.subr.bf16.mxu0 %v11375
    %12631 = vmatpush2.bf16.msra.mxu0 %v11374
    %12632 = vmatprep.subr.bf16.mxu0 %v11363
    %12633 = vmatpush2.bf16.msra.mxu0 %v11362
    %12634 = vmatprep.subr.bf16.mxu0 %v11351
    %12635 = vmatpush2.bf16.msra.mxu0 %v11350
    %12636 = vmatprep.subr.bf16.mxu0 %v11339
    %12637 = vmatpush2.bf16.msra.mxu0 %v11338
    %12638 = vmatprep.mubr.bf16.mxu0 %v8673
    %12639 = vmatmul.mubr.bf16.gmra.mxu0 %v8672
    %v12640 = vpop.f32.mrf.mxu0
    %v12641 = vadd.f32 %v12600, %v12640
    %v12642 = vpop.f32.mrf.mxu0
    %v12643 = vadd.f32 %v12602, %v12642
    %v12644 = vpop.f32.mrf.mxu0
    %v12645 = vpop.f32.mrf.mxu0
    %12646 = vdwg.mxu0
    %12647 = vmatprep.subr.bf16.mxu0 %v11519
    %12648 = vmatpush1.bf16.msra.mxu0 %v11518
    %12649 = vmatprep.subr.bf16.mxu0 %v11507
    %12650 = vmatpush1.bf16.msra.mxu0 %v11506
    %12651 = vmatprep.subr.bf16.mxu0 %v11495
    %12652 = vmatpush1.bf16.msra.mxu0 %v11494
    %12653 = vmatprep.subr.bf16.mxu0 %v11483
    %12654 = vmatpush1.bf16.msra.mxu0 %v11482
    %12655 = vmatprep.subr.bf16.mxu0 %v11471
    %12656 = vmatpush1.bf16.msra.mxu0 %v11470
    %12657 = vmatprep.subr.bf16.mxu0 %v11459
    %12658 = vmatpush1.bf16.msra.mxu0 %v11458
    %12659 = vmatprep.subr.bf16.mxu0 %v11447
    %12660 = vmatpush1.bf16.msra.mxu0 %v11446
    %12661 = vmatprep.subr.bf16.mxu0 %v11435
    %12662 = vmatpush1.bf16.msra.mxu0 %v11434
    %12663 = vmatprep.subr.bf16.mxu0 %v11615
    %12664 = vmatpush2.bf16.msra.mxu0 %v11614
    %12665 = vmatprep.subr.bf16.mxu0 %v11603
    %12666 = vmatpush2.bf16.msra.mxu0 %v11602
    %12667 = vmatprep.subr.bf16.mxu0 %v11591
    %12668 = vmatpush2.bf16.msra.mxu0 %v11590
    %12669 = vmatprep.subr.bf16.mxu0 %v11579
    %12670 = vmatpush2.bf16.msra.mxu0 %v11578
    %12671 = vmatprep.subr.bf16.mxu0 %v11567
    %12672 = vmatpush2.bf16.msra.mxu0 %v11566
    %12673 = vmatprep.subr.bf16.mxu0 %v11555
    %12674 = vmatpush2.bf16.msra.mxu0 %v11554
    %12675 = vmatprep.subr.bf16.mxu0 %v11543
    %12676 = vmatpush2.bf16.msra.mxu0 %v11542
    %12677 = vmatprep.subr.bf16.mxu0 %v11531
    %12678 = vmatpush2.bf16.msra.mxu0 %v11530
    %12679 = vmatprep.mubr.bf16.mxu0 %v8675
    %12680 = vmatmul.mubr.bf16.gmra.mxu0 %v8674
    %v12681 = vpop.f32.mrf.mxu0
    %v12682 = vadd.f32 %v12641, %v12681
    %v12683 = vpop.f32.mrf.mxu0
    %v12684 = vadd.f32 %v12643, %v12683
    %v12685 = vpop.f32.mrf.mxu0
    %v12686 = vpop.f32.mrf.mxu0
    %12687 = vdwg.mxu0
    %12688 = vmatprep.subr.bf16.mxu0 %v11137
    %12689 = vmatpush1.bf16.msra.mxu0 %v11136
    %12690 = vmatprep.subr.bf16.mxu0 %v11125
    %12691 = vmatpush1.bf16.msra.mxu0 %v11124
    %12692 = vmatprep.subr.bf16.mxu0 %v11113
    %12693 = vmatpush1.bf16.msra.mxu0 %v11112
    %12694 = vmatprep.subr.bf16.mxu0 %v11101
    %12695 = vmatpush1.bf16.msra.mxu0 %v11100
    %12696 = vmatprep.subr.bf16.mxu0 %v11089
    %12697 = vmatpush1.bf16.msra.mxu0 %v11088
    %12698 = vmatprep.subr.bf16.mxu0 %v11077
    %12699 = vmatpush1.bf16.msra.mxu0 %v11076
    %12700 = vmatprep.subr.bf16.mxu0 %v11065
    %12701 = vmatpush1.bf16.msra.mxu0 %v11064
    %12702 = vmatprep.subr.bf16.mxu0 %v11053
    %12703 = vmatpush1.bf16.msra.mxu0 %v11052
    %12704 = vmatprep.subr.bf16.mxu0 %v11233
    %12705 = vmatpush2.bf16.msra.mxu0 %v11232
    %12706 = vmatprep.subr.bf16.mxu0 %v11221
    %12707 = vmatpush2.bf16.msra.mxu0 %v11220
    %12708 = vmatprep.subr.bf16.mxu0 %v11209
    %12709 = vmatpush2.bf16.msra.mxu0 %v11208
    %12710 = vmatprep.subr.bf16.mxu0 %v11197
    %12711 = vmatpush2.bf16.msra.mxu0 %v11196
    %12712 = vmatprep.subr.bf16.mxu0 %v11185
    %12713 = vmatpush2.bf16.msra.mxu0 %v11184
    %12714 = vmatprep.subr.bf16.mxu0 %v11173
    %12715 = vmatpush2.bf16.msra.mxu0 %v11172
    %12716 = vmatprep.subr.bf16.mxu0 %v11161
    %12717 = vmatpush2.bf16.msra.mxu0 %v11160
    %12718 = vmatprep.subr.bf16.mxu0 %v11149
    %12719 = vmatpush2.bf16.msra.mxu0 %v11148
    %12720 = vmatprep.mubr.bf16.mxu0 %v8671
    %12721 = vmatmul.mubr.bf16.gmra.mxu0 %v8670
    %v12722 = vpop.f32.mrf.mxu0
    %v12723 = vadd.f32 %v9291, %v12722
    %v12724 = vpop.f32.mrf.mxu0
    %v12725 = vadd.f32 %v9295, %v12724
    %v12726 = vpop.f32.mrf.mxu0
    %v12727 = vpop.f32.mrf.mxu0
    %12728 = vdwg.mxu0
    %12729 = vmatprep.subr.bf16.mxu0 %v11329
    %12730 = vmatpush1.bf16.msra.mxu0 %v11328
    %12731 = vmatprep.subr.bf16.mxu0 %v11317
    %12732 = vmatpush1.bf16.msra.mxu0 %v11316
    %12733 = vmatprep.subr.bf16.mxu0 %v11305
    %12734 = vmatpush1.bf16.msra.mxu0 %v11304
    %12735 = vmatprep.subr.bf16.mxu0 %v11293
    %12736 = vmatpush1.bf16.msra.mxu0 %v11292
    %12737 = vmatprep.subr.bf16.mxu0 %v11281
    %12738 = vmatpush1.bf16.msra.mxu0 %v11280
    %12739 = vmatprep.subr.bf16.mxu0 %v11269
    %12740 = vmatpush1.bf16.msra.mxu0 %v11268
    %12741 = vmatprep.subr.bf16.mxu0 %v11257
    %12742 = vmatpush1.bf16.msra.mxu0 %v11256
    %12743 = vmatprep.subr.bf16.mxu0 %v11245
    %12744 = vmatpush1.bf16.msra.mxu0 %v11244
    %12745 = vmatprep.subr.bf16.mxu0 %v11425
    %12746 = vmatpush2.bf16.msra.mxu0 %v11424
    %12747 = vmatprep.subr.bf16.mxu0 %v11413
    %12748 = vmatpush2.bf16.msra.mxu0 %v11412
    %12749 = vmatprep.subr.bf16.mxu0 %v11401
    %12750 = vmatpush2.bf16.msra.mxu0 %v11400
    %12751 = vmatprep.subr.bf16.mxu0 %v11389
    %12752 = vmatpush2.bf16.msra.mxu0 %v11388
    %12753 = vmatprep.subr.bf16.mxu0 %v11377
    %12754 = vmatpush2.bf16.msra.mxu0 %v11376
    %12755 = vmatprep.subr.bf16.mxu0 %v11365
    %12756 = vmatpush2.bf16.msra.mxu0 %v11364
    %12757 = vmatprep.subr.bf16.mxu0 %v11353
    %12758 = vmatpush2.bf16.msra.mxu0 %v11352
    %12759 = vmatprep.subr.bf16.mxu0 %v11341
    %12760 = vmatpush2.bf16.msra.mxu0 %v11340
    %12761 = vmatprep.mubr.bf16.mxu0 %v8673
    %12762 = vmatmul.mubr.bf16.gmra.mxu0 %v8672
    %v12763 = vpop.f32.mrf.mxu0
    %v12764 = vadd.f32 %v12723, %v12763
    %v12765 = vpop.f32.mrf.mxu0
    %v12766 = vadd.f32 %v12725, %v12765
    %v12767 = vpop.f32.mrf.mxu0
    %v12768 = vpop.f32.mrf.mxu0
    %12769 = vdwg.mxu0
    %12770 = vmatprep.subr.bf16.mxu0 %v11521
    %12771 = vmatpush1.bf16.msra.mxu0 %v11520
    %12772 = vmatprep.subr.bf16.mxu0 %v11509
    %12773 = vmatpush1.bf16.msra.mxu0 %v11508
    %12774 = vmatprep.subr.bf16.mxu0 %v11497
    %12775 = vmatpush1.bf16.msra.mxu0 %v11496
    %12776 = vmatprep.subr.bf16.mxu0 %v11485
    %12777 = vmatpush1.bf16.msra.mxu0 %v11484
    %12778 = vmatprep.subr.bf16.mxu0 %v11473
    %12779 = vmatpush1.bf16.msra.mxu0 %v11472
    %12780 = vmatprep.subr.bf16.mxu0 %v11461
    %12781 = vmatpush1.bf16.msra.mxu0 %v11460
    %12782 = vmatprep.subr.bf16.mxu0 %v11449
    %12783 = vmatpush1.bf16.msra.mxu0 %v11448
    %12784 = vmatprep.subr.bf16.mxu0 %v11437
    %12785 = vmatpush1.bf16.msra.mxu0 %v11436
    %12786 = vmatprep.subr.bf16.mxu0 %v11617
    %12787 = vmatpush2.bf16.msra.mxu0 %v11616
    %12788 = vmatprep.subr.bf16.mxu0 %v11605
    %12789 = vmatpush2.bf16.msra.mxu0 %v11604
    %12790 = vmatprep.subr.bf16.mxu0 %v11593
    %12791 = vmatpush2.bf16.msra.mxu0 %v11592
    %12792 = vmatprep.subr.bf16.mxu0 %v11581
    %12793 = vmatpush2.bf16.msra.mxu0 %v11580
    %12794 = vmatprep.subr.bf16.mxu0 %v11569
    %12795 = vmatpush2.bf16.msra.mxu0 %v11568
    %12796 = vmatprep.subr.bf16.mxu0 %v11557
    %12797 = vmatpush2.bf16.msra.mxu0 %v11556
    %12798 = vmatprep.subr.bf16.mxu0 %v11545
    %12799 = vmatpush2.bf16.msra.mxu0 %v11544
    %12800 = vmatprep.subr.bf16.mxu0 %v11533
    %12801 = vmatpush2.bf16.msra.mxu0 %v11532
    %12802 = vmatprep.mubr.bf16.mxu0 %v8675
    %12803 = vmatmul.mubr.bf16.gmra.mxu0 %v8674
    %v12804 = vpop.f32.mrf.mxu0
    %v12805 = vadd.f32 %v12764, %v12804
    %v12806 = vpop.f32.mrf.mxu0
    %v12807 = vadd.f32 %v12766, %v12806
    %v12808 = vpop.f32.mrf.mxu0
    %v12809 = vpop.f32.mrf.mxu0
    %12810 = vdwg.mxu0
    %12811 = vmatprep.subr.bf16.mxu0 %v11139
    %12812 = vmatpush1.bf16.msra.mxu0 %v11138
    %12813 = vmatprep.subr.bf16.mxu0 %v11127
    %12814 = vmatpush1.bf16.msra.mxu0 %v11126
    %12815 = vmatprep.subr.bf16.mxu0 %v11115
    %12816 = vmatpush1.bf16.msra.mxu0 %v11114
    %12817 = vmatprep.subr.bf16.mxu0 %v11103
    %12818 = vmatpush1.bf16.msra.mxu0 %v11102
    %12819 = vmatprep.subr.bf16.mxu0 %v11091
    %12820 = vmatpush1.bf16.msra.mxu0 %v11090
    %12821 = vmatprep.subr.bf16.mxu0 %v11079
    %12822 = vmatpush1.bf16.msra.mxu0 %v11078
    %12823 = vmatprep.subr.bf16.mxu0 %v11067
    %12824 = vmatpush1.bf16.msra.mxu0 %v11066
    %12825 = vmatprep.subr.bf16.mxu0 %v11055
    %12826 = vmatpush1.bf16.msra.mxu0 %v11054
    %12827 = vmatprep.subr.bf16.mxu0 %v11235
    %12828 = vmatpush2.bf16.msra.mxu0 %v11234
    %12829 = vmatprep.subr.bf16.mxu0 %v11223
    %12830 = vmatpush2.bf16.msra.mxu0 %v11222
    %12831 = vmatprep.subr.bf16.mxu0 %v11211
    %12832 = vmatpush2.bf16.msra.mxu0 %v11210
    %12833 = vmatprep.subr.bf16.mxu0 %v11199
    %12834 = vmatpush2.bf16.msra.mxu0 %v11198
    %12835 = vmatprep.subr.bf16.mxu0 %v11187
    %12836 = vmatpush2.bf16.msra.mxu0 %v11186
    %12837 = vmatprep.subr.bf16.mxu0 %v11175
    %12838 = vmatpush2.bf16.msra.mxu0 %v11174
    %12839 = vmatprep.subr.bf16.mxu0 %v11163
    %12840 = vmatpush2.bf16.msra.mxu0 %v11162
    %12841 = vmatprep.subr.bf16.mxu0 %v11151
    %12842 = vmatpush2.bf16.msra.mxu0 %v11150
    %12843 = vmatprep.mubr.bf16.mxu0 %v8671
    %12844 = vmatmul.mubr.bf16.gmra.mxu0 %v8670
    %v12845 = vpop.f32.mrf.mxu0
    %v12846 = vadd.f32 %v9299, %v12845
    %v12847 = vpop.f32.mrf.mxu0
    %v12848 = vadd.f32 %v9303, %v12847
    %v12849 = vpop.f32.mrf.mxu0
    %v12850 = vpop.f32.mrf.mxu0
    %12851 = vdwg.mxu0
    %12852 = vmatprep.subr.bf16.mxu0 %v11331
    %12853 = vmatpush1.bf16.msra.mxu0 %v11330
    %12854 = vmatprep.subr.bf16.mxu0 %v11319
    %12855 = vmatpush1.bf16.msra.mxu0 %v11318
    %12856 = vmatprep.subr.bf16.mxu0 %v11307
    %12857 = vmatpush1.bf16.msra.mxu0 %v11306
    %12858 = vmatprep.subr.bf16.mxu0 %v11295
    %12859 = vmatpush1.bf16.msra.mxu0 %v11294
    %12860 = vmatprep.subr.bf16.mxu0 %v11283
    %12861 = vmatpush1.bf16.msra.mxu0 %v11282
    %12862 = vmatprep.subr.bf16.mxu0 %v11271
    %12863 = vmatpush1.bf16.msra.mxu0 %v11270
    %12864 = vmatprep.subr.bf16.mxu0 %v11259
    %12865 = vmatpush1.bf16.msra.mxu0 %v11258
    %12866 = vmatprep.subr.bf16.mxu0 %v11247
    %12867 = vmatpush1.bf16.msra.mxu0 %v11246
    %12868 = vmatprep.subr.bf16.mxu0 %v11427
    %12869 = vmatpush2.bf16.msra.mxu0 %v11426
    %12870 = vmatprep.subr.bf16.mxu0 %v11415
    %12871 = vmatpush2.bf16.msra.mxu0 %v11414
    %12872 = vmatprep.subr.bf16.mxu0 %v11403
    %12873 = vmatpush2.bf16.msra.mxu0 %v11402
    %12874 = vmatprep.subr.bf16.mxu0 %v11391
    %12875 = vmatpush2.bf16.msra.mxu0 %v11390
    %12876 = vmatprep.subr.bf16.mxu0 %v11379
    %12877 = vmatpush2.bf16.msra.mxu0 %v11378
    %12878 = vmatprep.subr.bf16.mxu0 %v11367
    %12879 = vmatpush2.bf16.msra.mxu0 %v11366
    %12880 = vmatprep.subr.bf16.mxu0 %v11355
    %12881 = vmatpush2.bf16.msra.mxu0 %v11354
    %12882 = vmatprep.subr.bf16.mxu0 %v11343
    %12883 = vmatpush2.bf16.msra.mxu0 %v11342
    %12884 = vmatprep.mubr.bf16.mxu0 %v8673
    %12885 = vmatmul.mubr.bf16.gmra.mxu0 %v8672
    %v12886 = vpop.f32.mrf.mxu0
    %v12887 = vadd.f32 %v12846, %v12886
    %v12888 = vpop.f32.mrf.mxu0
    %v12889 = vadd.f32 %v12848, %v12888
    %v12890 = vpop.f32.mrf.mxu0
    %v12891 = vpop.f32.mrf.mxu0
    %12892 = vdwg.mxu0
    %12893 = vmatprep.subr.bf16.mxu0 %v11523
    %12894 = vmatpush1.bf16.msra.mxu0 %v11522
    %12895 = vmatprep.subr.bf16.mxu0 %v11511
    %12896 = vmatpush1.bf16.msra.mxu0 %v11510
    %12897 = vmatprep.subr.bf16.mxu0 %v11499
    %12898 = vmatpush1.bf16.msra.mxu0 %v11498
    %12899 = vmatprep.subr.bf16.mxu0 %v11487
    %12900 = vmatpush1.bf16.msra.mxu0 %v11486
    %12901 = vmatprep.subr.bf16.mxu0 %v11475
    %12902 = vmatpush1.bf16.msra.mxu0 %v11474
    %12903 = vmatprep.subr.bf16.mxu0 %v11463
    %12904 = vmatpush1.bf16.msra.mxu0 %v11462
    %12905 = vmatprep.subr.bf16.mxu0 %v11451
    %12906 = vmatpush1.bf16.msra.mxu0 %v11450
    %12907 = vmatprep.subr.bf16.mxu0 %v11439
    %12908 = vmatpush1.bf16.msra.mxu0 %v11438
    %12909 = vmatprep.subr.bf16.mxu0 %v11619
    %12910 = vmatpush2.bf16.msra.mxu0 %v11618
    %12911 = vmatprep.subr.bf16.mxu0 %v11607
    %12912 = vmatpush2.bf16.msra.mxu0 %v11606
    %12913 = vmatprep.subr.bf16.mxu0 %v11595
    %12914 = vmatpush2.bf16.msra.mxu0 %v11594
    %12915 = vmatprep.subr.bf16.mxu0 %v11583
    %12916 = vmatpush2.bf16.msra.mxu0 %v11582
    %12917 = vmatprep.subr.bf16.mxu0 %v11571
    %12918 = vmatpush2.bf16.msra.mxu0 %v11570
    %12919 = vmatprep.subr.bf16.mxu0 %v11559
    %12920 = vmatpush2.bf16.msra.mxu0 %v11558
    %12921 = vmatprep.subr.bf16.mxu0 %v11547
    %12922 = vmatpush2.bf16.msra.mxu0 %v11546
    %12923 = vmatprep.subr.bf16.mxu0 %v11535
    %12924 = vmatpush2.bf16.msra.mxu0 %v11534
    %12925 = vmatprep.mubr.bf16.mxu0 %v8675
    %12926 = vmatmul.mubr.bf16.gmra.mxu0 %v8674
    %v12927 = vpop.f32.mrf.mxu0
    %v12928 = vadd.f32 %v12887, %v12927
    %v12929 = vpop.f32.mrf.mxu0
    %v12930 = vadd.f32 %v12889, %v12929
    %v12931 = vpop.f32.mrf.mxu0
    %v12932 = vpop.f32.mrf.mxu0
    %12933 = vdwg.mxu0
    %v12934 = vld [vmem:[%s13] sm:$0xff]
    %v12935 = vld [vmem:[%s13 + $0x8] sm:$0xf]
    %v12938 = vlaneseq
    %v12939 = vshrl.u32 %v12938, 7
    %v12940 = vsub.s32 0, %v12939
    %v12941 = vrot.slane %v12934, %v12940
    %v12942 = vlaneseq
    %v12943 = vshrl.u32 %v12942, 7
    %v12944 = vsub.s32 1, %v12943
    %v12945 = vrot.slane %v12934, %v12944
    %v12946 = vlaneseq
    %v12947 = vshrl.u32 %v12946, 7
    %v12948 = vsub.s32 2, %v12947
    %v12949 = vrot.slane %v12934, %v12948
    %v12950 = vlaneseq
    %v12951 = vshrl.u32 %v12950, 7
    %v12952 = vsub.s32 3, %v12951
    %v12953 = vrot.slane %v12934, %v12952
    %v12954 = vlaneseq
    %v12955 = vshrl.u32 %v12954, 7
    %v12956 = vsub.s32 4, %v12955
    %v12957 = vrot.slane %v12934, %v12956
    %v12958 = vlaneseq
    %v12959 = vshrl.u32 %v12958, 7
    %v12960 = vsub.s32 5, %v12959
    %v12961 = vrot.slane %v12934, %v12960
    %v12962 = vlaneseq
    %v12963 = vshrl.u32 %v12962, 7
    %v12964 = vsub.s32 6, %v12963
    %v12965 = vrot.slane %v12934, %v12964
    %v12966 = vlaneseq
    %v12967 = vshrl.u32 %v12966, 7
    %v12968 = vsub.s32 7, %v12967
    %v12969 = vrot.slane %v12934, %v12968
    %v12970 = vlaneseq
    %v12971 = vshrl.u32 %v12970, 7
    %v12972 = vsub.s32 0, %v12971
    %v12973 = vrot.slane %v12935, %v12972
    %v12974 = vlaneseq
    %v12975 = vshrl.u32 %v12974, 7
    %v12976 = vsub.s32 1, %v12975
    %v12977 = vrot.slane %v12935, %v12976
    %v12978 = vlaneseq
    %v12979 = vshrl.u32 %v12978, 7
    %v12980 = vsub.s32 2, %v12979
    %v12981 = vrot.slane %v12935, %v12980
    %v12982 = vlaneseq
    %v12983 = vshrl.u32 %v12982, 7
    %v12984 = vsub.s32 3, %v12983
    %v12985 = vrot.slane %v12935, %v12984
    %v12998 = vmul.f32 %v12313, %v12941
    %v12999 = vmul.f32 %v12315, %v12945
    %v13000 = vmul.f32 %v12436, %v12949
    %v13001 = vmul.f32 %v12438, %v12953
    %v13002 = vmul.f32 %v12559, %v12957
    %v13003 = vmul.f32 %v12561, %v12961
    %v13004 = vmul.f32 %v12682, %v12965
    %v13005 = vmul.f32 %v12684, %v12969
    %v13006 = vmul.f32 %v12805, %v12973
    %v13007 = vmul.f32 %v12807, %v12977
    %v13008 = vmul.f32 %v12928, %v12981
    %v13009 = vmul.f32 %v12930, %v12985
    %v13010 = vld [vmem:[%s14] sm:$0xff]
    %v13011 = vld [vmem:[%s14 + $0x8] sm:$0xf]
    %v13014 = vlaneseq
    %v13015 = vshrl.u32 %v13014, 7
    %v13016 = vsub.s32 0, %v13015
    %v13017 = vrot.slane %v13010, %v13016
    %v13018 = vlaneseq
    %v13019 = vshrl.u32 %v13018, 7
    %v13020 = vsub.s32 1, %v13019
    %v13021 = vrot.slane %v13010, %v13020
    %v13022 = vlaneseq
    %v13023 = vshrl.u32 %v13022, 7
    %v13024 = vsub.s32 2, %v13023
    %v13025 = vrot.slane %v13010, %v13024
    %v13026 = vlaneseq
    %v13027 = vshrl.u32 %v13026, 7
    %v13028 = vsub.s32 3, %v13027
    %v13029 = vrot.slane %v13010, %v13028
    %v13030 = vlaneseq
    %v13031 = vshrl.u32 %v13030, 7
    %v13032 = vsub.s32 4, %v13031
    %v13033 = vrot.slane %v13010, %v13032
    %v13034 = vlaneseq
    %v13035 = vshrl.u32 %v13034, 7
    %v13036 = vsub.s32 5, %v13035
    %v13037 = vrot.slane %v13010, %v13036
    %v13038 = vlaneseq
    %v13039 = vshrl.u32 %v13038, 7
    %v13040 = vsub.s32 6, %v13039
    %v13041 = vrot.slane %v13010, %v13040
    %v13042 = vlaneseq
    %v13043 = vshrl.u32 %v13042, 7
    %v13044 = vsub.s32 7, %v13043
    %v13045 = vrot.slane %v13010, %v13044
    %v13046 = vlaneseq
    %v13047 = vshrl.u32 %v13046, 7
    %v13048 = vsub.s32 0, %v13047
    %v13049 = vrot.slane %v13011, %v13048
    %v13050 = vlaneseq
    %v13051 = vshrl.u32 %v13050, 7
    %v13052 = vsub.s32 1, %v13051
    %v13053 = vrot.slane %v13011, %v13052
    %v13054 = vlaneseq
    %v13055 = vshrl.u32 %v13054, 7
    %v13056 = vsub.s32 2, %v13055
    %v13057 = vrot.slane %v13011, %v13056
    %v13058 = vlaneseq
    %v13059 = vshrl.u32 %v13058, 7
    %v13060 = vsub.s32 3, %v13059
    %v13061 = vrot.slane %v13011, %v13060
    %v13074 = vadd.f32 %v12998, %v13017
    %v13075 = vadd.f32 %v12999, %v13021
    %v13076 = vadd.f32 %v13000, %v13025
    %v13077 = vadd.f32 %v13001, %v13029
    %v13078 = vadd.f32 %v13002, %v13033
    %v13079 = vadd.f32 %v13003, %v13037
    %v13080 = vadd.f32 %v13004, %v13041
    %v13081 = vadd.f32 %v13005, %v13045
    %v13082 = vadd.f32 %v13006, %v13049
    %v13083 = vadd.f32 %v13007, %v13053
    %v13084 = vadd.f32 %v13008, %v13057
    %v13085 = vadd.f32 %v13009, %v13061
    %v13086 = vmax.f32 %v13074, 0.0
    %v13087 = vmax.f32 %v13075, 0.0
    %v13088 = vmax.f32 %v13076, 0.0
    %v13089 = vmax.f32 %v13077, 0.0
    %v13090 = vmax.f32 %v13078, 0.0
    %v13091 = vmax.f32 %v13079, 0.0
    %v13092 = vmax.f32 %v13080, 0.0
    %v13093 = vmax.f32 %v13081, 0.0
    %v13094 = vmax.f32 %v13082, 0.0
    %v13095 = vmax.f32 %v13083, 0.0
    %v13096 = vmax.f32 %v13084, 0.0
    %v13097 = vmax.f32 %v13085, 0.0
    %v13098 = vpack.c.bf16 %v13086, %v13086
    %v13099 = vpack.c.bf16 %v13087, %v13087
    %v13100 = vpack.c.bf16 %v13088, %v13088
    %v13101 = vpack.c.bf16 %v13089, %v13089
    %v13102 = vpack.c.bf16 %v13090, %v13090
    %v13103 = vpack.c.bf16 %v13091, %v13091
    %v13104 = vpack.c.bf16 %v13092, %v13092
    %v13105 = vpack.c.bf16 %v13093, %v13093
    %v13106 = vpack.c.bf16 %v13094, %v13094
    %v13107 = vpack.c.bf16 %v13095, %v13095
    %v13108 = vpack.c.bf16 %v13096, %v13096
    %v13109 = vpack.c.bf16 %v13097, %v13097
    %v13110 = vld [vmem:[%s15] sm:$0xf]
    %v13111 = vld [vmem:[%s15 + $0x4] sm:$0xf]
    %v13112 = vld [vmem:[%s15 + $0x8] sm:$0xf]
    %v13113 = vld [vmem:[%s15 + $0xc] sm:$0xf]
    %v13114 = vld [vmem:[%s15 + $0x10] sm:$0xf]
    %v13115 = vld [vmem:[%s15 + $0x14] sm:$0xf]
    %v13116 = vld [vmem:[%s15 + $0x18] sm:$0xf]
    %v13117 = vld [vmem:[%s15 + $0x1c] sm:$0xf]
    %v13118 = vld [vmem:[%s15 + $0x20] sm:$0xf]
    %v13119 = vld [vmem:[%s15 + $0x24] sm:$0xf]
    %v13120 = vld [vmem:[%s15 + $0x28] sm:$0xf]
    %v13121 = vld [vmem:[%s15 + $0x2c] sm:$0xf]
    %v13122 = vld [vmem:[%s15 + $0x30] sm:$0xf]
    %v13123 = vld [vmem:[%s15 + $0x34] sm:$0xf]
    %v13124 = vld [vmem:[%s15 + $0x38] sm:$0xf]
    %v13125 = vld [vmem:[%s15 + $0x3c] sm:$0xf]
    %v13126 = vld [vmem:[%s15 + $0x40] sm:$0xf]
    %v13127 = vld [vmem:[%s15 + $0x44] sm:$0xf]
    %v13128 = vld [vmem:[%s15 + $0x48] sm:$0xf]
    %v13129 = vld [vmem:[%s15 + $0x4c] sm:$0xf]
    %v13130 = vld [vmem:[%s15 + $0x50] sm:$0xf]
    %v13131 = vld [vmem:[%s15 + $0x54] sm:$0xf]
    %v13132 = vld [vmem:[%s15 + $0x58] sm:$0xf]
    %v13133 = vld [vmem:[%s15 + $0x5c] sm:$0xf]
    %v13134 = vld [vmem:[%s15 + $0x60] sm:$0xf]
    %v13135 = vld [vmem:[%s15 + $0x64] sm:$0xf]
    %v13136 = vld [vmem:[%s15 + $0x68] sm:$0xf]
    %v13137 = vld [vmem:[%s15 + $0x6c] sm:$0xf]
    %v13138 = vld [vmem:[%s15 + $0x70] sm:$0xf]
    %v13139 = vld [vmem:[%s15 + $0x74] sm:$0xf]
    %v13140 = vld [vmem:[%s15 + $0x78] sm:$0xf]
    %v13141 = vld [vmem:[%s15 + $0x7c] sm:$0xf]
    %v13142 = vld [vmem:[%s15 + $0x80] sm:$0xf]
    %v13143 = vld [vmem:[%s15 + $0x84] sm:$0xf]
    %v13144 = vld [vmem:[%s15 + $0x88] sm:$0xf]
    %v13145 = vld [vmem:[%s15 + $0x8c] sm:$0xf]
    %v13146 = vld [vmem:[%s15 + $0x90] sm:$0xf]
    %v13147 = vld [vmem:[%s15 + $0x94] sm:$0xf]
    %v13148 = vld [vmem:[%s15 + $0x98] sm:$0xf]
    %v13149 = vld [vmem:[%s15 + $0x9c] sm:$0xf]
    %v13150 = vld [vmem:[%s15 + $0xa0] sm:$0xf]
    %v13151 = vld [vmem:[%s15 + $0xa4] sm:$0xf]
    %v13152 = vld [vmem:[%s15 + $0xa8] sm:$0xf]
    %v13153 = vld [vmem:[%s15 + $0xac] sm:$0xf]
    %v13154 = vld [vmem:[%s15 + $0xb0] sm:$0xf]
    %v13155 = vld [vmem:[%s15 + $0xb4] sm:$0xf]
    %v13156 = vld [vmem:[%s15 + $0xb8] sm:$0xf]
    %v13157 = vld [vmem:[%s15 + $0xbc] sm:$0xf]
    %v13158 = vld [vmem:[%s15 + $0xc0] sm:$0xf]
    %v13159 = vld [vmem:[%s15 + $0xc4] sm:$0xf]
    %v13160 = vld [vmem:[%s15 + $0xc8] sm:$0xf]
    %v13161 = vld [vmem:[%s15 + $0xcc] sm:$0xf]
    %v13162 = vld [vmem:[%s15 + $0xd0] sm:$0xf]
    %v13163 = vld [vmem:[%s15 + $0xd4] sm:$0xf]
    %v13164 = vld [vmem:[%s15 + $0xd8] sm:$0xf]
    %v13165 = vld [vmem:[%s15 + $0xdc] sm:$0xf]
    %v13166 = vld [vmem:[%s15 + $0xe0] sm:$0xf]
    %v13167 = vld [vmem:[%s15 + $0xe4] sm:$0xf]
    %v13168 = vld [vmem:[%s15 + $0xe8] sm:$0xf]
    %v13169 = vld [vmem:[%s15 + $0xec] sm:$0xf]
    %v13170 = vld [vmem:[%s15 + $0xf0] sm:$0xf]
    %v13171 = vld [vmem:[%s15 + $0xf4] sm:$0xf]
    %v13172 = vld [vmem:[%s15 + $0xf8] sm:$0xf]
    %v13173 = vld [vmem:[%s15 + $0xfc] sm:$0xf]
    %v13174 = vld [vmem:[%s15 + $0x100] sm:$0xf]
    %v13175 = vld [vmem:[%s15 + $0x104] sm:$0xf]
    %v13176 = vld [vmem:[%s15 + $0x108] sm:$0xf]
    %v13177 = vld [vmem:[%s15 + $0x10c] sm:$0xf]
    %v13178 = vld [vmem:[%s15 + $0x110] sm:$0xf]
    %v13179 = vld [vmem:[%s15 + $0x114] sm:$0xf]
    %v13180 = vld [vmem:[%s15 + $0x118] sm:$0xf]
    %v13181 = vld [vmem:[%s15 + $0x11c] sm:$0xf]
    %v13182 = vld [vmem:[%s15 + $0x120] sm:$0xf]
    %v13183 = vld [vmem:[%s15 + $0x124] sm:$0xf]
    %v13184 = vld [vmem:[%s15 + $0x128] sm:$0xf]
    %v13185 = vld [vmem:[%s15 + $0x12c] sm:$0xf]
    %v13186 = vld [vmem:[%s15 + $0x130] sm:$0xf]
    %v13187 = vld [vmem:[%s15 + $0x134] sm:$0xf]
    %v13188 = vld [vmem:[%s15 + $0x138] sm:$0xf]
    %v13189 = vld [vmem:[%s15 + $0x13c] sm:$0xf]
    %v13190 = vld [vmem:[%s15 + $0x140] sm:$0xf]
    %v13191 = vld [vmem:[%s15 + $0x144] sm:$0xf]
    %v13192 = vld [vmem:[%s15 + $0x148] sm:$0xf]
    %v13193 = vld [vmem:[%s15 + $0x14c] sm:$0xf]
    %v13194 = vld [vmem:[%s15 + $0x150] sm:$0xf]
    %v13195 = vld [vmem:[%s15 + $0x154] sm:$0xf]
    %v13196 = vld [vmem:[%s15 + $0x158] sm:$0xf]
    %v13197 = vld [vmem:[%s15 + $0x15c] sm:$0xf]
    %v13198 = vld [vmem:[%s15 + $0x160] sm:$0xf]
    %v13199 = vld [vmem:[%s15 + $0x164] sm:$0xf]
    %v13200 = vld [vmem:[%s15 + $0x168] sm:$0xf]
    %v13201 = vld [vmem:[%s15 + $0x16c] sm:$0xf]
    %v13202 = vld [vmem:[%s15 + $0x170] sm:$0xf]
    %v13203 = vld [vmem:[%s15 + $0x174] sm:$0xf]
    %v13204 = vld [vmem:[%s15 + $0x178] sm:$0xf]
    %v13205 = vld [vmem:[%s15 + $0x17c] sm:$0xf]
    %v13206 = vld [vmem:[%s15 + $0x180] sm:$0xf]
    %v13207 = vld [vmem:[%s15 + $0x184] sm:$0xf]
    %v13208 = vld [vmem:[%s15 + $0x188] sm:$0xf]
    %v13209 = vld [vmem:[%s15 + $0x18c] sm:$0xf]
    %v13210 = vld [vmem:[%s15 + $0x190] sm:$0xf]
    %v13211 = vld [vmem:[%s15 + $0x194] sm:$0xf]
    %v13212 = vld [vmem:[%s15 + $0x198] sm:$0xf]
    %v13213 = vld [vmem:[%s15 + $0x19c] sm:$0xf]
    %v13214 = vld [vmem:[%s15 + $0x1a0] sm:$0xf]
    %v13215 = vld [vmem:[%s15 + $0x1a4] sm:$0xf]
    %v13216 = vld [vmem:[%s15 + $0x1a8] sm:$0xf]
    %v13217 = vld [vmem:[%s15 + $0x1ac] sm:$0xf]
    %v13218 = vld [vmem:[%s15 + $0x1b0] sm:$0xf]
    %v13219 = vld [vmem:[%s15 + $0x1b4] sm:$0xf]
    %v13220 = vld [vmem:[%s15 + $0x1b8] sm:$0xf]
    %v13221 = vld [vmem:[%s15 + $0x1bc] sm:$0xf]
    %v13222 = vld [vmem:[%s15 + $0x1c0] sm:$0xf]
    %v13223 = vld [vmem:[%s15 + $0x1c4] sm:$0xf]
    %v13224 = vld [vmem:[%s15 + $0x1c8] sm:$0xf]
    %v13225 = vld [vmem:[%s15 + $0x1cc] sm:$0xf]
    %v13226 = vld [vmem:[%s15 + $0x1d0] sm:$0xf]
    %v13227 = vld [vmem:[%s15 + $0x1d4] sm:$0xf]
    %v13228 = vld [vmem:[%s15 + $0x1d8] sm:$0xf]
    %v13229 = vld [vmem:[%s15 + $0x1dc] sm:$0xf]
    %v13230 = vld [vmem:[%s15 + $0x1e0] sm:$0xf]
    %v13231 = vld [vmem:[%s15 + $0x1e4] sm:$0xf]
    %v13232 = vld [vmem:[%s15 + $0x1e8] sm:$0xf]
    %v13233 = vld [vmem:[%s15 + $0x1ec] sm:$0xf]
    %v13234 = vld [vmem:[%s15 + $0x1f0] sm:$0xf]
    %v13235 = vld [vmem:[%s15 + $0x1f4] sm:$0xf]
    %v13236 = vld [vmem:[%s15 + $0x1f8] sm:$0xf]
    %v13237 = vld [vmem:[%s15 + $0x1fc] sm:$0xf]
    %v13238 = vld [vmem:[%s15 + $0x200] sm:$0xf]
    %v13239 = vld [vmem:[%s15 + $0x204] sm:$0xf]
    %v13240 = vld [vmem:[%s15 + $0x208] sm:$0xf]
    %v13241 = vld [vmem:[%s15 + $0x20c] sm:$0xf]
    %v13242 = vld [vmem:[%s15 + $0x210] sm:$0xf]
    %v13243 = vld [vmem:[%s15 + $0x214] sm:$0xf]
    %v13244 = vld [vmem:[%s15 + $0x218] sm:$0xf]
    %v13245 = vld [vmem:[%s15 + $0x21c] sm:$0xf]
    %v13246 = vld [vmem:[%s15 + $0x220] sm:$0xf]
    %v13247 = vld [vmem:[%s15 + $0x224] sm:$0xf]
    %v13248 = vld [vmem:[%s15 + $0x228] sm:$0xf]
    %v13249 = vld [vmem:[%s15 + $0x22c] sm:$0xf]
    %v13250 = vld [vmem:[%s15 + $0x230] sm:$0xf]
    %v13251 = vld [vmem:[%s15 + $0x234] sm:$0xf]
    %v13252 = vld [vmem:[%s15 + $0x238] sm:$0xf]
    %v13253 = vld [vmem:[%s15 + $0x23c] sm:$0xf]
    %v13254 = vld [vmem:[%s15 + $0x240] sm:$0xf]
    %v13255 = vld [vmem:[%s15 + $0x244] sm:$0xf]
    %v13256 = vld [vmem:[%s15 + $0x248] sm:$0xf]
    %v13257 = vld [vmem:[%s15 + $0x24c] sm:$0xf]
    %v13258 = vld [vmem:[%s15 + $0x250] sm:$0xf]
    %v13259 = vld [vmem:[%s15 + $0x254] sm:$0xf]
    %v13260 = vld [vmem:[%s15 + $0x258] sm:$0xf]
    %v13261 = vld [vmem:[%s15 + $0x25c] sm:$0xf]
    %v13262 = vld [vmem:[%s15 + $0x260] sm:$0xf]
    %v13263 = vld [vmem:[%s15 + $0x264] sm:$0xf]
    %v13264 = vld [vmem:[%s15 + $0x268] sm:$0xf]
    %v13265 = vld [vmem:[%s15 + $0x26c] sm:$0xf]
    %v13266 = vld [vmem:[%s15 + $0x270] sm:$0xf]
    %v13267 = vld [vmem:[%s15 + $0x274] sm:$0xf]
    %v13268 = vld [vmem:[%s15 + $0x278] sm:$0xf]
    %v13269 = vld [vmem:[%s15 + $0x27c] sm:$0xf]
    %v13270 = vld [vmem:[%s15 + $0x280] sm:$0xf]
    %v13271 = vld [vmem:[%s15 + $0x284] sm:$0xf]
    %v13272 = vld [vmem:[%s15 + $0x288] sm:$0xf]
    %v13273 = vld [vmem:[%s15 + $0x28c] sm:$0xf]
    %v13274 = vld [vmem:[%s15 + $0x290] sm:$0xf]
    %v13275 = vld [vmem:[%s15 + $0x294] sm:$0xf]
    %v13276 = vld [vmem:[%s15 + $0x298] sm:$0xf]
    %v13277 = vld [vmem:[%s15 + $0x29c] sm:$0xf]
    %v13278 = vld [vmem:[%s15 + $0x2a0] sm:$0xf]
    %v13279 = vld [vmem:[%s15 + $0x2a4] sm:$0xf]
    %v13280 = vld [vmem:[%s15 + $0x2a8] sm:$0xf]
    %v13281 = vld [vmem:[%s15 + $0x2ac] sm:$0xf]
    %v13282 = vld [vmem:[%s15 + $0x2b0] sm:$0xf]
    %v13283 = vld [vmem:[%s15 + $0x2b4] sm:$0xf]
    %v13284 = vld [vmem:[%s15 + $0x2b8] sm:$0xf]
    %v13285 = vld [vmem:[%s15 + $0x2bc] sm:$0xf]
    %v13286 = vld [vmem:[%s15 + $0x2c0] sm:$0xf]
    %v13287 = vld [vmem:[%s15 + $0x2c4] sm:$0xf]
    %v13288 = vld [vmem:[%s15 + $0x2c8] sm:$0xf]
    %v13289 = vld [vmem:[%s15 + $0x2cc] sm:$0xf]
    %v13290 = vld [vmem:[%s15 + $0x2d0] sm:$0xf]
    %v13291 = vld [vmem:[%s15 + $0x2d4] sm:$0xf]
    %v13292 = vld [vmem:[%s15 + $0x2d8] sm:$0xf]
    %v13293 = vld [vmem:[%s15 + $0x2dc] sm:$0xf]
    %v13294 = vld [vmem:[%s15 + $0x2e0] sm:$0xf]
    %v13295 = vld [vmem:[%s15 + $0x2e4] sm:$0xf]
    %v13296 = vld [vmem:[%s15 + $0x2e8] sm:$0xf]
    %v13297 = vld [vmem:[%s15 + $0x2ec] sm:$0xf]
    %v13298 = vld [vmem:[%s15 + $0x2f0] sm:$0xf]
    %v13299 = vld [vmem:[%s15 + $0x2f4] sm:$0xf]
    %v13300 = vld [vmem:[%s15 + $0x2f8] sm:$0xf]
    %v13301 = vld [vmem:[%s15 + $0x2fc] sm:$0xf]
    %v13302 = vld [vmem:[%s16] sm:$0x1]
    %v13304 = vlaneseq
    %v13305 = vshrl.u32 %v13304, 7
    %v13306 = vsub.s32 0, %v13305
    %v13307 = vrot.slane %v13302, %v13306
    %v13501 = vunpack.c.l.b16 %v13110
    %v13502 = vunpack.c.l.b16 %v13111
    %v13503 = vunpack.c.l.b16 %v13112
    %v13504 = vunpack.c.l.b16 %v13113
    %v13505 = vunpack.c.l.b16 %v13114
    %v13506 = vunpack.c.l.b16 %v13115
    %v13507 = vunpack.c.l.b16 %v13116
    %v13508 = vunpack.c.l.b16 %v13117
    %v13509 = vunpack.c.l.b16 %v13118
    %v13510 = vunpack.c.l.b16 %v13119
    %v13511 = vunpack.c.l.b16 %v13120
    %v13512 = vunpack.c.l.b16 %v13121
    %v13513 = vunpack.c.l.b16 %v13122
    %v13514 = vunpack.c.l.b16 %v13123
    %v13515 = vunpack.c.l.b16 %v13124
    %v13516 = vunpack.c.l.b16 %v13125
    %v13517 = vunpack.c.l.b16 %v13126
    %v13518 = vunpack.c.l.b16 %v13127
    %v13519 = vunpack.c.l.b16 %v13128
    %v13520 = vunpack.c.l.b16 %v13129
    %v13521 = vunpack.c.l.b16 %v13130
    %v13522 = vunpack.c.l.b16 %v13131
    %v13523 = vunpack.c.l.b16 %v13132
    %v13524 = vunpack.c.l.b16 %v13133
    %v13525 = vunpack.c.l.b16 %v13134
    %v13526 = vunpack.c.l.b16 %v13135
    %v13527 = vunpack.c.l.b16 %v13136
    %v13528 = vunpack.c.l.b16 %v13137
    %v13529 = vunpack.c.l.b16 %v13138
    %v13530 = vunpack.c.l.b16 %v13139
    %v13531 = vunpack.c.l.b16 %v13140
    %v13532 = vunpack.c.l.b16 %v13141
    %v13533 = vunpack.c.l.b16 %v13142
    %v13534 = vunpack.c.l.b16 %v13143
    %v13535 = vunpack.c.l.b16 %v13144
    %v13536 = vunpack.c.l.b16 %v13145
    %v13537 = vunpack.c.l.b16 %v13146
    %v13538 = vunpack.c.l.b16 %v13147
    %v13539 = vunpack.c.l.b16 %v13148
    %v13540 = vunpack.c.l.b16 %v13149
    %v13541 = vunpack.c.l.b16 %v13150
    %v13542 = vunpack.c.l.b16 %v13151
    %v13543 = vunpack.c.l.b16 %v13152
    %v13544 = vunpack.c.l.b16 %v13153
    %v13545 = vunpack.c.l.b16 %v13154
    %v13546 = vunpack.c.l.b16 %v13155
    %v13547 = vunpack.c.l.b16 %v13156
    %v13548 = vunpack.c.l.b16 %v13157
    %v13549 = vunpack.c.l.b16 %v13158
    %v13550 = vunpack.c.l.b16 %v13159
    %v13551 = vunpack.c.l.b16 %v13160
    %v13552 = vunpack.c.l.b16 %v13161
    %v13553 = vunpack.c.l.b16 %v13162
    %v13554 = vunpack.c.l.b16 %v13163
    %v13555 = vunpack.c.l.b16 %v13164
    %v13556 = vunpack.c.l.b16 %v13165
    %v13557 = vunpack.c.l.b16 %v13166
    %v13558 = vunpack.c.l.b16 %v13167
    %v13559 = vunpack.c.l.b16 %v13168
    %v13560 = vunpack.c.l.b16 %v13169
    %v13561 = vunpack.c.l.b16 %v13170
    %v13562 = vunpack.c.l.b16 %v13171
    %v13563 = vunpack.c.l.b16 %v13172
    %v13564 = vunpack.c.l.b16 %v13173
    %v13565 = vunpack.c.l.b16 %v13174
    %v13566 = vunpack.c.l.b16 %v13175
    %v13567 = vunpack.c.l.b16 %v13176
    %v13568 = vunpack.c.l.b16 %v13177
    %v13569 = vunpack.c.l.b16 %v13178
    %v13570 = vunpack.c.l.b16 %v13179
    %v13571 = vunpack.c.l.b16 %v13180
    %v13572 = vunpack.c.l.b16 %v13181
    %v13573 = vunpack.c.l.b16 %v13182
    %v13574 = vunpack.c.l.b16 %v13183
    %v13575 = vunpack.c.l.b16 %v13184
    %v13576 = vunpack.c.l.b16 %v13185
    %v13577 = vunpack.c.l.b16 %v13186
    %v13578 = vunpack.c.l.b16 %v13187
    %v13579 = vunpack.c.l.b16 %v13188
    %v13580 = vunpack.c.l.b16 %v13189
    %v13581 = vunpack.c.l.b16 %v13190
    %v13582 = vunpack.c.l.b16 %v13191
    %v13583 = vunpack.c.l.b16 %v13192
    %v13584 = vunpack.c.l.b16 %v13193
    %v13585 = vunpack.c.l.b16 %v13194
    %v13586 = vunpack.c.l.b16 %v13195
    %v13587 = vunpack.c.l.b16 %v13196
    %v13588 = vunpack.c.l.b16 %v13197
    %v13589 = vunpack.c.l.b16 %v13198
    %v13590 = vunpack.c.l.b16 %v13199
    %v13591 = vunpack.c.l.b16 %v13200
    %v13592 = vunpack.c.l.b16 %v13201
    %v13593 = vunpack.c.l.b16 %v13202
    %v13594 = vunpack.c.l.b16 %v13203
    %v13595 = vunpack.c.l.b16 %v13204
    %v13596 = vunpack.c.l.b16 %v13205
    %v13597 = vunpack.c.l.b16 %v13206
    %v13598 = vunpack.c.l.b16 %v13207
    %v13599 = vunpack.c.l.b16 %v13208
    %v13600 = vunpack.c.l.b16 %v13209
    %v13601 = vunpack.c.l.b16 %v13210
    %v13602 = vunpack.c.l.b16 %v13211
    %v13603 = vunpack.c.l.b16 %v13212
    %v13604 = vunpack.c.l.b16 %v13213
    %v13605 = vunpack.c.l.b16 %v13214
    %v13606 = vunpack.c.l.b16 %v13215
    %v13607 = vunpack.c.l.b16 %v13216
    %v13608 = vunpack.c.l.b16 %v13217
    %v13609 = vunpack.c.l.b16 %v13218
    %v13610 = vunpack.c.l.b16 %v13219
    %v13611 = vunpack.c.l.b16 %v13220
    %v13612 = vunpack.c.l.b16 %v13221
    %v13613 = vunpack.c.l.b16 %v13222
    %v13614 = vunpack.c.l.b16 %v13223
    %v13615 = vunpack.c.l.b16 %v13224
    %v13616 = vunpack.c.l.b16 %v13225
    %v13617 = vunpack.c.l.b16 %v13226
    %v13618 = vunpack.c.l.b16 %v13227
    %v13619 = vunpack.c.l.b16 %v13228
    %v13620 = vunpack.c.l.b16 %v13229
    %v13621 = vunpack.c.l.b16 %v13230
    %v13622 = vunpack.c.l.b16 %v13231
    %v13623 = vunpack.c.l.b16 %v13232
    %v13624 = vunpack.c.l.b16 %v13233
    %v13625 = vunpack.c.l.b16 %v13234
    %v13626 = vunpack.c.l.b16 %v13235
    %v13627 = vunpack.c.l.b16 %v13236
    %v13628 = vunpack.c.l.b16 %v13237
    %v13629 = vunpack.c.l.b16 %v13238
    %v13630 = vunpack.c.l.b16 %v13239
    %v13631 = vunpack.c.l.b16 %v13240
    %v13632 = vunpack.c.l.b16 %v13241
    %v13633 = vunpack.c.l.b16 %v13242
    %v13634 = vunpack.c.l.b16 %v13243
    %v13635 = vunpack.c.l.b16 %v13244
    %v13636 = vunpack.c.l.b16 %v13245
    %v13637 = vunpack.c.l.b16 %v13246
    %v13638 = vunpack.c.l.b16 %v13247
    %v13639 = vunpack.c.l.b16 %v13248
    %v13640 = vunpack.c.l.b16 %v13249
    %v13641 = vunpack.c.l.b16 %v13250
    %v13642 = vunpack.c.l.b16 %v13251
    %v13643 = vunpack.c.l.b16 %v13252
    %v13644 = vunpack.c.l.b16 %v13253
    %v13645 = vunpack.c.l.b16 %v13254
    %v13646 = vunpack.c.l.b16 %v13255
    %v13647 = vunpack.c.l.b16 %v13256
    %v13648 = vunpack.c.l.b16 %v13257
    %v13649 = vunpack.c.l.b16 %v13258
    %v13650 = vunpack.c.l.b16 %v13259
    %v13651 = vunpack.c.l.b16 %v13260
    %v13652 = vunpack.c.l.b16 %v13261
    %v13653 = vunpack.c.l.b16 %v13262
    %v13654 = vunpack.c.l.b16 %v13263
    %v13655 = vunpack.c.l.b16 %v13264
    %v13656 = vunpack.c.l.b16 %v13265
    %v13657 = vunpack.c.l.b16 %v13266
    %v13658 = vunpack.c.l.b16 %v13267
    %v13659 = vunpack.c.l.b16 %v13268
    %v13660 = vunpack.c.l.b16 %v13269
    %v13661 = vunpack.c.l.b16 %v13270
    %v13662 = vunpack.c.l.b16 %v13271
    %v13663 = vunpack.c.l.b16 %v13272
    %v13664 = vunpack.c.l.b16 %v13273
    %v13665 = vunpack.c.l.b16 %v13274
    %v13666 = vunpack.c.l.b16 %v13275
    %v13667 = vunpack.c.l.b16 %v13276
    %v13668 = vunpack.c.l.b16 %v13277
    %v13669 = vunpack.c.l.b16 %v13278
    %v13670 = vunpack.c.l.b16 %v13279
    %v13671 = vunpack.c.l.b16 %v13280
    %v13672 = vunpack.c.l.b16 %v13281
    %v13673 = vunpack.c.l.b16 %v13282
    %v13674 = vunpack.c.l.b16 %v13283
    %v13675 = vunpack.c.l.b16 %v13284
    %v13676 = vunpack.c.l.b16 %v13285
    %v13677 = vunpack.c.l.b16 %v13286
    %v13678 = vunpack.c.l.b16 %v13287
    %v13679 = vunpack.c.l.b16 %v13288
    %v13680 = vunpack.c.l.b16 %v13289
    %v13681 = vunpack.c.l.b16 %v13290
    %v13682 = vunpack.c.l.b16 %v13291
    %v13683 = vunpack.c.l.b16 %v13292
    %v13684 = vunpack.c.l.b16 %v13293
    %v13685 = vunpack.c.l.b16 %v13294
    %v13686 = vunpack.c.l.b16 %v13295
    %v13687 = vunpack.c.l.b16 %v13296
    %v13688 = vunpack.c.l.b16 %v13297
    %v13689 = vunpack.c.l.b16 %v13298
    %v13690 = vunpack.c.l.b16 %v13299
    %v13691 = vunpack.c.l.b16 %v13300
    %v13692 = vunpack.c.l.b16 %v13301
    %v13693 = vpack.c.b16 %v13502, %v13501
    %v13694 = vpack.c.b16 %v13504, %v13503
    %v13695 = vpack.c.b16 %v13506, %v13505
    %v13696 = vpack.c.b16 %v13508, %v13507
    %v13697 = vpack.c.b16 %v13510, %v13509
    %v13698 = vpack.c.b16 %v13512, %v13511
    %v13699 = vpack.c.b16 %v13514, %v13513
    %v13700 = vpack.c.b16 %v13516, %v13515
    %v13701 = vpack.c.b16 %v13518, %v13517
    %v13702 = vpack.c.b16 %v13520, %v13519
    %v13703 = vpack.c.b16 %v13522, %v13521
    %v13704 = vpack.c.b16 %v13524, %v13523
    %v13705 = vpack.c.b16 %v13526, %v13525
    %v13706 = vpack.c.b16 %v13528, %v13527
    %v13707 = vpack.c.b16 %v13530, %v13529
    %v13708 = vpack.c.b16 %v13532, %v13531
    %v13709 = vpack.c.b16 %v13534, %v13533
    %v13710 = vpack.c.b16 %v13536, %v13535
    %v13711 = vpack.c.b16 %v13538, %v13537
    %v13712 = vpack.c.b16 %v13540, %v13539
    %v13713 = vpack.c.b16 %v13542, %v13541
    %v13714 = vpack.c.b16 %v13544, %v13543
    %v13715 = vpack.c.b16 %v13546, %v13545
    %v13716 = vpack.c.b16 %v13548, %v13547
    %v13717 = vpack.c.b16 %v13550, %v13549
    %v13718 = vpack.c.b16 %v13552, %v13551
    %v13719 = vpack.c.b16 %v13554, %v13553
    %v13720 = vpack.c.b16 %v13556, %v13555
    %v13721 = vpack.c.b16 %v13558, %v13557
    %v13722 = vpack.c.b16 %v13560, %v13559
    %v13723 = vpack.c.b16 %v13562, %v13561
    %v13724 = vpack.c.b16 %v13564, %v13563
    %v13725 = vpack.c.b16 %v13566, %v13565
    %v13726 = vpack.c.b16 %v13568, %v13567
    %v13727 = vpack.c.b16 %v13570, %v13569
    %v13728 = vpack.c.b16 %v13572, %v13571
    %v13729 = vpack.c.b16 %v13574, %v13573
    %v13730 = vpack.c.b16 %v13576, %v13575
    %v13731 = vpack.c.b16 %v13578, %v13577
    %v13732 = vpack.c.b16 %v13580, %v13579
    %v13733 = vpack.c.b16 %v13582, %v13581
    %v13734 = vpack.c.b16 %v13584, %v13583
    %v13735 = vpack.c.b16 %v13586, %v13585
    %v13736 = vpack.c.b16 %v13588, %v13587
    %v13737 = vpack.c.b16 %v13590, %v13589
    %v13738 = vpack.c.b16 %v13592, %v13591
    %v13739 = vpack.c.b16 %v13594, %v13593
    %v13740 = vpack.c.b16 %v13596, %v13595
    %v13741 = vpack.c.b16 %v13598, %v13597
    %v13742 = vpack.c.b16 %v13600, %v13599
    %v13743 = vpack.c.b16 %v13602, %v13601
    %v13744 = vpack.c.b16 %v13604, %v13603
    %v13745 = vpack.c.b16 %v13606, %v13605
    %v13746 = vpack.c.b16 %v13608, %v13607
    %v13747 = vpack.c.b16 %v13610, %v13609
    %v13748 = vpack.c.b16 %v13612, %v13611
    %v13749 = vpack.c.b16 %v13614, %v13613
    %v13750 = vpack.c.b16 %v13616, %v13615
    %v13751 = vpack.c.b16 %v13618, %v13617
    %v13752 = vpack.c.b16 %v13620, %v13619
    %v13753 = vpack.c.b16 %v13622, %v13621
    %v13754 = vpack.c.b16 %v13624, %v13623
    %v13755 = vpack.c.b16 %v13626, %v13625
    %v13756 = vpack.c.b16 %v13628, %v13627
    %v13757 = vpack.c.b16 %v13630, %v13629
    %v13758 = vpack.c.b16 %v13632, %v13631
    %v13759 = vpack.c.b16 %v13634, %v13633
    %v13760 = vpack.c.b16 %v13636, %v13635
    %v13761 = vpack.c.b16 %v13638, %v13637
    %v13762 = vpack.c.b16 %v13640, %v13639
    %v13763 = vpack.c.b16 %v13642, %v13641
    %v13764 = vpack.c.b16 %v13644, %v13643
    %v13765 = vpack.c.b16 %v13646, %v13645
    %v13766 = vpack.c.b16 %v13648, %v13647
    %v13767 = vpack.c.b16 %v13650, %v13649
    %v13768 = vpack.c.b16 %v13652, %v13651
    %v13769 = vpack.c.b16 %v13654, %v13653
    %v13770 = vpack.c.b16 %v13656, %v13655
    %v13771 = vpack.c.b16 %v13658, %v13657
    %v13772 = vpack.c.b16 %v13660, %v13659
    %v13773 = vpack.c.b16 %v13662, %v13661
    %v13774 = vpack.c.b16 %v13664, %v13663
    %v13775 = vpack.c.b16 %v13666, %v13665
    %v13776 = vpack.c.b16 %v13668, %v13667
    %v13777 = vpack.c.b16 %v13670, %v13669
    %v13778 = vpack.c.b16 %v13672, %v13671
    %v13779 = vpack.c.b16 %v13674, %v13673
    %v13780 = vpack.c.b16 %v13676, %v13675
    %v13781 = vpack.c.b16 %v13678, %v13677
    %v13782 = vpack.c.b16 %v13680, %v13679
    %v13783 = vpack.c.b16 %v13682, %v13681
    %v13784 = vpack.c.b16 %v13684, %v13683
    %v13785 = vpack.c.b16 %v13686, %v13685
    %v13786 = vpack.c.b16 %v13688, %v13687
    %v13787 = vpack.c.b16 %v13690, %v13689
    %v13788 = vpack.c.b16 %v13692, %v13691
    %13885 = vmatprep.subr.bf16.mxu0 0
    %13886 = vmatpush1.bf16.msra.mxu0 %v13700
    %13887 = vmatprep.subr.bf16.mxu0 0
    %13888 = vmatpush1.bf16.msra.mxu0 %v13699
    %13889 = vmatprep.subr.bf16.mxu0 0
    %13890 = vmatpush1.bf16.msra.mxu0 %v13698
    %13891 = vmatprep.subr.bf16.mxu0 0
    %13892 = vmatpush1.bf16.msra.mxu0 %v13697
    %13893 = vmatprep.subr.bf16.mxu0 0
    %13894 = vmatpush1.bf16.msra.mxu0 %v13696
    %13895 = vmatprep.subr.bf16.mxu0 0
    %13896 = vmatpush1.bf16.msra.mxu0 %v13695
    %13897 = vmatprep.subr.bf16.mxu0 0
    %13898 = vmatpush1.bf16.msra.mxu0 %v13694
    %13899 = vmatprep.subr.bf16.mxu0 0
    %13900 = vmatpush1.bf16.msra.mxu0 %v13693
    %13901 = vmatprep.subr.bf16.mxu0 0
    %13902 = vmatpush2.bf16.msra.mxu0 %v13708
    %13903 = vmatprep.subr.bf16.mxu0 0
    %13904 = vmatpush2.bf16.msra.mxu0 %v13707
    %13905 = vmatprep.subr.bf16.mxu0 0
    %13906 = vmatpush2.bf16.msra.mxu0 %v13706
    %13907 = vmatprep.subr.bf16.mxu0 0
    %13908 = vmatpush2.bf16.msra.mxu0 %v13705
    %13909 = vmatprep.subr.bf16.mxu0 0
    %13910 = vmatpush2.bf16.msra.mxu0 %v13704
    %13911 = vmatprep.subr.bf16.mxu0 0
    %13912 = vmatpush2.bf16.msra.mxu0 %v13703
    %13913 = vmatprep.subr.bf16.mxu0 0
    %13914 = vmatpush2.bf16.msra.mxu0 %v13702
    %13915 = vmatprep.subr.bf16.mxu0 0
    %13916 = vmatpush2.bf16.msra.mxu0 %v13701
    %13917 = vmatprep.mubr.bf16.mxu0 %v13099
    %13918 = vmatmul.mubr.bf16.gmra.mxu0 %v13098
    %v13919 = vpop.f32.mrf.mxu0
    %v13920 = vadd.f32 %v13307, %v13919
    %v13921 = vpop.f32.mrf.mxu0
    %v13922 = vpop.f32.mrf.mxu0
    %v13923 = vpop.f32.mrf.mxu0
    %13924 = vdwg.mxu0
    %13925 = vmatprep.subr.bf16.mxu0 0
    %13926 = vmatpush1.bf16.msra.mxu0 %v13716
    %13927 = vmatprep.subr.bf16.mxu0 0
    %13928 = vmatpush1.bf16.msra.mxu0 %v13715
    %13929 = vmatprep.subr.bf16.mxu0 0
    %13930 = vmatpush1.bf16.msra.mxu0 %v13714
    %13931 = vmatprep.subr.bf16.mxu0 0
    %13932 = vmatpush1.bf16.msra.mxu0 %v13713
    %13933 = vmatprep.subr.bf16.mxu0 0
    %13934 = vmatpush1.bf16.msra.mxu0 %v13712
    %13935 = vmatprep.subr.bf16.mxu0 0
    %13936 = vmatpush1.bf16.msra.mxu0 %v13711
    %13937 = vmatprep.subr.bf16.mxu0 0
    %13938 = vmatpush1.bf16.msra.mxu0 %v13710
    %13939 = vmatprep.subr.bf16.mxu0 0
    %13940 = vmatpush1.bf16.msra.mxu0 %v13709
    %13941 = vmatprep.subr.bf16.mxu0 0
    %13942 = vmatpush2.bf16.msra.mxu0 %v13724
    %13943 = vmatprep.subr.bf16.mxu0 0
    %13944 = vmatpush2.bf16.msra.mxu0 %v13723
    %13945 = vmatprep.subr.bf16.mxu0 0
    %13946 = vmatpush2.bf16.msra.mxu0 %v13722
    %13947 = vmatprep.subr.bf16.mxu0 0
    %13948 = vmatpush2.bf16.msra.mxu0 %v13721
    %13949 = vmatprep.subr.bf16.mxu0 0
    %13950 = vmatpush2.bf16.msra.mxu0 %v13720
    %13951 = vmatprep.subr.bf16.mxu0 0
    %13952 = vmatpush2.bf16.msra.mxu0 %v13719
    %13953 = vmatprep.subr.bf16.mxu0 0
    %13954 = vmatpush2.bf16.msra.mxu0 %v13718
    %13955 = vmatprep.subr.bf16.mxu0 0
    %13956 = vmatpush2.bf16.msra.mxu0 %v13717
    %13957 = vmatprep.mubr.bf16.mxu0 %v13101
    %13958 = vmatmul.mubr.bf16.gmra.mxu0 %v13100
    %v13959 = vpop.f32.mrf.mxu0
    %v13960 = vadd.f32 %v13920, %v13959
    %v13961 = vpop.f32.mrf.mxu0
    %v13962 = vpop.f32.mrf.mxu0
    %v13963 = vpop.f32.mrf.mxu0
    %13964 = vdwg.mxu0
    %13965 = vmatprep.subr.bf16.mxu0 0
    %13966 = vmatpush1.bf16.msra.mxu0 %v13732
    %13967 = vmatprep.subr.bf16.mxu0 0
    %13968 = vmatpush1.bf16.msra.mxu0 %v13731
    %13969 = vmatprep.subr.bf16.mxu0 0
    %13970 = vmatpush1.bf16.msra.mxu0 %v13730
    %13971 = vmatprep.subr.bf16.mxu0 0
    %13972 = vmatpush1.bf16.msra.mxu0 %v13729
    %13973 = vmatprep.subr.bf16.mxu0 0
    %13974 = vmatpush1.bf16.msra.mxu0 %v13728
    %13975 = vmatprep.subr.bf16.mxu0 0
    %13976 = vmatpush1.bf16.msra.mxu0 %v13727
    %13977 = vmatprep.subr.bf16.mxu0 0
    %13978 = vmatpush1.bf16.msra.mxu0 %v13726
    %13979 = vmatprep.subr.bf16.mxu0 0
    %13980 = vmatpush1.bf16.msra.mxu0 %v13725
    %13981 = vmatprep.subr.bf16.mxu0 0
    %13982 = vmatpush2.bf16.msra.mxu0 %v13740
    %13983 = vmatprep.subr.bf16.mxu0 0
    %13984 = vmatpush2.bf16.msra.mxu0 %v13739
    %13985 = vmatprep.subr.bf16.mxu0 0
    %13986 = vmatpush2.bf16.msra.mxu0 %v13738
    %13987 = vmatprep.subr.bf16.mxu0 0
    %13988 = vmatpush2.bf16.msra.mxu0 %v13737
    %13989 = vmatprep.subr.bf16.mxu0 0
    %13990 = vmatpush2.bf16.msra.mxu0 %v13736
    %13991 = vmatprep.subr.bf16.mxu0 0
    %13992 = vmatpush2.bf16.msra.mxu0 %v13735
    %13993 = vmatprep.subr.bf16.mxu0 0
    %13994 = vmatpush2.bf16.msra.mxu0 %v13734
    %13995 = vmatprep.subr.bf16.mxu0 0
    %13996 = vmatpush2.bf16.msra.mxu0 %v13733
    %13997 = vmatprep.mubr.bf16.mxu0 %v13103
    %13998 = vmatmul.mubr.bf16.gmra.mxu0 %v13102
    %v13999 = vpop.f32.mrf.mxu0
    %v14000 = vadd.f32 %v13960, %v13999
    %v14001 = vpop.f32.mrf.mxu0
    %v14002 = vpop.f32.mrf.mxu0
    %v14003 = vpop.f32.mrf.mxu0
    %14004 = vdwg.mxu0
    %14005 = vmatprep.subr.bf16.mxu0 0
    %14006 = vmatpush1.bf16.msra.mxu0 %v13748
    %14007 = vmatprep.subr.bf16.mxu0 0
    %14008 = vmatpush1.bf16.msra.mxu0 %v13747
    %14009 = vmatprep.subr.bf16.mxu0 0
    %14010 = vmatpush1.bf16.msra.mxu0 %v13746
    %14011 = vmatprep.subr.bf16.mxu0 0
    %14012 = vmatpush1.bf16.msra.mxu0 %v13745
    %14013 = vmatprep.subr.bf16.mxu0 0
    %14014 = vmatpush1.bf16.msra.mxu0 %v13744
    %14015 = vmatprep.subr.bf16.mxu0 0
    %14016 = vmatpush1.bf16.msra.mxu0 %v13743
    %14017 = vmatprep.subr.bf16.mxu0 0
    %14018 = vmatpush1.bf16.msra.mxu0 %v13742
    %14019 = vmatprep.subr.bf16.mxu0 0
    %14020 = vmatpush1.bf16.msra.mxu0 %v13741
    %14021 = vmatprep.subr.bf16.mxu0 0
    %14022 = vmatpush2.bf16.msra.mxu0 %v13756
    %14023 = vmatprep.subr.bf16.mxu0 0
    %14024 = vmatpush2.bf16.msra.mxu0 %v13755
    %14025 = vmatprep.subr.bf16.mxu0 0
    %14026 = vmatpush2.bf16.msra.mxu0 %v13754
    %14027 = vmatprep.subr.bf16.mxu0 0
    %14028 = vmatpush2.bf16.msra.mxu0 %v13753
    %14029 = vmatprep.subr.bf16.mxu0 0
    %14030 = vmatpush2.bf16.msra.mxu0 %v13752
    %14031 = vmatprep.subr.bf16.mxu0 0
    %14032 = vmatpush2.bf16.msra.mxu0 %v13751
    %14033 = vmatprep.subr.bf16.mxu0 0
    %14034 = vmatpush2.bf16.msra.mxu0 %v13750
    %14035 = vmatprep.subr.bf16.mxu0 0
    %14036 = vmatpush2.bf16.msra.mxu0 %v13749
    %14037 = vmatprep.mubr.bf16.mxu0 %v13105
    %14038 = vmatmul.mubr.bf16.gmra.mxu0 %v13104
    %v14039 = vpop.f32.mrf.mxu0
    %v14040 = vadd.f32 %v14000, %v14039
    %v14041 = vpop.f32.mrf.mxu0
    %v14042 = vpop.f32.mrf.mxu0
    %v14043 = vpop.f32.mrf.mxu0
    %14044 = vdwg.mxu0
    %14045 = vmatprep.subr.bf16.mxu0 0
    %14046 = vmatpush1.bf16.msra.mxu0 %v13764
    %14047 = vmatprep.subr.bf16.mxu0 0
    %14048 = vmatpush1.bf16.msra.mxu0 %v13763
    %14049 = vmatprep.subr.bf16.mxu0 0
    %14050 = vmatpush1.bf16.msra.mxu0 %v13762
    %14051 = vmatprep.subr.bf16.mxu0 0
    %14052 = vmatpush1.bf16.msra.mxu0 %v13761
    %14053 = vmatprep.subr.bf16.mxu0 0
    %14054 = vmatpush1.bf16.msra.mxu0 %v13760
    %14055 = vmatprep.subr.bf16.mxu0 0
    %14056 = vmatpush1.bf16.msra.mxu0 %v13759
    %14057 = vmatprep.subr.bf16.mxu0 0
    %14058 = vmatpush1.bf16.msra.mxu0 %v13758
    %14059 = vmatprep.subr.bf16.mxu0 0
    %14060 = vmatpush1.bf16.msra.mxu0 %v13757
    %14061 = vmatprep.subr.bf16.mxu0 0
    %14062 = vmatpush2.bf16.msra.mxu0 %v13772
    %14063 = vmatprep.subr.bf16.mxu0 0
    %14064 = vmatpush2.bf16.msra.mxu0 %v13771
    %14065 = vmatprep.subr.bf16.mxu0 0
    %14066 = vmatpush2.bf16.msra.mxu0 %v13770
    %14067 = vmatprep.subr.bf16.mxu0 0
    %14068 = vmatpush2.bf16.msra.mxu0 %v13769
    %14069 = vmatprep.subr.bf16.mxu0 0
    %14070 = vmatpush2.bf16.msra.mxu0 %v13768
    %14071 = vmatprep.subr.bf16.mxu0 0
    %14072 = vmatpush2.bf16.msra.mxu0 %v13767
    %14073 = vmatprep.subr.bf16.mxu0 0
    %14074 = vmatpush2.bf16.msra.mxu0 %v13766
    %14075 = vmatprep.subr.bf16.mxu0 0
    %14076 = vmatpush2.bf16.msra.mxu0 %v13765
    %14077 = vmatprep.mubr.bf16.mxu0 %v13107
    %14078 = vmatmul.mubr.bf16.gmra.mxu0 %v13106
    %v14079 = vpop.f32.mrf.mxu0
    %v14080 = vadd.f32 %v14040, %v14079
    %v14081 = vpop.f32.mrf.mxu0
    %v14082 = vpop.f32.mrf.mxu0
    %v14083 = vpop.f32.mrf.mxu0
    %14084 = vdwg.mxu0
    %14085 = vmatprep.subr.bf16.mxu0 0
    %14086 = vmatpush1.bf16.msra.mxu0 %v13780
    %14087 = vmatprep.subr.bf16.mxu0 0
    %14088 = vmatpush1.bf16.msra.mxu0 %v13779
    %14089 = vmatprep.subr.bf16.mxu0 0
    %14090 = vmatpush1.bf16.msra.mxu0 %v13778
    %14091 = vmatprep.subr.bf16.mxu0 0
    %14092 = vmatpush1.bf16.msra.mxu0 %v13777
    %14093 = vmatprep.subr.bf16.mxu0 0
    %14094 = vmatpush1.bf16.msra.mxu0 %v13776
    %14095 = vmatprep.subr.bf16.mxu0 0
    %14096 = vmatpush1.bf16.msra.mxu0 %v13775
    %14097 = vmatprep.subr.bf16.mxu0 0
    %14098 = vmatpush1.bf16.msra.mxu0 %v13774
    %14099 = vmatprep.subr.bf16.mxu0 0
    %14100 = vmatpush1.bf16.msra.mxu0 %v13773
    %14101 = vmatprep.subr.bf16.mxu0 0
    %14102 = vmatpush2.bf16.msra.mxu0 %v13788
    %14103 = vmatprep.subr.bf16.mxu0 0
    %14104 = vmatpush2.bf16.msra.mxu0 %v13787
    %14105 = vmatprep.subr.bf16.mxu0 0
    %14106 = vmatpush2.bf16.msra.mxu0 %v13786
    %14107 = vmatprep.subr.bf16.mxu0 0
    %14108 = vmatpush2.bf16.msra.mxu0 %v13785
    %14109 = vmatprep.subr.bf16.mxu0 0
    %14110 = vmatpush2.bf16.msra.mxu0 %v13784
    %14111 = vmatprep.subr.bf16.mxu0 0
    %14112 = vmatpush2.bf16.msra.mxu0 %v13783
    %14113 = vmatprep.subr.bf16.mxu0 0
    %14114 = vmatpush2.bf16.msra.mxu0 %v13782
    %14115 = vmatprep.subr.bf16.mxu0 0
    %14116 = vmatpush2.bf16.msra.mxu0 %v13781
    %14117 = vmatprep.mubr.bf16.mxu0 %v13109
    %14118 = vmatmul.mubr.bf16.gmra.mxu0 %v13108
    %v14119 = vpop.f32.mrf.mxu0
    %v14120 = vadd.f32 %v14080, %v14119
    %v14121 = vpop.f32.mrf.mxu0
    %v14122 = vpop.f32.mrf.mxu0
    %v14123 = vpop.f32.mrf.mxu0
    %14124 = vdwg.mxu0
    %v14125 = vld [vmem:[%s17] sm:$0xff]
    %v14126 = vld [vmem:[%s17 + $0x8] sm:$0xff]
    %v14127 = vld [vmem:[%s17 + $0x10] sm:$0xff]
    %v14128 = vld [vmem:[%s18] sm:$0x1]
    %v14130 = vlaneseq
    %v14131 = vshrl.u32 %v14130, 7
    %v14132 = vsub.s32 0, %v14131
    %v14133 = vrot.slane %v14128, %v14132
    %v14136 = vsel %vm1546, %v14120, 0
    %14138 = vmatprep.subr.mxu0 0.0
    %14139 = vmatpush1.msra.mxu0 0.0
    %14140 = vmatprep.subr.mxu0 0.0
    %14141 = vmatpush1.msra.mxu0 0.0
    %14142 = vmatprep.subr.mxu0 0.0
    %14143 = vmatpush1.msra.mxu0 0.0
    %14144 = vmatprep.subr.mxu0 0.0
    %14145 = vmatpush1.msra.mxu0 0.0
    %14146 = vmatprep.subr.mxu0 0.0
    %14147 = vmatpush1.msra.mxu0 0.0
    %14148 = vmatprep.subr.mxu0 0.0
    %14149 = vmatpush1.msra.mxu0 0.0
    %14150 = vmatprep.subr.mxu0 0.0
    %14151 = vmatpush1.msra.mxu0 0.0
    %14152 = vmatprep.subr.mxu0 0.0
    %14153 = vmatpush1.msra.mxu0 0.0
    %14154 = vmatprep.subr.mxu0 0.0
    %14155 = vmatpush1.msra.mxu0 0.0
    %14156 = vmatprep.subr.mxu0 0.0
    %14157 = vmatpush1.msra.mxu0 0.0
    %14158 = vmatprep.subr.mxu0 0.0
    %14159 = vmatpush1.msra.mxu0 0.0
    %14160 = vmatprep.subr.mxu0 0.0
    %14161 = vmatpush1.msra.mxu0 0.0
    %14162 = vmatprep.subr.mxu0 0.0
    %14163 = vmatpush1.msra.mxu0 0.0
    %14164 = vmatprep.subr.mxu0 0.0
    %14165 = vmatpush1.msra.mxu0 %v14127
    %14166 = vmatprep.subr.mxu0 0.0
    %14167 = vmatpush1.msra.mxu0 %v14126
    %14168 = vmatprep.subr.mxu0 0.0
    %14169 = vmatpush1.msra.mxu0 %v14125
    %14170 = vmatprep.subr.mxu0 0.0
    %14171 = vmatpush2.msra.mxu0 0.0
    %14172 = vmatprep.subr.mxu0 0.0
    %14173 = vmatpush2.msra.mxu0 0.0
    %14174 = vmatprep.subr.mxu0 0.0
    %14175 = vmatpush2.msra.mxu0 0.0
    %14176 = vmatprep.subr.mxu0 0.0
    %14177 = vmatpush2.msra.mxu0 0.0
    %14178 = vmatprep.subr.mxu0 0.0
    %14179 = vmatpush2.msra.mxu0 0.0
    %14180 = vmatprep.subr.mxu0 0.0
    %14181 = vmatpush2.msra.mxu0 0.0
    %14182 = vmatprep.subr.mxu0 0.0
    %14183 = vmatpush2.msra.mxu0 0.0
    %14184 = vmatprep.subr.mxu0 0.0
    %14185 = vmatpush2.msra.mxu0 0.0
    %14186 = vmatprep.subr.mxu0 0.0
    %14187 = vmatpush2.msra.mxu0 0.0
    %14188 = vmatprep.subr.mxu0 0.0
    %14189 = vmatpush2.msra.mxu0 0.0
    %14190 = vmatprep.subr.mxu0 0.0
    %14191 = vmatpush2.msra.mxu0 0.0
    %14192 = vmatprep.subr.mxu0 0.0
    %14193 = vmatpush2.msra.mxu0 0.0
    %14194 = vmatprep.subr.mxu0 0.0
    %14195 = vmatpush2.msra.mxu0 0.0
    %14196 = vmatprep.subr.mxu0 0.0
    %14197 = vmatpush2.msra.mxu0 0.0
    %14198 = vmatprep.subr.mxu0 0.0
    %14199 = vmatpush2.msra.mxu0 0.0
    %14200 = vmatprep.subr.mxu0 0.0
    %14201 = vmatpush2.msra.mxu0 0.0
    %14202 = vmatprep.mubr.f32.mxu0 0.0
    %14203 = vmatmul.mubr.f32.gmra.mxu0 %v14136
    %v14204 = vpop.f32.mrf.mxu0
    %v14205 = vadd.f32 %v14133, %v14204
    %v14206 = vpop.f32.mrf.mxu0
    %14207 = vdwg.mxu0
    %v14208 = vmax.f32 %v14205, 0.0
    %v14209 = vld [vmem:[%s19] sm:$0x3]
    %v14210 = vld [vmem:[%s20] sm:$0x1]
    %v14212 = vlaneseq
    %v14213 = vshrl.u32 %v14212, 7
    %v14214 = vsub.s32 0, %v14213
    %v14215 = vrot.slane %v14210, %v14214
    %vm14217 = vcmask 15360
    %v14219 = vsel %vm14217, %v14208, 0
    %v14222 = vsel %vm1672, %v14209, 0
    %14224 = vmatprep.subr.mxu0 0.0
    %14225 = vmatpush1.msra.mxu0 0.0
    %14226 = vmatprep.subr.mxu0 0.0
    %14227 = vmatpush1.msra.mxu0 0.0
    %14228 = vmatprep.subr.mxu0 0.0
    %14229 = vmatpush1.msra.mxu0 0.0
    %14230 = vmatprep.subr.mxu0 0.0
    %14231 = vmatpush1.msra.mxu0 0.0
    %14232 = vmatprep.subr.mxu0 0.0
    %14233 = vmatpush1.msra.mxu0 0.0
    %14234 = vmatprep.subr.mxu0 0.0
    %14235 = vmatpush1.msra.mxu0 0.0
    %14236 = vmatprep.subr.mxu0 0.0
    %14237 = vmatpush1.msra.mxu0 0.0
    %14238 = vmatprep.subr.mxu0 0.0
    %14239 = vmatpush1.msra.mxu0 0.0
    %14240 = vmatprep.subr.mxu0 0.0
    %14241 = vmatpush1.msra.mxu0 0.0
    %14242 = vmatprep.subr.mxu0 0.0
    %14243 = vmatpush1.msra.mxu0 0.0
    %14244 = vmatprep.subr.mxu0 0.0
    %14245 = vmatpush1.msra.mxu0 0.0
    %14246 = vmatprep.subr.mxu0 0.0
    %14247 = vmatpush1.msra.mxu0 0.0
    %14248 = vmatprep.subr.mxu0 0.0
    %14249 = vmatpush1.msra.mxu0 0.0
    %14250 = vmatprep.subr.mxu0 0.0
    %14251 = vmatpush1.msra.mxu0 0.0
    %14252 = vmatprep.subr.mxu0 0.0
    %14253 = vmatpush1.msra.mxu0 0.0
    %14254 = vmatprep.subr.mxu0 0.0
    %14255 = vmatpush1.msra.mxu0 %v14222
    %14256 = vmatprep.subr.mxu0 0.0
    %14257 = vmatpush2.msra.mxu0 0.0
    %14258 = vmatprep.subr.mxu0 0.0
    %14259 = vmatpush2.msra.mxu0 0.0
    %14260 = vmatprep.subr.mxu0 0.0
    %14261 = vmatpush2.msra.mxu0 0.0
    %14262 = vmatprep.subr.mxu0 0.0
    %14263 = vmatpush2.msra.mxu0 0.0
    %14264 = vmatprep.subr.mxu0 0.0
    %14265 = vmatpush2.msra.mxu0 0.0
    %14266 = vmatprep.subr.mxu0 0.0
    %14267 = vmatpush2.msra.mxu0 0.0
    %14268 = vmatprep.subr.mxu0 0.0
    %14269 = vmatpush2.msra.mxu0 0.0
    %14270 = vmatprep.subr.mxu0 0.0
    %14271 = vmatpush2.msra.mxu0 0.0
    %14272 = vmatprep.subr.mxu0 0.0
    %14273 = vmatpush2.msra.mxu0 0.0
    %14274 = vmatprep.subr.mxu0 0.0
    %14275 = vmatpush2.msra.mxu0 0.0
    %14276 = vmatprep.subr.mxu0 0.0
    %14277 = vmatpush2.msra.mxu0 0.0
    %14278 = vmatprep.subr.mxu0 0.0
    %14279 = vmatpush2.msra.mxu0 0.0
    %14280 = vmatprep.subr.mxu0 0.0
    %14281 = vmatpush2.msra.mxu0 0.0
    %14282 = vmatprep.subr.mxu0 0.0
    %14283 = vmatpush2.msra.mxu0 0.0
    %14284 = vmatprep.subr.mxu0 0.0
    %14285 = vmatpush2.msra.mxu0 0.0
    %14286 = vmatprep.subr.mxu0 0.0
    %14287 = vmatpush2.msra.mxu0 0.0
    %14288 = vmatprep.mubr.f32.mxu0 0.0
    %14289 = vmatmul.mubr.f32.gmra.mxu0 %v14219
    %v14290 = vpop.f32.mrf.mxu0
    %v14291 = vadd.f32 %v14215, %v14290
    %v14292 = vpop.f32.mrf.mxu0
    %14293 = vdwg.mxu0
    %v14294 = vxor.u32 %v14291, 2147483648
    %v14295 = vmul.f32 %v14294, 1.442695
    %v14296 = vpow.pop %v14295
    %v14297 = vadd.f32 %v14296, 1.0
    %v14298 = vrcp.pop %v14297
    %v14299 = vmul.f32 1.0, %v14298
    %v14300 = vmul.f32 %v14299, %v8630
    %v14301 = vadd.f32 %v14300, %v8630
    %v14302 = vmul.f32 %v14301, %v14301
    %vm14303 = vcmask 189440
    %v14304 = vsel %vm14303, %v14302, 0.0
    %14305 = vadd.xlane.f32.xlu0 %v14304
    %v14306 = vpop.xlane.xlu0 %14305
    %v14307 = vmax.f32 %v14306, 1e-24
    %v14308 = vrsqrt.pop %v14307
    %v14309 = vmul.f32 %v14301, %v14308
    %14310 = vst.msk [vmem:[#allocation5] sm:$0x3] %vm14303, %v14309
    // Predicated region
    $region90: #{tpu_custom_call.1} parent=1 // pred_check
      _
    $region91: #{tpu_custom_call.1} parent=1 // pred_check_branch
      %14312 = sbr.rel (0) target = $region93
    $region92: #{tpu_custom_call.1} parent=1 // pred_region
      %s14314 = ssub.s32 32, 32
      %14315 = vsyncadd [#allocation4], %s14314
      %s14317 = sshll.u32 [#allocation5], 4
      %s14318 = int_to_ptr.vmem [resolvable:$true] %s14317
      %14320 = dma.vmem_to_hbm [thread:$0]  %s14318, 32, %s21, [#allocation4]
    $region93: #{tpu_custom_call.1} parent=1 // pred_fallthru
      _
    // Predicated region
    $region94: #{tpu_custom_call.1} parent=1 // pred_check
      _
    $region95: #{tpu_custom_call.1} parent=1 // pred_check_branch
      %14322 = sbr.rel (0) target = $region97
    $region96: #{tpu_custom_call.1} parent=1 // pred_region
      %14323 = dma.done [#allocation4], 32
    $region97: #{tpu_custom_call.1} parent=1 // pred_fallthru
      _
    %14324 = vsyncpa [#allocation3], 1
    %14325 = vsyncpa [#allocation4], 1

</llo_original>
